<compile_context>
chip_gen: v5e
topology: v5e:2x2
jax: 0.10.0
libtpu: 0.0.40
codegen_flags: <defaults>
</compile_context>

<pallas_src>
import jax
import jax.numpy as jnp
from jax.experimental import pallas as pl
from jax.experimental.pallas import tpu as pltpu


def _mlp_softmax_kernel(x_ref, w1t_ref, w2t_ref, w3t_ref, b_ref, out_ref):
    # x_ref:   (TB, S)   batch-major input tile (no host-side transpose needed)
    # w*t_ref: (in, out) pre-transposed Linear weights, VMEM-resident
    # b_ref:   (3, W)    packed biases: row0 = b1[:H], row1 = b2[:H], row2 = b3[:A]
    # out_ref: (TB, A)   softmax probabilities for this batch tile
    H = w1t_ref.shape[1]
    A = w3t_ref.shape[1]

    x = x_ref[...]                                             # (TB, S)
    b1 = b_ref[0:1, 0:H]                                       # (1, H)
    b2 = b_ref[1:2, 0:H]                                       # (1, H)
    b3 = b_ref[2:3, 0:A]                                       # (1, A)

    # Layer 1: Linear + ReLU   h1 = x @ W1^T + b1
    h1 = jnp.dot(x, w1t_ref[...], preferred_element_type=jnp.float32) + b1
    h1 = jnp.maximum(h1, 0.0)                                  # (TB, H)

    # Layer 2: Linear + ReLU
    h2 = jnp.dot(h1, w2t_ref[...], preferred_element_type=jnp.float32) + b2
    h2 = jnp.maximum(h2, 0.0)                                  # (TB, H)

    # Layer 3: Linear (logits)
    logits = jnp.dot(h2, w3t_ref[...], preferred_element_type=jnp.float32) + b3
    # logits: (TB, A)

    # Numerically-stable softmax over the action axis (dim=-1 of the original
    # module).  A is tiny (2), so the cross-lane max/sum are trivial; the
    # divide is exact so each output row sums to 1 to f32 rounding.
    m = jnp.max(logits, axis=-1, keepdims=True)                # (TB, 1)
    e = jnp.exp(logits - m)                                    # (TB, A)
    denom = jnp.sum(e, axis=-1, keepdims=True)                 # (TB, 1)
    out_ref[...] = (e / denom).astype(out_ref.dtype)


def _default_grid_steps():
    """2 grid steps on v7x (2 TensorCores share the 'parallel' batch axis),
    1 step elsewhere (minimizes ~0.35us/step grid overhead on 1-TC chips)."""
    try:
        kind = jax.devices()[0].device_kind.lower()
    except Exception:
        return 1
    return 2 if "v7" in kind else 1


def net_forward(state, params, *, tb=None):
    """state: (B, state_dim) f32.  params: torch-layout weights (out,in), biases (out,1).

    Returns probabilities of shape (B, action_dim), matching Net.forward.
    """
    B, S = state.shape
    H = params["w1"].shape[0]
    A = params["w3"].shape[0]
    W = max(H, A)

    # Batch tile: lane/sublane friendly multiple of 128 rows.  Default covers
    # the whole padded batch in `n_steps` grid iterations (1 on v5e/v6e, 2 on
    # v7x); capped so per-step VMEM (x tile + intermediates + out tile) stays
    # a few MiB at most.
    if tb is None:
        n_steps = _default_grid_steps()
        per_step = pl.cdiv(max(B, 128), n_steps)
        tb = min(pl.cdiv(per_step, 128) * 128, 32768)
    tb = max(128, (tb // 128) * 128)
    b_pad = pl.cdiv(B, tb) * tb

    # Pad the batch rows only when needed (zeros -> padded logits = b3, finite
    # softmax, sliced off below).
    x = state if b_pad == B else jnp.pad(state, ((0, b_pad - B), (0, 0)))

    # Pre-transpose weights to (in, out): tiny (<=HxH) one-time ops that keep
    # every in-kernel matmul a plain non-transposed MXU contraction.
    w1t = params["w1"].T                                       # (S, H)
    w2t = params["w2"].T                                       # (H, H)
    w3t = params["w3"].T                                       # (H, A)

    # Pack the three biases into one small (3, W) sublane-major buffer
    # (single DMA descriptor, pads to just one (8,128) VMEM tile).
    b_pack = jnp.zeros((3, W), jnp.float32)
    b_pack = b_pack.at[0, :H].set(params["b1"].reshape(-1))
    b_pack = b_pack.at[1, :H].set(params["b2"].reshape(-1))
    b_pack = b_pack.at[2, :A].set(params["b3"].reshape(-1))

    cost = pl.CostEstimate(
        flops=2 * b_pad * (S * H + H * H + H * A),
        transcendentals=b_pad * A,
        bytes_accessed=4 * (b_pad * S + b_pad * A + S * H + H * H + H * A + 3 * W),
    )

    grid = (b_pad // tb,)
    out = pl.pallas_call(
        _mlp_softmax_kernel,
        out_shape=jax.ShapeDtypeStruct((b_pad, A), jnp.float32),
        grid_spec=pltpu.PrefetchScalarGridSpec(
            num_scalar_prefetch=0,
            grid=grid,
            in_specs=[
                pl.BlockSpec((tb, S), lambda i: (i, 0)),      # x tile (streamed)
                pl.BlockSpec((S, H), lambda i: (0, 0)),       # w1^T (resident)
                pl.BlockSpec((H, H), lambda i: (0, 0)),       # w2^T (resident)
                pl.BlockSpec((H, A), lambda i: (0, 0)),       # w3^T (resident)
                pl.BlockSpec((3, W), lambda i: (0, 0)),       # packed biases
            ],
            out_specs=pl.BlockSpec((tb, A), lambda i: (i, 0)),
        ),
        compiler_params=pltpu.CompilerParams(
            dimension_semantics=("parallel",),                 # batch axis; megacore on v7x
        ),
        cost_estimate=cost,
    )(x, w1t, w2t, w3t, b_pack)

    return out if b_pad == B else out[:B]


def init_params(key, state_dim, hidden_dim, action_dim):
    """Deterministic init mimicking nn.Linear's U(-1/sqrt(fan_in), 1/sqrt(fan_in)).

    Weights are stored (out_features, in_features) — same as torch.nn.Linear.weight —
    biases as (out_features, 1).
    """
    ks = jax.random.split(key, 6)

    def linear(kw, kb, fan_in, fan_out):
        bound = 1.0 / jnp.sqrt(jnp.float32(fan_in))
        w = jax.random.uniform(kw, (fan_out, fan_in), jnp.float32, -bound, bound)
        b = jax.random.uniform(kb, (fan_out, 1), jnp.float32, -bound, bound)
        return w, b

    w1, b1 = linear(ks[0], ks[1], state_dim, hidden_dim)
    w2, b2 = linear(ks[2], ks[3], hidden_dim, hidden_dim)
    w3, b3 = linear(ks[4], ks[5], hidden_dim, action_dim)
    return {"w1": w1, "b1": b1, "w2": w2, "b2": b2, "w3": w3, "b3": b3}


if __name__ == "__main__":
    state_dim, hidden_dim, action_dim = 4, 24, 2   # CartPole-style dims
    batch = 2048                                   # rollout-sized batch

    key = jax.random.PRNGKey(0)
    k_params, k_x = jax.random.split(key)
    params = init_params(k_params, state_dim, hidden_dim, action_dim)
    state = jax.random.normal(k_x, (batch, state_dim), jnp.float32)

    probs = net_forward(state, params)
    jax.block_until_ready(probs)

    # Pure-JAX reference (identical math to the PyTorch module).
    def ref(x, p):
        h = jnp.maximum(x @ p["w1"].T + p["b1"].T, 0.0)
        h = jnp.maximum(h @ p["w2"].T + p["b2"].T, 0.0)
        return jax.nn.softmax(h @ p["w3"].T + p["b3"].T, axis=-1)

    expected = ref(state, params)
    assert probs.shape == (batch, action_dim)
    assert jnp.allclose(probs, expected, atol=2e-3), "mismatch vs reference"
    # Exact divide in the kernel -> rows sum to 1 to f32 rounding.
    assert jnp.allclose(jnp.sum(probs, axis=-1), 1.0, atol=1e-5)

    # Small, non-tile-aligned batch (pad + slice path).
    small = jax.random.normal(jax.random.PRNGKey(1), (8, state_dim), jnp.float32)
    probs_small = net_forward(small, params)
    jax.block_until_ready(probs_small)
    assert probs_small.shape == (8, action_dim)
    assert jnp.allclose(probs_small, ref(small, params), atol=2e-3)
    assert jnp.allclose(jnp.sum(probs_small, axis=-1), 1.0, atol=1e-5)

    # Explicit two-step grid (exercises the v7x-style parallel batch split).
    probs_2step = net_forward(state, params, tb=1024)
    jax.block_until_ready(probs_2step)
    assert jnp.allclose(probs_2step, expected, atol=2e-3)

    print("KERNEL_OK")
</pallas_src>

<mosaic_0001>
module attributes {stable_mosaic.version = 11 : i64} {
  func.func @_mlp_softmax_kernel(%arg0: i32, %arg1: memref<2048x4xf32, #tpu.memory_space<vmem>>, %arg2: memref<4x24xf32, #tpu.memory_space<vmem>>, %arg3: memref<24x24xf32, #tpu.memory_space<vmem>>, %arg4: memref<24x2xf32, #tpu.memory_space<vmem>>, %arg5: memref<3x24xf32, #tpu.memory_space<vmem>>, %arg6: memref<2048x2xf32, #tpu.memory_space<vmem>>) attributes {dimension_semantics = [#tpu.dimension_semantics<parallel>], iteration_bounds = array<i64: 1>, scalar_prefetch = 0 : i64, scratch_operands = 0 : i64, tpu.core_type = #tpu.core_type<tc>, window_params = [{transform_indices = @transform_0, window_bounds = array<i64: 2048, 4>}, {pipeline_mode = #tpu.pipeline_mode<synchronous>, transform_indices = @transform_1, window_bounds = array<i64: 4, 24>}, {pipeline_mode = #tpu.pipeline_mode<synchronous>, transform_indices = @transform_2, window_bounds = array<i64: 24, 24>}, {pipeline_mode = #tpu.pipeline_mode<synchronous>, transform_indices = @transform_3, window_bounds = array<i64: 24, 2>}, {pipeline_mode = #tpu.pipeline_mode<synchronous>, transform_indices = @transform_4, window_bounds = array<i64: 3, 24>}, {transform_indices = @transform_5, window_bounds = array<i64: 2048, 2>}]} {
    %c0 = arith.constant 0 : index
    %c0_0 = arith.constant 0 : index
    %0 = vector.load %arg1[%c0, %c0_0] : memref<2048x4xf32, #tpu.memory_space<vmem>>, vector<2048x4xf32>
    %c0_1 = arith.constant 0 : index
    %c0_2 = arith.constant 0 : index
    %1 = vector.load %arg5[%c0_1, %c0_2] : memref<3x24xf32, #tpu.memory_space<vmem>>, vector<1x24xf32>
    %c1 = arith.constant 1 : index
    %c0_3 = arith.constant 0 : index
    %2 = vector.load %arg5[%c1, %c0_3] : memref<3x24xf32, #tpu.memory_space<vmem>>, vector<1x24xf32>
    %c2 = arith.constant 2 : index
    %c0_4 = arith.constant 0 : index
    %3 = vector.load %arg5[%c2, %c0_4] : memref<3x24xf32, #tpu.memory_space<vmem>>, vector<1x2xf32>
    %c0_5 = arith.constant 0 : index
    %c0_6 = arith.constant 0 : index
    %4 = vector.load %arg2[%c0_5, %c0_6] : memref<4x24xf32, #tpu.memory_space<vmem>>, vector<4x24xf32>
    %cst = arith.constant dense<0.000000e+00> : vector<2048x24xf32>
    %5 = tpu.matmul %0, %4, %cst {dimension_numbers = #tpu.dot_dimension_numbers<[1], [0], [0], [1], [0, 0, 1, 1], [], []>} : vector<2048x4xf32>, vector<4x24xf32>, vector<2048x24xf32> -> vector<2048x24xf32>
    %6 = vector.broadcast %1 : vector<1x24xf32> to vector<2048x24xf32>
    %7 = arith.addf %5, %6 : vector<2048x24xf32>
    %cst_7 = arith.constant 0.000000e+00 : f32
    %8 = vector.broadcast %cst_7 : f32 to vector<2048x24xf32>
    %9 = arith.maximumf %7, %8 : vector<2048x24xf32>
    %c0_8 = arith.constant 0 : index
    %c0_9 = arith.constant 0 : index
    %10 = vector.load %arg3[%c0_8, %c0_9] : memref<24x24xf32, #tpu.memory_space<vmem>>, vector<24x24xf32>
    %cst_10 = arith.constant dense<0.000000e+00> : vector<2048x24xf32>
    %11 = tpu.matmul %9, %10, %cst_10 {dimension_numbers = #tpu.dot_dimension_numbers<[1], [0], [0], [1], [0, 0, 1, 1], [], []>} : vector<2048x24xf32>, vector<24x24xf32>, vector<2048x24xf32> -> vector<2048x24xf32>
    %12 = vector.broadcast %2 : vector<1x24xf32> to vector<2048x24xf32>
    %13 = arith.addf %11, %12 : vector<2048x24xf32>
    %cst_11 = arith.constant 0.000000e+00 : f32
    %14 = vector.broadcast %cst_11 : f32 to vector<2048x24xf32>
    %15 = arith.maximumf %13, %14 : vector<2048x24xf32>
    %c0_12 = arith.constant 0 : index
    %c0_13 = arith.constant 0 : index
    %16 = vector.load %arg4[%c0_12, %c0_13] : memref<24x2xf32, #tpu.memory_space<vmem>>, vector<24x2xf32>
    %cst_14 = arith.constant dense<0.000000e+00> : vector<2048x2xf32>
    %17 = tpu.matmul %15, %16, %cst_14 {dimension_numbers = #tpu.dot_dimension_numbers<[1], [0], [0], [1], [0, 0, 1, 1], [], []>} : vector<2048x24xf32>, vector<24x2xf32>, vector<2048x2xf32> -> vector<2048x2xf32>
    %18 = vector.broadcast %3 : vector<1x2xf32> to vector<2048x2xf32>
    %19 = arith.addf %17, %18 : vector<2048x2xf32>
    %cst_15 = arith.constant dense<0xFF800000> : vector<2048xf32>
    %20 = vector.multi_reduction <maximumf>, %19, %cst_15 [1] : vector<2048x2xf32> to vector<2048xf32>
    %21 = vector.shape_cast %20 : vector<2048xf32> to vector<2048x1xf32>
    %22 = vector.broadcast %21 : vector<2048x1xf32> to vector<2048x2xf32>
    %23 = arith.subf %19, %22 : vector<2048x2xf32>
    %24 = math.exp %23 : vector<2048x2xf32>
    %cst_16 = arith.constant dense<0.000000e+00> : vector<2048xf32>
    %25 = vector.multi_reduction <add>, %24, %cst_16 [1] : vector<2048x2xf32> to vector<2048xf32>
    %26 = vector.shape_cast %25 : vector<2048xf32> to vector<2048x1xf32>
    %27 = vector.broadcast %26 : vector<2048x1xf32> to vector<2048x2xf32>
    %28 = arith.divf %24, %27 : vector<2048x2xf32>
    %c0_17 = arith.constant 0 : index
    %c0_18 = arith.constant 0 : index
    %29 = vector.load %arg6[%c0_17, %c0_18] : memref<2048x2xf32, #tpu.memory_space<vmem>>, vector<2048x2xf32>
    tpu.vector_store %arg6[%c0_17, %c0_18], %28 {strides = array<i32>} : memref<2048x2xf32, #tpu.memory_space<vmem>>, vector<2048x2xf32>,
    return
  }
  func.func @transform_0(%arg0: i32) -> (i32, i32) {
    %c0_i32 = arith.constant 0 : i32
    %c0_i32_0 = arith.constant 0 : i32
    return %arg0, %c0_i32 : i32, i32
  }
  func.func @transform_1(%arg0: i32) -> (i32, i32) {
    %c0_i32 = arith.constant 0 : i32
    %c0_i32_0 = arith.constant 0 : i32
    %c0_i32_1 = arith.constant 0 : i32
    return %c0_i32, %c0_i32_0 : i32, i32
  }
  func.func @transform_2(%arg0: i32) -> (i32, i32) {
    %c0_i32 = arith.constant 0 : i32
    %c0_i32_0 = arith.constant 0 : i32
    %c0_i32_1 = arith.constant 0 : i32
    return %c0_i32, %c0_i32_0 : i32, i32
  }
  func.func @transform_3(%arg0: i32) -> (i32, i32) {
    %c0_i32 = arith.constant 0 : i32
    %c0_i32_0 = arith.constant 0 : i32
    %c0_i32_1 = arith.constant 0 : i32
    return %c0_i32, %c0_i32_0 : i32, i32
  }
  func.func @transform_4(%arg0: i32) -> (i32, i32) {
    %c0_i32 = arith.constant 0 : i32
    %c0_i32_0 = arith.constant 0 : i32
    %c0_i32_1 = arith.constant 0 : i32
    return %c0_i32, %c0_i32_0 : i32, i32
  }
  func.func @transform_5(%arg0: i32) -> (i32, i32) {
    %c0_i32 = arith.constant 0 : i32
    %c0_i32_0 = arith.constant 0 : i32
    return %arg0, %c0_i32 : i32, i32
  }
}

</mosaic_0001>

<llo_original>
// kernel: tpu_custom_call.1
$region0: #{tpu_custom_call.1}
  #allocation0 [shape = 'u32[]', space=smem, size = 0x4, offset = 0x4, fixed_abs, tag = 'smem constant byte address 0x4 - core index']
  #allocation1 [shape = 'u32[72,128]{1,0:T(1,128)}', space=vmem, size = 0x9000, scoped, tag = 'internal scratch']
  %s0 = inlined_call_operand.vmem [shape: f32[2048,4], index: 0, kind: input, shape index: {}]
  %s1 = inlined_call_operand.vmem [shape: f32[4,24], index: 1, kind: input, shape index: {}]
  %s2 = inlined_call_operand.vmem [shape: f32[24,24], index: 2, kind: input, shape index: {}]
  %s3 = inlined_call_operand.vmem [shape: f32[24,2], index: 3, kind: input, shape index: {}]
  %s4 = inlined_call_operand.vmem [shape: f32[3,24], index: 4, kind: input, shape index: {}]
  %s5 = inlined_call_operand.vmem [shape: f32[2048,2], index: 5, kind: output, shape index: {}]
  %s6 = sld [smem:[#allocation0]]
  $region30: #{tpu_custom_call.1} parent=0
    _
  %s8 = ssub.s32 1, %s6
  %s9 = scalar_select 0, %s8, %s6
  // Predicated region
  $region2: #{tpu_custom_call.1} parent=0 // pred_check
    _
  $region3: #{tpu_custom_call.1} parent=0 // pred_check_branch
    %11 = sbr.rel (0) target = $region5
  $region4: #{tpu_custom_call.1} parent=0 // pred_region
    _
  $region5: #{tpu_custom_call.1} parent=0 // pred_fallthru
    _
  // Predicated region
  $region6: #{tpu_custom_call.1} parent=0 // pred_check
    _
  $region7: #{tpu_custom_call.1} parent=0 // pred_check_branch
    %13 = sbr.rel (0) target = $region9
  $region8: #{tpu_custom_call.1} parent=0 // pred_region
    _
  $region9: #{tpu_custom_call.1} parent=0 // pred_fallthru
    _
  // Predicated region
  $region10: #{tpu_custom_call.1} parent=0 // pred_check
    _
  $region11: #{tpu_custom_call.1} parent=0 // pred_check_branch
    %15 = sbr.rel (0) target = $region13
  $region12: #{tpu_custom_call.1} parent=0 // pred_region
    _
  $region13: #{tpu_custom_call.1} parent=0 // pred_fallthru
    _
  // Predicated region
  $region14: #{tpu_custom_call.1} parent=0 // pred_check
    _
  $region15: #{tpu_custom_call.1} parent=0 // pred_check_branch
    %17 = sbr.rel (0) target = $region17
  $region16: #{tpu_custom_call.1} parent=0 // pred_region
    _
  $region17: #{tpu_custom_call.1} parent=0 // pred_fallthru
    _
  // Predicated region
  $region18: #{tpu_custom_call.1} parent=0 // pred_check
    _
  $region19: #{tpu_custom_call.1} parent=0 // pred_check_branch
    %19 = sbr.rel (0) target = $region21
  $region20: #{tpu_custom_call.1} parent=0 // pred_region
    _
  $region21: #{tpu_custom_call.1} parent=0 // pred_fallthru
    _
  %v20 = vld [vmem:[%s0] sm:$0xff]
  %v21 = vld [vmem:[%s0 + $0x8] sm:$0xff]
  %v22 = vld [vmem:[%s0 + $0x10] sm:$0xff]
  %v23 = vld [vmem:[%s0 + $0x18] sm:$0xff]
  %v24 = vld [vmem:[%s0 + $0x20] sm:$0xff]
  %v25 = vld [vmem:[%s0 + $0x28] sm:$0xff]
  %v26 = vld [vmem:[%s0 + $0x30] sm:$0xff]
  %v27 = vld [vmem:[%s0 + $0x38] sm:$0xff]
  %v28 = vld [vmem:[%s0 + $0x40] sm:$0xff]
  %v29 = vld [vmem:[%s0 + $0x48] sm:$0xff]
  %v30 = vld [vmem:[%s0 + $0x50] sm:$0xff]
  %v31 = vld [vmem:[%s0 + $0x58] sm:$0xff]
  %v32 = vld [vmem:[%s0 + $0x60] sm:$0xff]
  %v33 = vld [vmem:[%s0 + $0x68] sm:$0xff]
  %v34 = vld [vmem:[%s0 + $0x70] sm:$0xff]
  %v35 = vld [vmem:[%s0 + $0x78] sm:$0xff]
  %v36 = vld [vmem:[%s0 + $0x80] sm:$0xff]
  %v37 = vld [vmem:[%s0 + $0x88] sm:$0xff]
  %v38 = vld [vmem:[%s0 + $0x90] sm:$0xff]
  %v39 = vld [vmem:[%s0 + $0x98] sm:$0xff]
  %v40 = vld [vmem:[%s0 + $0xa0] sm:$0xff]
  %v41 = vld [vmem:[%s0 + $0xa8] sm:$0xff]
  %v42 = vld [vmem:[%s0 + $0xb0] sm:$0xff]
  %v43 = vld [vmem:[%s0 + $0xb8] sm:$0xff]
  %v44 = vld [vmem:[%s0 + $0xc0] sm:$0xff]
  %v45 = vld [vmem:[%s0 + $0xc8] sm:$0xff]
  %v46 = vld [vmem:[%s0 + $0xd0] sm:$0xff]
  %v47 = vld [vmem:[%s0 + $0xd8] sm:$0xff]
  %v48 = vld [vmem:[%s0 + $0xe0] sm:$0xff]
  %v49 = vld [vmem:[%s0 + $0xe8] sm:$0xff]
  %v50 = vld [vmem:[%s0 + $0xf0] sm:$0xff]
  %v51 = vld [vmem:[%s0 + $0xf8] sm:$0xff]
  %v52 = vld [vmem:[%s0 + $0x100] sm:$0xff]
  %v53 = vld [vmem:[%s0 + $0x108] sm:$0xff]
  %v54 = vld [vmem:[%s0 + $0x110] sm:$0xff]
  %v55 = vld [vmem:[%s0 + $0x118] sm:$0xff]
  %v56 = vld [vmem:[%s0 + $0x120] sm:$0xff]
  %v57 = vld [vmem:[%s0 + $0x128] sm:$0xff]
  %v58 = vld [vmem:[%s0 + $0x130] sm:$0xff]
  %v59 = vld [vmem:[%s0 + $0x138] sm:$0xff]
  %v60 = vld [vmem:[%s0 + $0x140] sm:$0xff]
  %v61 = vld [vmem:[%s0 + $0x148] sm:$0xff]
  %v62 = vld [vmem:[%s0 + $0x150] sm:$0xff]
  %v63 = vld [vmem:[%s0 + $0x158] sm:$0xff]
  %v64 = vld [vmem:[%s0 + $0x160] sm:$0xff]
  %v65 = vld [vmem:[%s0 + $0x168] sm:$0xff]
  %v66 = vld [vmem:[%s0 + $0x170] sm:$0xff]
  %v67 = vld [vmem:[%s0 + $0x178] sm:$0xff]
  %v68 = vld [vmem:[%s0 + $0x180] sm:$0xff]
  %v69 = vld [vmem:[%s0 + $0x188] sm:$0xff]
  %v70 = vld [vmem:[%s0 + $0x190] sm:$0xff]
  %v71 = vld [vmem:[%s0 + $0x198] sm:$0xff]
  %v72 = vld [vmem:[%s0 + $0x1a0] sm:$0xff]
  %v73 = vld [vmem:[%s0 + $0x1a8] sm:$0xff]
  %v74 = vld [vmem:[%s0 + $0x1b0] sm:$0xff]
  %v75 = vld [vmem:[%s0 + $0x1b8] sm:$0xff]
  %v76 = vld [vmem:[%s0 + $0x1c0] sm:$0xff]
  %v77 = vld [vmem:[%s0 + $0x1c8] sm:$0xff]
  %v78 = vld [vmem:[%s0 + $0x1d0] sm:$0xff]
  %v79 = vld [vmem:[%s0 + $0x1d8] sm:$0xff]
  %v80 = vld [vmem:[%s0 + $0x1e0] sm:$0xff]
  %v81 = vld [vmem:[%s0 + $0x1e8] sm:$0xff]
  %v82 = vld [vmem:[%s0 + $0x1f0] sm:$0xff]
  %v83 = vld [vmem:[%s0 + $0x1f8] sm:$0xff]
  %v84 = vld [vmem:[%s0 + $0x200] sm:$0xff]
  %v85 = vld [vmem:[%s0 + $0x208] sm:$0xff]
  %v86 = vld [vmem:[%s0 + $0x210] sm:$0xff]
  %v87 = vld [vmem:[%s0 + $0x218] sm:$0xff]
  %v88 = vld [vmem:[%s0 + $0x220] sm:$0xff]
  %v89 = vld [vmem:[%s0 + $0x228] sm:$0xff]
  %v90 = vld [vmem:[%s0 + $0x230] sm:$0xff]
  %v91 = vld [vmem:[%s0 + $0x238] sm:$0xff]
  %v92 = vld [vmem:[%s0 + $0x240] sm:$0xff]
  %v93 = vld [vmem:[%s0 + $0x248] sm:$0xff]
  %v94 = vld [vmem:[%s0 + $0x250] sm:$0xff]
  %v95 = vld [vmem:[%s0 + $0x258] sm:$0xff]
  %v96 = vld [vmem:[%s0 + $0x260] sm:$0xff]
  %v97 = vld [vmem:[%s0 + $0x268] sm:$0xff]
  %v98 = vld [vmem:[%s0 + $0x270] sm:$0xff]
  %v99 = vld [vmem:[%s0 + $0x278] sm:$0xff]
  %v100 = vld [vmem:[%s0 + $0x280] sm:$0xff]
  %v101 = vld [vmem:[%s0 + $0x288] sm:$0xff]
  %v102 = vld [vmem:[%s0 + $0x290] sm:$0xff]
  %v103 = vld [vmem:[%s0 + $0x298] sm:$0xff]
  %v104 = vld [vmem:[%s0 + $0x2a0] sm:$0xff]
  %v105 = vld [vmem:[%s0 + $0x2a8] sm:$0xff]
  %v106 = vld [vmem:[%s0 + $0x2b0] sm:$0xff]
  %v107 = vld [vmem:[%s0 + $0x2b8] sm:$0xff]
  %v108 = vld [vmem:[%s0 + $0x2c0] sm:$0xff]
  %v109 = vld [vmem:[%s0 + $0x2c8] sm:$0xff]
  %v110 = vld [vmem:[%s0 + $0x2d0] sm:$0xff]
  %v111 = vld [vmem:[%s0 + $0x2d8] sm:$0xff]
  %v112 = vld [vmem:[%s0 + $0x2e0] sm:$0xff]
  %v113 = vld [vmem:[%s0 + $0x2e8] sm:$0xff]
  %v114 = vld [vmem:[%s0 + $0x2f0] sm:$0xff]
  %v115 = vld [vmem:[%s0 + $0x2f8] sm:$0xff]
  %v116 = vld [vmem:[%s0 + $0x300] sm:$0xff]
  %v117 = vld [vmem:[%s0 + $0x308] sm:$0xff]
  %v118 = vld [vmem:[%s0 + $0x310] sm:$0xff]
  %v119 = vld [vmem:[%s0 + $0x318] sm:$0xff]
  %v120 = vld [vmem:[%s0 + $0x320] sm:$0xff]
  %v121 = vld [vmem:[%s0 + $0x328] sm:$0xff]
  %v122 = vld [vmem:[%s0 + $0x330] sm:$0xff]
  %v123 = vld [vmem:[%s0 + $0x338] sm:$0xff]
  %v124 = vld [vmem:[%s0 + $0x340] sm:$0xff]
  %v125 = vld [vmem:[%s0 + $0x348] sm:$0xff]
  %v126 = vld [vmem:[%s0 + $0x350] sm:$0xff]
  %v127 = vld [vmem:[%s0 + $0x358] sm:$0xff]
  %v128 = vld [vmem:[%s0 + $0x360] sm:$0xff]
  %v129 = vld [vmem:[%s0 + $0x368] sm:$0xff]
  %v130 = vld [vmem:[%s0 + $0x370] sm:$0xff]
  %v131 = vld [vmem:[%s0 + $0x378] sm:$0xff]
  %v132 = vld [vmem:[%s0 + $0x380] sm:$0xff]
  %v133 = vld [vmem:[%s0 + $0x388] sm:$0xff]
  %v134 = vld [vmem:[%s0 + $0x390] sm:$0xff]
  %v135 = vld [vmem:[%s0 + $0x398] sm:$0xff]
  %v136 = vld [vmem:[%s0 + $0x3a0] sm:$0xff]
  %v137 = vld [vmem:[%s0 + $0x3a8] sm:$0xff]
  %v138 = vld [vmem:[%s0 + $0x3b0] sm:$0xff]
  %v139 = vld [vmem:[%s0 + $0x3b8] sm:$0xff]
  %v140 = vld [vmem:[%s0 + $0x3c0] sm:$0xff]
  %v141 = vld [vmem:[%s0 + $0x3c8] sm:$0xff]
  %v142 = vld [vmem:[%s0 + $0x3d0] sm:$0xff]
  %v143 = vld [vmem:[%s0 + $0x3d8] sm:$0xff]
  %v144 = vld [vmem:[%s0 + $0x3e0] sm:$0xff]
  %v145 = vld [vmem:[%s0 + $0x3e8] sm:$0xff]
  %v146 = vld [vmem:[%s0 + $0x3f0] sm:$0xff]
  %v147 = vld [vmem:[%s0 + $0x3f8] sm:$0xff]
  %v148 = vld [vmem:[%s0 + $0x400] sm:$0xff]
  %v149 = vld [vmem:[%s0 + $0x408] sm:$0xff]
  %v150 = vld [vmem:[%s0 + $0x410] sm:$0xff]
  %v151 = vld [vmem:[%s0 + $0x418] sm:$0xff]
  %v152 = vld [vmem:[%s0 + $0x420] sm:$0xff]
  %v153 = vld [vmem:[%s0 + $0x428] sm:$0xff]
  %v154 = vld [vmem:[%s0 + $0x430] sm:$0xff]
  %v155 = vld [vmem:[%s0 + $0x438] sm:$0xff]
  %v156 = vld [vmem:[%s0 + $0x440] sm:$0xff]
  %v157 = vld [vmem:[%s0 + $0x448] sm:$0xff]
  %v158 = vld [vmem:[%s0 + $0x450] sm:$0xff]
  %v159 = vld [vmem:[%s0 + $0x458] sm:$0xff]
  %v160 = vld [vmem:[%s0 + $0x460] sm:$0xff]
  %v161 = vld [vmem:[%s0 + $0x468] sm:$0xff]
  %v162 = vld [vmem:[%s0 + $0x470] sm:$0xff]
  %v163 = vld [vmem:[%s0 + $0x478] sm:$0xff]
  %v164 = vld [vmem:[%s0 + $0x480] sm:$0xff]
  %v165 = vld [vmem:[%s0 + $0x488] sm:$0xff]
  %v166 = vld [vmem:[%s0 + $0x490] sm:$0xff]
  %v167 = vld [vmem:[%s0 + $0x498] sm:$0xff]
  %v168 = vld [vmem:[%s0 + $0x4a0] sm:$0xff]
  %v169 = vld [vmem:[%s0 + $0x4a8] sm:$0xff]
  %v170 = vld [vmem:[%s0 + $0x4b0] sm:$0xff]
  %v171 = vld [vmem:[%s0 + $0x4b8] sm:$0xff]
  %v172 = vld [vmem:[%s0 + $0x4c0] sm:$0xff]
  %v173 = vld [vmem:[%s0 + $0x4c8] sm:$0xff]
  %v174 = vld [vmem:[%s0 + $0x4d0] sm:$0xff]
  %v175 = vld [vmem:[%s0 + $0x4d8] sm:$0xff]
  %v176 = vld [vmem:[%s0 + $0x4e0] sm:$0xff]
  %v177 = vld [vmem:[%s0 + $0x4e8] sm:$0xff]
  %v178 = vld [vmem:[%s0 + $0x4f0] sm:$0xff]
  %v179 = vld [vmem:[%s0 + $0x4f8] sm:$0xff]
  %v180 = vld [vmem:[%s0 + $0x500] sm:$0xff]
  %v181 = vld [vmem:[%s0 + $0x508] sm:$0xff]
  %v182 = vld [vmem:[%s0 + $0x510] sm:$0xff]
  %v183 = vld [vmem:[%s0 + $0x518] sm:$0xff]
  %v184 = vld [vmem:[%s0 + $0x520] sm:$0xff]
  %v185 = vld [vmem:[%s0 + $0x528] sm:$0xff]
  %v186 = vld [vmem:[%s0 + $0x530] sm:$0xff]
  %v187 = vld [vmem:[%s0 + $0x538] sm:$0xff]
  %v188 = vld [vmem:[%s0 + $0x540] sm:$0xff]
  %v189 = vld [vmem:[%s0 + $0x548] sm:$0xff]
  %v190 = vld [vmem:[%s0 + $0x550] sm:$0xff]
  %v191 = vld [vmem:[%s0 + $0x558] sm:$0xff]
  %v192 = vld [vmem:[%s0 + $0x560] sm:$0xff]
  %v193 = vld [vmem:[%s0 + $0x568] sm:$0xff]
  %v194 = vld [vmem:[%s0 + $0x570] sm:$0xff]
  %v195 = vld [vmem:[%s0 + $0x578] sm:$0xff]
  %v196 = vld [vmem:[%s0 + $0x580] sm:$0xff]
  %v197 = vld [vmem:[%s0 + $0x588] sm:$0xff]
  %v198 = vld [vmem:[%s0 + $0x590] sm:$0xff]
  %v199 = vld [vmem:[%s0 + $0x598] sm:$0xff]
  %v200 = vld [vmem:[%s0 + $0x5a0] sm:$0xff]
  %v201 = vld [vmem:[%s0 + $0x5a8] sm:$0xff]
  %v202 = vld [vmem:[%s0 + $0x5b0] sm:$0xff]
  %v203 = vld [vmem:[%s0 + $0x5b8] sm:$0xff]
  %v204 = vld [vmem:[%s0 + $0x5c0] sm:$0xff]
  %v205 = vld [vmem:[%s0 + $0x5c8] sm:$0xff]
  %v206 = vld [vmem:[%s0 + $0x5d0] sm:$0xff]
  %v207 = vld [vmem:[%s0 + $0x5d8] sm:$0xff]
  %v208 = vld [vmem:[%s0 + $0x5e0] sm:$0xff]
  %v209 = vld [vmem:[%s0 + $0x5e8] sm:$0xff]
  %v210 = vld [vmem:[%s0 + $0x5f0] sm:$0xff]
  %v211 = vld [vmem:[%s0 + $0x5f8] sm:$0xff]
  %v212 = vld [vmem:[%s0 + $0x600] sm:$0xff]
  %v213 = vld [vmem:[%s0 + $0x608] sm:$0xff]
  %v214 = vld [vmem:[%s0 + $0x610] sm:$0xff]
  %v215 = vld [vmem:[%s0 + $0x618] sm:$0xff]
  %v216 = vld [vmem:[%s0 + $0x620] sm:$0xff]
  %v217 = vld [vmem:[%s0 + $0x628] sm:$0xff]
  %v218 = vld [vmem:[%s0 + $0x630] sm:$0xff]
  %v219 = vld [vmem:[%s0 + $0x638] sm:$0xff]
  %v220 = vld [vmem:[%s0 + $0x640] sm:$0xff]
  %v221 = vld [vmem:[%s0 + $0x648] sm:$0xff]
  %v222 = vld [vmem:[%s0 + $0x650] sm:$0xff]
  %v223 = vld [vmem:[%s0 + $0x658] sm:$0xff]
  %v224 = vld [vmem:[%s0 + $0x660] sm:$0xff]
  %v225 = vld [vmem:[%s0 + $0x668] sm:$0xff]
  %v226 = vld [vmem:[%s0 + $0x670] sm:$0xff]
  %v227 = vld [vmem:[%s0 + $0x678] sm:$0xff]
  %v228 = vld [vmem:[%s0 + $0x680] sm:$0xff]
  %v229 = vld [vmem:[%s0 + $0x688] sm:$0xff]
  %v230 = vld [vmem:[%s0 + $0x690] sm:$0xff]
  %v231 = vld [vmem:[%s0 + $0x698] sm:$0xff]
  %v232 = vld [vmem:[%s0 + $0x6a0] sm:$0xff]
  %v233 = vld [vmem:[%s0 + $0x6a8] sm:$0xff]
  %v234 = vld [vmem:[%s0 + $0x6b0] sm:$0xff]
  %v235 = vld [vmem:[%s0 + $0x6b8] sm:$0xff]
  %v236 = vld [vmem:[%s0 + $0x6c0] sm:$0xff]
  %v237 = vld [vmem:[%s0 + $0x6c8] sm:$0xff]
  %v238 = vld [vmem:[%s0 + $0x6d0] sm:$0xff]
  %v239 = vld [vmem:[%s0 + $0x6d8] sm:$0xff]
  %v240 = vld [vmem:[%s0 + $0x6e0] sm:$0xff]
  %v241 = vld [vmem:[%s0 + $0x6e8] sm:$0xff]
  %v242 = vld [vmem:[%s0 + $0x6f0] sm:$0xff]
  %v243 = vld [vmem:[%s0 + $0x6f8] sm:$0xff]
  %v244 = vld [vmem:[%s0 + $0x700] sm:$0xff]
  %v245 = vld [vmem:[%s0 + $0x708] sm:$0xff]
  %v246 = vld [vmem:[%s0 + $0x710] sm:$0xff]
  %v247 = vld [vmem:[%s0 + $0x718] sm:$0xff]
  %v248 = vld [vmem:[%s0 + $0x720] sm:$0xff]
  %v249 = vld [vmem:[%s0 + $0x728] sm:$0xff]
  %v250 = vld [vmem:[%s0 + $0x730] sm:$0xff]
  %v251 = vld [vmem:[%s0 + $0x738] sm:$0xff]
  %v252 = vld [vmem:[%s0 + $0x740] sm:$0xff]
  %v253 = vld [vmem:[%s0 + $0x748] sm:$0xff]
  %v254 = vld [vmem:[%s0 + $0x750] sm:$0xff]
  %v255 = vld [vmem:[%s0 + $0x758] sm:$0xff]
  %v256 = vld [vmem:[%s0 + $0x760] sm:$0xff]
  %v257 = vld [vmem:[%s0 + $0x768] sm:$0xff]
  %v258 = vld [vmem:[%s0 + $0x770] sm:$0xff]
  %v259 = vld [vmem:[%s0 + $0x778] sm:$0xff]
  %v260 = vld [vmem:[%s0 + $0x780] sm:$0xff]
  %v261 = vld [vmem:[%s0 + $0x788] sm:$0xff]
  %v262 = vld [vmem:[%s0 + $0x790] sm:$0xff]
  %v263 = vld [vmem:[%s0 + $0x798] sm:$0xff]
  %v264 = vld [vmem:[%s0 + $0x7a0] sm:$0xff]
  %v265 = vld [vmem:[%s0 + $0x7a8] sm:$0xff]
  %v266 = vld [vmem:[%s0 + $0x7b0] sm:$0xff]
  %v267 = vld [vmem:[%s0 + $0x7b8] sm:$0xff]
  %v268 = vld [vmem:[%s0 + $0x7c0] sm:$0xff]
  %v269 = vld [vmem:[%s0 + $0x7c8] sm:$0xff]
  %v270 = vld [vmem:[%s0 + $0x7d0] sm:$0xff]
  %v271 = vld [vmem:[%s0 + $0x7d8] sm:$0xff]
  %v272 = vld [vmem:[%s0 + $0x7e0] sm:$0xff]
  %v273 = vld [vmem:[%s0 + $0x7e8] sm:$0xff]
  %v274 = vld [vmem:[%s0 + $0x7f0] sm:$0xff]
  %v275 = vld [vmem:[%s0 + $0x7f8] sm:$0xff]
  %v276 = vld [vmem:[%s4] sm:$0x1]
  %v277 = vld [vmem:[%s4 + $0x1] sm:$0x1]
  %v278 = vld [vmem:[%s4 + $0x2] sm:$0x1]
  %v279 = vld [vmem:[%s1] sm:$0xf]
  %v280 = vperm.slane %v276, 0
  %vm281 = vcmask 31744
  %v283 = vsel %vm281, %v20, 0
  %v286 = vsel %vm281, %v21, 0
  %v289 = vsel %vm281, %v22, 0
  %v292 = vsel %vm281, %v23, 0
  %v295 = vsel %vm281, %v24, 0
  %v298 = vsel %vm281, %v25, 0
  %v301 = vsel %vm281, %v26, 0
  %v304 = vsel %vm281, %v27, 0
  %v307 = vsel %vm281, %v28, 0
  %v310 = vsel %vm281, %v29, 0
  %v313 = vsel %vm281, %v30, 0
  %v316 = vsel %vm281, %v31, 0
  %v319 = vsel %vm281, %v32, 0
  %v322 = vsel %vm281, %v33, 0
  %v325 = vsel %vm281, %v34, 0
  %v328 = vsel %vm281, %v35, 0
  %v331 = vsel %vm281, %v36, 0
  %v334 = vsel %vm281, %v37, 0
  %v337 = vsel %vm281, %v38, 0
  %v340 = vsel %vm281, %v39, 0
  %v343 = vsel %vm281, %v40, 0
  %v346 = vsel %vm281, %v41, 0
  %v349 = vsel %vm281, %v42, 0
  %v352 = vsel %vm281, %v43, 0
  %v355 = vsel %vm281, %v44, 0
  %v358 = vsel %vm281, %v45, 0
  %v361 = vsel %vm281, %v46, 0
  %v364 = vsel %vm281, %v47, 0
  %v367 = vsel %vm281, %v48, 0
  %v370 = vsel %vm281, %v49, 0
  %v373 = vsel %vm281, %v50, 0
  %v376 = vsel %vm281, %v51, 0
  %v379 = vsel %vm281, %v52, 0
  %v382 = vsel %vm281, %v53, 0
  %v385 = vsel %vm281, %v54, 0
  %v388 = vsel %vm281, %v55, 0
  %v391 = vsel %vm281, %v56, 0
  %v394 = vsel %vm281, %v57, 0
  %v397 = vsel %vm281, %v58, 0
  %v400 = vsel %vm281, %v59, 0
  %v403 = vsel %vm281, %v60, 0
  %v406 = vsel %vm281, %v61, 0
  %v409 = vsel %vm281, %v62, 0
  %v412 = vsel %vm281, %v63, 0
  %v415 = vsel %vm281, %v64, 0
  %v418 = vsel %vm281, %v65, 0
  %v421 = vsel %vm281, %v66, 0
  %v424 = vsel %vm281, %v67, 0
  %v427 = vsel %vm281, %v68, 0
  %v430 = vsel %vm281, %v69, 0
  %v433 = vsel %vm281, %v70, 0
  %v436 = vsel %vm281, %v71, 0
  %v439 = vsel %vm281, %v72, 0
  %v442 = vsel %vm281, %v73, 0
  %v445 = vsel %vm281, %v74, 0
  %v448 = vsel %vm281, %v75, 0
  %v451 = vsel %vm281, %v76, 0
  %v454 = vsel %vm281, %v77, 0
  %v457 = vsel %vm281, %v78, 0
  %v460 = vsel %vm281, %v79, 0
  %v463 = vsel %vm281, %v80, 0
  %v466 = vsel %vm281, %v81, 0
  %v469 = vsel %vm281, %v82, 0
  %v472 = vsel %vm281, %v83, 0
  %v475 = vsel %vm281, %v84, 0
  %v478 = vsel %vm281, %v85, 0
  %v481 = vsel %vm281, %v86, 0
  %v484 = vsel %vm281, %v87, 0
  %v487 = vsel %vm281, %v88, 0
  %v490 = vsel %vm281, %v89, 0
  %v493 = vsel %vm281, %v90, 0
  %v496 = vsel %vm281, %v91, 0
  %v499 = vsel %vm281, %v92, 0
  %v502 = vsel %vm281, %v93, 0
  %v505 = vsel %vm281, %v94, 0
  %v508 = vsel %vm281, %v95, 0
  %v511 = vsel %vm281, %v96, 0
  %v514 = vsel %vm281, %v97, 0
  %v517 = vsel %vm281, %v98, 0
  %v520 = vsel %vm281, %v99, 0
  %v523 = vsel %vm281, %v100, 0
  %v526 = vsel %vm281, %v101, 0
  %v529 = vsel %vm281, %v102, 0
  %v532 = vsel %vm281, %v103, 0
  %v535 = vsel %vm281, %v104, 0
  %v538 = vsel %vm281, %v105, 0
  %v541 = vsel %vm281, %v106, 0
  %v544 = vsel %vm281, %v107, 0
  %v547 = vsel %vm281, %v108, 0
  %v550 = vsel %vm281, %v109, 0
  %v553 = vsel %vm281, %v110, 0
  %v556 = vsel %vm281, %v111, 0
  %v559 = vsel %vm281, %v112, 0
  %v562 = vsel %vm281, %v113, 0
  %v565 = vsel %vm281, %v114, 0
  %v568 = vsel %vm281, %v115, 0
  %v571 = vsel %vm281, %v116, 0
  %v574 = vsel %vm281, %v117, 0
  %v577 = vsel %vm281, %v118, 0
  %v580 = vsel %vm281, %v119, 0
  %v583 = vsel %vm281, %v120, 0
  %v586 = vsel %vm281, %v121, 0
  %v589 = vsel %vm281, %v122, 0
  %v592 = vsel %vm281, %v123, 0
  %v595 = vsel %vm281, %v124, 0
  %v598 = vsel %vm281, %v125, 0
  %v601 = vsel %vm281, %v126, 0
  %v604 = vsel %vm281, %v127, 0
  %v607 = vsel %vm281, %v128, 0
  %v610 = vsel %vm281, %v129, 0
  %v613 = vsel %vm281, %v130, 0
  %v616 = vsel %vm281, %v131, 0
  %v619 = vsel %vm281, %v132, 0
  %v622 = vsel %vm281, %v133, 0
  %v625 = vsel %vm281, %v134, 0
  %v628 = vsel %vm281, %v135, 0
  %v631 = vsel %vm281, %v136, 0
  %v634 = vsel %vm281, %v137, 0
  %v637 = vsel %vm281, %v138, 0
  %v640 = vsel %vm281, %v139, 0
  %v643 = vsel %vm281, %v140, 0
  %v646 = vsel %vm281, %v141, 0
  %v649 = vsel %vm281, %v142, 0
  %v652 = vsel %vm281, %v143, 0
  %v655 = vsel %vm281, %v144, 0
  %v658 = vsel %vm281, %v145, 0
  %v661 = vsel %vm281, %v146, 0
  %v664 = vsel %vm281, %v147, 0
  %v667 = vsel %vm281, %v148, 0
  %v670 = vsel %vm281, %v149, 0
  %v673 = vsel %vm281, %v150, 0
  %v676 = vsel %vm281, %v151, 0
  %v679 = vsel %vm281, %v152, 0
  %v682 = vsel %vm281, %v153, 0
  %v685 = vsel %vm281, %v154, 0
  %v688 = vsel %vm281, %v155, 0
  %v691 = vsel %vm281, %v156, 0
  %v694 = vsel %vm281, %v157, 0
  %v697 = vsel %vm281, %v158, 0
  %v700 = vsel %vm281, %v159, 0
  %v703 = vsel %vm281, %v160, 0
  %v706 = vsel %vm281, %v161, 0
  %v709 = vsel %vm281, %v162, 0
  %v712 = vsel %vm281, %v163, 0
  %v715 = vsel %vm281, %v164, 0
  %v718 = vsel %vm281, %v165, 0
  %v721 = vsel %vm281, %v166, 0
  %v724 = vsel %vm281, %v167, 0
  %v727 = vsel %vm281, %v168, 0
  %v730 = vsel %vm281, %v169, 0
  %v733 = vsel %vm281, %v170, 0
  %v736 = vsel %vm281, %v171, 0
  %v739 = vsel %vm281, %v172, 0
  %v742 = vsel %vm281, %v173, 0
  %v745 = vsel %vm281, %v174, 0
  %v748 = vsel %vm281, %v175, 0
  %v751 = vsel %vm281, %v176, 0
  %v754 = vsel %vm281, %v177, 0
  %v757 = vsel %vm281, %v178, 0
  %v760 = vsel %vm281, %v179, 0
  %v763 = vsel %vm281, %v180, 0
  %v766 = vsel %vm281, %v181, 0
  %v769 = vsel %vm281, %v182, 0
  %v772 = vsel %vm281, %v183, 0
  %v775 = vsel %vm281, %v184, 0
  %v778 = vsel %vm281, %v185, 0
  %v781 = vsel %vm281, %v186, 0
  %v784 = vsel %vm281, %v187, 0
  %v787 = vsel %vm281, %v188, 0
  %v790 = vsel %vm281, %v189, 0
  %v793 = vsel %vm281, %v190, 0
  %v796 = vsel %vm281, %v191, 0
  %v799 = vsel %vm281, %v192, 0
  %v802 = vsel %vm281, %v193, 0
  %v805 = vsel %vm281, %v194, 0
  %v808 = vsel %vm281, %v195, 0
  %v811 = vsel %vm281, %v196, 0
  %v814 = vsel %vm281, %v197, 0
  %v817 = vsel %vm281, %v198, 0
  %v820 = vsel %vm281, %v199, 0
  %v823 = vsel %vm281, %v200, 0
  %v826 = vsel %vm281, %v201, 0
  %v829 = vsel %vm281, %v202, 0
  %v832 = vsel %vm281, %v203, 0
  %v835 = vsel %vm281, %v204, 0
  %v838 = vsel %vm281, %v205, 0
  %v841 = vsel %vm281, %v206, 0
  %v844 = vsel %vm281, %v207, 0
  %v847 = vsel %vm281, %v208, 0
  %v850 = vsel %vm281, %v209, 0
  %v853 = vsel %vm281, %v210, 0
  %v856 = vsel %vm281, %v211, 0
  %v859 = vsel %vm281, %v212, 0
  %v862 = vsel %vm281, %v213, 0
  %v865 = vsel %vm281, %v214, 0
  %v868 = vsel %vm281, %v215, 0
  %v871 = vsel %vm281, %v216, 0
  %v874 = vsel %vm281, %v217, 0
  %v877 = vsel %vm281, %v218, 0
  %v880 = vsel %vm281, %v219, 0
  %v883 = vsel %vm281, %v220, 0
  %v886 = vsel %vm281, %v221, 0
  %v889 = vsel %vm281, %v222, 0
  %v892 = vsel %vm281, %v223, 0
  %v895 = vsel %vm281, %v224, 0
  %v898 = vsel %vm281, %v225, 0
  %v901 = vsel %vm281, %v226, 0
  %v904 = vsel %vm281, %v227, 0
  %v907 = vsel %vm281, %v228, 0
  %v910 = vsel %vm281, %v229, 0
  %v913 = vsel %vm281, %v230, 0
  %v916 = vsel %vm281, %v231, 0
  %v919 = vsel %vm281, %v232, 0
  %v922 = vsel %vm281, %v233, 0
  %v925 = vsel %vm281, %v234, 0
  %v928 = vsel %vm281, %v235, 0
  %v931 = vsel %vm281, %v236, 0
  %v934 = vsel %vm281, %v237, 0
  %v937 = vsel %vm281, %v238, 0
  %v940 = vsel %vm281, %v239, 0
  %v943 = vsel %vm281, %v240, 0
  %v946 = vsel %vm281, %v241, 0
  %v949 = vsel %vm281, %v242, 0
  %v952 = vsel %vm281, %v243, 0
  %v955 = vsel %vm281, %v244, 0
  %v958 = vsel %vm281, %v245, 0
  %v961 = vsel %vm281, %v246, 0
  %v964 = vsel %vm281, %v247, 0
  %v967 = vsel %vm281, %v248, 0
  %v970 = vsel %vm281, %v249, 0
  %v973 = vsel %vm281, %v250, 0
  %v976 = vsel %vm281, %v251, 0
  %v979 = vsel %vm281, %v252, 0
  %v982 = vsel %vm281, %v253, 0
  %v985 = vsel %vm281, %v254, 0
  %v988 = vsel %vm281, %v255, 0
  %v991 = vsel %vm281, %v256, 0
  %v994 = vsel %vm281, %v257, 0
  %v997 = vsel %vm281, %v258, 0
  %v1000 = vsel %vm281, %v259, 0
  %v1003 = vsel %vm281, %v260, 0
  %v1006 = vsel %vm281, %v261, 0
  %v1009 = vsel %vm281, %v262, 0
  %v1012 = vsel %vm281, %v263, 0
  %v1015 = vsel %vm281, %v264, 0
  %v1018 = vsel %vm281, %v265, 0
  %v1021 = vsel %vm281, %v266, 0
  %v1024 = vsel %vm281, %v267, 0
  %v1027 = vsel %vm281, %v268, 0
  %v1030 = vsel %vm281, %v269, 0
  %v1033 = vsel %vm281, %v270, 0
  %v1036 = vsel %vm281, %v271, 0
  %v1039 = vsel %vm281, %v272, 0
  %v1042 = vsel %vm281, %v273, 0
  %v1045 = vsel %vm281, %v274, 0
  %v1048 = vsel %vm281, %v275, 0
  %vm1050 = vcmask 1043456
  %v1052 = vsel %vm1050, %v279, 0
  %1054 = vmatpush.msra.mxu0 0.0
  %1055 = vmatpush.msra.mxu0 0.0
  %1056 = vmatpush.msra.mxu0 0.0
  %1057 = vmatpush.msra.mxu0 0.0
  %1058 = vmatpush.msra.mxu0 0.0
  %1059 = vmatpush.msra.mxu0 0.0
  %1060 = vmatpush.msra.mxu0 0.0
  %1061 = vmatpush.msra.mxu0 0.0
  %1062 = vmatpush.msra.mxu0 0.0
  %1063 = vmatpush.msra.mxu0 0.0
  %1064 = vmatpush.msra.mxu0 0.0
  %1065 = vmatpush.msra.mxu0 0.0
  %1066 = vmatpush.msra.mxu0 0.0
  %1067 = vmatpush.msra.mxu0 0.0
  %1068 = vmatpush.msra.mxu0 0.0
  %1069 = vmatpush.msra.mxu0 %v1052
  %1070 = vmatmul.f32.gmra.mxu0 %v283
  %v1071 = vpop.f32.mrf.mxu0
  %v1072 = vadd.f32 %v280, %v1071
  %1073 = vmatmul.f32.gmra.mxu0 %v286
  %v1074 = vpop.f32.mrf.mxu0
  %v1075 = vadd.f32 %v280, %v1074
  %1076 = vmatmul.f32.gmra.mxu0 %v289
  %v1077 = vpop.f32.mrf.mxu0
  %v1078 = vadd.f32 %v280, %v1077
  %1079 = vmatmul.f32.gmra.mxu0 %v292
  %v1080 = vpop.f32.mrf.mxu0
  %v1081 = vadd.f32 %v280, %v1080
  %1082 = vmatmul.f32.gmra.mxu0 %v295
  %v1083 = vpop.f32.mrf.mxu0
  %v1084 = vadd.f32 %v280, %v1083
  %1085 = vmatmul.f32.gmra.mxu0 %v298
  %v1086 = vpop.f32.mrf.mxu0
  %v1087 = vadd.f32 %v280, %v1086
  %1088 = vmatmul.f32.gmra.mxu0 %v301
  %v1089 = vpop.f32.mrf.mxu0
  %v1090 = vadd.f32 %v280, %v1089
  %1091 = vmatmul.f32.gmra.mxu0 %v304
  %v1092 = vpop.f32.mrf.mxu0
  %v1093 = vadd.f32 %v280, %v1092
  %1094 = vmatmul.f32.gmra.mxu0 %v307
  %v1095 = vpop.f32.mrf.mxu0
  %v1096 = vadd.f32 %v280, %v1095
  %1097 = vmatmul.f32.gmra.mxu0 %v310
  %v1098 = vpop.f32.mrf.mxu0
  %v1099 = vadd.f32 %v280, %v1098
  %1100 = vmatmul.f32.gmra.mxu0 %v313
  %v1101 = vpop.f32.mrf.mxu0
  %v1102 = vadd.f32 %v280, %v1101
  %1103 = vmatmul.f32.gmra.mxu0 %v316
  %v1104 = vpop.f32.mrf.mxu0
  %v1105 = vadd.f32 %v280, %v1104
  %1106 = vmatmul.f32.gmra.mxu0 %v319
  %v1107 = vpop.f32.mrf.mxu0
  %v1108 = vadd.f32 %v280, %v1107
  %1109 = vmatmul.f32.gmra.mxu0 %v322
  %v1110 = vpop.f32.mrf.mxu0
  %v1111 = vadd.f32 %v280, %v1110
  %1112 = vmatmul.f32.gmra.mxu0 %v325
  %v1113 = vpop.f32.mrf.mxu0
  %v1114 = vadd.f32 %v280, %v1113
  %1115 = vmatmul.f32.gmra.mxu0 %v328
  %v1116 = vpop.f32.mrf.mxu0
  %v1117 = vadd.f32 %v280, %v1116
  %1118 = vmatmul.f32.gmra.mxu0 %v331
  %v1119 = vpop.f32.mrf.mxu0
  %v1120 = vadd.f32 %v280, %v1119
  %1121 = vmatmul.f32.gmra.mxu0 %v334
  %v1122 = vpop.f32.mrf.mxu0
  %v1123 = vadd.f32 %v280, %v1122
  %1124 = vmatmul.f32.gmra.mxu0 %v337
  %v1125 = vpop.f32.mrf.mxu0
  %v1126 = vadd.f32 %v280, %v1125
  %1127 = vmatmul.f32.gmra.mxu0 %v340
  %v1128 = vpop.f32.mrf.mxu0
  %v1129 = vadd.f32 %v280, %v1128
  %1130 = vmatmul.f32.gmra.mxu0 %v343
  %v1131 = vpop.f32.mrf.mxu0
  %v1132 = vadd.f32 %v280, %v1131
  %1133 = vmatmul.f32.gmra.mxu0 %v346
  %v1134 = vpop.f32.mrf.mxu0
  %v1135 = vadd.f32 %v280, %v1134
  %1136 = vmatmul.f32.gmra.mxu0 %v349
  %v1137 = vpop.f32.mrf.mxu0
  %v1138 = vadd.f32 %v280, %v1137
  %1139 = vmatmul.f32.gmra.mxu0 %v352
  %v1140 = vpop.f32.mrf.mxu0
  %v1141 = vadd.f32 %v280, %v1140
  %1142 = vmatmul.f32.gmra.mxu0 %v355
  %v1143 = vpop.f32.mrf.mxu0
  %v1144 = vadd.f32 %v280, %v1143
  %1145 = vmatmul.f32.gmra.mxu0 %v358
  %v1146 = vpop.f32.mrf.mxu0
  %v1147 = vadd.f32 %v280, %v1146
  %1148 = vmatmul.f32.gmra.mxu0 %v361
  %v1149 = vpop.f32.mrf.mxu0
  %v1150 = vadd.f32 %v280, %v1149
  %1151 = vmatmul.f32.gmra.mxu0 %v364
  %v1152 = vpop.f32.mrf.mxu0
  %v1153 = vadd.f32 %v280, %v1152
  %1154 = vmatmul.f32.gmra.mxu0 %v367
  %v1155 = vpop.f32.mrf.mxu0
  %v1156 = vadd.f32 %v280, %v1155
  %1157 = vmatmul.f32.gmra.mxu0 %v370
  %v1158 = vpop.f32.mrf.mxu0
  %v1159 = vadd.f32 %v280, %v1158
  %1160 = vmatmul.f32.gmra.mxu0 %v373
  %v1161 = vpop.f32.mrf.mxu0
  %v1162 = vadd.f32 %v280, %v1161
  %1163 = vmatmul.f32.gmra.mxu0 %v376
  %v1164 = vpop.f32.mrf.mxu0
  %v1165 = vadd.f32 %v280, %v1164
  %1166 = vmatmul.f32.gmra.mxu0 %v379
  %v1167 = vpop.f32.mrf.mxu0
  %v1168 = vadd.f32 %v280, %v1167
  %1169 = vmatmul.f32.gmra.mxu0 %v382
  %v1170 = vpop.f32.mrf.mxu0
  %v1171 = vadd.f32 %v280, %v1170
  %1172 = vmatmul.f32.gmra.mxu0 %v385
  %v1173 = vpop.f32.mrf.mxu0
  %v1174 = vadd.f32 %v280, %v1173
  %1175 = vmatmul.f32.gmra.mxu0 %v388
  %v1176 = vpop.f32.mrf.mxu0
  %v1177 = vadd.f32 %v280, %v1176
  %1178 = vmatmul.f32.gmra.mxu0 %v391
  %v1179 = vpop.f32.mrf.mxu0
  %v1180 = vadd.f32 %v280, %v1179
  %1181 = vmatmul.f32.gmra.mxu0 %v394
  %v1182 = vpop.f32.mrf.mxu0
  %v1183 = vadd.f32 %v280, %v1182
  %1184 = vmatmul.f32.gmra.mxu0 %v397
  %v1185 = vpop.f32.mrf.mxu0
  %v1186 = vadd.f32 %v280, %v1185
  %1187 = vmatmul.f32.gmra.mxu0 %v400
  %v1188 = vpop.f32.mrf.mxu0
  %v1189 = vadd.f32 %v280, %v1188
  %1190 = vmatmul.f32.gmra.mxu0 %v403
  %v1191 = vpop.f32.mrf.mxu0
  %v1192 = vadd.f32 %v280, %v1191
  %1193 = vmatmul.f32.gmra.mxu0 %v406
  %v1194 = vpop.f32.mrf.mxu0
  %v1195 = vadd.f32 %v280, %v1194
  %1196 = vmatmul.f32.gmra.mxu0 %v409
  %v1197 = vpop.f32.mrf.mxu0
  %v1198 = vadd.f32 %v280, %v1197
  %1199 = vmatmul.f32.gmra.mxu0 %v412
  %v1200 = vpop.f32.mrf.mxu0
  %v1201 = vadd.f32 %v280, %v1200
  %1202 = vmatmul.f32.gmra.mxu0 %v415
  %v1203 = vpop.f32.mrf.mxu0
  %v1204 = vadd.f32 %v280, %v1203
  %1205 = vmatmul.f32.gmra.mxu0 %v418
  %v1206 = vpop.f32.mrf.mxu0
  %v1207 = vadd.f32 %v280, %v1206
  %1208 = vmatmul.f32.gmra.mxu0 %v421
  %v1209 = vpop.f32.mrf.mxu0
  %v1210 = vadd.f32 %v280, %v1209
  %1211 = vmatmul.f32.gmra.mxu0 %v424
  %v1212 = vpop.f32.mrf.mxu0
  %v1213 = vadd.f32 %v280, %v1212
  %1214 = vmatmul.f32.gmra.mxu0 %v427
  %v1215 = vpop.f32.mrf.mxu0
  %v1216 = vadd.f32 %v280, %v1215
  %1217 = vmatmul.f32.gmra.mxu0 %v430
  %v1218 = vpop.f32.mrf.mxu0
  %v1219 = vadd.f32 %v280, %v1218
  %1220 = vmatmul.f32.gmra.mxu0 %v433
  %v1221 = vpop.f32.mrf.mxu0
  %v1222 = vadd.f32 %v280, %v1221
  %1223 = vmatmul.f32.gmra.mxu0 %v436
  %v1224 = vpop.f32.mrf.mxu0
  %v1225 = vadd.f32 %v280, %v1224
  %1226 = vmatmul.f32.gmra.mxu0 %v439
  %v1227 = vpop.f32.mrf.mxu0
  %v1228 = vadd.f32 %v280, %v1227
  %1229 = vmatmul.f32.gmra.mxu0 %v442
  %v1230 = vpop.f32.mrf.mxu0
  %v1231 = vadd.f32 %v280, %v1230
  %1232 = vmatmul.f32.gmra.mxu0 %v445
  %v1233 = vpop.f32.mrf.mxu0
  %v1234 = vadd.f32 %v280, %v1233
  %1235 = vmatmul.f32.gmra.mxu0 %v448
  %v1236 = vpop.f32.mrf.mxu0
  %v1237 = vadd.f32 %v280, %v1236
  %1238 = vmatmul.f32.gmra.mxu0 %v451
  %v1239 = vpop.f32.mrf.mxu0
  %v1240 = vadd.f32 %v280, %v1239
  %1241 = vmatmul.f32.gmra.mxu0 %v454
  %v1242 = vpop.f32.mrf.mxu0
  %v1243 = vadd.f32 %v280, %v1242
  %1244 = vmatmul.f32.gmra.mxu0 %v457
  %v1245 = vpop.f32.mrf.mxu0
  %v1246 = vadd.f32 %v280, %v1245
  %1247 = vmatmul.f32.gmra.mxu0 %v460
  %v1248 = vpop.f32.mrf.mxu0
  %v1249 = vadd.f32 %v280, %v1248
  %1250 = vmatmul.f32.gmra.mxu0 %v463
  %v1251 = vpop.f32.mrf.mxu0
  %v1252 = vadd.f32 %v280, %v1251
  %1253 = vmatmul.f32.gmra.mxu0 %v466
  %v1254 = vpop.f32.mrf.mxu0
  %v1255 = vadd.f32 %v280, %v1254
  %1256 = vmatmul.f32.gmra.mxu0 %v469
  %v1257 = vpop.f32.mrf.mxu0
  %v1258 = vadd.f32 %v280, %v1257
  %1259 = vmatmul.f32.gmra.mxu0 %v472
  %v1260 = vpop.f32.mrf.mxu0
  %v1261 = vadd.f32 %v280, %v1260
  %1262 = vmatmul.f32.gmra.mxu0 %v475
  %v1263 = vpop.f32.mrf.mxu0
  %v1264 = vadd.f32 %v280, %v1263
  %1265 = vmatmul.f32.gmra.mxu0 %v478
  %v1266 = vpop.f32.mrf.mxu0
  %v1267 = vadd.f32 %v280, %v1266
  %1268 = vmatmul.f32.gmra.mxu0 %v481
  %v1269 = vpop.f32.mrf.mxu0
  %v1270 = vadd.f32 %v280, %v1269
  %1271 = vmatmul.f32.gmra.mxu0 %v484
  %v1272 = vpop.f32.mrf.mxu0
  %v1273 = vadd.f32 %v280, %v1272
  %1274 = vmatmul.f32.gmra.mxu0 %v487
  %v1275 = vpop.f32.mrf.mxu0
  %v1276 = vadd.f32 %v280, %v1275
  %1277 = vmatmul.f32.gmra.mxu0 %v490
  %v1278 = vpop.f32.mrf.mxu0
  %v1279 = vadd.f32 %v280, %v1278
  %1280 = vmatmul.f32.gmra.mxu0 %v493
  %v1281 = vpop.f32.mrf.mxu0
  %v1282 = vadd.f32 %v280, %v1281
  %1283 = vmatmul.f32.gmra.mxu0 %v496
  %v1284 = vpop.f32.mrf.mxu0
  %v1285 = vadd.f32 %v280, %v1284
  %1286 = vmatmul.f32.gmra.mxu0 %v499
  %v1287 = vpop.f32.mrf.mxu0
  %v1288 = vadd.f32 %v280, %v1287
  %1289 = vmatmul.f32.gmra.mxu0 %v502
  %v1290 = vpop.f32.mrf.mxu0
  %v1291 = vadd.f32 %v280, %v1290
  %1292 = vmatmul.f32.gmra.mxu0 %v505
  %v1293 = vpop.f32.mrf.mxu0
  %v1294 = vadd.f32 %v280, %v1293
  %1295 = vmatmul.f32.gmra.mxu0 %v508
  %v1296 = vpop.f32.mrf.mxu0
  %v1297 = vadd.f32 %v280, %v1296
  %1298 = vmatmul.f32.gmra.mxu0 %v511
  %v1299 = vpop.f32.mrf.mxu0
  %v1300 = vadd.f32 %v280, %v1299
  %1301 = vmatmul.f32.gmra.mxu0 %v514
  %v1302 = vpop.f32.mrf.mxu0
  %v1303 = vadd.f32 %v280, %v1302
  %1304 = vmatmul.f32.gmra.mxu0 %v517
  %v1305 = vpop.f32.mrf.mxu0
  %v1306 = vadd.f32 %v280, %v1305
  %1307 = vmatmul.f32.gmra.mxu0 %v520
  %v1308 = vpop.f32.mrf.mxu0
  %v1309 = vadd.f32 %v280, %v1308
  %1310 = vmatmul.f32.gmra.mxu0 %v523
  %v1311 = vpop.f32.mrf.mxu0
  %v1312 = vadd.f32 %v280, %v1311
  %1313 = vmatmul.f32.gmra.mxu0 %v526
  %v1314 = vpop.f32.mrf.mxu0
  %v1315 = vadd.f32 %v280, %v1314
  %1316 = vmatmul.f32.gmra.mxu0 %v529
  %v1317 = vpop.f32.mrf.mxu0
  %v1318 = vadd.f32 %v280, %v1317
  %1319 = vmatmul.f32.gmra.mxu0 %v532
  %v1320 = vpop.f32.mrf.mxu0
  %v1321 = vadd.f32 %v280, %v1320
  %1322 = vmatmul.f32.gmra.mxu0 %v535
  %v1323 = vpop.f32.mrf.mxu0
  %v1324 = vadd.f32 %v280, %v1323
  %1325 = vmatmul.f32.gmra.mxu0 %v538
  %v1326 = vpop.f32.mrf.mxu0
  %v1327 = vadd.f32 %v280, %v1326
  %1328 = vmatmul.f32.gmra.mxu0 %v541
  %v1329 = vpop.f32.mrf.mxu0
  %v1330 = vadd.f32 %v280, %v1329
  %1331 = vmatmul.f32.gmra.mxu0 %v544
  %v1332 = vpop.f32.mrf.mxu0
  %v1333 = vadd.f32 %v280, %v1332
  %1334 = vmatmul.f32.gmra.mxu0 %v547
  %v1335 = vpop.f32.mrf.mxu0
  %v1336 = vadd.f32 %v280, %v1335
  %1337 = vmatmul.f32.gmra.mxu0 %v550
  %v1338 = vpop.f32.mrf.mxu0
  %v1339 = vadd.f32 %v280, %v1338
  %1340 = vmatmul.f32.gmra.mxu0 %v553
  %v1341 = vpop.f32.mrf.mxu0
  %v1342 = vadd.f32 %v280, %v1341
  %1343 = vmatmul.f32.gmra.mxu0 %v556
  %v1344 = vpop.f32.mrf.mxu0
  %v1345 = vadd.f32 %v280, %v1344
  %1346 = vmatmul.f32.gmra.mxu0 %v559
  %v1347 = vpop.f32.mrf.mxu0
  %v1348 = vadd.f32 %v280, %v1347
  %1349 = vmatmul.f32.gmra.mxu0 %v562
  %v1350 = vpop.f32.mrf.mxu0
  %v1351 = vadd.f32 %v280, %v1350
  %1352 = vmatmul.f32.gmra.mxu0 %v565
  %v1353 = vpop.f32.mrf.mxu0
  %v1354 = vadd.f32 %v280, %v1353
  %1355 = vmatmul.f32.gmra.mxu0 %v568
  %v1356 = vpop.f32.mrf.mxu0
  %v1357 = vadd.f32 %v280, %v1356
  %1358 = vmatmul.f32.gmra.mxu0 %v571
  %v1359 = vpop.f32.mrf.mxu0
  %v1360 = vadd.f32 %v280, %v1359
  %1361 = vmatmul.f32.gmra.mxu0 %v574
  %v1362 = vpop.f32.mrf.mxu0
  %v1363 = vadd.f32 %v280, %v1362
  %1364 = vmatmul.f32.gmra.mxu0 %v577
  %v1365 = vpop.f32.mrf.mxu0
  %v1366 = vadd.f32 %v280, %v1365
  %1367 = vmatmul.f32.gmra.mxu0 %v580
  %v1368 = vpop.f32.mrf.mxu0
  %v1369 = vadd.f32 %v280, %v1368
  %1370 = vmatmul.f32.gmra.mxu0 %v583
  %v1371 = vpop.f32.mrf.mxu0
  %v1372 = vadd.f32 %v280, %v1371
  %1373 = vmatmul.f32.gmra.mxu0 %v586
  %v1374 = vpop.f32.mrf.mxu0
  %v1375 = vadd.f32 %v280, %v1374
  %1376 = vmatmul.f32.gmra.mxu0 %v589
  %v1377 = vpop.f32.mrf.mxu0
  %v1378 = vadd.f32 %v280, %v1377
  %1379 = vmatmul.f32.gmra.mxu0 %v592
  %v1380 = vpop.f32.mrf.mxu0
  %v1381 = vadd.f32 %v280, %v1380
  %1382 = vmatmul.f32.gmra.mxu0 %v595
  %v1383 = vpop.f32.mrf.mxu0
  %v1384 = vadd.f32 %v280, %v1383
  %1385 = vmatmul.f32.gmra.mxu0 %v598
  %v1386 = vpop.f32.mrf.mxu0
  %v1387 = vadd.f32 %v280, %v1386
  %1388 = vmatmul.f32.gmra.mxu0 %v601
  %v1389 = vpop.f32.mrf.mxu0
  %v1390 = vadd.f32 %v280, %v1389
  %1391 = vmatmul.f32.gmra.mxu0 %v604
  %v1392 = vpop.f32.mrf.mxu0
  %v1393 = vadd.f32 %v280, %v1392
  %1394 = vmatmul.f32.gmra.mxu0 %v607
  %v1395 = vpop.f32.mrf.mxu0
  %v1396 = vadd.f32 %v280, %v1395
  %1397 = vmatmul.f32.gmra.mxu0 %v610
  %v1398 = vpop.f32.mrf.mxu0
  %v1399 = vadd.f32 %v280, %v1398
  %1400 = vmatmul.f32.gmra.mxu0 %v613
  %v1401 = vpop.f32.mrf.mxu0
  %v1402 = vadd.f32 %v280, %v1401
  %1403 = vmatmul.f32.gmra.mxu0 %v616
  %v1404 = vpop.f32.mrf.mxu0
  %v1405 = vadd.f32 %v280, %v1404
  %1406 = vmatmul.f32.gmra.mxu0 %v619
  %v1407 = vpop.f32.mrf.mxu0
  %v1408 = vadd.f32 %v280, %v1407
  %1409 = vmatmul.f32.gmra.mxu0 %v622
  %v1410 = vpop.f32.mrf.mxu0
  %v1411 = vadd.f32 %v280, %v1410
  %1412 = vmatmul.f32.gmra.mxu0 %v625
  %v1413 = vpop.f32.mrf.mxu0
  %v1414 = vadd.f32 %v280, %v1413
  %1415 = vmatmul.f32.gmra.mxu0 %v628
  %v1416 = vpop.f32.mrf.mxu0
  %v1417 = vadd.f32 %v280, %v1416
  %1418 = vmatmul.f32.gmra.mxu0 %v631
  %v1419 = vpop.f32.mrf.mxu0
  %v1420 = vadd.f32 %v280, %v1419
  %1421 = vmatmul.f32.gmra.mxu0 %v634
  %v1422 = vpop.f32.mrf.mxu0
  %v1423 = vadd.f32 %v280, %v1422
  %1424 = vmatmul.f32.gmra.mxu0 %v637
  %v1425 = vpop.f32.mrf.mxu0
  %v1426 = vadd.f32 %v280, %v1425
  %1427 = vmatmul.f32.gmra.mxu0 %v640
  %v1428 = vpop.f32.mrf.mxu0
  %v1429 = vadd.f32 %v280, %v1428
  %1430 = vmatmul.f32.gmra.mxu0 %v643
  %v1431 = vpop.f32.mrf.mxu0
  %v1432 = vadd.f32 %v280, %v1431
  %1433 = vmatmul.f32.gmra.mxu0 %v646
  %v1434 = vpop.f32.mrf.mxu0
  %v1435 = vadd.f32 %v280, %v1434
  %1436 = vmatmul.f32.gmra.mxu0 %v649
  %v1437 = vpop.f32.mrf.mxu0
  %v1438 = vadd.f32 %v280, %v1437
  %1439 = vmatmul.f32.gmra.mxu0 %v652
  %v1440 = vpop.f32.mrf.mxu0
  %v1441 = vadd.f32 %v280, %v1440
  %1442 = vmatmul.f32.gmra.mxu0 %v655
  %v1443 = vpop.f32.mrf.mxu0
  %v1444 = vadd.f32 %v280, %v1443
  %1445 = vmatmul.f32.gmra.mxu0 %v658
  %v1446 = vpop.f32.mrf.mxu0
  %v1447 = vadd.f32 %v280, %v1446
  %1448 = vmatmul.f32.gmra.mxu0 %v661
  %v1449 = vpop.f32.mrf.mxu0
  %v1450 = vadd.f32 %v280, %v1449
  %1451 = vmatmul.f32.gmra.mxu0 %v664
  %v1452 = vpop.f32.mrf.mxu0
  %v1453 = vadd.f32 %v280, %v1452
  %1454 = vmatmul.f32.gmra.mxu0 %v667
  %v1455 = vpop.f32.mrf.mxu0
  %v1456 = vadd.f32 %v280, %v1455
  %1457 = vmatmul.f32.gmra.mxu0 %v670
  %v1458 = vpop.f32.mrf.mxu0
  %v1459 = vadd.f32 %v280, %v1458
  %1460 = vmatmul.f32.gmra.mxu0 %v673
  %v1461 = vpop.f32.mrf.mxu0
  %v1462 = vadd.f32 %v280, %v1461
  %1463 = vmatmul.f32.gmra.mxu0 %v676
  %v1464 = vpop.f32.mrf.mxu0
  %v1465 = vadd.f32 %v280, %v1464
  %1466 = vmatmul.f32.gmra.mxu0 %v679
  %v1467 = vpop.f32.mrf.mxu0
  %v1468 = vadd.f32 %v280, %v1467
  %1469 = vmatmul.f32.gmra.mxu0 %v682
  %v1470 = vpop.f32.mrf.mxu0
  %v1471 = vadd.f32 %v280, %v1470
  %1472 = vmatmul.f32.gmra.mxu0 %v685
  %v1473 = vpop.f32.mrf.mxu0
  %v1474 = vadd.f32 %v280, %v1473
  %1475 = vmatmul.f32.gmra.mxu0 %v688
  %v1476 = vpop.f32.mrf.mxu0
  %v1477 = vadd.f32 %v280, %v1476
  %1478 = vmatmul.f32.gmra.mxu0 %v691
  %v1479 = vpop.f32.mrf.mxu0
  %v1480 = vadd.f32 %v280, %v1479
  %1481 = vmatmul.f32.gmra.mxu0 %v694
  %v1482 = vpop.f32.mrf.mxu0
  %v1483 = vadd.f32 %v280, %v1482
  %1484 = vmatmul.f32.gmra.mxu0 %v697
  %v1485 = vpop.f32.mrf.mxu0
  %v1486 = vadd.f32 %v280, %v1485
  %1487 = vmatmul.f32.gmra.mxu0 %v700
  %v1488 = vpop.f32.mrf.mxu0
  %v1489 = vadd.f32 %v280, %v1488
  %1490 = vmatmul.f32.gmra.mxu0 %v703
  %v1491 = vpop.f32.mrf.mxu0
  %v1492 = vadd.f32 %v280, %v1491
  %1493 = vmatmul.f32.gmra.mxu0 %v706
  %v1494 = vpop.f32.mrf.mxu0
  %v1495 = vadd.f32 %v280, %v1494
  %1496 = vmatmul.f32.gmra.mxu0 %v709
  %v1497 = vpop.f32.mrf.mxu0
  %v1498 = vadd.f32 %v280, %v1497
  %1499 = vmatmul.f32.gmra.mxu0 %v712
  %v1500 = vpop.f32.mrf.mxu0
  %v1501 = vadd.f32 %v280, %v1500
  %1502 = vmatmul.f32.gmra.mxu0 %v715
  %v1503 = vpop.f32.mrf.mxu0
  %v1504 = vadd.f32 %v280, %v1503
  %1505 = vmatmul.f32.gmra.mxu0 %v718
  %v1506 = vpop.f32.mrf.mxu0
  %v1507 = vadd.f32 %v280, %v1506
  %1508 = vmatmul.f32.gmra.mxu0 %v721
  %v1509 = vpop.f32.mrf.mxu0
  %v1510 = vadd.f32 %v280, %v1509
  %1511 = vmatmul.f32.gmra.mxu0 %v724
  %v1512 = vpop.f32.mrf.mxu0
  %v1513 = vadd.f32 %v280, %v1512
  %1514 = vmatmul.f32.gmra.mxu0 %v727
  %v1515 = vpop.f32.mrf.mxu0
  %v1516 = vadd.f32 %v280, %v1515
  %1517 = vmatmul.f32.gmra.mxu0 %v730
  %v1518 = vpop.f32.mrf.mxu0
  %v1519 = vadd.f32 %v280, %v1518
  %1520 = vmatmul.f32.gmra.mxu0 %v733
  %v1521 = vpop.f32.mrf.mxu0
  %v1522 = vadd.f32 %v280, %v1521
  %1523 = vmatmul.f32.gmra.mxu0 %v736
  %v1524 = vpop.f32.mrf.mxu0
  %v1525 = vadd.f32 %v280, %v1524
  %1526 = vmatmul.f32.gmra.mxu0 %v739
  %v1527 = vpop.f32.mrf.mxu0
  %v1528 = vadd.f32 %v280, %v1527
  %1529 = vmatmul.f32.gmra.mxu0 %v742
  %v1530 = vpop.f32.mrf.mxu0
  %v1531 = vadd.f32 %v280, %v1530
  %1532 = vmatmul.f32.gmra.mxu0 %v745
  %v1533 = vpop.f32.mrf.mxu0
  %v1534 = vadd.f32 %v280, %v1533
  %1535 = vmatmul.f32.gmra.mxu0 %v748
  %v1536 = vpop.f32.mrf.mxu0
  %v1537 = vadd.f32 %v280, %v1536
  %1538 = vmatmul.f32.gmra.mxu0 %v751
  %v1539 = vpop.f32.mrf.mxu0
  %v1540 = vadd.f32 %v280, %v1539
  %1541 = vmatmul.f32.gmra.mxu0 %v754
  %v1542 = vpop.f32.mrf.mxu0
  %v1543 = vadd.f32 %v280, %v1542
  %1544 = vmatmul.f32.gmra.mxu0 %v757
  %v1545 = vpop.f32.mrf.mxu0
  %v1546 = vadd.f32 %v280, %v1545
  %1547 = vmatmul.f32.gmra.mxu0 %v760
  %v1548 = vpop.f32.mrf.mxu0
  %v1549 = vadd.f32 %v280, %v1548
  %1550 = vmatmul.f32.gmra.mxu0 %v763
  %v1551 = vpop.f32.mrf.mxu0
  %v1552 = vadd.f32 %v280, %v1551
  %1553 = vmatmul.f32.gmra.mxu0 %v766
  %v1554 = vpop.f32.mrf.mxu0
  %v1555 = vadd.f32 %v280, %v1554
  %1556 = vmatmul.f32.gmra.mxu0 %v769
  %v1557 = vpop.f32.mrf.mxu0
  %v1558 = vadd.f32 %v280, %v1557
  %1559 = vmatmul.f32.gmra.mxu0 %v772
  %v1560 = vpop.f32.mrf.mxu0
  %v1561 = vadd.f32 %v280, %v1560
  %1562 = vmatmul.f32.gmra.mxu0 %v775
  %v1563 = vpop.f32.mrf.mxu0
  %v1564 = vadd.f32 %v280, %v1563
  %1565 = vmatmul.f32.gmra.mxu0 %v778
  %v1566 = vpop.f32.mrf.mxu0
  %v1567 = vadd.f32 %v280, %v1566
  %1568 = vmatmul.f32.gmra.mxu0 %v781
  %v1569 = vpop.f32.mrf.mxu0
  %v1570 = vadd.f32 %v280, %v1569
  %1571 = vmatmul.f32.gmra.mxu0 %v784
  %v1572 = vpop.f32.mrf.mxu0
  %v1573 = vadd.f32 %v280, %v1572
  %1574 = vmatmul.f32.gmra.mxu0 %v787
  %v1575 = vpop.f32.mrf.mxu0
  %v1576 = vadd.f32 %v280, %v1575
  %1577 = vmatmul.f32.gmra.mxu0 %v790
  %v1578 = vpop.f32.mrf.mxu0
  %v1579 = vadd.f32 %v280, %v1578
  %1580 = vmatmul.f32.gmra.mxu0 %v793
  %v1581 = vpop.f32.mrf.mxu0
  %v1582 = vadd.f32 %v280, %v1581
  %1583 = vmatmul.f32.gmra.mxu0 %v796
  %v1584 = vpop.f32.mrf.mxu0
  %v1585 = vadd.f32 %v280, %v1584
  %1586 = vmatmul.f32.gmra.mxu0 %v799
  %v1587 = vpop.f32.mrf.mxu0
  %v1588 = vadd.f32 %v280, %v1587
  %1589 = vmatmul.f32.gmra.mxu0 %v802
  %v1590 = vpop.f32.mrf.mxu0
  %v1591 = vadd.f32 %v280, %v1590
  %1592 = vmatmul.f32.gmra.mxu0 %v805
  %v1593 = vpop.f32.mrf.mxu0
  %v1594 = vadd.f32 %v280, %v1593
  %1595 = vmatmul.f32.gmra.mxu0 %v808
  %v1596 = vpop.f32.mrf.mxu0
  %v1597 = vadd.f32 %v280, %v1596
  %1598 = vmatmul.f32.gmra.mxu0 %v811
  %v1599 = vpop.f32.mrf.mxu0
  %v1600 = vadd.f32 %v280, %v1599
  %1601 = vmatmul.f32.gmra.mxu0 %v814
  %v1602 = vpop.f32.mrf.mxu0
  %v1603 = vadd.f32 %v280, %v1602
  %1604 = vmatmul.f32.gmra.mxu0 %v817
  %v1605 = vpop.f32.mrf.mxu0
  %v1606 = vadd.f32 %v280, %v1605
  %1607 = vmatmul.f32.gmra.mxu0 %v820
  %v1608 = vpop.f32.mrf.mxu0
  %v1609 = vadd.f32 %v280, %v1608
  %1610 = vmatmul.f32.gmra.mxu0 %v823
  %v1611 = vpop.f32.mrf.mxu0
  %v1612 = vadd.f32 %v280, %v1611
  %1613 = vmatmul.f32.gmra.mxu0 %v826
  %v1614 = vpop.f32.mrf.mxu0
  %v1615 = vadd.f32 %v280, %v1614
  %1616 = vmatmul.f32.gmra.mxu0 %v829
  %v1617 = vpop.f32.mrf.mxu0
  %v1618 = vadd.f32 %v280, %v1617
  %1619 = vmatmul.f32.gmra.mxu0 %v832
  %v1620 = vpop.f32.mrf.mxu0
  %v1621 = vadd.f32 %v280, %v1620
  %1622 = vmatmul.f32.gmra.mxu0 %v835
  %v1623 = vpop.f32.mrf.mxu0
  %v1624 = vadd.f32 %v280, %v1623
  %1625 = vmatmul.f32.gmra.mxu0 %v838
  %v1626 = vpop.f32.mrf.mxu0
  %v1627 = vadd.f32 %v280, %v1626
  %1628 = vmatmul.f32.gmra.mxu0 %v841
  %v1629 = vpop.f32.mrf.mxu0
  %v1630 = vadd.f32 %v280, %v1629
  %1631 = vmatmul.f32.gmra.mxu0 %v844
  %v1632 = vpop.f32.mrf.mxu0
  %v1633 = vadd.f32 %v280, %v1632
  %1634 = vmatmul.f32.gmra.mxu0 %v847
  %v1635 = vpop.f32.mrf.mxu0
  %v1636 = vadd.f32 %v280, %v1635
  %1637 = vmatmul.f32.gmra.mxu0 %v850
  %v1638 = vpop.f32.mrf.mxu0
  %v1639 = vadd.f32 %v280, %v1638
  %1640 = vmatmul.f32.gmra.mxu0 %v853
  %v1641 = vpop.f32.mrf.mxu0
  %v1642 = vadd.f32 %v280, %v1641
  %1643 = vmatmul.f32.gmra.mxu0 %v856
  %v1644 = vpop.f32.mrf.mxu0
  %v1645 = vadd.f32 %v280, %v1644
  %1646 = vmatmul.f32.gmra.mxu0 %v859
  %v1647 = vpop.f32.mrf.mxu0
  %v1648 = vadd.f32 %v280, %v1647
  %1649 = vmatmul.f32.gmra.mxu0 %v862
  %v1650 = vpop.f32.mrf.mxu0
  %v1651 = vadd.f32 %v280, %v1650
  %1652 = vmatmul.f32.gmra.mxu0 %v865
  %v1653 = vpop.f32.mrf.mxu0
  %v1654 = vadd.f32 %v280, %v1653
  %1655 = vmatmul.f32.gmra.mxu0 %v868
  %v1656 = vpop.f32.mrf.mxu0
  %v1657 = vadd.f32 %v280, %v1656
  %1658 = vmatmul.f32.gmra.mxu0 %v871
  %v1659 = vpop.f32.mrf.mxu0
  %v1660 = vadd.f32 %v280, %v1659
  %1661 = vmatmul.f32.gmra.mxu0 %v874
  %v1662 = vpop.f32.mrf.mxu0
  %v1663 = vadd.f32 %v280, %v1662
  %1664 = vmatmul.f32.gmra.mxu0 %v877
  %v1665 = vpop.f32.mrf.mxu0
  %v1666 = vadd.f32 %v280, %v1665
  %1667 = vmatmul.f32.gmra.mxu0 %v880
  %v1668 = vpop.f32.mrf.mxu0
  %v1669 = vadd.f32 %v280, %v1668
  %1670 = vmatmul.f32.gmra.mxu0 %v883
  %v1671 = vpop.f32.mrf.mxu0
  %v1672 = vadd.f32 %v280, %v1671
  %1673 = vmatmul.f32.gmra.mxu0 %v886
  %v1674 = vpop.f32.mrf.mxu0
  %v1675 = vadd.f32 %v280, %v1674
  %1676 = vmatmul.f32.gmra.mxu0 %v889
  %v1677 = vpop.f32.mrf.mxu0
  %v1678 = vadd.f32 %v280, %v1677
  %1679 = vmatmul.f32.gmra.mxu0 %v892
  %v1680 = vpop.f32.mrf.mxu0
  %v1681 = vadd.f32 %v280, %v1680
  %1682 = vmatmul.f32.gmra.mxu0 %v895
  %v1683 = vpop.f32.mrf.mxu0
  %v1684 = vadd.f32 %v280, %v1683
  %1685 = vmatmul.f32.gmra.mxu0 %v898
  %v1686 = vpop.f32.mrf.mxu0
  %v1687 = vadd.f32 %v280, %v1686
  %1688 = vmatmul.f32.gmra.mxu0 %v901
  %v1689 = vpop.f32.mrf.mxu0
  %v1690 = vadd.f32 %v280, %v1689
  %1691 = vmatmul.f32.gmra.mxu0 %v904
  %v1692 = vpop.f32.mrf.mxu0
  %v1693 = vadd.f32 %v280, %v1692
  %1694 = vmatmul.f32.gmra.mxu0 %v907
  %v1695 = vpop.f32.mrf.mxu0
  %v1696 = vadd.f32 %v280, %v1695
  %1697 = vmatmul.f32.gmra.mxu0 %v910
  %v1698 = vpop.f32.mrf.mxu0
  %v1699 = vadd.f32 %v280, %v1698
  %1700 = vmatmul.f32.gmra.mxu0 %v913
  %v1701 = vpop.f32.mrf.mxu0
  %v1702 = vadd.f32 %v280, %v1701
  %1703 = vmatmul.f32.gmra.mxu0 %v916
  %v1704 = vpop.f32.mrf.mxu0
  %v1705 = vadd.f32 %v280, %v1704
  %1706 = vmatmul.f32.gmra.mxu0 %v919
  %v1707 = vpop.f32.mrf.mxu0
  %v1708 = vadd.f32 %v280, %v1707
  %1709 = vmatmul.f32.gmra.mxu0 %v922
  %v1710 = vpop.f32.mrf.mxu0
  %v1711 = vadd.f32 %v280, %v1710
  %1712 = vmatmul.f32.gmra.mxu0 %v925
  %v1713 = vpop.f32.mrf.mxu0
  %v1714 = vadd.f32 %v280, %v1713
  %1715 = vmatmul.f32.gmra.mxu0 %v928
  %v1716 = vpop.f32.mrf.mxu0
  %v1717 = vadd.f32 %v280, %v1716
  %1718 = vmatmul.f32.gmra.mxu0 %v931
  %v1719 = vpop.f32.mrf.mxu0
  %v1720 = vadd.f32 %v280, %v1719
  %1721 = vmatmul.f32.gmra.mxu0 %v934
  %v1722 = vpop.f32.mrf.mxu0
  %v1723 = vadd.f32 %v280, %v1722
  %1724 = vmatmul.f32.gmra.mxu0 %v937
  %v1725 = vpop.f32.mrf.mxu0
  %v1726 = vadd.f32 %v280, %v1725
  %1727 = vmatmul.f32.gmra.mxu0 %v940
  %v1728 = vpop.f32.mrf.mxu0
  %v1729 = vadd.f32 %v280, %v1728
  %1730 = vmatmul.f32.gmra.mxu0 %v943
  %v1731 = vpop.f32.mrf.mxu0
  %v1732 = vadd.f32 %v280, %v1731
  %1733 = vmatmul.f32.gmra.mxu0 %v946
  %v1734 = vpop.f32.mrf.mxu0
  %v1735 = vadd.f32 %v280, %v1734
  %1736 = vmatmul.f32.gmra.mxu0 %v949
  %v1737 = vpop.f32.mrf.mxu0
  %v1738 = vadd.f32 %v280, %v1737
  %1739 = vmatmul.f32.gmra.mxu0 %v952
  %v1740 = vpop.f32.mrf.mxu0
  %v1741 = vadd.f32 %v280, %v1740
  %1742 = vmatmul.f32.gmra.mxu0 %v955
  %v1743 = vpop.f32.mrf.mxu0
  %v1744 = vadd.f32 %v280, %v1743
  %1745 = vmatmul.f32.gmra.mxu0 %v958
  %v1746 = vpop.f32.mrf.mxu0
  %v1747 = vadd.f32 %v280, %v1746
  %1748 = vmatmul.f32.gmra.mxu0 %v961
  %v1749 = vpop.f32.mrf.mxu0
  %v1750 = vadd.f32 %v280, %v1749
  %1751 = vmatmul.f32.gmra.mxu0 %v964
  %v1752 = vpop.f32.mrf.mxu0
  %v1753 = vadd.f32 %v280, %v1752
  %1754 = vmatmul.f32.gmra.mxu0 %v967
  %v1755 = vpop.f32.mrf.mxu0
  %v1756 = vadd.f32 %v280, %v1755
  %1757 = vmatmul.f32.gmra.mxu0 %v970
  %v1758 = vpop.f32.mrf.mxu0
  %v1759 = vadd.f32 %v280, %v1758
  %1760 = vmatmul.f32.gmra.mxu0 %v973
  %v1761 = vpop.f32.mrf.mxu0
  %v1762 = vadd.f32 %v280, %v1761
  %1763 = vmatmul.f32.gmra.mxu0 %v976
  %v1764 = vpop.f32.mrf.mxu0
  %v1765 = vadd.f32 %v280, %v1764
  %1766 = vmatmul.f32.gmra.mxu0 %v979
  %v1767 = vpop.f32.mrf.mxu0
  %v1768 = vadd.f32 %v280, %v1767
  %1769 = vmatmul.f32.gmra.mxu0 %v982
  %v1770 = vpop.f32.mrf.mxu0
  %v1771 = vadd.f32 %v280, %v1770
  %1772 = vmatmul.f32.gmra.mxu0 %v985
  %v1773 = vpop.f32.mrf.mxu0
  %v1774 = vadd.f32 %v280, %v1773
  %1775 = vmatmul.f32.gmra.mxu0 %v988
  %v1776 = vpop.f32.mrf.mxu0
  %v1777 = vadd.f32 %v280, %v1776
  %1778 = vmatmul.f32.gmra.mxu0 %v991
  %v1779 = vpop.f32.mrf.mxu0
  %v1780 = vadd.f32 %v280, %v1779
  %1781 = vmatmul.f32.gmra.mxu0 %v994
  %v1782 = vpop.f32.mrf.mxu0
  %v1783 = vadd.f32 %v280, %v1782
  %1784 = vmatmul.f32.gmra.mxu0 %v997
  %v1785 = vpop.f32.mrf.mxu0
  %v1786 = vadd.f32 %v280, %v1785
  %1787 = vmatmul.f32.gmra.mxu0 %v1000
  %v1788 = vpop.f32.mrf.mxu0
  %v1789 = vadd.f32 %v280, %v1788
  %1790 = vmatmul.f32.gmra.mxu0 %v1003
  %v1791 = vpop.f32.mrf.mxu0
  %v1792 = vadd.f32 %v280, %v1791
  %1793 = vmatmul.f32.gmra.mxu0 %v1006
  %v1794 = vpop.f32.mrf.mxu0
  %v1795 = vadd.f32 %v280, %v1794
  %1796 = vmatmul.f32.gmra.mxu0 %v1009
  %v1797 = vpop.f32.mrf.mxu0
  %v1798 = vadd.f32 %v280, %v1797
  %1799 = vmatmul.f32.gmra.mxu0 %v1012
  %v1800 = vpop.f32.mrf.mxu0
  %v1801 = vadd.f32 %v280, %v1800
  %1802 = vmatmul.f32.gmra.mxu0 %v1015
  %v1803 = vpop.f32.mrf.mxu0
  %v1804 = vadd.f32 %v280, %v1803
  %1805 = vmatmul.f32.gmra.mxu0 %v1018
  %v1806 = vpop.f32.mrf.mxu0
  %v1807 = vadd.f32 %v280, %v1806
  %1808 = vmatmul.f32.gmra.mxu0 %v1021
  %v1809 = vpop.f32.mrf.mxu0
  %v1810 = vadd.f32 %v280, %v1809
  %1811 = vmatmul.f32.gmra.mxu0 %v1024
  %v1812 = vpop.f32.mrf.mxu0
  %v1813 = vadd.f32 %v280, %v1812
  %1814 = vmatmul.f32.gmra.mxu0 %v1027
  %v1815 = vpop.f32.mrf.mxu0
  %v1816 = vadd.f32 %v280, %v1815
  %1817 = vmatmul.f32.gmra.mxu0 %v1030
  %v1818 = vpop.f32.mrf.mxu0
  %v1819 = vadd.f32 %v280, %v1818
  %1820 = vmatmul.f32.gmra.mxu0 %v1033
  %v1821 = vpop.f32.mrf.mxu0
  %v1822 = vadd.f32 %v280, %v1821
  %1823 = vmatmul.f32.gmra.mxu0 %v1036
  %v1824 = vpop.f32.mrf.mxu0
  %v1825 = vadd.f32 %v280, %v1824
  %1826 = vmatmul.f32.gmra.mxu0 %v1039
  %v1827 = vpop.f32.mrf.mxu0
  %v1828 = vadd.f32 %v280, %v1827
  %1829 = vmatmul.f32.gmra.mxu0 %v1042
  %v1830 = vpop.f32.mrf.mxu0
  %v1831 = vadd.f32 %v280, %v1830
  %1832 = vmatmul.f32.gmra.mxu0 %v1045
  %v1833 = vpop.f32.mrf.mxu0
  %v1834 = vadd.f32 %v280, %v1833
  %1835 = vmatmul.f32.gmra.mxu0 %v1048
  %v1836 = vpop.f32.mrf.mxu0
  %v1837 = vadd.f32 %v280, %v1836
  %1838 = vdwg.mxu0
  %v1839 = vmax.f32 %v1072, 0.0
  %v1840 = vmax.f32 %v1075, 0.0
  %v1841 = vmax.f32 %v1078, 0.0
  %v1842 = vmax.f32 %v1081, 0.0
  %v1843 = vmax.f32 %v1084, 0.0
  %v1844 = vmax.f32 %v1087, 0.0
  %v1845 = vmax.f32 %v1090, 0.0
  %v1846 = vmax.f32 %v1093, 0.0
  %v1847 = vmax.f32 %v1096, 0.0
  %v1848 = vmax.f32 %v1099, 0.0
  %v1849 = vmax.f32 %v1102, 0.0
  %v1850 = vmax.f32 %v1105, 0.0
  %v1851 = vmax.f32 %v1108, 0.0
  %v1852 = vmax.f32 %v1111, 0.0
  %v1853 = vmax.f32 %v1114, 0.0
  %v1854 = vmax.f32 %v1117, 0.0
  %v1855 = vmax.f32 %v1120, 0.0
  %v1856 = vmax.f32 %v1123, 0.0
  %v1857 = vmax.f32 %v1126, 0.0
  %v1858 = vmax.f32 %v1129, 0.0
  %v1859 = vmax.f32 %v1132, 0.0
  %v1860 = vmax.f32 %v1135, 0.0
  %v1861 = vmax.f32 %v1138, 0.0
  %v1862 = vmax.f32 %v1141, 0.0
  %v1863 = vmax.f32 %v1144, 0.0
  %v1864 = vmax.f32 %v1147, 0.0
  %v1865 = vmax.f32 %v1150, 0.0
  %v1866 = vmax.f32 %v1153, 0.0
  %v1867 = vmax.f32 %v1156, 0.0
  %v1868 = vmax.f32 %v1159, 0.0
  %v1869 = vmax.f32 %v1162, 0.0
  %v1870 = vmax.f32 %v1165, 0.0
  %v1871 = vmax.f32 %v1168, 0.0
  %v1872 = vmax.f32 %v1171, 0.0
  %v1873 = vmax.f32 %v1174, 0.0
  %v1874 = vmax.f32 %v1177, 0.0
  %v1875 = vmax.f32 %v1180, 0.0
  %v1876 = vmax.f32 %v1183, 0.0
  %v1877 = vmax.f32 %v1186, 0.0
  %v1878 = vmax.f32 %v1189, 0.0
  %v1879 = vmax.f32 %v1192, 0.0
  %v1880 = vmax.f32 %v1195, 0.0
  %v1881 = vmax.f32 %v1198, 0.0
  %v1882 = vmax.f32 %v1201, 0.0
  %v1883 = vmax.f32 %v1204, 0.0
  %v1884 = vmax.f32 %v1207, 0.0
  %v1885 = vmax.f32 %v1210, 0.0
  %v1886 = vmax.f32 %v1213, 0.0
  %v1887 = vmax.f32 %v1216, 0.0
  %v1888 = vmax.f32 %v1219, 0.0
  %v1889 = vmax.f32 %v1222, 0.0
  %v1890 = vmax.f32 %v1225, 0.0
  %v1891 = vmax.f32 %v1228, 0.0
  %v1892 = vmax.f32 %v1231, 0.0
  %v1893 = vmax.f32 %v1234, 0.0
  %v1894 = vmax.f32 %v1237, 0.0
  %v1895 = vmax.f32 %v1240, 0.0
  %v1896 = vmax.f32 %v1243, 0.0
  %v1897 = vmax.f32 %v1246, 0.0
  %v1898 = vmax.f32 %v1249, 0.0
  %v1899 = vmax.f32 %v1252, 0.0
  %v1900 = vmax.f32 %v1255, 0.0
  %v1901 = vmax.f32 %v1258, 0.0
  %v1902 = vmax.f32 %v1261, 0.0
  %v1903 = vmax.f32 %v1264, 0.0
  %v1904 = vmax.f32 %v1267, 0.0
  %v1905 = vmax.f32 %v1270, 0.0
  %v1906 = vmax.f32 %v1273, 0.0
  %v1907 = vmax.f32 %v1276, 0.0
  %v1908 = vmax.f32 %v1279, 0.0
  %v1909 = vmax.f32 %v1282, 0.0
  %v1910 = vmax.f32 %v1285, 0.0
  %v1911 = vmax.f32 %v1288, 0.0
  %v1912 = vmax.f32 %v1291, 0.0
  %v1913 = vmax.f32 %v1294, 0.0
  %v1914 = vmax.f32 %v1297, 0.0
  %v1915 = vmax.f32 %v1300, 0.0
  %v1916 = vmax.f32 %v1303, 0.0
  %v1917 = vmax.f32 %v1306, 0.0
  %v1918 = vmax.f32 %v1309, 0.0
  %v1919 = vmax.f32 %v1312, 0.0
  %v1920 = vmax.f32 %v1315, 0.0
  %v1921 = vmax.f32 %v1318, 0.0
  %v1922 = vmax.f32 %v1321, 0.0
  %v1923 = vmax.f32 %v1324, 0.0
  %v1924 = vmax.f32 %v1327, 0.0
  %v1925 = vmax.f32 %v1330, 0.0
  %v1926 = vmax.f32 %v1333, 0.0
  %v1927 = vmax.f32 %v1336, 0.0
  %v1928 = vmax.f32 %v1339, 0.0
  %v1929 = vmax.f32 %v1342, 0.0
  %v1930 = vmax.f32 %v1345, 0.0
  %v1931 = vmax.f32 %v1348, 0.0
  %v1932 = vmax.f32 %v1351, 0.0
  %v1933 = vmax.f32 %v1354, 0.0
  %v1934 = vmax.f32 %v1357, 0.0
  %v1935 = vmax.f32 %v1360, 0.0
  %v1936 = vmax.f32 %v1363, 0.0
  %v1937 = vmax.f32 %v1366, 0.0
  %v1938 = vmax.f32 %v1369, 0.0
  %v1939 = vmax.f32 %v1372, 0.0
  %v1940 = vmax.f32 %v1375, 0.0
  %v1941 = vmax.f32 %v1378, 0.0
  %v1942 = vmax.f32 %v1381, 0.0
  %v1943 = vmax.f32 %v1384, 0.0
  %v1944 = vmax.f32 %v1387, 0.0
  %v1945 = vmax.f32 %v1390, 0.0
  %v1946 = vmax.f32 %v1393, 0.0
  %v1947 = vmax.f32 %v1396, 0.0
  %v1948 = vmax.f32 %v1399, 0.0
  %v1949 = vmax.f32 %v1402, 0.0
  %v1950 = vmax.f32 %v1405, 0.0
  %v1951 = vmax.f32 %v1408, 0.0
  %v1952 = vmax.f32 %v1411, 0.0
  %v1953 = vmax.f32 %v1414, 0.0
  %v1954 = vmax.f32 %v1417, 0.0
  %v1955 = vmax.f32 %v1420, 0.0
  %v1956 = vmax.f32 %v1423, 0.0
  %v1957 = vmax.f32 %v1426, 0.0
  %v1958 = vmax.f32 %v1429, 0.0
  %v1959 = vmax.f32 %v1432, 0.0
  %v1960 = vmax.f32 %v1435, 0.0
  %v1961 = vmax.f32 %v1438, 0.0
  %v1962 = vmax.f32 %v1441, 0.0
  %v1963 = vmax.f32 %v1444, 0.0
  %v1964 = vmax.f32 %v1447, 0.0
  %v1965 = vmax.f32 %v1450, 0.0
  %v1966 = vmax.f32 %v1453, 0.0
  %v1967 = vmax.f32 %v1456, 0.0
  %v1968 = vmax.f32 %v1459, 0.0
  %v1969 = vmax.f32 %v1462, 0.0
  %v1970 = vmax.f32 %v1465, 0.0
  %v1971 = vmax.f32 %v1468, 0.0
  %v1972 = vmax.f32 %v1471, 0.0
  %v1973 = vmax.f32 %v1474, 0.0
  %v1974 = vmax.f32 %v1477, 0.0
  %v1975 = vmax.f32 %v1480, 0.0
  %v1976 = vmax.f32 %v1483, 0.0
  %v1977 = vmax.f32 %v1486, 0.0
  %v1978 = vmax.f32 %v1489, 0.0
  %v1979 = vmax.f32 %v1492, 0.0
  %v1980 = vmax.f32 %v1495, 0.0
  %v1981 = vmax.f32 %v1498, 0.0
  %v1982 = vmax.f32 %v1501, 0.0
  %v1983 = vmax.f32 %v1504, 0.0
  %v1984 = vmax.f32 %v1507, 0.0
  %v1985 = vmax.f32 %v1510, 0.0
  %v1986 = vmax.f32 %v1513, 0.0
  %v1987 = vmax.f32 %v1516, 0.0
  %v1988 = vmax.f32 %v1519, 0.0
  %v1989 = vmax.f32 %v1522, 0.0
  %v1990 = vmax.f32 %v1525, 0.0
  %v1991 = vmax.f32 %v1528, 0.0
  %v1992 = vmax.f32 %v1531, 0.0
  %v1993 = vmax.f32 %v1534, 0.0
  %v1994 = vmax.f32 %v1537, 0.0
  %v1995 = vmax.f32 %v1540, 0.0
  %v1996 = vmax.f32 %v1543, 0.0
  %v1997 = vmax.f32 %v1546, 0.0
  %v1998 = vmax.f32 %v1549, 0.0
  %v1999 = vmax.f32 %v1552, 0.0
  %v2000 = vmax.f32 %v1555, 0.0
  %v2001 = vmax.f32 %v1558, 0.0
  %v2002 = vmax.f32 %v1561, 0.0
  %v2003 = vmax.f32 %v1564, 0.0
  %v2004 = vmax.f32 %v1567, 0.0
  %v2005 = vmax.f32 %v1570, 0.0
  %v2006 = vmax.f32 %v1573, 0.0
  %v2007 = vmax.f32 %v1576, 0.0
  %v2008 = vmax.f32 %v1579, 0.0
  %v2009 = vmax.f32 %v1582, 0.0
  %v2010 = vmax.f32 %v1585, 0.0
  %v2011 = vmax.f32 %v1588, 0.0
  %v2012 = vmax.f32 %v1591, 0.0
  %v2013 = vmax.f32 %v1594, 0.0
  %v2014 = vmax.f32 %v1597, 0.0
  %v2015 = vmax.f32 %v1600, 0.0
  %v2016 = vmax.f32 %v1603, 0.0
  %v2017 = vmax.f32 %v1606, 0.0
  %v2018 = vmax.f32 %v1609, 0.0
  %v2019 = vmax.f32 %v1612, 0.0
  %v2020 = vmax.f32 %v1615, 0.0
  %v2021 = vmax.f32 %v1618, 0.0
  %v2022 = vmax.f32 %v1621, 0.0
  %v2023 = vmax.f32 %v1624, 0.0
  %v2024 = vmax.f32 %v1627, 0.0
  %v2025 = vmax.f32 %v1630, 0.0
  %v2026 = vmax.f32 %v1633, 0.0
  %v2027 = vmax.f32 %v1636, 0.0
  %v2028 = vmax.f32 %v1639, 0.0
  %v2029 = vmax.f32 %v1642, 0.0
  %v2030 = vmax.f32 %v1645, 0.0
  %v2031 = vmax.f32 %v1648, 0.0
  %v2032 = vmax.f32 %v1651, 0.0
  %v2033 = vmax.f32 %v1654, 0.0
  %v2034 = vmax.f32 %v1657, 0.0
  %v2035 = vmax.f32 %v1660, 0.0
  %v2036 = vmax.f32 %v1663, 0.0
  %v2037 = vmax.f32 %v1666, 0.0
  %v2038 = vmax.f32 %v1669, 0.0
  %v2039 = vmax.f32 %v1672, 0.0
  %v2040 = vmax.f32 %v1675, 0.0
  %v2041 = vmax.f32 %v1678, 0.0
  %v2042 = vmax.f32 %v1681, 0.0
  %v2043 = vmax.f32 %v1684, 0.0
  %v2044 = vmax.f32 %v1687, 0.0
  %v2045 = vmax.f32 %v1690, 0.0
  %v2046 = vmax.f32 %v1693, 0.0
  %v2047 = vmax.f32 %v1696, 0.0
  %v2048 = vmax.f32 %v1699, 0.0
  %v2049 = vmax.f32 %v1702, 0.0
  %v2050 = vmax.f32 %v1705, 0.0
  %v2051 = vmax.f32 %v1708, 0.0
  %v2052 = vmax.f32 %v1711, 0.0
  %v2053 = vmax.f32 %v1714, 0.0
  %v2054 = vmax.f32 %v1717, 0.0
  %v2055 = vmax.f32 %v1720, 0.0
  %v2056 = vmax.f32 %v1723, 0.0
  %v2057 = vmax.f32 %v1726, 0.0
  %v2058 = vmax.f32 %v1729, 0.0
  %v2059 = vmax.f32 %v1732, 0.0
  %v2060 = vmax.f32 %v1735, 0.0
  %v2061 = vmax.f32 %v1738, 0.0
  %v2062 = vmax.f32 %v1741, 0.0
  %v2063 = vmax.f32 %v1744, 0.0
  %v2064 = vmax.f32 %v1747, 0.0
  %v2065 = vmax.f32 %v1750, 0.0
  %v2066 = vmax.f32 %v1753, 0.0
  %v2067 = vmax.f32 %v1756, 0.0
  %v2068 = vmax.f32 %v1759, 0.0
  %v2069 = vmax.f32 %v1762, 0.0
  %v2070 = vmax.f32 %v1765, 0.0
  %v2071 = vmax.f32 %v1768, 0.0
  %v2072 = vmax.f32 %v1771, 0.0
  %v2073 = vmax.f32 %v1774, 0.0
  %v2074 = vmax.f32 %v1777, 0.0
  %v2075 = vmax.f32 %v1780, 0.0
  %v2076 = vmax.f32 %v1783, 0.0
  %v2077 = vmax.f32 %v1786, 0.0
  %v2078 = vmax.f32 %v1789, 0.0
  %v2079 = vmax.f32 %v1792, 0.0
  %v2080 = vmax.f32 %v1795, 0.0
  %v2081 = vmax.f32 %v1798, 0.0
  %v2082 = vmax.f32 %v1801, 0.0
  %v2083 = vmax.f32 %v1804, 0.0
  %v2084 = vmax.f32 %v1807, 0.0
  %v2085 = vmax.f32 %v1810, 0.0
  %v2086 = vmax.f32 %v1813, 0.0
  %v2087 = vmax.f32 %v1816, 0.0
  %v2088 = vmax.f32 %v1819, 0.0
  %v2089 = vmax.f32 %v1822, 0.0
  %v2090 = vmax.f32 %v1825, 0.0
  %v2091 = vmax.f32 %v1828, 0.0
  %v2092 = vmax.f32 %v1831, 0.0
  %v2093 = vmax.f32 %v1834, 0.0
  %v2094 = vmax.f32 %v1837, 0.0
  %v2095 = vld [vmem:[%s2] sm:$0xff]
  %v2096 = vld [vmem:[%s2 + $0x8] sm:$0xff]
  %v2097 = vld [vmem:[%s2 + $0x10] sm:$0xff]
  %v2098 = vperm.slane %v277, 0
  %vm2099 = vcmask 195584
  %v2101 = vsel %vm2099, %v1839, 0
  %v2104 = vsel %vm2099, %v1840, 0
  %v2107 = vsel %vm2099, %v1841, 0
  %v2110 = vsel %vm2099, %v1842, 0
  %v2113 = vsel %vm2099, %v1843, 0
  %v2116 = vsel %vm2099, %v1844, 0
  %v2119 = vsel %vm2099, %v1845, 0
  %v2122 = vsel %vm2099, %v1846, 0
  %v2125 = vsel %vm2099, %v1847, 0
  %v2128 = vsel %vm2099, %v1848, 0
  %v2131 = vsel %vm2099, %v1849, 0
  %v2134 = vsel %vm2099, %v1850, 0
  %v2137 = vsel %vm2099, %v1851, 0
  %v2140 = vsel %vm2099, %v1852, 0
  %v2143 = vsel %vm2099, %v1853, 0
  %v2146 = vsel %vm2099, %v1854, 0
  %v2149 = vsel %vm2099, %v1855, 0
  %v2152 = vsel %vm2099, %v1856, 0
  %v2155 = vsel %vm2099, %v1857, 0
  %v2158 = vsel %vm2099, %v1858, 0
  %v2161 = vsel %vm2099, %v1859, 0
  %v2164 = vsel %vm2099, %v1860, 0
  %v2167 = vsel %vm2099, %v1861, 0
  %v2170 = vsel %vm2099, %v1862, 0
  %v2173 = vsel %vm2099, %v1863, 0
  %v2176 = vsel %vm2099, %v1864, 0
  %v2179 = vsel %vm2099, %v1865, 0
  %v2182 = vsel %vm2099, %v1866, 0
  %v2185 = vsel %vm2099, %v1867, 0
  %v2188 = vsel %vm2099, %v1868, 0
  %v2191 = vsel %vm2099, %v1869, 0
  %v2194 = vsel %vm2099, %v1870, 0
  %v2197 = vsel %vm2099, %v1871, 0
  %v2200 = vsel %vm2099, %v1872, 0
  %v2203 = vsel %vm2099, %v1873, 0
  %v2206 = vsel %vm2099, %v1874, 0
  %v2209 = vsel %vm2099, %v1875, 0
  %v2212 = vsel %vm2099, %v1876, 0
  %v2215 = vsel %vm2099, %v1877, 0
  %v2218 = vsel %vm2099, %v1878, 0
  %v2221 = vsel %vm2099, %v1879, 0
  %v2224 = vsel %vm2099, %v1880, 0
  %v2227 = vsel %vm2099, %v1881, 0
  %v2230 = vsel %vm2099, %v1882, 0
  %v2233 = vsel %vm2099, %v1883, 0
  %v2236 = vsel %vm2099, %v1884, 0
  %v2239 = vsel %vm2099, %v1885, 0
  %v2242 = vsel %vm2099, %v1886, 0
  %v2245 = vsel %vm2099, %v1887, 0
  %v2248 = vsel %vm2099, %v1888, 0
  %v2251 = vsel %vm2099, %v1889, 0
  %v2254 = vsel %vm2099, %v1890, 0
  %v2257 = vsel %vm2099, %v1891, 0
  %v2260 = vsel %vm2099, %v1892, 0
  %v2263 = vsel %vm2099, %v1893, 0
  %v2266 = vsel %vm2099, %v1894, 0
  %v2269 = vsel %vm2099, %v1895, 0
  %v2272 = vsel %vm2099, %v1896, 0
  %v2275 = vsel %vm2099, %v1897, 0
  %v2278 = vsel %vm2099, %v1898, 0
  %v2281 = vsel %vm2099, %v1899, 0
  %v2284 = vsel %vm2099, %v1900, 0
  %v2287 = vsel %vm2099, %v1901, 0
  %v2290 = vsel %vm2099, %v1902, 0
  %v2293 = vsel %vm2099, %v1903, 0
  %v2296 = vsel %vm2099, %v1904, 0
  %v2299 = vsel %vm2099, %v1905, 0
  %v2302 = vsel %vm2099, %v1906, 0
  %v2305 = vsel %vm2099, %v1907, 0
  %v2308 = vsel %vm2099, %v1908, 0
  %v2311 = vsel %vm2099, %v1909, 0
  %v2314 = vsel %vm2099, %v1910, 0
  %v2317 = vsel %vm2099, %v1911, 0
  %v2320 = vsel %vm2099, %v1912, 0
  %v2323 = vsel %vm2099, %v1913, 0
  %v2326 = vsel %vm2099, %v1914, 0
  %v2329 = vsel %vm2099, %v1915, 0
  %v2332 = vsel %vm2099, %v1916, 0
  %v2335 = vsel %vm2099, %v1917, 0
  %v2338 = vsel %vm2099, %v1918, 0
  %v2341 = vsel %vm2099, %v1919, 0
  %v2344 = vsel %vm2099, %v1920, 0
  %v2347 = vsel %vm2099, %v1921, 0
  %v2350 = vsel %vm2099, %v1922, 0
  %v2353 = vsel %vm2099, %v1923, 0
  %v2356 = vsel %vm2099, %v1924, 0
  %v2359 = vsel %vm2099, %v1925, 0
  %v2362 = vsel %vm2099, %v1926, 0
  %v2365 = vsel %vm2099, %v1927, 0
  %v2368 = vsel %vm2099, %v1928, 0
  %v2371 = vsel %vm2099, %v1929, 0
  %v2374 = vsel %vm2099, %v1930, 0
  %v2377 = vsel %vm2099, %v1931, 0
  %v2380 = vsel %vm2099, %v1932, 0
  %v2383 = vsel %vm2099, %v1933, 0
  %v2386 = vsel %vm2099, %v1934, 0
  %v2389 = vsel %vm2099, %v1935, 0
  %v2392 = vsel %vm2099, %v1936, 0
  %v2395 = vsel %vm2099, %v1937, 0
  %v2398 = vsel %vm2099, %v1938, 0
  %v2401 = vsel %vm2099, %v1939, 0
  %v2404 = vsel %vm2099, %v1940, 0
  %v2407 = vsel %vm2099, %v1941, 0
  %v2410 = vsel %vm2099, %v1942, 0
  %v2413 = vsel %vm2099, %v1943, 0
  %v2416 = vsel %vm2099, %v1944, 0
  %v2419 = vsel %vm2099, %v1945, 0
  %v2422 = vsel %vm2099, %v1946, 0
  %v2425 = vsel %vm2099, %v1947, 0
  %v2428 = vsel %vm2099, %v1948, 0
  %v2431 = vsel %vm2099, %v1949, 0
  %v2434 = vsel %vm2099, %v1950, 0
  %v2437 = vsel %vm2099, %v1951, 0
  %v2440 = vsel %vm2099, %v1952, 0
  %v2443 = vsel %vm2099, %v1953, 0
  %v2446 = vsel %vm2099, %v1954, 0
  %v2449 = vsel %vm2099, %v1955, 0
  %v2452 = vsel %vm2099, %v1956, 0
  %v2455 = vsel %vm2099, %v1957, 0
  %v2458 = vsel %vm2099, %v1958, 0
  %v2461 = vsel %vm2099, %v1959, 0
  %v2464 = vsel %vm2099, %v1960, 0
  %v2467 = vsel %vm2099, %v1961, 0
  %v2470 = vsel %vm2099, %v1962, 0
  %v2473 = vsel %vm2099, %v1963, 0
  %v2476 = vsel %vm2099, %v1964, 0
  %v2479 = vsel %vm2099, %v1965, 0
  %v2482 = vsel %vm2099, %v1966, 0
  %v2485 = vsel %vm2099, %v1967, 0
  %v2488 = vsel %vm2099, %v1968, 0
  %v2491 = vsel %vm2099, %v1969, 0
  %v2494 = vsel %vm2099, %v1970, 0
  %v2497 = vsel %vm2099, %v1971, 0
  %v2500 = vsel %vm2099, %v1972, 0
  %v2503 = vsel %vm2099, %v1973, 0
  %v2506 = vsel %vm2099, %v1974, 0
  %v2509 = vsel %vm2099, %v1975, 0
  %v2512 = vsel %vm2099, %v1976, 0
  %v2515 = vsel %vm2099, %v1977, 0
  %v2518 = vsel %vm2099, %v1978, 0
  %v2521 = vsel %vm2099, %v1979, 0
  %v2524 = vsel %vm2099, %v1980, 0
  %v2527 = vsel %vm2099, %v1981, 0
  %v2530 = vsel %vm2099, %v1982, 0
  %v2533 = vsel %vm2099, %v1983, 0
  %v2536 = vsel %vm2099, %v1984, 0
  %v2539 = vsel %vm2099, %v1985, 0
  %v2542 = vsel %vm2099, %v1986, 0
  %v2545 = vsel %vm2099, %v1987, 0
  %v2548 = vsel %vm2099, %v1988, 0
  %v2551 = vsel %vm2099, %v1989, 0
  %v2554 = vsel %vm2099, %v1990, 0
  %v2557 = vsel %vm2099, %v1991, 0
  %v2560 = vsel %vm2099, %v1992, 0
  %v2563 = vsel %vm2099, %v1993, 0
  %v2566 = vsel %vm2099, %v1994, 0
  %v2569 = vsel %vm2099, %v1995, 0
  %v2572 = vsel %vm2099, %v1996, 0
  %v2575 = vsel %vm2099, %v1997, 0
  %v2578 = vsel %vm2099, %v1998, 0
  %v2581 = vsel %vm2099, %v1999, 0
  %v2584 = vsel %vm2099, %v2000, 0
  %v2587 = vsel %vm2099, %v2001, 0
  %v2590 = vsel %vm2099, %v2002, 0
  %v2593 = vsel %vm2099, %v2003, 0
  %v2596 = vsel %vm2099, %v2004, 0
  %v2599 = vsel %vm2099, %v2005, 0
  %v2602 = vsel %vm2099, %v2006, 0
  %v2605 = vsel %vm2099, %v2007, 0
  %v2608 = vsel %vm2099, %v2008, 0
  %v2611 = vsel %vm2099, %v2009, 0
  %v2614 = vsel %vm2099, %v2010, 0
  %v2617 = vsel %vm2099, %v2011, 0
  %v2620 = vsel %vm2099, %v2012, 0
  %v2623 = vsel %vm2099, %v2013, 0
  %v2626 = vsel %vm2099, %v2014, 0
  %v2629 = vsel %vm2099, %v2015, 0
  %v2632 = vsel %vm2099, %v2016, 0
  %v2635 = vsel %vm2099, %v2017, 0
  %v2638 = vsel %vm2099, %v2018, 0
  %v2641 = vsel %vm2099, %v2019, 0
  %v2644 = vsel %vm2099, %v2020, 0
  %v2647 = vsel %vm2099, %v2021, 0
  %v2650 = vsel %vm2099, %v2022, 0
  %v2653 = vsel %vm2099, %v2023, 0
  %v2656 = vsel %vm2099, %v2024, 0
  %v2659 = vsel %vm2099, %v2025, 0
  %v2662 = vsel %vm2099, %v2026, 0
  %v2665 = vsel %vm2099, %v2027, 0
  %v2668 = vsel %vm2099, %v2028, 0
  %v2671 = vsel %vm2099, %v2029, 0
  %v2674 = vsel %vm2099, %v2030, 0
  %v2677 = vsel %vm2099, %v2031, 0
  %v2680 = vsel %vm2099, %v2032, 0
  %v2683 = vsel %vm2099, %v2033, 0
  %v2686 = vsel %vm2099, %v2034, 0
  %v2689 = vsel %vm2099, %v2035, 0
  %v2692 = vsel %vm2099, %v2036, 0
  %v2695 = vsel %vm2099, %v2037, 0
  %v2698 = vsel %vm2099, %v2038, 0
  %v2701 = vsel %vm2099, %v2039, 0
  %v2704 = vsel %vm2099, %v2040, 0
  %v2707 = vsel %vm2099, %v2041, 0
  %v2710 = vsel %vm2099, %v2042, 0
  %v2713 = vsel %vm2099, %v2043, 0
  %v2716 = vsel %vm2099, %v2044, 0
  %v2719 = vsel %vm2099, %v2045, 0
  %v2722 = vsel %vm2099, %v2046, 0
  %v2725 = vsel %vm2099, %v2047, 0
  %v2728 = vsel %vm2099, %v2048, 0
  %v2731 = vsel %vm2099, %v2049, 0
  %v2734 = vsel %vm2099, %v2050, 0
  %v2737 = vsel %vm2099, %v2051, 0
  %v2740 = vsel %vm2099, %v2052, 0
  %v2743 = vsel %vm2099, %v2053, 0
  %v2746 = vsel %vm2099, %v2054, 0
  %v2749 = vsel %vm2099, %v2055, 0
  %v2752 = vsel %vm2099, %v2056, 0
  %v2755 = vsel %vm2099, %v2057, 0
  %v2758 = vsel %vm2099, %v2058, 0
  %v2761 = vsel %vm2099, %v2059, 0
  %v2764 = vsel %vm2099, %v2060, 0
  %v2767 = vsel %vm2099, %v2061, 0
  %v2770 = vsel %vm2099, %v2062, 0
  %v2773 = vsel %vm2099, %v2063, 0
  %v2776 = vsel %vm2099, %v2064, 0
  %v2779 = vsel %vm2099, %v2065, 0
  %v2782 = vsel %vm2099, %v2066, 0
  %v2785 = vsel %vm2099, %v2067, 0
  %v2788 = vsel %vm2099, %v2068, 0
  %v2791 = vsel %vm2099, %v2069, 0
  %v2794 = vsel %vm2099, %v2070, 0
  %v2797 = vsel %vm2099, %v2071, 0
  %v2800 = vsel %vm2099, %v2072, 0
  %v2803 = vsel %vm2099, %v2073, 0
  %v2806 = vsel %vm2099, %v2074, 0
  %v2809 = vsel %vm2099, %v2075, 0
  %v2812 = vsel %vm2099, %v2076, 0
  %v2815 = vsel %vm2099, %v2077, 0
  %v2818 = vsel %vm2099, %v2078, 0
  %v2821 = vsel %vm2099, %v2079, 0
  %v2824 = vsel %vm2099, %v2080, 0
  %v2827 = vsel %vm2099, %v2081, 0
  %v2830 = vsel %vm2099, %v2082, 0
  %v2833 = vsel %vm2099, %v2083, 0
  %v2836 = vsel %vm2099, %v2084, 0
  %v2839 = vsel %vm2099, %v2085, 0
  %v2842 = vsel %vm2099, %v2086, 0
  %v2845 = vsel %vm2099, %v2087, 0
  %v2848 = vsel %vm2099, %v2088, 0
  %v2851 = vsel %vm2099, %v2089, 0
  %v2854 = vsel %vm2099, %v2090, 0
  %v2857 = vsel %vm2099, %v2091, 0
  %v2860 = vsel %vm2099, %v2092, 0
  %v2863 = vsel %vm2099, %v2093, 0
  %v2866 = vsel %vm2099, %v2094, 0
  %2868 = vmatpush.msra.mxu0 0.0
  %2869 = vmatpush.msra.mxu0 0.0
  %2870 = vmatpush.msra.mxu0 0.0
  %2871 = vmatpush.msra.mxu0 0.0
  %2872 = vmatpush.msra.mxu0 0.0
  %2873 = vmatpush.msra.mxu0 0.0
  %2874 = vmatpush.msra.mxu0 0.0
  %2875 = vmatpush.msra.mxu0 0.0
  %2876 = vmatpush.msra.mxu0 0.0
  %2877 = vmatpush.msra.mxu0 0.0
  %2878 = vmatpush.msra.mxu0 0.0
  %2879 = vmatpush.msra.mxu0 0.0
  %2880 = vmatpush.msra.mxu0 0.0
  %2881 = vmatpush.msra.mxu0 %v2097
  %2882 = vmatpush.msra.mxu0 %v2096
  %2883 = vmatpush.msra.mxu0 %v2095
  %2884 = vmatmul.f32.gmra.mxu0 %v2101
  %v2885 = vpop.f32.mrf.mxu0
  %v2886 = vadd.f32 %v2098, %v2885
  %2887 = vmatmul.f32.gmra.mxu0 %v2104
  %v2888 = vpop.f32.mrf.mxu0
  %v2889 = vadd.f32 %v2098, %v2888
  %2890 = vmatmul.f32.gmra.mxu0 %v2107
  %v2891 = vpop.f32.mrf.mxu0
  %v2892 = vadd.f32 %v2098, %v2891
  %2893 = vmatmul.f32.gmra.mxu0 %v2110
  %v2894 = vpop.f32.mrf.mxu0
  %v2895 = vadd.f32 %v2098, %v2894
  %2896 = vmatmul.f32.gmra.mxu0 %v2113
  %v2897 = vpop.f32.mrf.mxu0
  %v2898 = vadd.f32 %v2098, %v2897
  %2899 = vmatmul.f32.gmra.mxu0 %v2116
  %v2900 = vpop.f32.mrf.mxu0
  %v2901 = vadd.f32 %v2098, %v2900
  %2902 = vmatmul.f32.gmra.mxu0 %v2119
  %v2903 = vpop.f32.mrf.mxu0
  %v2904 = vadd.f32 %v2098, %v2903
  %2905 = vmatmul.f32.gmra.mxu0 %v2122
  %v2906 = vpop.f32.mrf.mxu0
  %v2907 = vadd.f32 %v2098, %v2906
  %2908 = vmatmul.f32.gmra.mxu0 %v2125
  %v2909 = vpop.f32.mrf.mxu0
  %v2910 = vadd.f32 %v2098, %v2909
  %2911 = vmatmul.f32.gmra.mxu0 %v2128
  %v2912 = vpop.f32.mrf.mxu0
  %v2913 = vadd.f32 %v2098, %v2912
  %2914 = vmatmul.f32.gmra.mxu0 %v2131
  %v2915 = vpop.f32.mrf.mxu0
  %v2916 = vadd.f32 %v2098, %v2915
  %2917 = vmatmul.f32.gmra.mxu0 %v2134
  %v2918 = vpop.f32.mrf.mxu0
  %v2919 = vadd.f32 %v2098, %v2918
  %2920 = vmatmul.f32.gmra.mxu0 %v2137
  %v2921 = vpop.f32.mrf.mxu0
  %v2922 = vadd.f32 %v2098, %v2921
  %2923 = vmatmul.f32.gmra.mxu0 %v2140
  %v2924 = vpop.f32.mrf.mxu0
  %v2925 = vadd.f32 %v2098, %v2924
  %2926 = vmatmul.f32.gmra.mxu0 %v2143
  %v2927 = vpop.f32.mrf.mxu0
  %v2928 = vadd.f32 %v2098, %v2927
  %2929 = vmatmul.f32.gmra.mxu0 %v2146
  %v2930 = vpop.f32.mrf.mxu0
  %v2931 = vadd.f32 %v2098, %v2930
  %2932 = vmatmul.f32.gmra.mxu0 %v2149
  %v2933 = vpop.f32.mrf.mxu0
  %v2934 = vadd.f32 %v2098, %v2933
  %2935 = vmatmul.f32.gmra.mxu0 %v2152
  %v2936 = vpop.f32.mrf.mxu0
  %v2937 = vadd.f32 %v2098, %v2936
  %2938 = vmatmul.f32.gmra.mxu0 %v2155
  %v2939 = vpop.f32.mrf.mxu0
  %v2940 = vadd.f32 %v2098, %v2939
  %2941 = vmatmul.f32.gmra.mxu0 %v2158
  %v2942 = vpop.f32.mrf.mxu0
  %v2943 = vadd.f32 %v2098, %v2942
  %2944 = vmatmul.f32.gmra.mxu0 %v2161
  %v2945 = vpop.f32.mrf.mxu0
  %v2946 = vadd.f32 %v2098, %v2945
  %2947 = vmatmul.f32.gmra.mxu0 %v2164
  %v2948 = vpop.f32.mrf.mxu0
  %v2949 = vadd.f32 %v2098, %v2948
  %2950 = vmatmul.f32.gmra.mxu0 %v2167
  %v2951 = vpop.f32.mrf.mxu0
  %v2952 = vadd.f32 %v2098, %v2951
  %2953 = vmatmul.f32.gmra.mxu0 %v2170
  %v2954 = vpop.f32.mrf.mxu0
  %v2955 = vadd.f32 %v2098, %v2954
  %2956 = vmatmul.f32.gmra.mxu0 %v2173
  %v2957 = vpop.f32.mrf.mxu0
  %v2958 = vadd.f32 %v2098, %v2957
  %2959 = vmatmul.f32.gmra.mxu0 %v2176
  %v2960 = vpop.f32.mrf.mxu0
  %v2961 = vadd.f32 %v2098, %v2960
  %2962 = vmatmul.f32.gmra.mxu0 %v2179
  %v2963 = vpop.f32.mrf.mxu0
  %v2964 = vadd.f32 %v2098, %v2963
  %2965 = vmatmul.f32.gmra.mxu0 %v2182
  %v2966 = vpop.f32.mrf.mxu0
  %v2967 = vadd.f32 %v2098, %v2966
  %2968 = vmatmul.f32.gmra.mxu0 %v2185
  %v2969 = vpop.f32.mrf.mxu0
  %v2970 = vadd.f32 %v2098, %v2969
  %2971 = vmatmul.f32.gmra.mxu0 %v2188
  %v2972 = vpop.f32.mrf.mxu0
  %v2973 = vadd.f32 %v2098, %v2972
  %2974 = vmatmul.f32.gmra.mxu0 %v2191
  %v2975 = vpop.f32.mrf.mxu0
  %v2976 = vadd.f32 %v2098, %v2975
  %2977 = vmatmul.f32.gmra.mxu0 %v2194
  %v2978 = vpop.f32.mrf.mxu0
  %v2979 = vadd.f32 %v2098, %v2978
  %2980 = vmatmul.f32.gmra.mxu0 %v2197
  %v2981 = vpop.f32.mrf.mxu0
  %v2982 = vadd.f32 %v2098, %v2981
  %2983 = vmatmul.f32.gmra.mxu0 %v2200
  %v2984 = vpop.f32.mrf.mxu0
  %v2985 = vadd.f32 %v2098, %v2984
  %2986 = vmatmul.f32.gmra.mxu0 %v2203
  %v2987 = vpop.f32.mrf.mxu0
  %v2988 = vadd.f32 %v2098, %v2987
  %2989 = vmatmul.f32.gmra.mxu0 %v2206
  %v2990 = vpop.f32.mrf.mxu0
  %v2991 = vadd.f32 %v2098, %v2990
  %2992 = vmatmul.f32.gmra.mxu0 %v2209
  %v2993 = vpop.f32.mrf.mxu0
  %v2994 = vadd.f32 %v2098, %v2993
  %2995 = vmatmul.f32.gmra.mxu0 %v2212
  %v2996 = vpop.f32.mrf.mxu0
  %v2997 = vadd.f32 %v2098, %v2996
  %2998 = vmatmul.f32.gmra.mxu0 %v2215
  %v2999 = vpop.f32.mrf.mxu0
  %v3000 = vadd.f32 %v2098, %v2999
  %3001 = vmatmul.f32.gmra.mxu0 %v2218
  %v3002 = vpop.f32.mrf.mxu0
  %v3003 = vadd.f32 %v2098, %v3002
  %3004 = vmatmul.f32.gmra.mxu0 %v2221
  %v3005 = vpop.f32.mrf.mxu0
  %v3006 = vadd.f32 %v2098, %v3005
  %3007 = vmatmul.f32.gmra.mxu0 %v2224
  %v3008 = vpop.f32.mrf.mxu0
  %v3009 = vadd.f32 %v2098, %v3008
  %3010 = vmatmul.f32.gmra.mxu0 %v2227
  %v3011 = vpop.f32.mrf.mxu0
  %v3012 = vadd.f32 %v2098, %v3011
  %3013 = vmatmul.f32.gmra.mxu0 %v2230
  %v3014 = vpop.f32.mrf.mxu0
  %v3015 = vadd.f32 %v2098, %v3014
  %3016 = vmatmul.f32.gmra.mxu0 %v2233
  %v3017 = vpop.f32.mrf.mxu0
  %v3018 = vadd.f32 %v2098, %v3017
  %3019 = vmatmul.f32.gmra.mxu0 %v2236
  %v3020 = vpop.f32.mrf.mxu0
  %v3021 = vadd.f32 %v2098, %v3020
  %3022 = vmatmul.f32.gmra.mxu0 %v2239
  %v3023 = vpop.f32.mrf.mxu0
  %v3024 = vadd.f32 %v2098, %v3023
  %3025 = vmatmul.f32.gmra.mxu0 %v2242
  %v3026 = vpop.f32.mrf.mxu0
  %v3027 = vadd.f32 %v2098, %v3026
  %3028 = vmatmul.f32.gmra.mxu0 %v2245
  %v3029 = vpop.f32.mrf.mxu0
  %v3030 = vadd.f32 %v2098, %v3029
  %3031 = vmatmul.f32.gmra.mxu0 %v2248
  %v3032 = vpop.f32.mrf.mxu0
  %v3033 = vadd.f32 %v2098, %v3032
  %3034 = vmatmul.f32.gmra.mxu0 %v2251
  %v3035 = vpop.f32.mrf.mxu0
  %v3036 = vadd.f32 %v2098, %v3035
  %3037 = vmatmul.f32.gmra.mxu0 %v2254
  %v3038 = vpop.f32.mrf.mxu0
  %v3039 = vadd.f32 %v2098, %v3038
  %3040 = vmatmul.f32.gmra.mxu0 %v2257
  %v3041 = vpop.f32.mrf.mxu0
  %v3042 = vadd.f32 %v2098, %v3041
  %3043 = vmatmul.f32.gmra.mxu0 %v2260
  %v3044 = vpop.f32.mrf.mxu0
  %v3045 = vadd.f32 %v2098, %v3044
  %3046 = vmatmul.f32.gmra.mxu0 %v2263
  %v3047 = vpop.f32.mrf.mxu0
  %v3048 = vadd.f32 %v2098, %v3047
  %3049 = vmatmul.f32.gmra.mxu0 %v2266
  %v3050 = vpop.f32.mrf.mxu0
  %v3051 = vadd.f32 %v2098, %v3050
  %3052 = vmatmul.f32.gmra.mxu0 %v2269
  %v3053 = vpop.f32.mrf.mxu0
  %v3054 = vadd.f32 %v2098, %v3053
  %3055 = vmatmul.f32.gmra.mxu0 %v2272
  %v3056 = vpop.f32.mrf.mxu0
  %v3057 = vadd.f32 %v2098, %v3056
  %3058 = vmatmul.f32.gmra.mxu0 %v2275
  %v3059 = vpop.f32.mrf.mxu0
  %v3060 = vadd.f32 %v2098, %v3059
  %3061 = vmatmul.f32.gmra.mxu0 %v2278
  %v3062 = vpop.f32.mrf.mxu0
  %v3063 = vadd.f32 %v2098, %v3062
  %3064 = vmatmul.f32.gmra.mxu0 %v2281
  %v3065 = vpop.f32.mrf.mxu0
  %v3066 = vadd.f32 %v2098, %v3065
  %3067 = vmatmul.f32.gmra.mxu0 %v2284
  %v3068 = vpop.f32.mrf.mxu0
  %v3069 = vadd.f32 %v2098, %v3068
  %3070 = vmatmul.f32.gmra.mxu0 %v2287
  %v3071 = vpop.f32.mrf.mxu0
  %v3072 = vadd.f32 %v2098, %v3071
  %3073 = vmatmul.f32.gmra.mxu0 %v2290
  %v3074 = vpop.f32.mrf.mxu0
  %v3075 = vadd.f32 %v2098, %v3074
  %3076 = vmatmul.f32.gmra.mxu0 %v2293
  %v3077 = vpop.f32.mrf.mxu0
  %v3078 = vadd.f32 %v2098, %v3077
  %3079 = vmatmul.f32.gmra.mxu0 %v2296
  %v3080 = vpop.f32.mrf.mxu0
  %v3081 = vadd.f32 %v2098, %v3080
  %3082 = vmatmul.f32.gmra.mxu0 %v2299
  %v3083 = vpop.f32.mrf.mxu0
  %v3084 = vadd.f32 %v2098, %v3083
  %3085 = vmatmul.f32.gmra.mxu0 %v2302
  %v3086 = vpop.f32.mrf.mxu0
  %v3087 = vadd.f32 %v2098, %v3086
  %3088 = vmatmul.f32.gmra.mxu0 %v2305
  %v3089 = vpop.f32.mrf.mxu0
  %v3090 = vadd.f32 %v2098, %v3089
  %3091 = vmatmul.f32.gmra.mxu0 %v2308
  %v3092 = vpop.f32.mrf.mxu0
  %v3093 = vadd.f32 %v2098, %v3092
  %3094 = vmatmul.f32.gmra.mxu0 %v2311
  %v3095 = vpop.f32.mrf.mxu0
  %v3096 = vadd.f32 %v2098, %v3095
  %3097 = vmatmul.f32.gmra.mxu0 %v2314
  %v3098 = vpop.f32.mrf.mxu0
  %v3099 = vadd.f32 %v2098, %v3098
  %3100 = vmatmul.f32.gmra.mxu0 %v2317
  %v3101 = vpop.f32.mrf.mxu0
  %v3102 = vadd.f32 %v2098, %v3101
  %3103 = vmatmul.f32.gmra.mxu0 %v2320
  %v3104 = vpop.f32.mrf.mxu0
  %v3105 = vadd.f32 %v2098, %v3104
  %3106 = vmatmul.f32.gmra.mxu0 %v2323
  %v3107 = vpop.f32.mrf.mxu0
  %v3108 = vadd.f32 %v2098, %v3107
  %3109 = vmatmul.f32.gmra.mxu0 %v2326
  %v3110 = vpop.f32.mrf.mxu0
  %v3111 = vadd.f32 %v2098, %v3110
  %3112 = vmatmul.f32.gmra.mxu0 %v2329
  %v3113 = vpop.f32.mrf.mxu0
  %v3114 = vadd.f32 %v2098, %v3113
  %3115 = vmatmul.f32.gmra.mxu0 %v2332
  %v3116 = vpop.f32.mrf.mxu0
  %v3117 = vadd.f32 %v2098, %v3116
  %3118 = vmatmul.f32.gmra.mxu0 %v2335
  %v3119 = vpop.f32.mrf.mxu0
  %v3120 = vadd.f32 %v2098, %v3119
  %3121 = vmatmul.f32.gmra.mxu0 %v2338
  %v3122 = vpop.f32.mrf.mxu0
  %v3123 = vadd.f32 %v2098, %v3122
  %3124 = vmatmul.f32.gmra.mxu0 %v2341
  %v3125 = vpop.f32.mrf.mxu0
  %v3126 = vadd.f32 %v2098, %v3125
  %3127 = vmatmul.f32.gmra.mxu0 %v2344
  %v3128 = vpop.f32.mrf.mxu0
  %v3129 = vadd.f32 %v2098, %v3128
  %3130 = vmatmul.f32.gmra.mxu0 %v2347
  %v3131 = vpop.f32.mrf.mxu0
  %v3132 = vadd.f32 %v2098, %v3131
  %3133 = vmatmul.f32.gmra.mxu0 %v2350
  %v3134 = vpop.f32.mrf.mxu0
  %v3135 = vadd.f32 %v2098, %v3134
  %3136 = vmatmul.f32.gmra.mxu0 %v2353
  %v3137 = vpop.f32.mrf.mxu0
  %v3138 = vadd.f32 %v2098, %v3137
  %3139 = vmatmul.f32.gmra.mxu0 %v2356
  %v3140 = vpop.f32.mrf.mxu0
  %v3141 = vadd.f32 %v2098, %v3140
  %3142 = vmatmul.f32.gmra.mxu0 %v2359
  %v3143 = vpop.f32.mrf.mxu0
  %v3144 = vadd.f32 %v2098, %v3143
  %3145 = vmatmul.f32.gmra.mxu0 %v2362
  %v3146 = vpop.f32.mrf.mxu0
  %v3147 = vadd.f32 %v2098, %v3146
  %3148 = vmatmul.f32.gmra.mxu0 %v2365
  %v3149 = vpop.f32.mrf.mxu0
  %v3150 = vadd.f32 %v2098, %v3149
  %3151 = vmatmul.f32.gmra.mxu0 %v2368
  %v3152 = vpop.f32.mrf.mxu0
  %v3153 = vadd.f32 %v2098, %v3152
  %3154 = vmatmul.f32.gmra.mxu0 %v2371
  %v3155 = vpop.f32.mrf.mxu0
  %v3156 = vadd.f32 %v2098, %v3155
  %3157 = vmatmul.f32.gmra.mxu0 %v2374
  %v3158 = vpop.f32.mrf.mxu0
  %v3159 = vadd.f32 %v2098, %v3158
  %3160 = vmatmul.f32.gmra.mxu0 %v2377
  %v3161 = vpop.f32.mrf.mxu0
  %v3162 = vadd.f32 %v2098, %v3161
  %3163 = vmatmul.f32.gmra.mxu0 %v2380
  %v3164 = vpop.f32.mrf.mxu0
  %v3165 = vadd.f32 %v2098, %v3164
  %3166 = vmatmul.f32.gmra.mxu0 %v2383
  %v3167 = vpop.f32.mrf.mxu0
  %v3168 = vadd.f32 %v2098, %v3167
  %3169 = vmatmul.f32.gmra.mxu0 %v2386
  %v3170 = vpop.f32.mrf.mxu0
  %v3171 = vadd.f32 %v2098, %v3170
  %3172 = vmatmul.f32.gmra.mxu0 %v2389
  %v3173 = vpop.f32.mrf.mxu0
  %v3174 = vadd.f32 %v2098, %v3173
  %3175 = vmatmul.f32.gmra.mxu0 %v2392
  %v3176 = vpop.f32.mrf.mxu0
  %v3177 = vadd.f32 %v2098, %v3176
  %3178 = vmatmul.f32.gmra.mxu0 %v2395
  %v3179 = vpop.f32.mrf.mxu0
  %v3180 = vadd.f32 %v2098, %v3179
  %3181 = vmatmul.f32.gmra.mxu0 %v2398
  %v3182 = vpop.f32.mrf.mxu0
  %v3183 = vadd.f32 %v2098, %v3182
  %3184 = vmatmul.f32.gmra.mxu0 %v2401
  %v3185 = vpop.f32.mrf.mxu0
  %v3186 = vadd.f32 %v2098, %v3185
  %3187 = vmatmul.f32.gmra.mxu0 %v2404
  %v3188 = vpop.f32.mrf.mxu0
  %v3189 = vadd.f32 %v2098, %v3188
  %3190 = vmatmul.f32.gmra.mxu0 %v2407
  %v3191 = vpop.f32.mrf.mxu0
  %v3192 = vadd.f32 %v2098, %v3191
  %3193 = vmatmul.f32.gmra.mxu0 %v2410
  %v3194 = vpop.f32.mrf.mxu0
  %v3195 = vadd.f32 %v2098, %v3194
  %3196 = vmatmul.f32.gmra.mxu0 %v2413
  %v3197 = vpop.f32.mrf.mxu0
  %v3198 = vadd.f32 %v2098, %v3197
  %3199 = vmatmul.f32.gmra.mxu0 %v2416
  %v3200 = vpop.f32.mrf.mxu0
  %v3201 = vadd.f32 %v2098, %v3200
  %3202 = vmatmul.f32.gmra.mxu0 %v2419
  %v3203 = vpop.f32.mrf.mxu0
  %v3204 = vadd.f32 %v2098, %v3203
  %3205 = vmatmul.f32.gmra.mxu0 %v2422
  %v3206 = vpop.f32.mrf.mxu0
  %v3207 = vadd.f32 %v2098, %v3206
  %3208 = vmatmul.f32.gmra.mxu0 %v2425
  %v3209 = vpop.f32.mrf.mxu0
  %v3210 = vadd.f32 %v2098, %v3209
  %3211 = vmatmul.f32.gmra.mxu0 %v2428
  %v3212 = vpop.f32.mrf.mxu0
  %v3213 = vadd.f32 %v2098, %v3212
  %3214 = vmatmul.f32.gmra.mxu0 %v2431
  %v3215 = vpop.f32.mrf.mxu0
  %v3216 = vadd.f32 %v2098, %v3215
  %3217 = vmatmul.f32.gmra.mxu0 %v2434
  %v3218 = vpop.f32.mrf.mxu0
  %v3219 = vadd.f32 %v2098, %v3218
  %3220 = vmatmul.f32.gmra.mxu0 %v2437
  %v3221 = vpop.f32.mrf.mxu0
  %v3222 = vadd.f32 %v2098, %v3221
  %3223 = vmatmul.f32.gmra.mxu0 %v2440
  %v3224 = vpop.f32.mrf.mxu0
  %v3225 = vadd.f32 %v2098, %v3224
  %3226 = vmatmul.f32.gmra.mxu0 %v2443
  %v3227 = vpop.f32.mrf.mxu0
  %v3228 = vadd.f32 %v2098, %v3227
  %3229 = vmatmul.f32.gmra.mxu0 %v2446
  %v3230 = vpop.f32.mrf.mxu0
  %v3231 = vadd.f32 %v2098, %v3230
  %3232 = vmatmul.f32.gmra.mxu0 %v2449
  %v3233 = vpop.f32.mrf.mxu0
  %v3234 = vadd.f32 %v2098, %v3233
  %3235 = vmatmul.f32.gmra.mxu0 %v2452
  %v3236 = vpop.f32.mrf.mxu0
  %v3237 = vadd.f32 %v2098, %v3236
  %3238 = vmatmul.f32.gmra.mxu0 %v2455
  %v3239 = vpop.f32.mrf.mxu0
  %v3240 = vadd.f32 %v2098, %v3239
  %3241 = vmatmul.f32.gmra.mxu0 %v2458
  %v3242 = vpop.f32.mrf.mxu0
  %v3243 = vadd.f32 %v2098, %v3242
  %3244 = vmatmul.f32.gmra.mxu0 %v2461
  %v3245 = vpop.f32.mrf.mxu0
  %v3246 = vadd.f32 %v2098, %v3245
  %3247 = vmatmul.f32.gmra.mxu0 %v2464
  %v3248 = vpop.f32.mrf.mxu0
  %v3249 = vadd.f32 %v2098, %v3248
  %3250 = vmatmul.f32.gmra.mxu0 %v2467
  %v3251 = vpop.f32.mrf.mxu0
  %v3252 = vadd.f32 %v2098, %v3251
  %3253 = vmatmul.f32.gmra.mxu0 %v2470
  %v3254 = vpop.f32.mrf.mxu0
  %v3255 = vadd.f32 %v2098, %v3254
  %3256 = vmatmul.f32.gmra.mxu0 %v2473
  %v3257 = vpop.f32.mrf.mxu0
  %v3258 = vadd.f32 %v2098, %v3257
  %3259 = vmatmul.f32.gmra.mxu0 %v2476
  %v3260 = vpop.f32.mrf.mxu0
  %v3261 = vadd.f32 %v2098, %v3260
  %3262 = vmatmul.f32.gmra.mxu0 %v2479
  %v3263 = vpop.f32.mrf.mxu0
  %v3264 = vadd.f32 %v2098, %v3263
  %3265 = vmatmul.f32.gmra.mxu0 %v2482
  %v3266 = vpop.f32.mrf.mxu0
  %v3267 = vadd.f32 %v2098, %v3266
  %3268 = vmatmul.f32.gmra.mxu0 %v2485
  %v3269 = vpop.f32.mrf.mxu0
  %v3270 = vadd.f32 %v2098, %v3269
  %3271 = vmatmul.f32.gmra.mxu0 %v2488
  %v3272 = vpop.f32.mrf.mxu0
  %v3273 = vadd.f32 %v2098, %v3272
  %3274 = vmatmul.f32.gmra.mxu0 %v2491
  %v3275 = vpop.f32.mrf.mxu0
  %v3276 = vadd.f32 %v2098, %v3275
  %3277 = vmatmul.f32.gmra.mxu0 %v2494
  %v3278 = vpop.f32.mrf.mxu0
  %v3279 = vadd.f32 %v2098, %v3278
  %3280 = vmatmul.f32.gmra.mxu0 %v2497
  %v3281 = vpop.f32.mrf.mxu0
  %v3282 = vadd.f32 %v2098, %v3281
  %3283 = vmatmul.f32.gmra.mxu0 %v2500
  %v3284 = vpop.f32.mrf.mxu0
  %v3285 = vadd.f32 %v2098, %v3284
  %3286 = vmatmul.f32.gmra.mxu0 %v2503
  %v3287 = vpop.f32.mrf.mxu0
  %v3288 = vadd.f32 %v2098, %v3287
  %3289 = vmatmul.f32.gmra.mxu0 %v2506
  %v3290 = vpop.f32.mrf.mxu0
  %v3291 = vadd.f32 %v2098, %v3290
  %3292 = vmatmul.f32.gmra.mxu0 %v2509
  %v3293 = vpop.f32.mrf.mxu0
  %v3294 = vadd.f32 %v2098, %v3293
  %3295 = vmatmul.f32.gmra.mxu0 %v2512
  %v3296 = vpop.f32.mrf.mxu0
  %v3297 = vadd.f32 %v2098, %v3296
  %3298 = vmatmul.f32.gmra.mxu0 %v2515
  %v3299 = vpop.f32.mrf.mxu0
  %v3300 = vadd.f32 %v2098, %v3299
  %3301 = vmatmul.f32.gmra.mxu0 %v2518
  %v3302 = vpop.f32.mrf.mxu0
  %v3303 = vadd.f32 %v2098, %v3302
  %3304 = vmatmul.f32.gmra.mxu0 %v2521
  %v3305 = vpop.f32.mrf.mxu0
  %v3306 = vadd.f32 %v2098, %v3305
  %3307 = vmatmul.f32.gmra.mxu0 %v2524
  %v3308 = vpop.f32.mrf.mxu0
  %v3309 = vadd.f32 %v2098, %v3308
  %3310 = vmatmul.f32.gmra.mxu0 %v2527
  %v3311 = vpop.f32.mrf.mxu0
  %v3312 = vadd.f32 %v2098, %v3311
  %3313 = vmatmul.f32.gmra.mxu0 %v2530
  %v3314 = vpop.f32.mrf.mxu0
  %v3315 = vadd.f32 %v2098, %v3314
  %3316 = vmatmul.f32.gmra.mxu0 %v2533
  %v3317 = vpop.f32.mrf.mxu0
  %v3318 = vadd.f32 %v2098, %v3317
  %3319 = vmatmul.f32.gmra.mxu0 %v2536
  %v3320 = vpop.f32.mrf.mxu0
  %v3321 = vadd.f32 %v2098, %v3320
  %3322 = vmatmul.f32.gmra.mxu0 %v2539
  %v3323 = vpop.f32.mrf.mxu0
  %v3324 = vadd.f32 %v2098, %v3323
  %3325 = vmatmul.f32.gmra.mxu0 %v2542
  %v3326 = vpop.f32.mrf.mxu0
  %v3327 = vadd.f32 %v2098, %v3326
  %3328 = vmatmul.f32.gmra.mxu0 %v2545
  %v3329 = vpop.f32.mrf.mxu0
  %v3330 = vadd.f32 %v2098, %v3329
  %3331 = vmatmul.f32.gmra.mxu0 %v2548
  %v3332 = vpop.f32.mrf.mxu0
  %v3333 = vadd.f32 %v2098, %v3332
  %3334 = vmatmul.f32.gmra.mxu0 %v2551
  %v3335 = vpop.f32.mrf.mxu0
  %v3336 = vadd.f32 %v2098, %v3335
  %3337 = vmatmul.f32.gmra.mxu0 %v2554
  %v3338 = vpop.f32.mrf.mxu0
  %v3339 = vadd.f32 %v2098, %v3338
  %3340 = vmatmul.f32.gmra.mxu0 %v2557
  %v3341 = vpop.f32.mrf.mxu0
  %v3342 = vadd.f32 %v2098, %v3341
  %3343 = vmatmul.f32.gmra.mxu0 %v2560
  %v3344 = vpop.f32.mrf.mxu0
  %v3345 = vadd.f32 %v2098, %v3344
  %3346 = vmatmul.f32.gmra.mxu0 %v2563
  %v3347 = vpop.f32.mrf.mxu0
  %v3348 = vadd.f32 %v2098, %v3347
  %3349 = vmatmul.f32.gmra.mxu0 %v2566
  %v3350 = vpop.f32.mrf.mxu0
  %v3351 = vadd.f32 %v2098, %v3350
  %3352 = vmatmul.f32.gmra.mxu0 %v2569
  %v3353 = vpop.f32.mrf.mxu0
  %v3354 = vadd.f32 %v2098, %v3353
  %3355 = vmatmul.f32.gmra.mxu0 %v2572
  %v3356 = vpop.f32.mrf.mxu0
  %v3357 = vadd.f32 %v2098, %v3356
  %3358 = vmatmul.f32.gmra.mxu0 %v2575
  %v3359 = vpop.f32.mrf.mxu0
  %v3360 = vadd.f32 %v2098, %v3359
  %3361 = vmatmul.f32.gmra.mxu0 %v2578
  %v3362 = vpop.f32.mrf.mxu0
  %v3363 = vadd.f32 %v2098, %v3362
  %3364 = vmatmul.f32.gmra.mxu0 %v2581
  %v3365 = vpop.f32.mrf.mxu0
  %v3366 = vadd.f32 %v2098, %v3365
  %3367 = vmatmul.f32.gmra.mxu0 %v2584
  %v3368 = vpop.f32.mrf.mxu0
  %v3369 = vadd.f32 %v2098, %v3368
  %3370 = vmatmul.f32.gmra.mxu0 %v2587
  %v3371 = vpop.f32.mrf.mxu0
  %v3372 = vadd.f32 %v2098, %v3371
  %3373 = vmatmul.f32.gmra.mxu0 %v2590
  %v3374 = vpop.f32.mrf.mxu0
  %v3375 = vadd.f32 %v2098, %v3374
  %3376 = vmatmul.f32.gmra.mxu0 %v2593
  %v3377 = vpop.f32.mrf.mxu0
  %v3378 = vadd.f32 %v2098, %v3377
  %3379 = vmatmul.f32.gmra.mxu0 %v2596
  %v3380 = vpop.f32.mrf.mxu0
  %v3381 = vadd.f32 %v2098, %v3380
  %3382 = vmatmul.f32.gmra.mxu0 %v2599
  %v3383 = vpop.f32.mrf.mxu0
  %v3384 = vadd.f32 %v2098, %v3383
  %3385 = vmatmul.f32.gmra.mxu0 %v2602
  %v3386 = vpop.f32.mrf.mxu0
  %v3387 = vadd.f32 %v2098, %v3386
  %3388 = vmatmul.f32.gmra.mxu0 %v2605
  %v3389 = vpop.f32.mrf.mxu0
  %v3390 = vadd.f32 %v2098, %v3389
  %3391 = vmatmul.f32.gmra.mxu0 %v2608
  %v3392 = vpop.f32.mrf.mxu0
  %v3393 = vadd.f32 %v2098, %v3392
  %3394 = vmatmul.f32.gmra.mxu0 %v2611
  %v3395 = vpop.f32.mrf.mxu0
  %v3396 = vadd.f32 %v2098, %v3395
  %3397 = vmatmul.f32.gmra.mxu0 %v2614
  %v3398 = vpop.f32.mrf.mxu0
  %v3399 = vadd.f32 %v2098, %v3398
  %3400 = vmatmul.f32.gmra.mxu0 %v2617
  %v3401 = vpop.f32.mrf.mxu0
  %v3402 = vadd.f32 %v2098, %v3401
  %3403 = vmatmul.f32.gmra.mxu0 %v2620
  %v3404 = vpop.f32.mrf.mxu0
  %v3405 = vadd.f32 %v2098, %v3404
  %3406 = vmatmul.f32.gmra.mxu0 %v2623
  %v3407 = vpop.f32.mrf.mxu0
  %v3408 = vadd.f32 %v2098, %v3407
  %3409 = vmatmul.f32.gmra.mxu0 %v2626
  %v3410 = vpop.f32.mrf.mxu0
  %v3411 = vadd.f32 %v2098, %v3410
  %3412 = vmatmul.f32.gmra.mxu0 %v2629
  %v3413 = vpop.f32.mrf.mxu0
  %v3414 = vadd.f32 %v2098, %v3413
  %3415 = vmatmul.f32.gmra.mxu0 %v2632
  %v3416 = vpop.f32.mrf.mxu0
  %v3417 = vadd.f32 %v2098, %v3416
  %3418 = vmatmul.f32.gmra.mxu0 %v2635
  %v3419 = vpop.f32.mrf.mxu0
  %v3420 = vadd.f32 %v2098, %v3419
  %3421 = vmatmul.f32.gmra.mxu0 %v2638
  %v3422 = vpop.f32.mrf.mxu0
  %v3423 = vadd.f32 %v2098, %v3422
  %3424 = vmatmul.f32.gmra.mxu0 %v2641
  %v3425 = vpop.f32.mrf.mxu0
  %v3426 = vadd.f32 %v2098, %v3425
  %3427 = vmatmul.f32.gmra.mxu0 %v2644
  %v3428 = vpop.f32.mrf.mxu0
  %v3429 = vadd.f32 %v2098, %v3428
  %3430 = vmatmul.f32.gmra.mxu0 %v2647
  %v3431 = vpop.f32.mrf.mxu0
  %v3432 = vadd.f32 %v2098, %v3431
  %3433 = vmatmul.f32.gmra.mxu0 %v2650
  %v3434 = vpop.f32.mrf.mxu0
  %v3435 = vadd.f32 %v2098, %v3434
  %3436 = vmatmul.f32.gmra.mxu0 %v2653
  %v3437 = vpop.f32.mrf.mxu0
  %v3438 = vadd.f32 %v2098, %v3437
  %3439 = vmatmul.f32.gmra.mxu0 %v2656
  %v3440 = vpop.f32.mrf.mxu0
  %v3441 = vadd.f32 %v2098, %v3440
  %3442 = vmatmul.f32.gmra.mxu0 %v2659
  %v3443 = vpop.f32.mrf.mxu0
  %v3444 = vadd.f32 %v2098, %v3443
  %3445 = vmatmul.f32.gmra.mxu0 %v2662
  %v3446 = vpop.f32.mrf.mxu0
  %v3447 = vadd.f32 %v2098, %v3446
  %3448 = vmatmul.f32.gmra.mxu0 %v2665
  %v3449 = vpop.f32.mrf.mxu0
  %v3450 = vadd.f32 %v2098, %v3449
  %3451 = vmatmul.f32.gmra.mxu0 %v2668
  %v3452 = vpop.f32.mrf.mxu0
  %v3453 = vadd.f32 %v2098, %v3452
  %3454 = vmatmul.f32.gmra.mxu0 %v2671
  %v3455 = vpop.f32.mrf.mxu0
  %v3456 = vadd.f32 %v2098, %v3455
  %3457 = vmatmul.f32.gmra.mxu0 %v2674
  %v3458 = vpop.f32.mrf.mxu0
  %v3459 = vadd.f32 %v2098, %v3458
  %3460 = vmatmul.f32.gmra.mxu0 %v2677
  %v3461 = vpop.f32.mrf.mxu0
  %v3462 = vadd.f32 %v2098, %v3461
  %3463 = vmatmul.f32.gmra.mxu0 %v2680
  %v3464 = vpop.f32.mrf.mxu0
  %v3465 = vadd.f32 %v2098, %v3464
  %3466 = vmatmul.f32.gmra.mxu0 %v2683
  %v3467 = vpop.f32.mrf.mxu0
  %v3468 = vadd.f32 %v2098, %v3467
  %3469 = vmatmul.f32.gmra.mxu0 %v2686
  %v3470 = vpop.f32.mrf.mxu0
  %v3471 = vadd.f32 %v2098, %v3470
  %3472 = vmatmul.f32.gmra.mxu0 %v2689
  %v3473 = vpop.f32.mrf.mxu0
  %v3474 = vadd.f32 %v2098, %v3473
  %3475 = vmatmul.f32.gmra.mxu0 %v2692
  %v3476 = vpop.f32.mrf.mxu0
  %v3477 = vadd.f32 %v2098, %v3476
  %3478 = vmatmul.f32.gmra.mxu0 %v2695
  %v3479 = vpop.f32.mrf.mxu0
  %v3480 = vadd.f32 %v2098, %v3479
  %3481 = vmatmul.f32.gmra.mxu0 %v2698
  %v3482 = vpop.f32.mrf.mxu0
  %v3483 = vadd.f32 %v2098, %v3482
  %3484 = vmatmul.f32.gmra.mxu0 %v2701
  %v3485 = vpop.f32.mrf.mxu0
  %v3486 = vadd.f32 %v2098, %v3485
  %3487 = vmatmul.f32.gmra.mxu0 %v2704
  %v3488 = vpop.f32.mrf.mxu0
  %v3489 = vadd.f32 %v2098, %v3488
  %3490 = vmatmul.f32.gmra.mxu0 %v2707
  %v3491 = vpop.f32.mrf.mxu0
  %v3492 = vadd.f32 %v2098, %v3491
  %3493 = vmatmul.f32.gmra.mxu0 %v2710
  %v3494 = vpop.f32.mrf.mxu0
  %v3495 = vadd.f32 %v2098, %v3494
  %3496 = vmatmul.f32.gmra.mxu0 %v2713
  %v3497 = vpop.f32.mrf.mxu0
  %v3498 = vadd.f32 %v2098, %v3497
  %3499 = vmatmul.f32.gmra.mxu0 %v2716
  %v3500 = vpop.f32.mrf.mxu0
  %v3501 = vadd.f32 %v2098, %v3500
  %3502 = vmatmul.f32.gmra.mxu0 %v2719
  %v3503 = vpop.f32.mrf.mxu0
  %v3504 = vadd.f32 %v2098, %v3503
  %3505 = vmatmul.f32.gmra.mxu0 %v2722
  %v3506 = vpop.f32.mrf.mxu0
  %v3507 = vadd.f32 %v2098, %v3506
  %3508 = vmatmul.f32.gmra.mxu0 %v2725
  %v3509 = vpop.f32.mrf.mxu0
  %v3510 = vadd.f32 %v2098, %v3509
  %3511 = vmatmul.f32.gmra.mxu0 %v2728
  %v3512 = vpop.f32.mrf.mxu0
  %v3513 = vadd.f32 %v2098, %v3512
  %3514 = vmatmul.f32.gmra.mxu0 %v2731
  %v3515 = vpop.f32.mrf.mxu0
  %v3516 = vadd.f32 %v2098, %v3515
  %3517 = vmatmul.f32.gmra.mxu0 %v2734
  %v3518 = vpop.f32.mrf.mxu0
  %v3519 = vadd.f32 %v2098, %v3518
  %3520 = vmatmul.f32.gmra.mxu0 %v2737
  %v3521 = vpop.f32.mrf.mxu0
  %v3522 = vadd.f32 %v2098, %v3521
  %3523 = vmatmul.f32.gmra.mxu0 %v2740
  %v3524 = vpop.f32.mrf.mxu0
  %v3525 = vadd.f32 %v2098, %v3524
  %3526 = vmatmul.f32.gmra.mxu0 %v2743
  %v3527 = vpop.f32.mrf.mxu0
  %v3528 = vadd.f32 %v2098, %v3527
  %3529 = vmatmul.f32.gmra.mxu0 %v2746
  %v3530 = vpop.f32.mrf.mxu0
  %v3531 = vadd.f32 %v2098, %v3530
  %3532 = vmatmul.f32.gmra.mxu0 %v2749
  %v3533 = vpop.f32.mrf.mxu0
  %v3534 = vadd.f32 %v2098, %v3533
  %3535 = vmatmul.f32.gmra.mxu0 %v2752
  %v3536 = vpop.f32.mrf.mxu0
  %v3537 = vadd.f32 %v2098, %v3536
  %3538 = vmatmul.f32.gmra.mxu0 %v2755
  %v3539 = vpop.f32.mrf.mxu0
  %v3540 = vadd.f32 %v2098, %v3539
  %3541 = vmatmul.f32.gmra.mxu0 %v2758
  %v3542 = vpop.f32.mrf.mxu0
  %v3543 = vadd.f32 %v2098, %v3542
  %3544 = vmatmul.f32.gmra.mxu0 %v2761
  %v3545 = vpop.f32.mrf.mxu0
  %v3546 = vadd.f32 %v2098, %v3545
  %3547 = vmatmul.f32.gmra.mxu0 %v2764
  %v3548 = vpop.f32.mrf.mxu0
  %v3549 = vadd.f32 %v2098, %v3548
  %3550 = vmatmul.f32.gmra.mxu0 %v2767
  %v3551 = vpop.f32.mrf.mxu0
  %v3552 = vadd.f32 %v2098, %v3551
  %3553 = vmatmul.f32.gmra.mxu0 %v2770
  %v3554 = vpop.f32.mrf.mxu0
  %v3555 = vadd.f32 %v2098, %v3554
  %3556 = vmatmul.f32.gmra.mxu0 %v2773
  %v3557 = vpop.f32.mrf.mxu0
  %v3558 = vadd.f32 %v2098, %v3557
  %3559 = vmatmul.f32.gmra.mxu0 %v2776
  %v3560 = vpop.f32.mrf.mxu0
  %v3561 = vadd.f32 %v2098, %v3560
  %3562 = vmatmul.f32.gmra.mxu0 %v2779
  %v3563 = vpop.f32.mrf.mxu0
  %v3564 = vadd.f32 %v2098, %v3563
  %3565 = vmatmul.f32.gmra.mxu0 %v2782
  %v3566 = vpop.f32.mrf.mxu0
  %v3567 = vadd.f32 %v2098, %v3566
  %3568 = vmatmul.f32.gmra.mxu0 %v2785
  %v3569 = vpop.f32.mrf.mxu0
  %v3570 = vadd.f32 %v2098, %v3569
  %3571 = vmatmul.f32.gmra.mxu0 %v2788
  %v3572 = vpop.f32.mrf.mxu0
  %v3573 = vadd.f32 %v2098, %v3572
  %3574 = vmatmul.f32.gmra.mxu0 %v2791
  %v3575 = vpop.f32.mrf.mxu0
  %v3576 = vadd.f32 %v2098, %v3575
  %3577 = vmatmul.f32.gmra.mxu0 %v2794
  %v3578 = vpop.f32.mrf.mxu0
  %v3579 = vadd.f32 %v2098, %v3578
  %3580 = vmatmul.f32.gmra.mxu0 %v2797
  %v3581 = vpop.f32.mrf.mxu0
  %v3582 = vadd.f32 %v2098, %v3581
  %3583 = vmatmul.f32.gmra.mxu0 %v2800
  %v3584 = vpop.f32.mrf.mxu0
  %v3585 = vadd.f32 %v2098, %v3584
  %3586 = vmatmul.f32.gmra.mxu0 %v2803
  %v3587 = vpop.f32.mrf.mxu0
  %v3588 = vadd.f32 %v2098, %v3587
  %3589 = vmatmul.f32.gmra.mxu0 %v2806
  %v3590 = vpop.f32.mrf.mxu0
  %v3591 = vadd.f32 %v2098, %v3590
  %3592 = vmatmul.f32.gmra.mxu0 %v2809
  %v3593 = vpop.f32.mrf.mxu0
  %v3594 = vadd.f32 %v2098, %v3593
  %3595 = vmatmul.f32.gmra.mxu0 %v2812
  %v3596 = vpop.f32.mrf.mxu0
  %v3597 = vadd.f32 %v2098, %v3596
  %3598 = vmatmul.f32.gmra.mxu0 %v2815
  %v3599 = vpop.f32.mrf.mxu0
  %v3600 = vadd.f32 %v2098, %v3599
  %3601 = vmatmul.f32.gmra.mxu0 %v2818
  %v3602 = vpop.f32.mrf.mxu0
  %v3603 = vadd.f32 %v2098, %v3602
  %3604 = vmatmul.f32.gmra.mxu0 %v2821
  %v3605 = vpop.f32.mrf.mxu0
  %v3606 = vadd.f32 %v2098, %v3605
  %3607 = vmatmul.f32.gmra.mxu0 %v2824
  %v3608 = vpop.f32.mrf.mxu0
  %v3609 = vadd.f32 %v2098, %v3608
  %3610 = vmatmul.f32.gmra.mxu0 %v2827
  %v3611 = vpop.f32.mrf.mxu0
  %v3612 = vadd.f32 %v2098, %v3611
  %3613 = vmatmul.f32.gmra.mxu0 %v2830
  %v3614 = vpop.f32.mrf.mxu0
  %v3615 = vadd.f32 %v2098, %v3614
  %3616 = vmatmul.f32.gmra.mxu0 %v2833
  %v3617 = vpop.f32.mrf.mxu0
  %v3618 = vadd.f32 %v2098, %v3617
  %3619 = vmatmul.f32.gmra.mxu0 %v2836
  %v3620 = vpop.f32.mrf.mxu0
  %v3621 = vadd.f32 %v2098, %v3620
  %3622 = vmatmul.f32.gmra.mxu0 %v2839
  %v3623 = vpop.f32.mrf.mxu0
  %v3624 = vadd.f32 %v2098, %v3623
  %3625 = vmatmul.f32.gmra.mxu0 %v2842
  %v3626 = vpop.f32.mrf.mxu0
  %v3627 = vadd.f32 %v2098, %v3626
  %3628 = vmatmul.f32.gmra.mxu0 %v2845
  %v3629 = vpop.f32.mrf.mxu0
  %v3630 = vadd.f32 %v2098, %v3629
  %3631 = vmatmul.f32.gmra.mxu0 %v2848
  %v3632 = vpop.f32.mrf.mxu0
  %v3633 = vadd.f32 %v2098, %v3632
  %3634 = vmatmul.f32.gmra.mxu0 %v2851
  %v3635 = vpop.f32.mrf.mxu0
  %v3636 = vadd.f32 %v2098, %v3635
  %3637 = vmatmul.f32.gmra.mxu0 %v2854
  %v3638 = vpop.f32.mrf.mxu0
  %v3639 = vadd.f32 %v2098, %v3638
  %3640 = vmatmul.f32.gmra.mxu0 %v2857
  %v3641 = vpop.f32.mrf.mxu0
  %v3642 = vadd.f32 %v2098, %v3641
  %3643 = vmatmul.f32.gmra.mxu0 %v2860
  %v3644 = vpop.f32.mrf.mxu0
  %v3645 = vadd.f32 %v2098, %v3644
  %3646 = vmatmul.f32.gmra.mxu0 %v2863
  %v3647 = vpop.f32.mrf.mxu0
  %v3648 = vadd.f32 %v2098, %v3647
  %3649 = vmatmul.f32.gmra.mxu0 %v2866
  %v3650 = vpop.f32.mrf.mxu0
  %v3651 = vadd.f32 %v2098, %v3650
  %3652 = vdwg.mxu0
  %v3653 = vmax.f32 %v2886, 0.0
  %v3654 = vmax.f32 %v2889, 0.0
  %v3655 = vmax.f32 %v2892, 0.0
  %v3656 = vmax.f32 %v2895, 0.0
  %v3657 = vmax.f32 %v2898, 0.0
  %v3658 = vmax.f32 %v2901, 0.0
  %v3659 = vmax.f32 %v2904, 0.0
  %v3660 = vmax.f32 %v2907, 0.0
  %v3661 = vmax.f32 %v2910, 0.0
  %v3662 = vmax.f32 %v2913, 0.0
  %v3663 = vmax.f32 %v2916, 0.0
  %v3664 = vmax.f32 %v2919, 0.0
  %v3665 = vmax.f32 %v2922, 0.0
  %v3666 = vmax.f32 %v2925, 0.0
  %v3667 = vmax.f32 %v2928, 0.0
  %v3668 = vmax.f32 %v2931, 0.0
  %v3669 = vmax.f32 %v2934, 0.0
  %v3670 = vmax.f32 %v2937, 0.0
  %v3671 = vmax.f32 %v2940, 0.0
  %v3672 = vmax.f32 %v2943, 0.0
  %v3673 = vmax.f32 %v2946, 0.0
  %v3674 = vmax.f32 %v2949, 0.0
  %v3675 = vmax.f32 %v2952, 0.0
  %v3676 = vmax.f32 %v2955, 0.0
  %v3677 = vmax.f32 %v2958, 0.0
  %v3678 = vmax.f32 %v2961, 0.0
  %v3679 = vmax.f32 %v2964, 0.0
  %v3680 = vmax.f32 %v2967, 0.0
  %v3681 = vmax.f32 %v2970, 0.0
  %v3682 = vmax.f32 %v2973, 0.0
  %v3683 = vmax.f32 %v2976, 0.0
  %v3684 = vmax.f32 %v2979, 0.0
  %v3685 = vmax.f32 %v2982, 0.0
  %v3686 = vmax.f32 %v2985, 0.0
  %v3687 = vmax.f32 %v2988, 0.0
  %v3688 = vmax.f32 %v2991, 0.0
  %v3689 = vmax.f32 %v2994, 0.0
  %v3690 = vmax.f32 %v2997, 0.0
  %v3691 = vmax.f32 %v3000, 0.0
  %v3692 = vmax.f32 %v3003, 0.0
  %v3693 = vmax.f32 %v3006, 0.0
  %v3694 = vmax.f32 %v3009, 0.0
  %v3695 = vmax.f32 %v3012, 0.0
  %v3696 = vmax.f32 %v3015, 0.0
  %v3697 = vmax.f32 %v3018, 0.0
  %v3698 = vmax.f32 %v3021, 0.0
  %v3699 = vmax.f32 %v3024, 0.0
  %v3700 = vmax.f32 %v3027, 0.0
  %v3701 = vmax.f32 %v3030, 0.0
  %v3702 = vmax.f32 %v3033, 0.0
  %v3703 = vmax.f32 %v3036, 0.0
  %v3704 = vmax.f32 %v3039, 0.0
  %v3705 = vmax.f32 %v3042, 0.0
  %v3706 = vmax.f32 %v3045, 0.0
  %v3707 = vmax.f32 %v3048, 0.0
  %v3708 = vmax.f32 %v3051, 0.0
  %v3709 = vmax.f32 %v3054, 0.0
  %v3710 = vmax.f32 %v3057, 0.0
  %v3711 = vmax.f32 %v3060, 0.0
  %v3712 = vmax.f32 %v3063, 0.0
  %v3713 = vmax.f32 %v3066, 0.0
  %v3714 = vmax.f32 %v3069, 0.0
  %v3715 = vmax.f32 %v3072, 0.0
  %v3716 = vmax.f32 %v3075, 0.0
  %v3717 = vmax.f32 %v3078, 0.0
  %v3718 = vmax.f32 %v3081, 0.0
  %v3719 = vmax.f32 %v3084, 0.0
  %v3720 = vmax.f32 %v3087, 0.0
  %v3721 = vmax.f32 %v3090, 0.0
  %v3722 = vmax.f32 %v3093, 0.0
  %v3723 = vmax.f32 %v3096, 0.0
  %v3724 = vmax.f32 %v3099, 0.0
  %v3725 = vmax.f32 %v3102, 0.0
  %v3726 = vmax.f32 %v3105, 0.0
  %v3727 = vmax.f32 %v3108, 0.0
  %v3728 = vmax.f32 %v3111, 0.0
  %v3729 = vmax.f32 %v3114, 0.0
  %v3730 = vmax.f32 %v3117, 0.0
  %v3731 = vmax.f32 %v3120, 0.0
  %v3732 = vmax.f32 %v3123, 0.0
  %v3733 = vmax.f32 %v3126, 0.0
  %v3734 = vmax.f32 %v3129, 0.0
  %v3735 = vmax.f32 %v3132, 0.0
  %v3736 = vmax.f32 %v3135, 0.0
  %v3737 = vmax.f32 %v3138, 0.0
  %v3738 = vmax.f32 %v3141, 0.0
  %v3739 = vmax.f32 %v3144, 0.0
  %v3740 = vmax.f32 %v3147, 0.0
  %v3741 = vmax.f32 %v3150, 0.0
  %v3742 = vmax.f32 %v3153, 0.0
  %v3743 = vmax.f32 %v3156, 0.0
  %v3744 = vmax.f32 %v3159, 0.0
  %v3745 = vmax.f32 %v3162, 0.0
  %v3746 = vmax.f32 %v3165, 0.0
  %v3747 = vmax.f32 %v3168, 0.0
  %v3748 = vmax.f32 %v3171, 0.0
  %v3749 = vmax.f32 %v3174, 0.0
  %v3750 = vmax.f32 %v3177, 0.0
  %v3751 = vmax.f32 %v3180, 0.0
  %v3752 = vmax.f32 %v3183, 0.0
  %v3753 = vmax.f32 %v3186, 0.0
  %v3754 = vmax.f32 %v3189, 0.0
  %v3755 = vmax.f32 %v3192, 0.0
  %v3756 = vmax.f32 %v3195, 0.0
  %v3757 = vmax.f32 %v3198, 0.0
  %v3758 = vmax.f32 %v3201, 0.0
  %v3759 = vmax.f32 %v3204, 0.0
  %v3760 = vmax.f32 %v3207, 0.0
  %v3761 = vmax.f32 %v3210, 0.0
  %v3762 = vmax.f32 %v3213, 0.0
  %v3763 = vmax.f32 %v3216, 0.0
  %v3764 = vmax.f32 %v3219, 0.0
  %v3765 = vmax.f32 %v3222, 0.0
  %v3766 = vmax.f32 %v3225, 0.0
  %v3767 = vmax.f32 %v3228, 0.0
  %v3768 = vmax.f32 %v3231, 0.0
  %v3769 = vmax.f32 %v3234, 0.0
  %v3770 = vmax.f32 %v3237, 0.0
  %v3771 = vmax.f32 %v3240, 0.0
  %v3772 = vmax.f32 %v3243, 0.0
  %v3773 = vmax.f32 %v3246, 0.0
  %v3774 = vmax.f32 %v3249, 0.0
  %v3775 = vmax.f32 %v3252, 0.0
  %v3776 = vmax.f32 %v3255, 0.0
  %v3777 = vmax.f32 %v3258, 0.0
  %v3778 = vmax.f32 %v3261, 0.0
  %v3779 = vmax.f32 %v3264, 0.0
  %v3780 = vmax.f32 %v3267, 0.0
  %v3781 = vmax.f32 %v3270, 0.0
  %v3782 = vmax.f32 %v3273, 0.0
  %v3783 = vmax.f32 %v3276, 0.0
  %v3784 = vmax.f32 %v3279, 0.0
  %v3785 = vmax.f32 %v3282, 0.0
  %v3786 = vmax.f32 %v3285, 0.0
  %v3787 = vmax.f32 %v3288, 0.0
  %v3788 = vmax.f32 %v3291, 0.0
  %v3789 = vmax.f32 %v3294, 0.0
  %v3790 = vmax.f32 %v3297, 0.0
  %v3791 = vmax.f32 %v3300, 0.0
  %v3792 = vmax.f32 %v3303, 0.0
  %v3793 = vmax.f32 %v3306, 0.0
  %v3794 = vmax.f32 %v3309, 0.0
  %v3795 = vmax.f32 %v3312, 0.0
  %v3796 = vmax.f32 %v3315, 0.0
  %v3797 = vmax.f32 %v3318, 0.0
  %v3798 = vmax.f32 %v3321, 0.0
  %v3799 = vmax.f32 %v3324, 0.0
  %v3800 = vmax.f32 %v3327, 0.0
  %v3801 = vmax.f32 %v3330, 0.0
  %v3802 = vmax.f32 %v3333, 0.0
  %v3803 = vmax.f32 %v3336, 0.0
  %v3804 = vmax.f32 %v3339, 0.0
  %v3805 = vmax.f32 %v3342, 0.0
  %v3806 = vmax.f32 %v3345, 0.0
  %v3807 = vmax.f32 %v3348, 0.0
  %v3808 = vmax.f32 %v3351, 0.0
  %v3809 = vmax.f32 %v3354, 0.0
  %v3810 = vmax.f32 %v3357, 0.0
  %v3811 = vmax.f32 %v3360, 0.0
  %v3812 = vmax.f32 %v3363, 0.0
  %v3813 = vmax.f32 %v3366, 0.0
  %v3814 = vmax.f32 %v3369, 0.0
  %v3815 = vmax.f32 %v3372, 0.0
  %v3816 = vmax.f32 %v3375, 0.0
  %v3817 = vmax.f32 %v3378, 0.0
  %v3818 = vmax.f32 %v3381, 0.0
  %v3819 = vmax.f32 %v3384, 0.0
  %v3820 = vmax.f32 %v3387, 0.0
  %v3821 = vmax.f32 %v3390, 0.0
  %v3822 = vmax.f32 %v3393, 0.0
  %v3823 = vmax.f32 %v3396, 0.0
  %v3824 = vmax.f32 %v3399, 0.0
  %v3825 = vmax.f32 %v3402, 0.0
  %v3826 = vmax.f32 %v3405, 0.0
  %v3827 = vmax.f32 %v3408, 0.0
  %v3828 = vmax.f32 %v3411, 0.0
  %v3829 = vmax.f32 %v3414, 0.0
  %v3830 = vmax.f32 %v3417, 0.0
  %v3831 = vmax.f32 %v3420, 0.0
  %v3832 = vmax.f32 %v3423, 0.0
  %v3833 = vmax.f32 %v3426, 0.0
  %v3834 = vmax.f32 %v3429, 0.0
  %v3835 = vmax.f32 %v3432, 0.0
  %v3836 = vmax.f32 %v3435, 0.0
  %v3837 = vmax.f32 %v3438, 0.0
  %v3838 = vmax.f32 %v3441, 0.0
  %v3839 = vmax.f32 %v3444, 0.0
  %v3840 = vmax.f32 %v3447, 0.0
  %v3841 = vmax.f32 %v3450, 0.0
  %v3842 = vmax.f32 %v3453, 0.0
  %v3843 = vmax.f32 %v3456, 0.0
  %v3844 = vmax.f32 %v3459, 0.0
  %v3845 = vmax.f32 %v3462, 0.0
  %v3846 = vmax.f32 %v3465, 0.0
  %v3847 = vmax.f32 %v3468, 0.0
  %v3848 = vmax.f32 %v3471, 0.0
  %v3849 = vmax.f32 %v3474, 0.0
  %v3850 = vmax.f32 %v3477, 0.0
  %v3851 = vmax.f32 %v3480, 0.0
  %v3852 = vmax.f32 %v3483, 0.0
  %v3853 = vmax.f32 %v3486, 0.0
  %v3854 = vmax.f32 %v3489, 0.0
  %v3855 = vmax.f32 %v3492, 0.0
  %v3856 = vmax.f32 %v3495, 0.0
  %v3857 = vmax.f32 %v3498, 0.0
  %v3858 = vmax.f32 %v3501, 0.0
  %v3859 = vmax.f32 %v3504, 0.0
  %v3860 = vmax.f32 %v3507, 0.0
  %v3861 = vmax.f32 %v3510, 0.0
  %v3862 = vmax.f32 %v3513, 0.0
  %v3863 = vmax.f32 %v3516, 0.0
  %v3864 = vmax.f32 %v3519, 0.0
  %v3865 = vmax.f32 %v3522, 0.0
  %v3866 = vmax.f32 %v3525, 0.0
  %v3867 = vmax.f32 %v3528, 0.0
  %v3868 = vmax.f32 %v3531, 0.0
  %v3869 = vmax.f32 %v3534, 0.0
  %v3870 = vmax.f32 %v3537, 0.0
  %v3871 = vmax.f32 %v3540, 0.0
  %v3872 = vmax.f32 %v3543, 0.0
  %v3873 = vmax.f32 %v3546, 0.0
  %v3874 = vmax.f32 %v3549, 0.0
  %v3875 = vmax.f32 %v3552, 0.0
  %v3876 = vmax.f32 %v3555, 0.0
  %v3877 = vmax.f32 %v3558, 0.0
  %v3878 = vmax.f32 %v3561, 0.0
  %v3879 = vmax.f32 %v3564, 0.0
  %v3880 = vmax.f32 %v3567, 0.0
  %v3881 = vmax.f32 %v3570, 0.0
  %v3882 = vmax.f32 %v3573, 0.0
  %v3883 = vmax.f32 %v3576, 0.0
  %v3884 = vmax.f32 %v3579, 0.0
  %v3885 = vmax.f32 %v3582, 0.0
  %v3886 = vmax.f32 %v3585, 0.0
  %v3887 = vmax.f32 %v3588, 0.0
  %v3888 = vmax.f32 %v3591, 0.0
  %v3889 = vmax.f32 %v3594, 0.0
  %v3890 = vmax.f32 %v3597, 0.0
  %v3891 = vmax.f32 %v3600, 0.0
  %v3892 = vmax.f32 %v3603, 0.0
  %v3893 = vmax.f32 %v3606, 0.0
  %v3894 = vmax.f32 %v3609, 0.0
  %v3895 = vmax.f32 %v3612, 0.0
  %v3896 = vmax.f32 %v3615, 0.0
  %v3897 = vmax.f32 %v3618, 0.0
  %v3898 = vmax.f32 %v3621, 0.0
  %v3899 = vmax.f32 %v3624, 0.0
  %v3900 = vmax.f32 %v3627, 0.0
  %v3901 = vmax.f32 %v3630, 0.0
  %v3902 = vmax.f32 %v3633, 0.0
  %v3903 = vmax.f32 %v3636, 0.0
  %v3904 = vmax.f32 %v3639, 0.0
  %v3905 = vmax.f32 %v3642, 0.0
  %v3906 = vmax.f32 %v3645, 0.0
  %v3907 = vmax.f32 %v3648, 0.0
  %v3908 = vmax.f32 %v3651, 0.0
  %v3909 = vld [vmem:[%s3] sm:$0xff]
  %v3910 = vld [vmem:[%s3 + $0x8] sm:$0xff]
  %v3911 = vld [vmem:[%s3 + $0x10] sm:$0xff]
  %v3912 = vperm.slane %v278, 0
  %v3914 = vsel %vm2099, %v3653, 0
  %v3917 = vsel %vm2099, %v3654, 0
  %v3920 = vsel %vm2099, %v3655, 0
  %v3923 = vsel %vm2099, %v3656, 0
  %v3926 = vsel %vm2099, %v3657, 0
  %v3929 = vsel %vm2099, %v3658, 0
  %v3932 = vsel %vm2099, %v3659, 0
  %v3935 = vsel %vm2099, %v3660, 0
  %v3938 = vsel %vm2099, %v3661, 0
  %v3941 = vsel %vm2099, %v3662, 0
  %v3944 = vsel %vm2099, %v3663, 0
  %v3947 = vsel %vm2099, %v3664, 0
  %v3950 = vsel %vm2099, %v3665, 0
  %v3953 = vsel %vm2099, %v3666, 0
  %v3956 = vsel %vm2099, %v3667, 0
  %v3959 = vsel %vm2099, %v3668, 0
  %v3962 = vsel %vm2099, %v3669, 0
  %v3965 = vsel %vm2099, %v3670, 0
  %v3968 = vsel %vm2099, %v3671, 0
  %v3971 = vsel %vm2099, %v3672, 0
  %v3974 = vsel %vm2099, %v3673, 0
  %v3977 = vsel %vm2099, %v3674, 0
  %v3980 = vsel %vm2099, %v3675, 0
  %v3983 = vsel %vm2099, %v3676, 0
  %v3986 = vsel %vm2099, %v3677, 0
  %v3989 = vsel %vm2099, %v3678, 0
  %v3992 = vsel %vm2099, %v3679, 0
  %v3995 = vsel %vm2099, %v3680, 0
  %v3998 = vsel %vm2099, %v3681, 0
  %v4001 = vsel %vm2099, %v3682, 0
  %v4004 = vsel %vm2099, %v3683, 0
  %v4007 = vsel %vm2099, %v3684, 0
  %v4010 = vsel %vm2099, %v3685, 0
  %v4013 = vsel %vm2099, %v3686, 0
  %v4016 = vsel %vm2099, %v3687, 0
  %v4019 = vsel %vm2099, %v3688, 0
  %v4022 = vsel %vm2099, %v3689, 0
  %v4025 = vsel %vm2099, %v3690, 0
  %v4028 = vsel %vm2099, %v3691, 0
  %v4031 = vsel %vm2099, %v3692, 0
  %v4034 = vsel %vm2099, %v3693, 0
  %v4037 = vsel %vm2099, %v3694, 0
  %v4040 = vsel %vm2099, %v3695, 0
  %v4043 = vsel %vm2099, %v3696, 0
  %v4046 = vsel %vm2099, %v3697, 0
  %v4049 = vsel %vm2099, %v3698, 0
  %v4052 = vsel %vm2099, %v3699, 0
  %v4055 = vsel %vm2099, %v3700, 0
  %v4058 = vsel %vm2099, %v3701, 0
  %v4061 = vsel %vm2099, %v3702, 0
  %v4064 = vsel %vm2099, %v3703, 0
  %v4067 = vsel %vm2099, %v3704, 0
  %v4070 = vsel %vm2099, %v3705, 0
  %v4073 = vsel %vm2099, %v3706, 0
  %v4076 = vsel %vm2099, %v3707, 0
  %v4079 = vsel %vm2099, %v3708, 0
  %v4082 = vsel %vm2099, %v3709, 0
  %v4085 = vsel %vm2099, %v3710, 0
  %v4088 = vsel %vm2099, %v3711, 0
  %v4091 = vsel %vm2099, %v3712, 0
  %v4094 = vsel %vm2099, %v3713, 0
  %v4097 = vsel %vm2099, %v3714, 0
  %v4100 = vsel %vm2099, %v3715, 0
  %v4103 = vsel %vm2099, %v3716, 0
  %v4106 = vsel %vm2099, %v3717, 0
  %v4109 = vsel %vm2099, %v3718, 0
  %v4112 = vsel %vm2099, %v3719, 0
  %v4115 = vsel %vm2099, %v3720, 0
  %v4118 = vsel %vm2099, %v3721, 0
  %v4121 = vsel %vm2099, %v3722, 0
  %v4124 = vsel %vm2099, %v3723, 0
  %v4127 = vsel %vm2099, %v3724, 0
  %v4130 = vsel %vm2099, %v3725, 0
  %v4133 = vsel %vm2099, %v3726, 0
  %v4136 = vsel %vm2099, %v3727, 0
  %v4139 = vsel %vm2099, %v3728, 0
  %v4142 = vsel %vm2099, %v3729, 0
  %v4145 = vsel %vm2099, %v3730, 0
  %v4148 = vsel %vm2099, %v3731, 0
  %v4151 = vsel %vm2099, %v3732, 0
  %v4154 = vsel %vm2099, %v3733, 0
  %v4157 = vsel %vm2099, %v3734, 0
  %v4160 = vsel %vm2099, %v3735, 0
  %v4163 = vsel %vm2099, %v3736, 0
  %v4166 = vsel %vm2099, %v3737, 0
  %v4169 = vsel %vm2099, %v3738, 0
  %v4172 = vsel %vm2099, %v3739, 0
  %v4175 = vsel %vm2099, %v3740, 0
  %v4178 = vsel %vm2099, %v3741, 0
  %v4181 = vsel %vm2099, %v3742, 0
  %v4184 = vsel %vm2099, %v3743, 0
  %v4187 = vsel %vm2099, %v3744, 0
  %v4190 = vsel %vm2099, %v3745, 0
  %v4193 = vsel %vm2099, %v3746, 0
  %v4196 = vsel %vm2099, %v3747, 0
  %v4199 = vsel %vm2099, %v3748, 0
  %v4202 = vsel %vm2099, %v3749, 0
  %v4205 = vsel %vm2099, %v3750, 0
  %v4208 = vsel %vm2099, %v3751, 0
  %v4211 = vsel %vm2099, %v3752, 0
  %v4214 = vsel %vm2099, %v3753, 0
  %v4217 = vsel %vm2099, %v3754, 0
  %v4220 = vsel %vm2099, %v3755, 0
  %v4223 = vsel %vm2099, %v3756, 0
  %v4226 = vsel %vm2099, %v3757, 0
  %v4229 = vsel %vm2099, %v3758, 0
  %v4232 = vsel %vm2099, %v3759, 0
  %v4235 = vsel %vm2099, %v3760, 0
  %v4238 = vsel %vm2099, %v3761, 0
  %v4241 = vsel %vm2099, %v3762, 0
  %v4244 = vsel %vm2099, %v3763, 0
  %v4247 = vsel %vm2099, %v3764, 0
  %v4250 = vsel %vm2099, %v3765, 0
  %v4253 = vsel %vm2099, %v3766, 0
  %v4256 = vsel %vm2099, %v3767, 0
  %v4259 = vsel %vm2099, %v3768, 0
  %v4262 = vsel %vm2099, %v3769, 0
  %v4265 = vsel %vm2099, %v3770, 0
  %v4268 = vsel %vm2099, %v3771, 0
  %v4271 = vsel %vm2099, %v3772, 0
  %v4274 = vsel %vm2099, %v3773, 0
  %v4277 = vsel %vm2099, %v3774, 0
  %v4280 = vsel %vm2099, %v3775, 0
  %v4283 = vsel %vm2099, %v3776, 0
  %v4286 = vsel %vm2099, %v3777, 0
  %v4289 = vsel %vm2099, %v3778, 0
  %v4292 = vsel %vm2099, %v3779, 0
  %v4295 = vsel %vm2099, %v3780, 0
  %v4298 = vsel %vm2099, %v3781, 0
  %v4301 = vsel %vm2099, %v3782, 0
  %v4304 = vsel %vm2099, %v3783, 0
  %v4307 = vsel %vm2099, %v3784, 0
  %v4310 = vsel %vm2099, %v3785, 0
  %v4313 = vsel %vm2099, %v3786, 0
  %v4316 = vsel %vm2099, %v3787, 0
  %v4319 = vsel %vm2099, %v3788, 0
  %v4322 = vsel %vm2099, %v3789, 0
  %v4325 = vsel %vm2099, %v3790, 0
  %v4328 = vsel %vm2099, %v3791, 0
  %v4331 = vsel %vm2099, %v3792, 0
  %v4334 = vsel %vm2099, %v3793, 0
  %v4337 = vsel %vm2099, %v3794, 0
  %v4340 = vsel %vm2099, %v3795, 0
  %v4343 = vsel %vm2099, %v3796, 0
  %v4346 = vsel %vm2099, %v3797, 0
  %v4349 = vsel %vm2099, %v3798, 0
  %v4352 = vsel %vm2099, %v3799, 0
  %v4355 = vsel %vm2099, %v3800, 0
  %v4358 = vsel %vm2099, %v3801, 0
  %v4361 = vsel %vm2099, %v3802, 0
  %v4364 = vsel %vm2099, %v3803, 0
  %v4367 = vsel %vm2099, %v3804, 0
  %v4370 = vsel %vm2099, %v3805, 0
  %v4373 = vsel %vm2099, %v3806, 0
  %v4376 = vsel %vm2099, %v3807, 0
  %v4379 = vsel %vm2099, %v3808, 0
  %v4382 = vsel %vm2099, %v3809, 0
  %v4385 = vsel %vm2099, %v3810, 0
  %v4388 = vsel %vm2099, %v3811, 0
  %v4391 = vsel %vm2099, %v3812, 0
  %v4394 = vsel %vm2099, %v3813, 0
  %v4397 = vsel %vm2099, %v3814, 0
  %v4400 = vsel %vm2099, %v3815, 0
  %v4403 = vsel %vm2099, %v3816, 0
  %v4406 = vsel %vm2099, %v3817, 0
  %v4409 = vsel %vm2099, %v3818, 0
  %v4412 = vsel %vm2099, %v3819, 0
  %v4415 = vsel %vm2099, %v3820, 0
  %v4418 = vsel %vm2099, %v3821, 0
  %v4421 = vsel %vm2099, %v3822, 0
  %v4424 = vsel %vm2099, %v3823, 0
  %v4427 = vsel %vm2099, %v3824, 0
  %v4430 = vsel %vm2099, %v3825, 0
  %v4433 = vsel %vm2099, %v3826, 0
  %v4436 = vsel %vm2099, %v3827, 0
  %v4439 = vsel %vm2099, %v3828, 0
  %v4442 = vsel %vm2099, %v3829, 0
  %v4445 = vsel %vm2099, %v3830, 0
  %v4448 = vsel %vm2099, %v3831, 0
  %v4451 = vsel %vm2099, %v3832, 0
  %v4454 = vsel %vm2099, %v3833, 0
  %v4457 = vsel %vm2099, %v3834, 0
  %v4460 = vsel %vm2099, %v3835, 0
  %v4463 = vsel %vm2099, %v3836, 0
  %v4466 = vsel %vm2099, %v3837, 0
  %v4469 = vsel %vm2099, %v3838, 0
  %v4472 = vsel %vm2099, %v3839, 0
  %v4475 = vsel %vm2099, %v3840, 0
  %v4478 = vsel %vm2099, %v3841, 0
  %v4481 = vsel %vm2099, %v3842, 0
  %v4484 = vsel %vm2099, %v3843, 0
  %v4487 = vsel %vm2099, %v3844, 0
  %v4490 = vsel %vm2099, %v3845, 0
  %v4493 = vsel %vm2099, %v3846, 0
  %v4496 = vsel %vm2099, %v3847, 0
  %v4499 = vsel %vm2099, %v3848, 0
  %v4502 = vsel %vm2099, %v3849, 0
  %v4505 = vsel %vm2099, %v3850, 0
  %v4508 = vsel %vm2099, %v3851, 0
  %v4511 = vsel %vm2099, %v3852, 0
  %v4514 = vsel %vm2099, %v3853, 0
  %v4517 = vsel %vm2099, %v3854, 0
  %v4520 = vsel %vm2099, %v3855, 0
  %v4523 = vsel %vm2099, %v3856, 0
  %v4526 = vsel %vm2099, %v3857, 0
  %v4529 = vsel %vm2099, %v3858, 0
  %v4532 = vsel %vm2099, %v3859, 0
  %v4535 = vsel %vm2099, %v3860, 0
  %v4538 = vsel %vm2099, %v3861, 0
  %v4541 = vsel %vm2099, %v3862, 0
  %v4544 = vsel %vm2099, %v3863, 0
  %v4547 = vsel %vm2099, %v3864, 0
  %v4550 = vsel %vm2099, %v3865, 0
  %v4553 = vsel %vm2099, %v3866, 0
  %v4556 = vsel %vm2099, %v3867, 0
  %v4559 = vsel %vm2099, %v3868, 0
  %v4562 = vsel %vm2099, %v3869, 0
  %v4565 = vsel %vm2099, %v3870, 0
  %v4568 = vsel %vm2099, %v3871, 0
  %v4571 = vsel %vm2099, %v3872, 0
  %v4574 = vsel %vm2099, %v3873, 0
  %v4577 = vsel %vm2099, %v3874, 0
  %v4580 = vsel %vm2099, %v3875, 0
  %v4583 = vsel %vm2099, %v3876, 0
  %v4586 = vsel %vm2099, %v3877, 0
  %v4589 = vsel %vm2099, %v3878, 0
  %v4592 = vsel %vm2099, %v3879, 0
  %v4595 = vsel %vm2099, %v3880, 0
  %v4598 = vsel %vm2099, %v3881, 0
  %v4601 = vsel %vm2099, %v3882, 0
  %v4604 = vsel %vm2099, %v3883, 0
  %v4607 = vsel %vm2099, %v3884, 0
  %v4610 = vsel %vm2099, %v3885, 0
  %v4613 = vsel %vm2099, %v3886, 0
  %v4616 = vsel %vm2099, %v3887, 0
  %v4619 = vsel %vm2099, %v3888, 0
  %v4622 = vsel %vm2099, %v3889, 0
  %v4625 = vsel %vm2099, %v3890, 0
  %v4628 = vsel %vm2099, %v3891, 0
  %v4631 = vsel %vm2099, %v3892, 0
  %v4634 = vsel %vm2099, %v3893, 0
  %v4637 = vsel %vm2099, %v3894, 0
  %v4640 = vsel %vm2099, %v3895, 0
  %v4643 = vsel %vm2099, %v3896, 0
  %v4646 = vsel %vm2099, %v3897, 0
  %v4649 = vsel %vm2099, %v3898, 0
  %v4652 = vsel %vm2099, %v3899, 0
  %v4655 = vsel %vm2099, %v3900, 0
  %v4658 = vsel %vm2099, %v3901, 0
  %v4661 = vsel %vm2099, %v3902, 0
  %v4664 = vsel %vm2099, %v3903, 0
  %v4667 = vsel %vm2099, %v3904, 0
  %v4670 = vsel %vm2099, %v3905, 0
  %v4673 = vsel %vm2099, %v3906, 0
  %v4676 = vsel %vm2099, %v3907, 0
  %v4679 = vsel %vm2099, %v3908, 0
  %4681 = vmatpush.msra.mxu0 0.0
  %4682 = vmatpush.msra.mxu0 0.0
  %4683 = vmatpush.msra.mxu0 0.0
  %4684 = vmatpush.msra.mxu0 0.0
  %4685 = vmatpush.msra.mxu0 0.0
  %4686 = vmatpush.msra.mxu0 0.0
  %4687 = vmatpush.msra.mxu0 0.0
  %4688 = vmatpush.msra.mxu0 0.0
  %4689 = vmatpush.msra.mxu0 0.0
  %4690 = vmatpush.msra.mxu0 0.0
  %4691 = vmatpush.msra.mxu0 0.0
  %4692 = vmatpush.msra.mxu0 0.0
  %4693 = vmatpush.msra.mxu0 0.0
  %4694 = vmatpush.msra.mxu0 %v3911
  %4695 = vmatpush.msra.mxu0 %v3910
  %4696 = vmatpush.msra.mxu0 %v3909
  %4697 = vmatmul.f32.gmra.mxu0 %v3914
  %v4698 = vpop.f32.mrf.mxu0
  %v4699 = vadd.f32 %v3912, %v4698
  %4700 = vmatmul.f32.gmra.mxu0 %v3917
  %v4701 = vpop.f32.mrf.mxu0
  %v4702 = vadd.f32 %v3912, %v4701
  %4703 = vmatmul.f32.gmra.mxu0 %v3920
  %v4704 = vpop.f32.mrf.mxu0
  %v4705 = vadd.f32 %v3912, %v4704
  %4706 = vmatmul.f32.gmra.mxu0 %v3923
  %v4707 = vpop.f32.mrf.mxu0
  %v4708 = vadd.f32 %v3912, %v4707
  %4709 = vmatmul.f32.gmra.mxu0 %v3926
  %v4710 = vpop.f32.mrf.mxu0
  %v4711 = vadd.f32 %v3912, %v4710
  %4712 = vmatmul.f32.gmra.mxu0 %v3929
  %v4713 = vpop.f32.mrf.mxu0
  %v4714 = vadd.f32 %v3912, %v4713
  %4715 = vmatmul.f32.gmra.mxu0 %v3932
  %v4716 = vpop.f32.mrf.mxu0
  %v4717 = vadd.f32 %v3912, %v4716
  %4718 = vmatmul.f32.gmra.mxu0 %v3935
  %v4719 = vpop.f32.mrf.mxu0
  %v4720 = vadd.f32 %v3912, %v4719
  %4721 = vmatmul.f32.gmra.mxu0 %v3938
  %v4722 = vpop.f32.mrf.mxu0
  %v4723 = vadd.f32 %v3912, %v4722
  %4724 = vmatmul.f32.gmra.mxu0 %v3941
  %v4725 = vpop.f32.mrf.mxu0
  %v4726 = vadd.f32 %v3912, %v4725
  %4727 = vmatmul.f32.gmra.mxu0 %v3944
  %v4728 = vpop.f32.mrf.mxu0
  %v4729 = vadd.f32 %v3912, %v4728
  %4730 = vmatmul.f32.gmra.mxu0 %v3947
  %v4731 = vpop.f32.mrf.mxu0
  %v4732 = vadd.f32 %v3912, %v4731
  %4733 = vmatmul.f32.gmra.mxu0 %v3950
  %v4734 = vpop.f32.mrf.mxu0
  %v4735 = vadd.f32 %v3912, %v4734
  %4736 = vmatmul.f32.gmra.mxu0 %v3953
  %v4737 = vpop.f32.mrf.mxu0
  %v4738 = vadd.f32 %v3912, %v4737
  %4739 = vmatmul.f32.gmra.mxu0 %v3956
  %v4740 = vpop.f32.mrf.mxu0
  %v4741 = vadd.f32 %v3912, %v4740
  %4742 = vmatmul.f32.gmra.mxu0 %v3959
  %v4743 = vpop.f32.mrf.mxu0
  %v4744 = vadd.f32 %v3912, %v4743
  %4745 = vmatmul.f32.gmra.mxu0 %v3962
  %v4746 = vpop.f32.mrf.mxu0
  %v4747 = vadd.f32 %v3912, %v4746
  %4748 = vmatmul.f32.gmra.mxu0 %v3965
  %v4749 = vpop.f32.mrf.mxu0
  %v4750 = vadd.f32 %v3912, %v4749
  %4751 = vmatmul.f32.gmra.mxu0 %v3968
  %v4752 = vpop.f32.mrf.mxu0
  %v4753 = vadd.f32 %v3912, %v4752
  %4754 = vmatmul.f32.gmra.mxu0 %v3971
  %v4755 = vpop.f32.mrf.mxu0
  %v4756 = vadd.f32 %v3912, %v4755
  %4757 = vmatmul.f32.gmra.mxu0 %v3974
  %v4758 = vpop.f32.mrf.mxu0
  %v4759 = vadd.f32 %v3912, %v4758
  %4760 = vmatmul.f32.gmra.mxu0 %v3977
  %v4761 = vpop.f32.mrf.mxu0
  %v4762 = vadd.f32 %v3912, %v4761
  %4763 = vmatmul.f32.gmra.mxu0 %v3980
  %v4764 = vpop.f32.mrf.mxu0
  %v4765 = vadd.f32 %v3912, %v4764
  %4766 = vmatmul.f32.gmra.mxu0 %v3983
  %v4767 = vpop.f32.mrf.mxu0
  %v4768 = vadd.f32 %v3912, %v4767
  %4769 = vmatmul.f32.gmra.mxu0 %v3986
  %v4770 = vpop.f32.mrf.mxu0
  %v4771 = vadd.f32 %v3912, %v4770
  %4772 = vmatmul.f32.gmra.mxu0 %v3989
  %v4773 = vpop.f32.mrf.mxu0
  %v4774 = vadd.f32 %v3912, %v4773
  %4775 = vmatmul.f32.gmra.mxu0 %v3992
  %v4776 = vpop.f32.mrf.mxu0
  %v4777 = vadd.f32 %v3912, %v4776
  %4778 = vmatmul.f32.gmra.mxu0 %v3995
  %v4779 = vpop.f32.mrf.mxu0
  %v4780 = vadd.f32 %v3912, %v4779
  %4781 = vmatmul.f32.gmra.mxu0 %v3998
  %v4782 = vpop.f32.mrf.mxu0
  %v4783 = vadd.f32 %v3912, %v4782
  %4784 = vmatmul.f32.gmra.mxu0 %v4001
  %v4785 = vpop.f32.mrf.mxu0
  %v4786 = vadd.f32 %v3912, %v4785
  %4787 = vmatmul.f32.gmra.mxu0 %v4004
  %v4788 = vpop.f32.mrf.mxu0
  %v4789 = vadd.f32 %v3912, %v4788
  %4790 = vmatmul.f32.gmra.mxu0 %v4007
  %v4791 = vpop.f32.mrf.mxu0
  %v4792 = vadd.f32 %v3912, %v4791
  %4793 = vmatmul.f32.gmra.mxu0 %v4010
  %v4794 = vpop.f32.mrf.mxu0
  %v4795 = vadd.f32 %v3912, %v4794
  %4796 = vmatmul.f32.gmra.mxu0 %v4013
  %v4797 = vpop.f32.mrf.mxu0
  %v4798 = vadd.f32 %v3912, %v4797
  %4799 = vmatmul.f32.gmra.mxu0 %v4016
  %v4800 = vpop.f32.mrf.mxu0
  %v4801 = vadd.f32 %v3912, %v4800
  %4802 = vmatmul.f32.gmra.mxu0 %v4019
  %v4803 = vpop.f32.mrf.mxu0
  %v4804 = vadd.f32 %v3912, %v4803
  %4805 = vmatmul.f32.gmra.mxu0 %v4022
  %v4806 = vpop.f32.mrf.mxu0
  %v4807 = vadd.f32 %v3912, %v4806
  %4808 = vmatmul.f32.gmra.mxu0 %v4025
  %v4809 = vpop.f32.mrf.mxu0
  %v4810 = vadd.f32 %v3912, %v4809
  %4811 = vmatmul.f32.gmra.mxu0 %v4028
  %v4812 = vpop.f32.mrf.mxu0
  %v4813 = vadd.f32 %v3912, %v4812
  %4814 = vmatmul.f32.gmra.mxu0 %v4031
  %v4815 = vpop.f32.mrf.mxu0
  %v4816 = vadd.f32 %v3912, %v4815
  %4817 = vmatmul.f32.gmra.mxu0 %v4034
  %v4818 = vpop.f32.mrf.mxu0
  %v4819 = vadd.f32 %v3912, %v4818
  %4820 = vmatmul.f32.gmra.mxu0 %v4037
  %v4821 = vpop.f32.mrf.mxu0
  %v4822 = vadd.f32 %v3912, %v4821
  %4823 = vmatmul.f32.gmra.mxu0 %v4040
  %v4824 = vpop.f32.mrf.mxu0
  %v4825 = vadd.f32 %v3912, %v4824
  %4826 = vmatmul.f32.gmra.mxu0 %v4043
  %v4827 = vpop.f32.mrf.mxu0
  %v4828 = vadd.f32 %v3912, %v4827
  %4829 = vmatmul.f32.gmra.mxu0 %v4046
  %v4830 = vpop.f32.mrf.mxu0
  %v4831 = vadd.f32 %v3912, %v4830
  %4832 = vmatmul.f32.gmra.mxu0 %v4049
  %v4833 = vpop.f32.mrf.mxu0
  %v4834 = vadd.f32 %v3912, %v4833
  %4835 = vmatmul.f32.gmra.mxu0 %v4052
  %v4836 = vpop.f32.mrf.mxu0
  %v4837 = vadd.f32 %v3912, %v4836
  %4838 = vmatmul.f32.gmra.mxu0 %v4055
  %v4839 = vpop.f32.mrf.mxu0
  %v4840 = vadd.f32 %v3912, %v4839
  %4841 = vmatmul.f32.gmra.mxu0 %v4058
  %v4842 = vpop.f32.mrf.mxu0
  %v4843 = vadd.f32 %v3912, %v4842
  %4844 = vmatmul.f32.gmra.mxu0 %v4061
  %v4845 = vpop.f32.mrf.mxu0
  %v4846 = vadd.f32 %v3912, %v4845
  %4847 = vmatmul.f32.gmra.mxu0 %v4064
  %v4848 = vpop.f32.mrf.mxu0
  %v4849 = vadd.f32 %v3912, %v4848
  %4850 = vmatmul.f32.gmra.mxu0 %v4067
  %v4851 = vpop.f32.mrf.mxu0
  %v4852 = vadd.f32 %v3912, %v4851
  %4853 = vmatmul.f32.gmra.mxu0 %v4070
  %v4854 = vpop.f32.mrf.mxu0
  %v4855 = vadd.f32 %v3912, %v4854
  %4856 = vmatmul.f32.gmra.mxu0 %v4073
  %v4857 = vpop.f32.mrf.mxu0
  %v4858 = vadd.f32 %v3912, %v4857
  %4859 = vmatmul.f32.gmra.mxu0 %v4076
  %v4860 = vpop.f32.mrf.mxu0
  %v4861 = vadd.f32 %v3912, %v4860
  %4862 = vmatmul.f32.gmra.mxu0 %v4079
  %v4863 = vpop.f32.mrf.mxu0
  %v4864 = vadd.f32 %v3912, %v4863
  %4865 = vmatmul.f32.gmra.mxu0 %v4082
  %v4866 = vpop.f32.mrf.mxu0
  %v4867 = vadd.f32 %v3912, %v4866
  %4868 = vmatmul.f32.gmra.mxu0 %v4085
  %v4869 = vpop.f32.mrf.mxu0
  %v4870 = vadd.f32 %v3912, %v4869
  %4871 = vmatmul.f32.gmra.mxu0 %v4088
  %v4872 = vpop.f32.mrf.mxu0
  %v4873 = vadd.f32 %v3912, %v4872
  %4874 = vmatmul.f32.gmra.mxu0 %v4091
  %v4875 = vpop.f32.mrf.mxu0
  %v4876 = vadd.f32 %v3912, %v4875
  %4877 = vmatmul.f32.gmra.mxu0 %v4094
  %v4878 = vpop.f32.mrf.mxu0
  %v4879 = vadd.f32 %v3912, %v4878
  %4880 = vmatmul.f32.gmra.mxu0 %v4097
  %v4881 = vpop.f32.mrf.mxu0
  %v4882 = vadd.f32 %v3912, %v4881
  %4883 = vmatmul.f32.gmra.mxu0 %v4100
  %v4884 = vpop.f32.mrf.mxu0
  %v4885 = vadd.f32 %v3912, %v4884
  %4886 = vmatmul.f32.gmra.mxu0 %v4103
  %v4887 = vpop.f32.mrf.mxu0
  %v4888 = vadd.f32 %v3912, %v4887
  %4889 = vmatmul.f32.gmra.mxu0 %v4106
  %v4890 = vpop.f32.mrf.mxu0
  %v4891 = vadd.f32 %v3912, %v4890
  %4892 = vmatmul.f32.gmra.mxu0 %v4109
  %v4893 = vpop.f32.mrf.mxu0
  %v4894 = vadd.f32 %v3912, %v4893
  %4895 = vmatmul.f32.gmra.mxu0 %v4112
  %v4896 = vpop.f32.mrf.mxu0
  %v4897 = vadd.f32 %v3912, %v4896
  %4898 = vmatmul.f32.gmra.mxu0 %v4115
  %v4899 = vpop.f32.mrf.mxu0
  %v4900 = vadd.f32 %v3912, %v4899
  %4901 = vmatmul.f32.gmra.mxu0 %v4118
  %v4902 = vpop.f32.mrf.mxu0
  %v4903 = vadd.f32 %v3912, %v4902
  %4904 = vmatmul.f32.gmra.mxu0 %v4121
  %v4905 = vpop.f32.mrf.mxu0
  %v4906 = vadd.f32 %v3912, %v4905
  %4907 = vmatmul.f32.gmra.mxu0 %v4124
  %v4908 = vpop.f32.mrf.mxu0
  %v4909 = vadd.f32 %v3912, %v4908
  %4910 = vmatmul.f32.gmra.mxu0 %v4127
  %v4911 = vpop.f32.mrf.mxu0
  %v4912 = vadd.f32 %v3912, %v4911
  %4913 = vmatmul.f32.gmra.mxu0 %v4130
  %v4914 = vpop.f32.mrf.mxu0
  %v4915 = vadd.f32 %v3912, %v4914
  %4916 = vmatmul.f32.gmra.mxu0 %v4133
  %v4917 = vpop.f32.mrf.mxu0
  %v4918 = vadd.f32 %v3912, %v4917
  %4919 = vmatmul.f32.gmra.mxu0 %v4136
  %v4920 = vpop.f32.mrf.mxu0
  %v4921 = vadd.f32 %v3912, %v4920
  %4922 = vmatmul.f32.gmra.mxu0 %v4139
  %v4923 = vpop.f32.mrf.mxu0
  %v4924 = vadd.f32 %v3912, %v4923
  %4925 = vmatmul.f32.gmra.mxu0 %v4142
  %v4926 = vpop.f32.mrf.mxu0
  %v4927 = vadd.f32 %v3912, %v4926
  %4928 = vmatmul.f32.gmra.mxu0 %v4145
  %v4929 = vpop.f32.mrf.mxu0
  %v4930 = vadd.f32 %v3912, %v4929
  %4931 = vmatmul.f32.gmra.mxu0 %v4148
  %v4932 = vpop.f32.mrf.mxu0
  %v4933 = vadd.f32 %v3912, %v4932
  %4934 = vmatmul.f32.gmra.mxu0 %v4151
  %v4935 = vpop.f32.mrf.mxu0
  %v4936 = vadd.f32 %v3912, %v4935
  %4937 = vmatmul.f32.gmra.mxu0 %v4154
  %v4938 = vpop.f32.mrf.mxu0
  %v4939 = vadd.f32 %v3912, %v4938
  %4940 = vmatmul.f32.gmra.mxu0 %v4157
  %v4941 = vpop.f32.mrf.mxu0
  %v4942 = vadd.f32 %v3912, %v4941
  %4943 = vmatmul.f32.gmra.mxu0 %v4160
  %v4944 = vpop.f32.mrf.mxu0
  %v4945 = vadd.f32 %v3912, %v4944
  %4946 = vmatmul.f32.gmra.mxu0 %v4163
  %v4947 = vpop.f32.mrf.mxu0
  %v4948 = vadd.f32 %v3912, %v4947
  %4949 = vmatmul.f32.gmra.mxu0 %v4166
  %v4950 = vpop.f32.mrf.mxu0
  %v4951 = vadd.f32 %v3912, %v4950
  %4952 = vmatmul.f32.gmra.mxu0 %v4169
  %v4953 = vpop.f32.mrf.mxu0
  %v4954 = vadd.f32 %v3912, %v4953
  %4955 = vmatmul.f32.gmra.mxu0 %v4172
  %v4956 = vpop.f32.mrf.mxu0
  %v4957 = vadd.f32 %v3912, %v4956
  %4958 = vmatmul.f32.gmra.mxu0 %v4175
  %v4959 = vpop.f32.mrf.mxu0
  %v4960 = vadd.f32 %v3912, %v4959
  %4961 = vmatmul.f32.gmra.mxu0 %v4178
  %v4962 = vpop.f32.mrf.mxu0
  %v4963 = vadd.f32 %v3912, %v4962
  %4964 = vmatmul.f32.gmra.mxu0 %v4181
  %v4965 = vpop.f32.mrf.mxu0
  %v4966 = vadd.f32 %v3912, %v4965
  %4967 = vmatmul.f32.gmra.mxu0 %v4184
  %v4968 = vpop.f32.mrf.mxu0
  %v4969 = vadd.f32 %v3912, %v4968
  %4970 = vmatmul.f32.gmra.mxu0 %v4187
  %v4971 = vpop.f32.mrf.mxu0
  %v4972 = vadd.f32 %v3912, %v4971
  %4973 = vmatmul.f32.gmra.mxu0 %v4190
  %v4974 = vpop.f32.mrf.mxu0
  %v4975 = vadd.f32 %v3912, %v4974
  %4976 = vmatmul.f32.gmra.mxu0 %v4193
  %v4977 = vpop.f32.mrf.mxu0
  %v4978 = vadd.f32 %v3912, %v4977
  %4979 = vmatmul.f32.gmra.mxu0 %v4196
  %v4980 = vpop.f32.mrf.mxu0
  %v4981 = vadd.f32 %v3912, %v4980
  %4982 = vmatmul.f32.gmra.mxu0 %v4199
  %v4983 = vpop.f32.mrf.mxu0
  %v4984 = vadd.f32 %v3912, %v4983
  %4985 = vmatmul.f32.gmra.mxu0 %v4202
  %v4986 = vpop.f32.mrf.mxu0
  %v4987 = vadd.f32 %v3912, %v4986
  %4988 = vmatmul.f32.gmra.mxu0 %v4205
  %v4989 = vpop.f32.mrf.mxu0
  %v4990 = vadd.f32 %v3912, %v4989
  %4991 = vmatmul.f32.gmra.mxu0 %v4208
  %v4992 = vpop.f32.mrf.mxu0
  %v4993 = vadd.f32 %v3912, %v4992
  %4994 = vmatmul.f32.gmra.mxu0 %v4211
  %v4995 = vpop.f32.mrf.mxu0
  %v4996 = vadd.f32 %v3912, %v4995
  %4997 = vmatmul.f32.gmra.mxu0 %v4214
  %v4998 = vpop.f32.mrf.mxu0
  %v4999 = vadd.f32 %v3912, %v4998
  %5000 = vmatmul.f32.gmra.mxu0 %v4217
  %v5001 = vpop.f32.mrf.mxu0
  %v5002 = vadd.f32 %v3912, %v5001
  %5003 = vmatmul.f32.gmra.mxu0 %v4220
  %v5004 = vpop.f32.mrf.mxu0
  %v5005 = vadd.f32 %v3912, %v5004
  %5006 = vmatmul.f32.gmra.mxu0 %v4223
  %v5007 = vpop.f32.mrf.mxu0
  %v5008 = vadd.f32 %v3912, %v5007
  %5009 = vmatmul.f32.gmra.mxu0 %v4226
  %v5010 = vpop.f32.mrf.mxu0
  %v5011 = vadd.f32 %v3912, %v5010
  %5012 = vmatmul.f32.gmra.mxu0 %v4229
  %v5013 = vpop.f32.mrf.mxu0
  %v5014 = vadd.f32 %v3912, %v5013
  %5015 = vmatmul.f32.gmra.mxu0 %v4232
  %v5016 = vpop.f32.mrf.mxu0
  %v5017 = vadd.f32 %v3912, %v5016
  %5018 = vmatmul.f32.gmra.mxu0 %v4235
  %v5019 = vpop.f32.mrf.mxu0
  %v5020 = vadd.f32 %v3912, %v5019
  %5021 = vmatmul.f32.gmra.mxu0 %v4238
  %v5022 = vpop.f32.mrf.mxu0
  %v5023 = vadd.f32 %v3912, %v5022
  %5024 = vmatmul.f32.gmra.mxu0 %v4241
  %v5025 = vpop.f32.mrf.mxu0
  %v5026 = vadd.f32 %v3912, %v5025
  %5027 = vmatmul.f32.gmra.mxu0 %v4244
  %v5028 = vpop.f32.mrf.mxu0
  %v5029 = vadd.f32 %v3912, %v5028
  %5030 = vmatmul.f32.gmra.mxu0 %v4247
  %v5031 = vpop.f32.mrf.mxu0
  %v5032 = vadd.f32 %v3912, %v5031
  %5033 = vmatmul.f32.gmra.mxu0 %v4250
  %v5034 = vpop.f32.mrf.mxu0
  %v5035 = vadd.f32 %v3912, %v5034
  %5036 = vmatmul.f32.gmra.mxu0 %v4253
  %v5037 = vpop.f32.mrf.mxu0
  %v5038 = vadd.f32 %v3912, %v5037
  %5039 = vmatmul.f32.gmra.mxu0 %v4256
  %v5040 = vpop.f32.mrf.mxu0
  %v5041 = vadd.f32 %v3912, %v5040
  %5042 = vmatmul.f32.gmra.mxu0 %v4259
  %v5043 = vpop.f32.mrf.mxu0
  %v5044 = vadd.f32 %v3912, %v5043
  %5045 = vmatmul.f32.gmra.mxu0 %v4262
  %v5046 = vpop.f32.mrf.mxu0
  %v5047 = vadd.f32 %v3912, %v5046
  %5048 = vmatmul.f32.gmra.mxu0 %v4265
  %v5049 = vpop.f32.mrf.mxu0
  %v5050 = vadd.f32 %v3912, %v5049
  %5051 = vmatmul.f32.gmra.mxu0 %v4268
  %v5052 = vpop.f32.mrf.mxu0
  %v5053 = vadd.f32 %v3912, %v5052
  %5054 = vmatmul.f32.gmra.mxu0 %v4271
  %v5055 = vpop.f32.mrf.mxu0
  %v5056 = vadd.f32 %v3912, %v5055
  %5057 = vmatmul.f32.gmra.mxu0 %v4274
  %v5058 = vpop.f32.mrf.mxu0
  %v5059 = vadd.f32 %v3912, %v5058
  %5060 = vmatmul.f32.gmra.mxu0 %v4277
  %v5061 = vpop.f32.mrf.mxu0
  %v5062 = vadd.f32 %v3912, %v5061
  %5063 = vmatmul.f32.gmra.mxu0 %v4280
  %v5064 = vpop.f32.mrf.mxu0
  %v5065 = vadd.f32 %v3912, %v5064
  %5066 = vmatmul.f32.gmra.mxu0 %v4283
  %v5067 = vpop.f32.mrf.mxu0
  %v5068 = vadd.f32 %v3912, %v5067
  %5069 = vmatmul.f32.gmra.mxu0 %v4286
  %v5070 = vpop.f32.mrf.mxu0
  %v5071 = vadd.f32 %v3912, %v5070
  %5072 = vmatmul.f32.gmra.mxu0 %v4289
  %v5073 = vpop.f32.mrf.mxu0
  %v5074 = vadd.f32 %v3912, %v5073
  %5075 = vmatmul.f32.gmra.mxu0 %v4292
  %v5076 = vpop.f32.mrf.mxu0
  %v5077 = vadd.f32 %v3912, %v5076
  %5078 = vmatmul.f32.gmra.mxu0 %v4295
  %v5079 = vpop.f32.mrf.mxu0
  %v5080 = vadd.f32 %v3912, %v5079
  %5081 = vmatmul.f32.gmra.mxu0 %v4298
  %v5082 = vpop.f32.mrf.mxu0
  %v5083 = vadd.f32 %v3912, %v5082
  %5084 = vmatmul.f32.gmra.mxu0 %v4301
  %v5085 = vpop.f32.mrf.mxu0
  %v5086 = vadd.f32 %v3912, %v5085
  %5087 = vmatmul.f32.gmra.mxu0 %v4304
  %v5088 = vpop.f32.mrf.mxu0
  %v5089 = vadd.f32 %v3912, %v5088
  %5090 = vmatmul.f32.gmra.mxu0 %v4307
  %v5091 = vpop.f32.mrf.mxu0
  %v5092 = vadd.f32 %v3912, %v5091
  %5093 = vmatmul.f32.gmra.mxu0 %v4310
  %v5094 = vpop.f32.mrf.mxu0
  %v5095 = vadd.f32 %v3912, %v5094
  %5096 = vmatmul.f32.gmra.mxu0 %v4313
  %v5097 = vpop.f32.mrf.mxu0
  %v5098 = vadd.f32 %v3912, %v5097
  %5099 = vmatmul.f32.gmra.mxu0 %v4316
  %v5100 = vpop.f32.mrf.mxu0
  %v5101 = vadd.f32 %v3912, %v5100
  %5102 = vmatmul.f32.gmra.mxu0 %v4319
  %v5103 = vpop.f32.mrf.mxu0
  %v5104 = vadd.f32 %v3912, %v5103
  %5105 = vmatmul.f32.gmra.mxu0 %v4322
  %v5106 = vpop.f32.mrf.mxu0
  %v5107 = vadd.f32 %v3912, %v5106
  %5108 = vmatmul.f32.gmra.mxu0 %v4325
  %v5109 = vpop.f32.mrf.mxu0
  %v5110 = vadd.f32 %v3912, %v5109
  %5111 = vmatmul.f32.gmra.mxu0 %v4328
  %v5112 = vpop.f32.mrf.mxu0
  %v5113 = vadd.f32 %v3912, %v5112
  %5114 = vmatmul.f32.gmra.mxu0 %v4331
  %v5115 = vpop.f32.mrf.mxu0
  %v5116 = vadd.f32 %v3912, %v5115
  %5117 = vmatmul.f32.gmra.mxu0 %v4334
  %v5118 = vpop.f32.mrf.mxu0
  %v5119 = vadd.f32 %v3912, %v5118
  %5120 = vmatmul.f32.gmra.mxu0 %v4337
  %v5121 = vpop.f32.mrf.mxu0
  %v5122 = vadd.f32 %v3912, %v5121
  %5123 = vmatmul.f32.gmra.mxu0 %v4340
  %v5124 = vpop.f32.mrf.mxu0
  %v5125 = vadd.f32 %v3912, %v5124
  %5126 = vmatmul.f32.gmra.mxu0 %v4343
  %v5127 = vpop.f32.mrf.mxu0
  %v5128 = vadd.f32 %v3912, %v5127
  %5129 = vmatmul.f32.gmra.mxu0 %v4346
  %v5130 = vpop.f32.mrf.mxu0
  %v5131 = vadd.f32 %v3912, %v5130
  %5132 = vmatmul.f32.gmra.mxu0 %v4349
  %v5133 = vpop.f32.mrf.mxu0
  %v5134 = vadd.f32 %v3912, %v5133
  %5135 = vmatmul.f32.gmra.mxu0 %v4352
  %v5136 = vpop.f32.mrf.mxu0
  %v5137 = vadd.f32 %v3912, %v5136
  %5138 = vmatmul.f32.gmra.mxu0 %v4355
  %v5139 = vpop.f32.mrf.mxu0
  %v5140 = vadd.f32 %v3912, %v5139
  %5141 = vmatmul.f32.gmra.mxu0 %v4358
  %v5142 = vpop.f32.mrf.mxu0
  %v5143 = vadd.f32 %v3912, %v5142
  %5144 = vmatmul.f32.gmra.mxu0 %v4361
  %v5145 = vpop.f32.mrf.mxu0
  %v5146 = vadd.f32 %v3912, %v5145
  %5147 = vmatmul.f32.gmra.mxu0 %v4364
  %v5148 = vpop.f32.mrf.mxu0
  %v5149 = vadd.f32 %v3912, %v5148
  %5150 = vmatmul.f32.gmra.mxu0 %v4367
  %v5151 = vpop.f32.mrf.mxu0
  %v5152 = vadd.f32 %v3912, %v5151
  %5153 = vmatmul.f32.gmra.mxu0 %v4370
  %v5154 = vpop.f32.mrf.mxu0
  %v5155 = vadd.f32 %v3912, %v5154
  %5156 = vmatmul.f32.gmra.mxu0 %v4373
  %v5157 = vpop.f32.mrf.mxu0
  %v5158 = vadd.f32 %v3912, %v5157
  %5159 = vmatmul.f32.gmra.mxu0 %v4376
  %v5160 = vpop.f32.mrf.mxu0
  %v5161 = vadd.f32 %v3912, %v5160
  %5162 = vmatmul.f32.gmra.mxu0 %v4379
  %v5163 = vpop.f32.mrf.mxu0
  %v5164 = vadd.f32 %v3912, %v5163
  %5165 = vmatmul.f32.gmra.mxu0 %v4382
  %v5166 = vpop.f32.mrf.mxu0
  %v5167 = vadd.f32 %v3912, %v5166
  %5168 = vmatmul.f32.gmra.mxu0 %v4385
  %v5169 = vpop.f32.mrf.mxu0
  %v5170 = vadd.f32 %v3912, %v5169
  %5171 = vmatmul.f32.gmra.mxu0 %v4388
  %v5172 = vpop.f32.mrf.mxu0
  %v5173 = vadd.f32 %v3912, %v5172
  %5174 = vmatmul.f32.gmra.mxu0 %v4391
  %v5175 = vpop.f32.mrf.mxu0
  %v5176 = vadd.f32 %v3912, %v5175
  %5177 = vmatmul.f32.gmra.mxu0 %v4394
  %v5178 = vpop.f32.mrf.mxu0
  %v5179 = vadd.f32 %v3912, %v5178
  %5180 = vmatmul.f32.gmra.mxu0 %v4397
  %v5181 = vpop.f32.mrf.mxu0
  %v5182 = vadd.f32 %v3912, %v5181
  %5183 = vmatmul.f32.gmra.mxu0 %v4400
  %v5184 = vpop.f32.mrf.mxu0
  %v5185 = vadd.f32 %v3912, %v5184
  %5186 = vmatmul.f32.gmra.mxu0 %v4403
  %v5187 = vpop.f32.mrf.mxu0
  %v5188 = vadd.f32 %v3912, %v5187
  %5189 = vmatmul.f32.gmra.mxu0 %v4406
  %v5190 = vpop.f32.mrf.mxu0
  %v5191 = vadd.f32 %v3912, %v5190
  %5192 = vmatmul.f32.gmra.mxu0 %v4409
  %v5193 = vpop.f32.mrf.mxu0
  %v5194 = vadd.f32 %v3912, %v5193
  %5195 = vmatmul.f32.gmra.mxu0 %v4412
  %v5196 = vpop.f32.mrf.mxu0
  %v5197 = vadd.f32 %v3912, %v5196
  %5198 = vmatmul.f32.gmra.mxu0 %v4415
  %v5199 = vpop.f32.mrf.mxu0
  %v5200 = vadd.f32 %v3912, %v5199
  %5201 = vmatmul.f32.gmra.mxu0 %v4418
  %v5202 = vpop.f32.mrf.mxu0
  %v5203 = vadd.f32 %v3912, %v5202
  %5204 = vmatmul.f32.gmra.mxu0 %v4421
  %v5205 = vpop.f32.mrf.mxu0
  %v5206 = vadd.f32 %v3912, %v5205
  %5207 = vmatmul.f32.gmra.mxu0 %v4424
  %v5208 = vpop.f32.mrf.mxu0
  %v5209 = vadd.f32 %v3912, %v5208
  %5210 = vmatmul.f32.gmra.mxu0 %v4427
  %v5211 = vpop.f32.mrf.mxu0
  %v5212 = vadd.f32 %v3912, %v5211
  %5213 = vmatmul.f32.gmra.mxu0 %v4430
  %v5214 = vpop.f32.mrf.mxu0
  %v5215 = vadd.f32 %v3912, %v5214
  %5216 = vmatmul.f32.gmra.mxu0 %v4433
  %v5217 = vpop.f32.mrf.mxu0
  %v5218 = vadd.f32 %v3912, %v5217
  %5219 = vmatmul.f32.gmra.mxu0 %v4436
  %v5220 = vpop.f32.mrf.mxu0
  %v5221 = vadd.f32 %v3912, %v5220
  %5222 = vmatmul.f32.gmra.mxu0 %v4439
  %v5223 = vpop.f32.mrf.mxu0
  %v5224 = vadd.f32 %v3912, %v5223
  %5225 = vmatmul.f32.gmra.mxu0 %v4442
  %v5226 = vpop.f32.mrf.mxu0
  %v5227 = vadd.f32 %v3912, %v5226
  %5228 = vmatmul.f32.gmra.mxu0 %v4445
  %v5229 = vpop.f32.mrf.mxu0
  %v5230 = vadd.f32 %v3912, %v5229
  %5231 = vmatmul.f32.gmra.mxu0 %v4448
  %v5232 = vpop.f32.mrf.mxu0
  %v5233 = vadd.f32 %v3912, %v5232
  %5234 = vmatmul.f32.gmra.mxu0 %v4451
  %v5235 = vpop.f32.mrf.mxu0
  %v5236 = vadd.f32 %v3912, %v5235
  %5237 = vmatmul.f32.gmra.mxu0 %v4454
  %v5238 = vpop.f32.mrf.mxu0
  %v5239 = vadd.f32 %v3912, %v5238
  %5240 = vmatmul.f32.gmra.mxu0 %v4457
  %v5241 = vpop.f32.mrf.mxu0
  %v5242 = vadd.f32 %v3912, %v5241
  %5243 = vmatmul.f32.gmra.mxu0 %v4460
  %v5244 = vpop.f32.mrf.mxu0
  %v5245 = vadd.f32 %v3912, %v5244
  %5246 = vmatmul.f32.gmra.mxu0 %v4463
  %v5247 = vpop.f32.mrf.mxu0
  %v5248 = vadd.f32 %v3912, %v5247
  %5249 = vmatmul.f32.gmra.mxu0 %v4466
  %v5250 = vpop.f32.mrf.mxu0
  %v5251 = vadd.f32 %v3912, %v5250
  %5252 = vmatmul.f32.gmra.mxu0 %v4469
  %v5253 = vpop.f32.mrf.mxu0
  %v5254 = vadd.f32 %v3912, %v5253
  %5255 = vmatmul.f32.gmra.mxu0 %v4472
  %v5256 = vpop.f32.mrf.mxu0
  %v5257 = vadd.f32 %v3912, %v5256
  %5258 = vmatmul.f32.gmra.mxu0 %v4475
  %v5259 = vpop.f32.mrf.mxu0
  %v5260 = vadd.f32 %v3912, %v5259
  %5261 = vmatmul.f32.gmra.mxu0 %v4478
  %v5262 = vpop.f32.mrf.mxu0
  %v5263 = vadd.f32 %v3912, %v5262
  %5264 = vmatmul.f32.gmra.mxu0 %v4481
  %v5265 = vpop.f32.mrf.mxu0
  %v5266 = vadd.f32 %v3912, %v5265
  %5267 = vmatmul.f32.gmra.mxu0 %v4484
  %v5268 = vpop.f32.mrf.mxu0
  %v5269 = vadd.f32 %v3912, %v5268
  %5270 = vmatmul.f32.gmra.mxu0 %v4487
  %v5271 = vpop.f32.mrf.mxu0
  %v5272 = vadd.f32 %v3912, %v5271
  %5273 = vmatmul.f32.gmra.mxu0 %v4490
  %v5274 = vpop.f32.mrf.mxu0
  %v5275 = vadd.f32 %v3912, %v5274
  %5276 = vmatmul.f32.gmra.mxu0 %v4493
  %v5277 = vpop.f32.mrf.mxu0
  %v5278 = vadd.f32 %v3912, %v5277
  %5279 = vmatmul.f32.gmra.mxu0 %v4496
  %v5280 = vpop.f32.mrf.mxu0
  %v5281 = vadd.f32 %v3912, %v5280
  %5282 = vmatmul.f32.gmra.mxu0 %v4499
  %v5283 = vpop.f32.mrf.mxu0
  %v5284 = vadd.f32 %v3912, %v5283
  %5285 = vmatmul.f32.gmra.mxu0 %v4502
  %v5286 = vpop.f32.mrf.mxu0
  %v5287 = vadd.f32 %v3912, %v5286
  %5288 = vmatmul.f32.gmra.mxu0 %v4505
  %v5289 = vpop.f32.mrf.mxu0
  %v5290 = vadd.f32 %v3912, %v5289
  %5291 = vmatmul.f32.gmra.mxu0 %v4508
  %v5292 = vpop.f32.mrf.mxu0
  %v5293 = vadd.f32 %v3912, %v5292
  %5294 = vmatmul.f32.gmra.mxu0 %v4511
  %v5295 = vpop.f32.mrf.mxu0
  %v5296 = vadd.f32 %v3912, %v5295
  %5297 = vmatmul.f32.gmra.mxu0 %v4514
  %v5298 = vpop.f32.mrf.mxu0
  %v5299 = vadd.f32 %v3912, %v5298
  %5300 = vmatmul.f32.gmra.mxu0 %v4517
  %v5301 = vpop.f32.mrf.mxu0
  %v5302 = vadd.f32 %v3912, %v5301
  %5303 = vmatmul.f32.gmra.mxu0 %v4520
  %v5304 = vpop.f32.mrf.mxu0
  %v5305 = vadd.f32 %v3912, %v5304
  %5306 = vmatmul.f32.gmra.mxu0 %v4523
  %v5307 = vpop.f32.mrf.mxu0
  %v5308 = vadd.f32 %v3912, %v5307
  %5309 = vmatmul.f32.gmra.mxu0 %v4526
  %v5310 = vpop.f32.mrf.mxu0
  %v5311 = vadd.f32 %v3912, %v5310
  %5312 = vmatmul.f32.gmra.mxu0 %v4529
  %v5313 = vpop.f32.mrf.mxu0
  %v5314 = vadd.f32 %v3912, %v5313
  %5315 = vmatmul.f32.gmra.mxu0 %v4532
  %v5316 = vpop.f32.mrf.mxu0
  %v5317 = vadd.f32 %v3912, %v5316
  %5318 = vmatmul.f32.gmra.mxu0 %v4535
  %v5319 = vpop.f32.mrf.mxu0
  %v5320 = vadd.f32 %v3912, %v5319
  %5321 = vmatmul.f32.gmra.mxu0 %v4538
  %v5322 = vpop.f32.mrf.mxu0
  %v5323 = vadd.f32 %v3912, %v5322
  %5324 = vmatmul.f32.gmra.mxu0 %v4541
  %v5325 = vpop.f32.mrf.mxu0
  %v5326 = vadd.f32 %v3912, %v5325
  %5327 = vmatmul.f32.gmra.mxu0 %v4544
  %v5328 = vpop.f32.mrf.mxu0
  %v5329 = vadd.f32 %v3912, %v5328
  %5330 = vmatmul.f32.gmra.mxu0 %v4547
  %v5331 = vpop.f32.mrf.mxu0
  %v5332 = vadd.f32 %v3912, %v5331
  %5333 = vmatmul.f32.gmra.mxu0 %v4550
  %v5334 = vpop.f32.mrf.mxu0
  %v5335 = vadd.f32 %v3912, %v5334
  %5336 = vmatmul.f32.gmra.mxu0 %v4553
  %v5337 = vpop.f32.mrf.mxu0
  %v5338 = vadd.f32 %v3912, %v5337
  %5339 = vmatmul.f32.gmra.mxu0 %v4556
  %v5340 = vpop.f32.mrf.mxu0
  %v5341 = vadd.f32 %v3912, %v5340
  %5342 = vmatmul.f32.gmra.mxu0 %v4559
  %v5343 = vpop.f32.mrf.mxu0
  %v5344 = vadd.f32 %v3912, %v5343
  %5345 = vmatmul.f32.gmra.mxu0 %v4562
  %v5346 = vpop.f32.mrf.mxu0
  %v5347 = vadd.f32 %v3912, %v5346
  %5348 = vmatmul.f32.gmra.mxu0 %v4565
  %v5349 = vpop.f32.mrf.mxu0
  %v5350 = vadd.f32 %v3912, %v5349
  %5351 = vmatmul.f32.gmra.mxu0 %v4568
  %v5352 = vpop.f32.mrf.mxu0
  %v5353 = vadd.f32 %v3912, %v5352
  %5354 = vmatmul.f32.gmra.mxu0 %v4571
  %v5355 = vpop.f32.mrf.mxu0
  %v5356 = vadd.f32 %v3912, %v5355
  %5357 = vmatmul.f32.gmra.mxu0 %v4574
  %v5358 = vpop.f32.mrf.mxu0
  %v5359 = vadd.f32 %v3912, %v5358
  %5360 = vmatmul.f32.gmra.mxu0 %v4577
  %v5361 = vpop.f32.mrf.mxu0
  %v5362 = vadd.f32 %v3912, %v5361
  %5363 = vmatmul.f32.gmra.mxu0 %v4580
  %v5364 = vpop.f32.mrf.mxu0
  %v5365 = vadd.f32 %v3912, %v5364
  %5366 = vmatmul.f32.gmra.mxu0 %v4583
  %v5367 = vpop.f32.mrf.mxu0
  %v5368 = vadd.f32 %v3912, %v5367
  %5369 = vmatmul.f32.gmra.mxu0 %v4586
  %v5370 = vpop.f32.mrf.mxu0
  %v5371 = vadd.f32 %v3912, %v5370
  %5372 = vmatmul.f32.gmra.mxu0 %v4589
  %v5373 = vpop.f32.mrf.mxu0
  %v5374 = vadd.f32 %v3912, %v5373
  %5375 = vmatmul.f32.gmra.mxu0 %v4592
  %v5376 = vpop.f32.mrf.mxu0
  %v5377 = vadd.f32 %v3912, %v5376
  %5378 = vmatmul.f32.gmra.mxu0 %v4595
  %v5379 = vpop.f32.mrf.mxu0
  %v5380 = vadd.f32 %v3912, %v5379
  %5381 = vmatmul.f32.gmra.mxu0 %v4598
  %v5382 = vpop.f32.mrf.mxu0
  %v5383 = vadd.f32 %v3912, %v5382
  %5384 = vmatmul.f32.gmra.mxu0 %v4601
  %v5385 = vpop.f32.mrf.mxu0
  %v5386 = vadd.f32 %v3912, %v5385
  %5387 = vmatmul.f32.gmra.mxu0 %v4604
  %v5388 = vpop.f32.mrf.mxu0
  %v5389 = vadd.f32 %v3912, %v5388
  %5390 = vmatmul.f32.gmra.mxu0 %v4607
  %v5391 = vpop.f32.mrf.mxu0
  %v5392 = vadd.f32 %v3912, %v5391
  %5393 = vmatmul.f32.gmra.mxu0 %v4610
  %v5394 = vpop.f32.mrf.mxu0
  %v5395 = vadd.f32 %v3912, %v5394
  %5396 = vmatmul.f32.gmra.mxu0 %v4613
  %v5397 = vpop.f32.mrf.mxu0
  %v5398 = vadd.f32 %v3912, %v5397
  %5399 = vmatmul.f32.gmra.mxu0 %v4616
  %v5400 = vpop.f32.mrf.mxu0
  %v5401 = vadd.f32 %v3912, %v5400
  %5402 = vmatmul.f32.gmra.mxu0 %v4619
  %v5403 = vpop.f32.mrf.mxu0
  %v5404 = vadd.f32 %v3912, %v5403
  %5405 = vmatmul.f32.gmra.mxu0 %v4622
  %v5406 = vpop.f32.mrf.mxu0
  %v5407 = vadd.f32 %v3912, %v5406
  %5408 = vmatmul.f32.gmra.mxu0 %v4625
  %v5409 = vpop.f32.mrf.mxu0
  %v5410 = vadd.f32 %v3912, %v5409
  %5411 = vmatmul.f32.gmra.mxu0 %v4628
  %v5412 = vpop.f32.mrf.mxu0
  %v5413 = vadd.f32 %v3912, %v5412
  %5414 = vmatmul.f32.gmra.mxu0 %v4631
  %v5415 = vpop.f32.mrf.mxu0
  %v5416 = vadd.f32 %v3912, %v5415
  %5417 = vmatmul.f32.gmra.mxu0 %v4634
  %v5418 = vpop.f32.mrf.mxu0
  %v5419 = vadd.f32 %v3912, %v5418
  %5420 = vmatmul.f32.gmra.mxu0 %v4637
  %v5421 = vpop.f32.mrf.mxu0
  %v5422 = vadd.f32 %v3912, %v5421
  %5423 = vmatmul.f32.gmra.mxu0 %v4640
  %v5424 = vpop.f32.mrf.mxu0
  %v5425 = vadd.f32 %v3912, %v5424
  %5426 = vmatmul.f32.gmra.mxu0 %v4643
  %v5427 = vpop.f32.mrf.mxu0
  %v5428 = vadd.f32 %v3912, %v5427
  %5429 = vmatmul.f32.gmra.mxu0 %v4646
  %v5430 = vpop.f32.mrf.mxu0
  %v5431 = vadd.f32 %v3912, %v5430
  %5432 = vmatmul.f32.gmra.mxu0 %v4649
  %v5433 = vpop.f32.mrf.mxu0
  %v5434 = vadd.f32 %v3912, %v5433
  %5435 = vmatmul.f32.gmra.mxu0 %v4652
  %v5436 = vpop.f32.mrf.mxu0
  %v5437 = vadd.f32 %v3912, %v5436
  %5438 = vmatmul.f32.gmra.mxu0 %v4655
  %v5439 = vpop.f32.mrf.mxu0
  %v5440 = vadd.f32 %v3912, %v5439
  %5441 = vmatmul.f32.gmra.mxu0 %v4658
  %v5442 = vpop.f32.mrf.mxu0
  %v5443 = vadd.f32 %v3912, %v5442
  %5444 = vmatmul.f32.gmra.mxu0 %v4661
  %v5445 = vpop.f32.mrf.mxu0
  %v5446 = vadd.f32 %v3912, %v5445
  %5447 = vmatmul.f32.gmra.mxu0 %v4664
  %v5448 = vpop.f32.mrf.mxu0
  %v5449 = vadd.f32 %v3912, %v5448
  %5450 = vmatmul.f32.gmra.mxu0 %v4667
  %v5451 = vpop.f32.mrf.mxu0
  %v5452 = vadd.f32 %v3912, %v5451
  %5453 = vmatmul.f32.gmra.mxu0 %v4670
  %v5454 = vpop.f32.mrf.mxu0
  %v5455 = vadd.f32 %v3912, %v5454
  %5456 = vmatmul.f32.gmra.mxu0 %v4673
  %v5457 = vpop.f32.mrf.mxu0
  %v5458 = vadd.f32 %v3912, %v5457
  %5459 = vmatmul.f32.gmra.mxu0 %v4676
  %v5460 = vpop.f32.mrf.mxu0
  %v5461 = vadd.f32 %v3912, %v5460
  %5462 = vmatmul.f32.gmra.mxu0 %v4679
  %v5463 = vpop.f32.mrf.mxu0
  %v5464 = vadd.f32 %v3912, %v5463
  %5465 = vdwg.mxu0
  %vm5466 = vcmask 15360
  %v5467 = vsel %vm5466, %v4699, -inf
  %5468 = vmax.xlane.f32.xlu0 %v5467
  %v5469 = vpop.xlane.xlu0 %5468
  %v5470 = vsel %vm5466, %v4702, -inf
  %5471 = vmax.xlane.f32.xlu0 %v5470
  %v5472 = vpop.xlane.xlu0 %5471
  %v5473 = vsel %vm5466, %v4705, -inf
  %5474 = vmax.xlane.f32.xlu0 %v5473
  %v5475 = vpop.xlane.xlu0 %5474
  %v5476 = vsel %vm5466, %v4708, -inf
  %5477 = vmax.xlane.f32.xlu0 %v5476
  %v5478 = vpop.xlane.xlu0 %5477
  %v5479 = vsel %vm5466, %v4711, -inf
  %5480 = vmax.xlane.f32.xlu0 %v5479
  %v5481 = vpop.xlane.xlu0 %5480
  %v5482 = vsel %vm5466, %v4714, -inf
  %5483 = vmax.xlane.f32.xlu0 %v5482
  %v5484 = vpop.xlane.xlu0 %5483
  %v5485 = vsel %vm5466, %v4717, -inf
  %5486 = vmax.xlane.f32.xlu0 %v5485
  %v5487 = vpop.xlane.xlu0 %5486
  %v5488 = vsel %vm5466, %v4720, -inf
  %5489 = vmax.xlane.f32.xlu0 %v5488
  %v5490 = vpop.xlane.xlu0 %5489
  %v5491 = vsel %vm5466, %v4723, -inf
  %5492 = vmax.xlane.f32.xlu0 %v5491
  %v5493 = vpop.xlane.xlu0 %5492
  %v5494 = vsel %vm5466, %v4726, -inf
  %5495 = vmax.xlane.f32.xlu0 %v5494
  %v5496 = vpop.xlane.xlu0 %5495
  %v5497 = vsel %vm5466, %v4729, -inf
  %5498 = vmax.xlane.f32.xlu0 %v5497
  %v5499 = vpop.xlane.xlu0 %5498
  %v5500 = vsel %vm5466, %v4732, -inf
  %5501 = vmax.xlane.f32.xlu0 %v5500
  %v5502 = vpop.xlane.xlu0 %5501
  %v5503 = vsel %vm5466, %v4735, -inf
  %5504 = vmax.xlane.f32.xlu0 %v5503
  %v5505 = vpop.xlane.xlu0 %5504
  %v5506 = vsel %vm5466, %v4738, -inf
  %5507 = vmax.xlane.f32.xlu0 %v5506
  %v5508 = vpop.xlane.xlu0 %5507
  %v5509 = vsel %vm5466, %v4741, -inf
  %5510 = vmax.xlane.f32.xlu0 %v5509
  %v5511 = vpop.xlane.xlu0 %5510
  %v5512 = vsel %vm5466, %v4744, -inf
  %5513 = vmax.xlane.f32.xlu0 %v5512
  %v5514 = vpop.xlane.xlu0 %5513
  %v5515 = vsel %vm5466, %v4747, -inf
  %5516 = vmax.xlane.f32.xlu0 %v5515
  %v5517 = vpop.xlane.xlu0 %5516
  %v5518 = vsel %vm5466, %v4750, -inf
  %5519 = vmax.xlane.f32.xlu0 %v5518
  %v5520 = vpop.xlane.xlu0 %5519
  %v5521 = vsel %vm5466, %v4753, -inf
  %5522 = vmax.xlane.f32.xlu0 %v5521
  %v5523 = vpop.xlane.xlu0 %5522
  %v5524 = vsel %vm5466, %v4756, -inf
  %5525 = vmax.xlane.f32.xlu0 %v5524
  %v5526 = vpop.xlane.xlu0 %5525
  %v5527 = vsel %vm5466, %v4759, -inf
  %5528 = vmax.xlane.f32.xlu0 %v5527
  %v5529 = vpop.xlane.xlu0 %5528
  %v5530 = vsel %vm5466, %v4762, -inf
  %5531 = vmax.xlane.f32.xlu0 %v5530
  %v5532 = vpop.xlane.xlu0 %5531
  %v5533 = vsel %vm5466, %v4765, -inf
  %5534 = vmax.xlane.f32.xlu0 %v5533
  %v5535 = vpop.xlane.xlu0 %5534
  %v5536 = vsel %vm5466, %v4768, -inf
  %5537 = vmax.xlane.f32.xlu0 %v5536
  %v5538 = vpop.xlane.xlu0 %5537
  %v5539 = vsel %vm5466, %v4771, -inf
  %5540 = vmax.xlane.f32.xlu0 %v5539
  %v5541 = vpop.xlane.xlu0 %5540
  %v5542 = vsel %vm5466, %v4774, -inf
  %5543 = vmax.xlane.f32.xlu0 %v5542
  %v5544 = vpop.xlane.xlu0 %5543
  %v5545 = vsel %vm5466, %v4777, -inf
  %5546 = vmax.xlane.f32.xlu0 %v5545
  %v5547 = vpop.xlane.xlu0 %5546
  %v5548 = vsel %vm5466, %v4780, -inf
  %5549 = vmax.xlane.f32.xlu0 %v5548
  %v5550 = vpop.xlane.xlu0 %5549
  %v5551 = vsel %vm5466, %v4783, -inf
  %5552 = vmax.xlane.f32.xlu0 %v5551
  %v5553 = vpop.xlane.xlu0 %5552
  %v5554 = vsel %vm5466, %v4786, -inf
  %5555 = vmax.xlane.f32.xlu0 %v5554
  %v5556 = vpop.xlane.xlu0 %5555
  %v5557 = vsel %vm5466, %v4789, -inf
  %5558 = vmax.xlane.f32.xlu0 %v5557
  %v5559 = vpop.xlane.xlu0 %5558
  %v5560 = vsel %vm5466, %v4792, -inf
  %5561 = vmax.xlane.f32.xlu0 %v5560
  %v5562 = vpop.xlane.xlu0 %5561
  %v5563 = vsel %vm5466, %v4795, -inf
  %5564 = vmax.xlane.f32.xlu0 %v5563
  %v5565 = vpop.xlane.xlu0 %5564
  %v5566 = vsel %vm5466, %v4798, -inf
  %5567 = vmax.xlane.f32.xlu0 %v5566
  %v5568 = vpop.xlane.xlu0 %5567
  %v5569 = vsel %vm5466, %v4801, -inf
  %5570 = vmax.xlane.f32.xlu0 %v5569
  %v5571 = vpop.xlane.xlu0 %5570
  %v5572 = vsel %vm5466, %v4804, -inf
  %5573 = vmax.xlane.f32.xlu0 %v5572
  %v5574 = vpop.xlane.xlu0 %5573
  %v5575 = vsel %vm5466, %v4807, -inf
  %5576 = vmax.xlane.f32.xlu0 %v5575
  %v5577 = vpop.xlane.xlu0 %5576
  %v5578 = vsel %vm5466, %v4810, -inf
  %5579 = vmax.xlane.f32.xlu0 %v5578
  %v5580 = vpop.xlane.xlu0 %5579
  %v5581 = vsel %vm5466, %v4813, -inf
  %5582 = vmax.xlane.f32.xlu0 %v5581
  %v5583 = vpop.xlane.xlu0 %5582
  %v5584 = vsel %vm5466, %v4816, -inf
  %5585 = vmax.xlane.f32.xlu0 %v5584
  %v5586 = vpop.xlane.xlu0 %5585
  %v5587 = vsel %vm5466, %v4819, -inf
  %5588 = vmax.xlane.f32.xlu0 %v5587
  %v5589 = vpop.xlane.xlu0 %5588
  %v5590 = vsel %vm5466, %v4822, -inf
  %5591 = vmax.xlane.f32.xlu0 %v5590
  %v5592 = vpop.xlane.xlu0 %5591
  %v5593 = vsel %vm5466, %v4825, -inf
  %5594 = vmax.xlane.f32.xlu0 %v5593
  %v5595 = vpop.xlane.xlu0 %5594
  %v5596 = vsel %vm5466, %v4828, -inf
  %5597 = vmax.xlane.f32.xlu0 %v5596
  %v5598 = vpop.xlane.xlu0 %5597
  %v5599 = vsel %vm5466, %v4831, -inf
  %5600 = vmax.xlane.f32.xlu0 %v5599
  %v5601 = vpop.xlane.xlu0 %5600
  %v5602 = vsel %vm5466, %v4834, -inf
  %5603 = vmax.xlane.f32.xlu0 %v5602
  %v5604 = vpop.xlane.xlu0 %5603
  %v5605 = vsel %vm5466, %v4837, -inf
  %5606 = vmax.xlane.f32.xlu0 %v5605
  %v5607 = vpop.xlane.xlu0 %5606
  %v5608 = vsel %vm5466, %v4840, -inf
  %5609 = vmax.xlane.f32.xlu0 %v5608
  %v5610 = vpop.xlane.xlu0 %5609
  %v5611 = vsel %vm5466, %v4843, -inf
  %5612 = vmax.xlane.f32.xlu0 %v5611
  %v5613 = vpop.xlane.xlu0 %5612
  %v5614 = vsel %vm5466, %v4846, -inf
  %5615 = vmax.xlane.f32.xlu0 %v5614
  %v5616 = vpop.xlane.xlu0 %5615
  %v5617 = vsel %vm5466, %v4849, -inf
  %5618 = vmax.xlane.f32.xlu0 %v5617
  %v5619 = vpop.xlane.xlu0 %5618
  %v5620 = vsel %vm5466, %v4852, -inf
  %5621 = vmax.xlane.f32.xlu0 %v5620
  %v5622 = vpop.xlane.xlu0 %5621
  %v5623 = vsel %vm5466, %v4855, -inf
  %5624 = vmax.xlane.f32.xlu0 %v5623
  %v5625 = vpop.xlane.xlu0 %5624
  %v5626 = vsel %vm5466, %v4858, -inf
  %5627 = vmax.xlane.f32.xlu0 %v5626
  %v5628 = vpop.xlane.xlu0 %5627
  %v5629 = vsel %vm5466, %v4861, -inf
  %5630 = vmax.xlane.f32.xlu0 %v5629
  %v5631 = vpop.xlane.xlu0 %5630
  %v5632 = vsel %vm5466, %v4864, -inf
  %5633 = vmax.xlane.f32.xlu0 %v5632
  %v5634 = vpop.xlane.xlu0 %5633
  %v5635 = vsel %vm5466, %v4867, -inf
  %5636 = vmax.xlane.f32.xlu0 %v5635
  %v5637 = vpop.xlane.xlu0 %5636
  %v5638 = vsel %vm5466, %v4870, -inf
  %5639 = vmax.xlane.f32.xlu0 %v5638
  %v5640 = vpop.xlane.xlu0 %5639
  %v5641 = vsel %vm5466, %v4873, -inf
  %5642 = vmax.xlane.f32.xlu0 %v5641
  %v5643 = vpop.xlane.xlu0 %5642
  %v5644 = vsel %vm5466, %v4876, -inf
  %5645 = vmax.xlane.f32.xlu0 %v5644
  %v5646 = vpop.xlane.xlu0 %5645
  %v5647 = vsel %vm5466, %v4879, -inf
  %5648 = vmax.xlane.f32.xlu0 %v5647
  %v5649 = vpop.xlane.xlu0 %5648
  %v5650 = vsel %vm5466, %v4882, -inf
  %5651 = vmax.xlane.f32.xlu0 %v5650
  %v5652 = vpop.xlane.xlu0 %5651
  %v5653 = vsel %vm5466, %v4885, -inf
  %5654 = vmax.xlane.f32.xlu0 %v5653
  %v5655 = vpop.xlane.xlu0 %5654
  %v5656 = vsel %vm5466, %v4888, -inf
  %5657 = vmax.xlane.f32.xlu0 %v5656
  %v5658 = vpop.xlane.xlu0 %5657
  %v5659 = vsel %vm5466, %v4891, -inf
  %5660 = vmax.xlane.f32.xlu0 %v5659
  %v5661 = vpop.xlane.xlu0 %5660
  %v5662 = vsel %vm5466, %v4894, -inf
  %5663 = vmax.xlane.f32.xlu0 %v5662
  %v5664 = vpop.xlane.xlu0 %5663
  %v5665 = vsel %vm5466, %v4897, -inf
  %5666 = vmax.xlane.f32.xlu0 %v5665
  %v5667 = vpop.xlane.xlu0 %5666
  %v5668 = vsel %vm5466, %v4900, -inf
  %5669 = vmax.xlane.f32.xlu0 %v5668
  %v5670 = vpop.xlane.xlu0 %5669
  %v5671 = vsel %vm5466, %v4903, -inf
  %5672 = vmax.xlane.f32.xlu0 %v5671
  %v5673 = vpop.xlane.xlu0 %5672
  %v5674 = vsel %vm5466, %v4906, -inf
  %5675 = vmax.xlane.f32.xlu0 %v5674
  %v5676 = vpop.xlane.xlu0 %5675
  %v5677 = vsel %vm5466, %v4909, -inf
  %5678 = vmax.xlane.f32.xlu0 %v5677
  %v5679 = vpop.xlane.xlu0 %5678
  %v5680 = vsel %vm5466, %v4912, -inf
  %5681 = vmax.xlane.f32.xlu0 %v5680
  %v5682 = vpop.xlane.xlu0 %5681
  %v5683 = vsel %vm5466, %v4915, -inf
  %5684 = vmax.xlane.f32.xlu0 %v5683
  %v5685 = vpop.xlane.xlu0 %5684
  %v5686 = vsel %vm5466, %v4918, -inf
  %5687 = vmax.xlane.f32.xlu0 %v5686
  %v5688 = vpop.xlane.xlu0 %5687
  %v5689 = vsel %vm5466, %v4921, -inf
  %5690 = vmax.xlane.f32.xlu0 %v5689
  %v5691 = vpop.xlane.xlu0 %5690
  %v5692 = vsel %vm5466, %v4924, -inf
  %5693 = vmax.xlane.f32.xlu0 %v5692
  %v5694 = vpop.xlane.xlu0 %5693
  %v5695 = vsel %vm5466, %v4927, -inf
  %5696 = vmax.xlane.f32.xlu0 %v5695
  %v5697 = vpop.xlane.xlu0 %5696
  %v5698 = vsel %vm5466, %v4930, -inf
  %5699 = vmax.xlane.f32.xlu0 %v5698
  %v5700 = vpop.xlane.xlu0 %5699
  %v5701 = vsel %vm5466, %v4933, -inf
  %5702 = vmax.xlane.f32.xlu0 %v5701
  %v5703 = vpop.xlane.xlu0 %5702
  %v5704 = vsel %vm5466, %v4936, -inf
  %5705 = vmax.xlane.f32.xlu0 %v5704
  %v5706 = vpop.xlane.xlu0 %5705
  %v5707 = vsel %vm5466, %v4939, -inf
  %5708 = vmax.xlane.f32.xlu0 %v5707
  %v5709 = vpop.xlane.xlu0 %5708
  %v5710 = vsel %vm5466, %v4942, -inf
  %5711 = vmax.xlane.f32.xlu0 %v5710
  %v5712 = vpop.xlane.xlu0 %5711
  %v5713 = vsel %vm5466, %v4945, -inf
  %5714 = vmax.xlane.f32.xlu0 %v5713
  %v5715 = vpop.xlane.xlu0 %5714
  %v5716 = vsel %vm5466, %v4948, -inf
  %5717 = vmax.xlane.f32.xlu0 %v5716
  %v5718 = vpop.xlane.xlu0 %5717
  %v5719 = vsel %vm5466, %v4951, -inf
  %5720 = vmax.xlane.f32.xlu0 %v5719
  %v5721 = vpop.xlane.xlu0 %5720
  %v5722 = vsel %vm5466, %v4954, -inf
  %5723 = vmax.xlane.f32.xlu0 %v5722
  %v5724 = vpop.xlane.xlu0 %5723
  %v5725 = vsel %vm5466, %v4957, -inf
  %5726 = vmax.xlane.f32.xlu0 %v5725
  %v5727 = vpop.xlane.xlu0 %5726
  %v5728 = vsel %vm5466, %v4960, -inf
  %5729 = vmax.xlane.f32.xlu0 %v5728
  %v5730 = vpop.xlane.xlu0 %5729
  %v5731 = vsel %vm5466, %v4963, -inf
  %5732 = vmax.xlane.f32.xlu0 %v5731
  %v5733 = vpop.xlane.xlu0 %5732
  %v5734 = vsel %vm5466, %v4966, -inf
  %5735 = vmax.xlane.f32.xlu0 %v5734
  %v5736 = vpop.xlane.xlu0 %5735
  %v5737 = vsel %vm5466, %v4969, -inf
  %5738 = vmax.xlane.f32.xlu0 %v5737
  %v5739 = vpop.xlane.xlu0 %5738
  %v5740 = vsel %vm5466, %v4972, -inf
  %5741 = vmax.xlane.f32.xlu0 %v5740
  %v5742 = vpop.xlane.xlu0 %5741
  %v5743 = vsel %vm5466, %v4975, -inf
  %5744 = vmax.xlane.f32.xlu0 %v5743
  %v5745 = vpop.xlane.xlu0 %5744
  %v5746 = vsel %vm5466, %v4978, -inf
  %5747 = vmax.xlane.f32.xlu0 %v5746
  %v5748 = vpop.xlane.xlu0 %5747
  %v5749 = vsel %vm5466, %v4981, -inf
  %5750 = vmax.xlane.f32.xlu0 %v5749
  %v5751 = vpop.xlane.xlu0 %5750
  %v5752 = vsel %vm5466, %v4984, -inf
  %5753 = vmax.xlane.f32.xlu0 %v5752
  %v5754 = vpop.xlane.xlu0 %5753
  %v5755 = vsel %vm5466, %v4987, -inf
  %5756 = vmax.xlane.f32.xlu0 %v5755
  %v5757 = vpop.xlane.xlu0 %5756
  %v5758 = vsel %vm5466, %v4990, -inf
  %5759 = vmax.xlane.f32.xlu0 %v5758
  %v5760 = vpop.xlane.xlu0 %5759
  %v5761 = vsel %vm5466, %v4993, -inf
  %5762 = vmax.xlane.f32.xlu0 %v5761
  %v5763 = vpop.xlane.xlu0 %5762
  %v5764 = vsel %vm5466, %v4996, -inf
  %5765 = vmax.xlane.f32.xlu0 %v5764
  %v5766 = vpop.xlane.xlu0 %5765
  %v5767 = vsel %vm5466, %v4999, -inf
  %5768 = vmax.xlane.f32.xlu0 %v5767
  %v5769 = vpop.xlane.xlu0 %5768
  %v5770 = vsel %vm5466, %v5002, -inf
  %5771 = vmax.xlane.f32.xlu0 %v5770
  %v5772 = vpop.xlane.xlu0 %5771
  %v5773 = vsel %vm5466, %v5005, -inf
  %5774 = vmax.xlane.f32.xlu0 %v5773
  %v5775 = vpop.xlane.xlu0 %5774
  %v5776 = vsel %vm5466, %v5008, -inf
  %5777 = vmax.xlane.f32.xlu0 %v5776
  %v5778 = vpop.xlane.xlu0 %5777
  %v5779 = vsel %vm5466, %v5011, -inf
  %5780 = vmax.xlane.f32.xlu0 %v5779
  %v5781 = vpop.xlane.xlu0 %5780
  %v5782 = vsel %vm5466, %v5014, -inf
  %5783 = vmax.xlane.f32.xlu0 %v5782
  %v5784 = vpop.xlane.xlu0 %5783
  %v5785 = vsel %vm5466, %v5017, -inf
  %5786 = vmax.xlane.f32.xlu0 %v5785
  %v5787 = vpop.xlane.xlu0 %5786
  %v5788 = vsel %vm5466, %v5020, -inf
  %5789 = vmax.xlane.f32.xlu0 %v5788
  %v5790 = vpop.xlane.xlu0 %5789
  %v5791 = vsel %vm5466, %v5023, -inf
  %5792 = vmax.xlane.f32.xlu0 %v5791
  %v5793 = vpop.xlane.xlu0 %5792
  %v5794 = vsel %vm5466, %v5026, -inf
  %5795 = vmax.xlane.f32.xlu0 %v5794
  %v5796 = vpop.xlane.xlu0 %5795
  %v5797 = vsel %vm5466, %v5029, -inf
  %5798 = vmax.xlane.f32.xlu0 %v5797
  %v5799 = vpop.xlane.xlu0 %5798
  %v5800 = vsel %vm5466, %v5032, -inf
  %5801 = vmax.xlane.f32.xlu0 %v5800
  %v5802 = vpop.xlane.xlu0 %5801
  %v5803 = vsel %vm5466, %v5035, -inf
  %5804 = vmax.xlane.f32.xlu0 %v5803
  %v5805 = vpop.xlane.xlu0 %5804
  %v5806 = vsel %vm5466, %v5038, -inf
  %5807 = vmax.xlane.f32.xlu0 %v5806
  %v5808 = vpop.xlane.xlu0 %5807
  %v5809 = vsel %vm5466, %v5041, -inf
  %5810 = vmax.xlane.f32.xlu0 %v5809
  %v5811 = vpop.xlane.xlu0 %5810
  %v5812 = vsel %vm5466, %v5044, -inf
  %5813 = vmax.xlane.f32.xlu0 %v5812
  %v5814 = vpop.xlane.xlu0 %5813
  %v5815 = vsel %vm5466, %v5047, -inf
  %5816 = vmax.xlane.f32.xlu0 %v5815
  %v5817 = vpop.xlane.xlu0 %5816
  %v5818 = vsel %vm5466, %v5050, -inf
  %5819 = vmax.xlane.f32.xlu0 %v5818
  %v5820 = vpop.xlane.xlu0 %5819
  %v5821 = vsel %vm5466, %v5053, -inf
  %5822 = vmax.xlane.f32.xlu0 %v5821
  %v5823 = vpop.xlane.xlu0 %5822
  %v5824 = vsel %vm5466, %v5056, -inf
  %5825 = vmax.xlane.f32.xlu0 %v5824
  %v5826 = vpop.xlane.xlu0 %5825
  %v5827 = vsel %vm5466, %v5059, -inf
  %5828 = vmax.xlane.f32.xlu0 %v5827
  %v5829 = vpop.xlane.xlu0 %5828
  %v5830 = vsel %vm5466, %v5062, -inf
  %5831 = vmax.xlane.f32.xlu0 %v5830
  %v5832 = vpop.xlane.xlu0 %5831
  %v5833 = vsel %vm5466, %v5065, -inf
  %5834 = vmax.xlane.f32.xlu0 %v5833
  %v5835 = vpop.xlane.xlu0 %5834
  %v5836 = vsel %vm5466, %v5068, -inf
  %5837 = vmax.xlane.f32.xlu0 %v5836
  %v5838 = vpop.xlane.xlu0 %5837
  %v5839 = vsel %vm5466, %v5071, -inf
  %5840 = vmax.xlane.f32.xlu0 %v5839
  %v5841 = vpop.xlane.xlu0 %5840
  %v5842 = vsel %vm5466, %v5074, -inf
  %5843 = vmax.xlane.f32.xlu0 %v5842
  %v5844 = vpop.xlane.xlu0 %5843
  %v5845 = vsel %vm5466, %v5077, -inf
  %5846 = vmax.xlane.f32.xlu0 %v5845
  %v5847 = vpop.xlane.xlu0 %5846
  %v5848 = vsel %vm5466, %v5080, -inf
  %5849 = vmax.xlane.f32.xlu0 %v5848
  %v5850 = vpop.xlane.xlu0 %5849
  %v5851 = vsel %vm5466, %v5083, -inf
  %5852 = vmax.xlane.f32.xlu0 %v5851
  %v5853 = vpop.xlane.xlu0 %5852
  %v5854 = vsel %vm5466, %v5086, -inf
  %5855 = vmax.xlane.f32.xlu0 %v5854
  %v5856 = vpop.xlane.xlu0 %5855
  %v5857 = vsel %vm5466, %v5089, -inf
  %5858 = vmax.xlane.f32.xlu0 %v5857
  %v5859 = vpop.xlane.xlu0 %5858
  %v5860 = vsel %vm5466, %v5092, -inf
  %5861 = vmax.xlane.f32.xlu0 %v5860
  %v5862 = vpop.xlane.xlu0 %5861
  %v5863 = vsel %vm5466, %v5095, -inf
  %5864 = vmax.xlane.f32.xlu0 %v5863
  %v5865 = vpop.xlane.xlu0 %5864
  %v5866 = vsel %vm5466, %v5098, -inf
  %5867 = vmax.xlane.f32.xlu0 %v5866
  %v5868 = vpop.xlane.xlu0 %5867
  %v5869 = vsel %vm5466, %v5101, -inf
  %5870 = vmax.xlane.f32.xlu0 %v5869
  %v5871 = vpop.xlane.xlu0 %5870
  %v5872 = vsel %vm5466, %v5104, -inf
  %5873 = vmax.xlane.f32.xlu0 %v5872
  %v5874 = vpop.xlane.xlu0 %5873
  %v5875 = vsel %vm5466, %v5107, -inf
  %5876 = vmax.xlane.f32.xlu0 %v5875
  %v5877 = vpop.xlane.xlu0 %5876
  %v5878 = vsel %vm5466, %v5110, -inf
  %5879 = vmax.xlane.f32.xlu0 %v5878
  %v5880 = vpop.xlane.xlu0 %5879
  %v5881 = vsel %vm5466, %v5113, -inf
  %5882 = vmax.xlane.f32.xlu0 %v5881
  %v5883 = vpop.xlane.xlu0 %5882
  %v5884 = vsel %vm5466, %v5116, -inf
  %5885 = vmax.xlane.f32.xlu0 %v5884
  %v5886 = vpop.xlane.xlu0 %5885
  %v5887 = vsel %vm5466, %v5119, -inf
  %5888 = vmax.xlane.f32.xlu0 %v5887
  %v5889 = vpop.xlane.xlu0 %5888
  %v5890 = vsel %vm5466, %v5122, -inf
  %5891 = vmax.xlane.f32.xlu0 %v5890
  %v5892 = vpop.xlane.xlu0 %5891
  %v5893 = vsel %vm5466, %v5125, -inf
  %5894 = vmax.xlane.f32.xlu0 %v5893
  %v5895 = vpop.xlane.xlu0 %5894
  %v5896 = vsel %vm5466, %v5128, -inf
  %5897 = vmax.xlane.f32.xlu0 %v5896
  %v5898 = vpop.xlane.xlu0 %5897
  %v5899 = vsel %vm5466, %v5131, -inf
  %5900 = vmax.xlane.f32.xlu0 %v5899
  %v5901 = vpop.xlane.xlu0 %5900
  %v5902 = vsel %vm5466, %v5134, -inf
  %5903 = vmax.xlane.f32.xlu0 %v5902
  %v5904 = vpop.xlane.xlu0 %5903
  %v5905 = vsel %vm5466, %v5137, -inf
  %5906 = vmax.xlane.f32.xlu0 %v5905
  %v5907 = vpop.xlane.xlu0 %5906
  %v5908 = vsel %vm5466, %v5140, -inf
  %5909 = vmax.xlane.f32.xlu0 %v5908
  %v5910 = vpop.xlane.xlu0 %5909
  %v5911 = vsel %vm5466, %v5143, -inf
  %5912 = vmax.xlane.f32.xlu0 %v5911
  %v5913 = vpop.xlane.xlu0 %5912
  %v5914 = vsel %vm5466, %v5146, -inf
  %5915 = vmax.xlane.f32.xlu0 %v5914
  %v5916 = vpop.xlane.xlu0 %5915
  %v5917 = vsel %vm5466, %v5149, -inf
  %5918 = vmax.xlane.f32.xlu0 %v5917
  %v5919 = vpop.xlane.xlu0 %5918
  %v5920 = vsel %vm5466, %v5152, -inf
  %5921 = vmax.xlane.f32.xlu0 %v5920
  %v5922 = vpop.xlane.xlu0 %5921
  %v5923 = vsel %vm5466, %v5155, -inf
  %5924 = vmax.xlane.f32.xlu0 %v5923
  %v5925 = vpop.xlane.xlu0 %5924
  %v5926 = vsel %vm5466, %v5158, -inf
  %5927 = vmax.xlane.f32.xlu0 %v5926
  %v5928 = vpop.xlane.xlu0 %5927
  %v5929 = vsel %vm5466, %v5161, -inf
  %5930 = vmax.xlane.f32.xlu0 %v5929
  %v5931 = vpop.xlane.xlu0 %5930
  %v5932 = vsel %vm5466, %v5164, -inf
  %5933 = vmax.xlane.f32.xlu0 %v5932
  %v5934 = vpop.xlane.xlu0 %5933
  %v5935 = vsel %vm5466, %v5167, -inf
  %5936 = vmax.xlane.f32.xlu0 %v5935
  %v5937 = vpop.xlane.xlu0 %5936
  %v5938 = vsel %vm5466, %v5170, -inf
  %5939 = vmax.xlane.f32.xlu0 %v5938
  %v5940 = vpop.xlane.xlu0 %5939
  %v5941 = vsel %vm5466, %v5173, -inf
  %5942 = vmax.xlane.f32.xlu0 %v5941
  %v5943 = vpop.xlane.xlu0 %5942
  %v5944 = vsel %vm5466, %v5176, -inf
  %5945 = vmax.xlane.f32.xlu0 %v5944
  %v5946 = vpop.xlane.xlu0 %5945
  %v5947 = vsel %vm5466, %v5179, -inf
  %5948 = vmax.xlane.f32.xlu0 %v5947
  %v5949 = vpop.xlane.xlu0 %5948
  %v5950 = vsel %vm5466, %v5182, -inf
  %5951 = vmax.xlane.f32.xlu0 %v5950
  %v5952 = vpop.xlane.xlu0 %5951
  %v5953 = vsel %vm5466, %v5185, -inf
  %5954 = vmax.xlane.f32.xlu0 %v5953
  %v5955 = vpop.xlane.xlu0 %5954
  %v5956 = vsel %vm5466, %v5188, -inf
  %5957 = vmax.xlane.f32.xlu0 %v5956
  %v5958 = vpop.xlane.xlu0 %5957
  %v5959 = vsel %vm5466, %v5191, -inf
  %5960 = vmax.xlane.f32.xlu0 %v5959
  %v5961 = vpop.xlane.xlu0 %5960
  %v5962 = vsel %vm5466, %v5194, -inf
  %5963 = vmax.xlane.f32.xlu0 %v5962
  %v5964 = vpop.xlane.xlu0 %5963
  %v5965 = vsel %vm5466, %v5197, -inf
  %5966 = vmax.xlane.f32.xlu0 %v5965
  %v5967 = vpop.xlane.xlu0 %5966
  %v5968 = vsel %vm5466, %v5200, -inf
  %5969 = vmax.xlane.f32.xlu0 %v5968
  %v5970 = vpop.xlane.xlu0 %5969
  %v5971 = vsel %vm5466, %v5203, -inf
  %5972 = vmax.xlane.f32.xlu0 %v5971
  %v5973 = vpop.xlane.xlu0 %5972
  %v5974 = vsel %vm5466, %v5206, -inf
  %5975 = vmax.xlane.f32.xlu0 %v5974
  %v5976 = vpop.xlane.xlu0 %5975
  %v5977 = vsel %vm5466, %v5209, -inf
  %5978 = vmax.xlane.f32.xlu0 %v5977
  %v5979 = vpop.xlane.xlu0 %5978
  %v5980 = vsel %vm5466, %v5212, -inf
  %5981 = vmax.xlane.f32.xlu0 %v5980
  %v5982 = vpop.xlane.xlu0 %5981
  %v5983 = vsel %vm5466, %v5215, -inf
  %5984 = vmax.xlane.f32.xlu0 %v5983
  %v5985 = vpop.xlane.xlu0 %5984
  %v5986 = vsel %vm5466, %v5218, -inf
  %5987 = vmax.xlane.f32.xlu0 %v5986
  %v5988 = vpop.xlane.xlu0 %5987
  %v5989 = vsel %vm5466, %v5221, -inf
  %5990 = vmax.xlane.f32.xlu0 %v5989
  %v5991 = vpop.xlane.xlu0 %5990
  %v5992 = vsel %vm5466, %v5224, -inf
  %5993 = vmax.xlane.f32.xlu0 %v5992
  %v5994 = vpop.xlane.xlu0 %5993
  %v5995 = vsel %vm5466, %v5227, -inf
  %5996 = vmax.xlane.f32.xlu0 %v5995
  %v5997 = vpop.xlane.xlu0 %5996
  %v5998 = vsel %vm5466, %v5230, -inf
  %5999 = vmax.xlane.f32.xlu0 %v5998
  %v6000 = vpop.xlane.xlu0 %5999
  %v6001 = vsel %vm5466, %v5233, -inf
  %6002 = vmax.xlane.f32.xlu0 %v6001
  %v6003 = vpop.xlane.xlu0 %6002
  %v6004 = vsel %vm5466, %v5236, -inf
  %6005 = vmax.xlane.f32.xlu0 %v6004
  %v6006 = vpop.xlane.xlu0 %6005
  %v6007 = vsel %vm5466, %v5239, -inf
  %6008 = vmax.xlane.f32.xlu0 %v6007
  %v6009 = vpop.xlane.xlu0 %6008
  %v6010 = vsel %vm5466, %v5242, -inf
  %6011 = vmax.xlane.f32.xlu0 %v6010
  %v6012 = vpop.xlane.xlu0 %6011
  %v6013 = vsel %vm5466, %v5245, -inf
  %6014 = vmax.xlane.f32.xlu0 %v6013
  %v6015 = vpop.xlane.xlu0 %6014
  %v6016 = vsel %vm5466, %v5248, -inf
  %6017 = vmax.xlane.f32.xlu0 %v6016
  %v6018 = vpop.xlane.xlu0 %6017
  %v6019 = vsel %vm5466, %v5251, -inf
  %6020 = vmax.xlane.f32.xlu0 %v6019
  %v6021 = vpop.xlane.xlu0 %6020
  %v6022 = vsel %vm5466, %v5254, -inf
  %6023 = vmax.xlane.f32.xlu0 %v6022
  %v6024 = vpop.xlane.xlu0 %6023
  %v6025 = vsel %vm5466, %v5257, -inf
  %6026 = vmax.xlane.f32.xlu0 %v6025
  %v6027 = vpop.xlane.xlu0 %6026
  %v6028 = vsel %vm5466, %v5260, -inf
  %6029 = vmax.xlane.f32.xlu0 %v6028
  %v6030 = vpop.xlane.xlu0 %6029
  %v6031 = vsel %vm5466, %v5263, -inf
  %6032 = vmax.xlane.f32.xlu0 %v6031
  %v6033 = vpop.xlane.xlu0 %6032
  %v6034 = vsel %vm5466, %v5266, -inf
  %6035 = vmax.xlane.f32.xlu0 %v6034
  %v6036 = vpop.xlane.xlu0 %6035
  %v6037 = vsel %vm5466, %v5269, -inf
  %6038 = vmax.xlane.f32.xlu0 %v6037
  %v6039 = vpop.xlane.xlu0 %6038
  %v6040 = vsel %vm5466, %v5272, -inf
  %6041 = vmax.xlane.f32.xlu0 %v6040
  %v6042 = vpop.xlane.xlu0 %6041
  %v6043 = vsel %vm5466, %v5275, -inf
  %6044 = vmax.xlane.f32.xlu0 %v6043
  %v6045 = vpop.xlane.xlu0 %6044
  %v6046 = vsel %vm5466, %v5278, -inf
  %6047 = vmax.xlane.f32.xlu0 %v6046
  %v6048 = vpop.xlane.xlu0 %6047
  %v6049 = vsel %vm5466, %v5281, -inf
  %6050 = vmax.xlane.f32.xlu0 %v6049
  %v6051 = vpop.xlane.xlu0 %6050
  %v6052 = vsel %vm5466, %v5284, -inf
  %6053 = vmax.xlane.f32.xlu0 %v6052
  %v6054 = vpop.xlane.xlu0 %6053
  %v6055 = vsel %vm5466, %v5287, -inf
  %6056 = vmax.xlane.f32.xlu0 %v6055
  %v6057 = vpop.xlane.xlu0 %6056
  %v6058 = vsel %vm5466, %v5290, -inf
  %6059 = vmax.xlane.f32.xlu0 %v6058
  %v6060 = vpop.xlane.xlu0 %6059
  %v6061 = vsel %vm5466, %v5293, -inf
  %6062 = vmax.xlane.f32.xlu0 %v6061
  %v6063 = vpop.xlane.xlu0 %6062
  %v6064 = vsel %vm5466, %v5296, -inf
  %6065 = vmax.xlane.f32.xlu0 %v6064
  %v6066 = vpop.xlane.xlu0 %6065
  %v6067 = vsel %vm5466, %v5299, -inf
  %6068 = vmax.xlane.f32.xlu0 %v6067
  %v6069 = vpop.xlane.xlu0 %6068
  %v6070 = vsel %vm5466, %v5302, -inf
  %6071 = vmax.xlane.f32.xlu0 %v6070
  %v6072 = vpop.xlane.xlu0 %6071
  %v6073 = vsel %vm5466, %v5305, -inf
  %6074 = vmax.xlane.f32.xlu0 %v6073
  %v6075 = vpop.xlane.xlu0 %6074
  %v6076 = vsel %vm5466, %v5308, -inf
  %6077 = vmax.xlane.f32.xlu0 %v6076
  %v6078 = vpop.xlane.xlu0 %6077
  %v6079 = vsel %vm5466, %v5311, -inf
  %6080 = vmax.xlane.f32.xlu0 %v6079
  %v6081 = vpop.xlane.xlu0 %6080
  %v6082 = vsel %vm5466, %v5314, -inf
  %6083 = vmax.xlane.f32.xlu0 %v6082
  %v6084 = vpop.xlane.xlu0 %6083
  %v6085 = vsel %vm5466, %v5317, -inf
  %6086 = vmax.xlane.f32.xlu0 %v6085
  %v6087 = vpop.xlane.xlu0 %6086
  %v6088 = vsel %vm5466, %v5320, -inf
  %6089 = vmax.xlane.f32.xlu0 %v6088
  %v6090 = vpop.xlane.xlu0 %6089
  %v6091 = vsel %vm5466, %v5323, -inf
  %6092 = vmax.xlane.f32.xlu0 %v6091
  %v6093 = vpop.xlane.xlu0 %6092
  %v6094 = vsel %vm5466, %v5326, -inf
  %6095 = vmax.xlane.f32.xlu0 %v6094
  %v6096 = vpop.xlane.xlu0 %6095
  %v6097 = vsel %vm5466, %v5329, -inf
  %6098 = vmax.xlane.f32.xlu0 %v6097
  %v6099 = vpop.xlane.xlu0 %6098
  %v6100 = vsel %vm5466, %v5332, -inf
  %6101 = vmax.xlane.f32.xlu0 %v6100
  %v6102 = vpop.xlane.xlu0 %6101
  %v6103 = vsel %vm5466, %v5335, -inf
  %6104 = vmax.xlane.f32.xlu0 %v6103
  %v6105 = vpop.xlane.xlu0 %6104
  %v6106 = vsel %vm5466, %v5338, -inf
  %6107 = vmax.xlane.f32.xlu0 %v6106
  %v6108 = vpop.xlane.xlu0 %6107
  %v6109 = vsel %vm5466, %v5341, -inf
  %6110 = vmax.xlane.f32.xlu0 %v6109
  %v6111 = vpop.xlane.xlu0 %6110
  %v6112 = vsel %vm5466, %v5344, -inf
  %6113 = vmax.xlane.f32.xlu0 %v6112
  %v6114 = vpop.xlane.xlu0 %6113
  %v6115 = vsel %vm5466, %v5347, -inf
  %6116 = vmax.xlane.f32.xlu0 %v6115
  %v6117 = vpop.xlane.xlu0 %6116
  %v6118 = vsel %vm5466, %v5350, -inf
  %6119 = vmax.xlane.f32.xlu0 %v6118
  %v6120 = vpop.xlane.xlu0 %6119
  %v6121 = vsel %vm5466, %v5353, -inf
  %6122 = vmax.xlane.f32.xlu0 %v6121
  %v6123 = vpop.xlane.xlu0 %6122
  %v6124 = vsel %vm5466, %v5356, -inf
  %6125 = vmax.xlane.f32.xlu0 %v6124
  %v6126 = vpop.xlane.xlu0 %6125
  %v6127 = vsel %vm5466, %v5359, -inf
  %6128 = vmax.xlane.f32.xlu0 %v6127
  %v6129 = vpop.xlane.xlu0 %6128
  %v6130 = vsel %vm5466, %v5362, -inf
  %6131 = vmax.xlane.f32.xlu0 %v6130
  %v6132 = vpop.xlane.xlu0 %6131
  %v6133 = vsel %vm5466, %v5365, -inf
  %6134 = vmax.xlane.f32.xlu0 %v6133
  %v6135 = vpop.xlane.xlu0 %6134
  %v6136 = vsel %vm5466, %v5368, -inf
  %6137 = vmax.xlane.f32.xlu0 %v6136
  %v6138 = vpop.xlane.xlu0 %6137
  %v6139 = vsel %vm5466, %v5371, -inf
  %6140 = vmax.xlane.f32.xlu0 %v6139
  %v6141 = vpop.xlane.xlu0 %6140
  %v6142 = vsel %vm5466, %v5374, -inf
  %6143 = vmax.xlane.f32.xlu0 %v6142
  %v6144 = vpop.xlane.xlu0 %6143
  %v6145 = vsel %vm5466, %v5377, -inf
  %6146 = vmax.xlane.f32.xlu0 %v6145
  %v6147 = vpop.xlane.xlu0 %6146
  %v6148 = vsel %vm5466, %v5380, -inf
  %6149 = vmax.xlane.f32.xlu0 %v6148
  %v6150 = vpop.xlane.xlu0 %6149
  %v6151 = vsel %vm5466, %v5383, -inf
  %6152 = vmax.xlane.f32.xlu0 %v6151
  %v6153 = vpop.xlane.xlu0 %6152
  %v6154 = vsel %vm5466, %v5386, -inf
  %6155 = vmax.xlane.f32.xlu0 %v6154
  %v6156 = vpop.xlane.xlu0 %6155
  %v6157 = vsel %vm5466, %v5389, -inf
  %6158 = vmax.xlane.f32.xlu0 %v6157
  %v6159 = vpop.xlane.xlu0 %6158
  %v6160 = vsel %vm5466, %v5392, -inf
  %6161 = vmax.xlane.f32.xlu0 %v6160
  %v6162 = vpop.xlane.xlu0 %6161
  %v6163 = vsel %vm5466, %v5395, -inf
  %6164 = vmax.xlane.f32.xlu0 %v6163
  %v6165 = vpop.xlane.xlu0 %6164
  %v6166 = vsel %vm5466, %v5398, -inf
  %6167 = vmax.xlane.f32.xlu0 %v6166
  %v6168 = vpop.xlane.xlu0 %6167
  %v6169 = vsel %vm5466, %v5401, -inf
  %6170 = vmax.xlane.f32.xlu0 %v6169
  %v6171 = vpop.xlane.xlu0 %6170
  %v6172 = vsel %vm5466, %v5404, -inf
  %6173 = vmax.xlane.f32.xlu0 %v6172
  %v6174 = vpop.xlane.xlu0 %6173
  %v6175 = vsel %vm5466, %v5407, -inf
  %6176 = vmax.xlane.f32.xlu0 %v6175
  %v6177 = vpop.xlane.xlu0 %6176
  %v6178 = vsel %vm5466, %v5410, -inf
  %6179 = vmax.xlane.f32.xlu0 %v6178
  %v6180 = vpop.xlane.xlu0 %6179
  %v6181 = vsel %vm5466, %v5413, -inf
  %6182 = vmax.xlane.f32.xlu0 %v6181
  %v6183 = vpop.xlane.xlu0 %6182
  %v6184 = vsel %vm5466, %v5416, -inf
  %6185 = vmax.xlane.f32.xlu0 %v6184
  %v6186 = vpop.xlane.xlu0 %6185
  %v6187 = vsel %vm5466, %v5419, -inf
  %6188 = vmax.xlane.f32.xlu0 %v6187
  %v6189 = vpop.xlane.xlu0 %6188
  %v6190 = vsel %vm5466, %v5422, -inf
  %6191 = vmax.xlane.f32.xlu0 %v6190
  %v6192 = vpop.xlane.xlu0 %6191
  %v6193 = vsel %vm5466, %v5425, -inf
  %6194 = vmax.xlane.f32.xlu0 %v6193
  %v6195 = vpop.xlane.xlu0 %6194
  %v6196 = vsel %vm5466, %v5428, -inf
  %6197 = vmax.xlane.f32.xlu0 %v6196
  %v6198 = vpop.xlane.xlu0 %6197
  %v6199 = vsel %vm5466, %v5431, -inf
  %6200 = vmax.xlane.f32.xlu0 %v6199
  %v6201 = vpop.xlane.xlu0 %6200
  %v6202 = vsel %vm5466, %v5434, -inf
  %6203 = vmax.xlane.f32.xlu0 %v6202
  %v6204 = vpop.xlane.xlu0 %6203
  %v6205 = vsel %vm5466, %v5437, -inf
  %6206 = vmax.xlane.f32.xlu0 %v6205
  %v6207 = vpop.xlane.xlu0 %6206
  %v6208 = vsel %vm5466, %v5440, -inf
  %6209 = vmax.xlane.f32.xlu0 %v6208
  %v6210 = vpop.xlane.xlu0 %6209
  %v6211 = vsel %vm5466, %v5443, -inf
  %6212 = vmax.xlane.f32.xlu0 %v6211
  %v6213 = vpop.xlane.xlu0 %6212
  %v6214 = vsel %vm5466, %v5446, -inf
  %6215 = vmax.xlane.f32.xlu0 %v6214
  %v6216 = vpop.xlane.xlu0 %6215
  %v6217 = vsel %vm5466, %v5449, -inf
  %6218 = vmax.xlane.f32.xlu0 %v6217
  %v6219 = vpop.xlane.xlu0 %6218
  %v6220 = vsel %vm5466, %v5452, -inf
  %6221 = vmax.xlane.f32.xlu0 %v6220
  %v6222 = vpop.xlane.xlu0 %6221
  %v6223 = vsel %vm5466, %v5455, -inf
  %6224 = vmax.xlane.f32.xlu0 %v6223
  %v6225 = vpop.xlane.xlu0 %6224
  %v6226 = vsel %vm5466, %v5458, -inf
  %6227 = vmax.xlane.f32.xlu0 %v6226
  %v6228 = vpop.xlane.xlu0 %6227
  %v6229 = vsel %vm5466, %v5461, -inf
  %6230 = vmax.xlane.f32.xlu0 %v6229
  %v6231 = vpop.xlane.xlu0 %6230
  %v6232 = vsel %vm5466, %v5464, -inf
  %6233 = vmax.xlane.f32.xlu0 %v6232
  %v6234 = vpop.xlane.xlu0 %6233
  %v6235 = vsub.f32 %v4699, %v5469
  %v6236 = vsub.f32 %v4702, %v5472
  %v6237 = vsub.f32 %v4705, %v5475
  %v6238 = vsub.f32 %v4708, %v5478
  %v6239 = vsub.f32 %v4711, %v5481
  %v6240 = vsub.f32 %v4714, %v5484
  %v6241 = vsub.f32 %v4717, %v5487
  %v6242 = vsub.f32 %v4720, %v5490
  %v6243 = vsub.f32 %v4723, %v5493
  %v6244 = vsub.f32 %v4726, %v5496
  %v6245 = vsub.f32 %v4729, %v5499
  %v6246 = vsub.f32 %v4732, %v5502
  %v6247 = vsub.f32 %v4735, %v5505
  %v6248 = vsub.f32 %v4738, %v5508
  %v6249 = vsub.f32 %v4741, %v5511
  %v6250 = vsub.f32 %v4744, %v5514
  %v6251 = vsub.f32 %v4747, %v5517
  %v6252 = vsub.f32 %v4750, %v5520
  %v6253 = vsub.f32 %v4753, %v5523
  %v6254 = vsub.f32 %v4756, %v5526
  %v6255 = vsub.f32 %v4759, %v5529
  %v6256 = vsub.f32 %v4762, %v5532
  %v6257 = vsub.f32 %v4765, %v5535
  %v6258 = vsub.f32 %v4768, %v5538
  %v6259 = vsub.f32 %v4771, %v5541
  %v6260 = vsub.f32 %v4774, %v5544
  %v6261 = vsub.f32 %v4777, %v5547
  %v6262 = vsub.f32 %v4780, %v5550
  %v6263 = vsub.f32 %v4783, %v5553
  %v6264 = vsub.f32 %v4786, %v5556
  %v6265 = vsub.f32 %v4789, %v5559
  %v6266 = vsub.f32 %v4792, %v5562
  %v6267 = vsub.f32 %v4795, %v5565
  %v6268 = vsub.f32 %v4798, %v5568
  %v6269 = vsub.f32 %v4801, %v5571
  %v6270 = vsub.f32 %v4804, %v5574
  %v6271 = vsub.f32 %v4807, %v5577
  %v6272 = vsub.f32 %v4810, %v5580
  %v6273 = vsub.f32 %v4813, %v5583
  %v6274 = vsub.f32 %v4816, %v5586
  %v6275 = vsub.f32 %v4819, %v5589
  %v6276 = vsub.f32 %v4822, %v5592
  %v6277 = vsub.f32 %v4825, %v5595
  %v6278 = vsub.f32 %v4828, %v5598
  %v6279 = vsub.f32 %v4831, %v5601
  %v6280 = vsub.f32 %v4834, %v5604
  %v6281 = vsub.f32 %v4837, %v5607
  %v6282 = vsub.f32 %v4840, %v5610
  %v6283 = vsub.f32 %v4843, %v5613
  %v6284 = vsub.f32 %v4846, %v5616
  %v6285 = vsub.f32 %v4849, %v5619
  %v6286 = vsub.f32 %v4852, %v5622
  %v6287 = vsub.f32 %v4855, %v5625
  %v6288 = vsub.f32 %v4858, %v5628
  %v6289 = vsub.f32 %v4861, %v5631
  %v6290 = vsub.f32 %v4864, %v5634
  %v6291 = vsub.f32 %v4867, %v5637
  %v6292 = vsub.f32 %v4870, %v5640
  %v6293 = vsub.f32 %v4873, %v5643
  %v6294 = vsub.f32 %v4876, %v5646
  %v6295 = vsub.f32 %v4879, %v5649
  %v6296 = vsub.f32 %v4882, %v5652
  %v6297 = vsub.f32 %v4885, %v5655
  %v6298 = vsub.f32 %v4888, %v5658
  %v6299 = vsub.f32 %v4891, %v5661
  %v6300 = vsub.f32 %v4894, %v5664
  %v6301 = vsub.f32 %v4897, %v5667
  %v6302 = vsub.f32 %v4900, %v5670
  %v6303 = vsub.f32 %v4903, %v5673
  %v6304 = vsub.f32 %v4906, %v5676
  %v6305 = vsub.f32 %v4909, %v5679
  %v6306 = vsub.f32 %v4912, %v5682
  %v6307 = vsub.f32 %v4915, %v5685
  %v6308 = vsub.f32 %v4918, %v5688
  %v6309 = vsub.f32 %v4921, %v5691
  %v6310 = vsub.f32 %v4924, %v5694
  %v6311 = vsub.f32 %v4927, %v5697
  %v6312 = vsub.f32 %v4930, %v5700
  %v6313 = vsub.f32 %v4933, %v5703
  %v6314 = vsub.f32 %v4936, %v5706
  %v6315 = vsub.f32 %v4939, %v5709
  %v6316 = vsub.f32 %v4942, %v5712
  %v6317 = vsub.f32 %v4945, %v5715
  %v6318 = vsub.f32 %v4948, %v5718
  %v6319 = vsub.f32 %v4951, %v5721
  %v6320 = vsub.f32 %v4954, %v5724
  %v6321 = vsub.f32 %v4957, %v5727
  %v6322 = vsub.f32 %v4960, %v5730
  %v6323 = vsub.f32 %v4963, %v5733
  %v6324 = vsub.f32 %v4966, %v5736
  %v6325 = vsub.f32 %v4969, %v5739
  %v6326 = vsub.f32 %v4972, %v5742
  %v6327 = vsub.f32 %v4975, %v5745
  %v6328 = vsub.f32 %v4978, %v5748
  %v6329 = vsub.f32 %v4981, %v5751
  %v6330 = vsub.f32 %v4984, %v5754
  %v6331 = vsub.f32 %v4987, %v5757
  %v6332 = vsub.f32 %v4990, %v5760
  %v6333 = vsub.f32 %v4993, %v5763
  %v6334 = vsub.f32 %v4996, %v5766
  %v6335 = vsub.f32 %v4999, %v5769
  %v6336 = vsub.f32 %v5002, %v5772
  %v6337 = vsub.f32 %v5005, %v5775
  %v6338 = vsub.f32 %v5008, %v5778
  %v6339 = vsub.f32 %v5011, %v5781
  %v6340 = vsub.f32 %v5014, %v5784
  %v6341 = vsub.f32 %v5017, %v5787
  %v6342 = vsub.f32 %v5020, %v5790
  %v6343 = vsub.f32 %v5023, %v5793
  %v6344 = vsub.f32 %v5026, %v5796
  %v6345 = vsub.f32 %v5029, %v5799
  %v6346 = vsub.f32 %v5032, %v5802
  %v6347 = vsub.f32 %v5035, %v5805
  %v6348 = vsub.f32 %v5038, %v5808
  %v6349 = vsub.f32 %v5041, %v5811
  %v6350 = vsub.f32 %v5044, %v5814
  %v6351 = vsub.f32 %v5047, %v5817
  %v6352 = vsub.f32 %v5050, %v5820
  %v6353 = vsub.f32 %v5053, %v5823
  %v6354 = vsub.f32 %v5056, %v5826
  %v6355 = vsub.f32 %v5059, %v5829
  %v6356 = vsub.f32 %v5062, %v5832
  %v6357 = vsub.f32 %v5065, %v5835
  %v6358 = vsub.f32 %v5068, %v5838
  %v6359 = vsub.f32 %v5071, %v5841
  %v6360 = vsub.f32 %v5074, %v5844
  %v6361 = vsub.f32 %v5077, %v5847
  %v6362 = vsub.f32 %v5080, %v5850
  %v6363 = vsub.f32 %v5083, %v5853
  %v6364 = vsub.f32 %v5086, %v5856
  %v6365 = vsub.f32 %v5089, %v5859
  %v6366 = vsub.f32 %v5092, %v5862
  %v6367 = vsub.f32 %v5095, %v5865
  %v6368 = vsub.f32 %v5098, %v5868
  %v6369 = vsub.f32 %v5101, %v5871
  %v6370 = vsub.f32 %v5104, %v5874
  %v6371 = vsub.f32 %v5107, %v5877
  %v6372 = vsub.f32 %v5110, %v5880
  %v6373 = vsub.f32 %v5113, %v5883
  %v6374 = vsub.f32 %v5116, %v5886
  %v6375 = vsub.f32 %v5119, %v5889
  %v6376 = vsub.f32 %v5122, %v5892
  %v6377 = vsub.f32 %v5125, %v5895
  %v6378 = vsub.f32 %v5128, %v5898
  %v6379 = vsub.f32 %v5131, %v5901
  %v6380 = vsub.f32 %v5134, %v5904
  %v6381 = vsub.f32 %v5137, %v5907
  %v6382 = vsub.f32 %v5140, %v5910
  %v6383 = vsub.f32 %v5143, %v5913
  %v6384 = vsub.f32 %v5146, %v5916
  %v6385 = vsub.f32 %v5149, %v5919
  %v6386 = vsub.f32 %v5152, %v5922
  %v6387 = vsub.f32 %v5155, %v5925
  %v6388 = vsub.f32 %v5158, %v5928
  %v6389 = vsub.f32 %v5161, %v5931
  %v6390 = vsub.f32 %v5164, %v5934
  %v6391 = vsub.f32 %v5167, %v5937
  %v6392 = vsub.f32 %v5170, %v5940
  %v6393 = vsub.f32 %v5173, %v5943
  %v6394 = vsub.f32 %v5176, %v5946
  %v6395 = vsub.f32 %v5179, %v5949
  %v6396 = vsub.f32 %v5182, %v5952
  %v6397 = vsub.f32 %v5185, %v5955
  %v6398 = vsub.f32 %v5188, %v5958
  %v6399 = vsub.f32 %v5191, %v5961
  %v6400 = vsub.f32 %v5194, %v5964
  %v6401 = vsub.f32 %v5197, %v5967
  %v6402 = vsub.f32 %v5200, %v5970
  %v6403 = vsub.f32 %v5203, %v5973
  %v6404 = vsub.f32 %v5206, %v5976
  %v6405 = vsub.f32 %v5209, %v5979
  %v6406 = vsub.f32 %v5212, %v5982
  %v6407 = vsub.f32 %v5215, %v5985
  %v6408 = vsub.f32 %v5218, %v5988
  %v6409 = vsub.f32 %v5221, %v5991
  %v6410 = vsub.f32 %v5224, %v5994
  %v6411 = vsub.f32 %v5227, %v5997
  %v6412 = vsub.f32 %v5230, %v6000
  %v6413 = vsub.f32 %v5233, %v6003
  %v6414 = vsub.f32 %v5236, %v6006
  %v6415 = vsub.f32 %v5239, %v6009
  %v6416 = vsub.f32 %v5242, %v6012
  %v6417 = vsub.f32 %v5245, %v6015
  %v6418 = vsub.f32 %v5248, %v6018
  %v6419 = vsub.f32 %v5251, %v6021
  %v6420 = vsub.f32 %v5254, %v6024
  %v6421 = vsub.f32 %v5257, %v6027
  %v6422 = vsub.f32 %v5260, %v6030
  %v6423 = vsub.f32 %v5263, %v6033
  %v6424 = vsub.f32 %v5266, %v6036
  %v6425 = vsub.f32 %v5269, %v6039
  %v6426 = vsub.f32 %v5272, %v6042
  %v6427 = vsub.f32 %v5275, %v6045
  %v6428 = vsub.f32 %v5278, %v6048
  %v6429 = vsub.f32 %v5281, %v6051
  %v6430 = vsub.f32 %v5284, %v6054
  %v6431 = vsub.f32 %v5287, %v6057
  %v6432 = vsub.f32 %v5290, %v6060
  %v6433 = vsub.f32 %v5293, %v6063
  %v6434 = vsub.f32 %v5296, %v6066
  %v6435 = vsub.f32 %v5299, %v6069
  %v6436 = vsub.f32 %v5302, %v6072
  %v6437 = vsub.f32 %v5305, %v6075
  %v6438 = vsub.f32 %v5308, %v6078
  %v6439 = vsub.f32 %v5311, %v6081
  %v6440 = vsub.f32 %v5314, %v6084
  %v6441 = vsub.f32 %v5317, %v6087
  %v6442 = vsub.f32 %v5320, %v6090
  %v6443 = vsub.f32 %v5323, %v6093
  %v6444 = vsub.f32 %v5326, %v6096
  %v6445 = vsub.f32 %v5329, %v6099
  %v6446 = vsub.f32 %v5332, %v6102
  %v6447 = vsub.f32 %v5335, %v6105
  %v6448 = vsub.f32 %v5338, %v6108
  %v6449 = vsub.f32 %v5341, %v6111
  %v6450 = vsub.f32 %v5344, %v6114
  %v6451 = vsub.f32 %v5347, %v6117
  %v6452 = vsub.f32 %v5350, %v6120
  %v6453 = vsub.f32 %v5353, %v6123
  %v6454 = vsub.f32 %v5356, %v6126
  %v6455 = vsub.f32 %v5359, %v6129
  %v6456 = vsub.f32 %v5362, %v6132
  %v6457 = vsub.f32 %v5365, %v6135
  %v6458 = vsub.f32 %v5368, %v6138
  %v6459 = vsub.f32 %v5371, %v6141
  %v6460 = vsub.f32 %v5374, %v6144
  %v6461 = vsub.f32 %v5377, %v6147
  %v6462 = vsub.f32 %v5380, %v6150
  %v6463 = vsub.f32 %v5383, %v6153
  %v6464 = vsub.f32 %v5386, %v6156
  %v6465 = vsub.f32 %v5389, %v6159
  %v6466 = vsub.f32 %v5392, %v6162
  %v6467 = vsub.f32 %v5395, %v6165
  %v6468 = vsub.f32 %v5398, %v6168
  %v6469 = vsub.f32 %v5401, %v6171
  %v6470 = vsub.f32 %v5404, %v6174
  %v6471 = vsub.f32 %v5407, %v6177
  %v6472 = vsub.f32 %v5410, %v6180
  %v6473 = vsub.f32 %v5413, %v6183
  %v6474 = vsub.f32 %v5416, %v6186
  %v6475 = vsub.f32 %v5419, %v6189
  %v6476 = vsub.f32 %v5422, %v6192
  %v6477 = vsub.f32 %v5425, %v6195
  %v6478 = vsub.f32 %v5428, %v6198
  %v6479 = vsub.f32 %v5431, %v6201
  %v6480 = vsub.f32 %v5434, %v6204
  %v6481 = vsub.f32 %v5437, %v6207
  %v6482 = vsub.f32 %v5440, %v6210
  %v6483 = vsub.f32 %v5443, %v6213
  %v6484 = vsub.f32 %v5446, %v6216
  %v6485 = vsub.f32 %v5449, %v6219
  %v6486 = vsub.f32 %v5452, %v6222
  %v6487 = vsub.f32 %v5455, %v6225
  %v6488 = vsub.f32 %v5458, %v6228
  %v6489 = vsub.f32 %v5461, %v6231
  %v6490 = vsub.f32 %v5464, %v6234
  %v6491 = vmul.f32 %v6235, 1.442695
  %v6492 = vpow.pop %v6491
  %v6493 = vmul.f32 %v6236, 1.442695
  %v6494 = vpow.pop %v6493
  %v6495 = vmul.f32 %v6237, 1.442695
  %v6496 = vpow.pop %v6495
  %v6497 = vmul.f32 %v6238, 1.442695
  %v6498 = vpow.pop %v6497
  %v6499 = vmul.f32 %v6239, 1.442695
  %v6500 = vpow.pop %v6499
  %v6501 = vmul.f32 %v6240, 1.442695
  %v6502 = vpow.pop %v6501
  %v6503 = vmul.f32 %v6241, 1.442695
  %v6504 = vpow.pop %v6503
  %v6505 = vmul.f32 %v6242, 1.442695
  %v6506 = vpow.pop %v6505
  %v6507 = vmul.f32 %v6243, 1.442695
  %v6508 = vpow.pop %v6507
  %v6509 = vmul.f32 %v6244, 1.442695
  %v6510 = vpow.pop %v6509
  %v6511 = vmul.f32 %v6245, 1.442695
  %v6512 = vpow.pop %v6511
  %v6513 = vmul.f32 %v6246, 1.442695
  %v6514 = vpow.pop %v6513
  %v6515 = vmul.f32 %v6247, 1.442695
  %v6516 = vpow.pop %v6515
  %v6517 = vmul.f32 %v6248, 1.442695
  %v6518 = vpow.pop %v6517
  %v6519 = vmul.f32 %v6249, 1.442695
  %v6520 = vpow.pop %v6519
  %v6521 = vmul.f32 %v6250, 1.442695
  %v6522 = vpow.pop %v6521
  %v6523 = vmul.f32 %v6251, 1.442695
  %v6524 = vpow.pop %v6523
  %v6525 = vmul.f32 %v6252, 1.442695
  %v6526 = vpow.pop %v6525
  %v6527 = vmul.f32 %v6253, 1.442695
  %v6528 = vpow.pop %v6527
  %v6529 = vmul.f32 %v6254, 1.442695
  %v6530 = vpow.pop %v6529
  %v6531 = vmul.f32 %v6255, 1.442695
  %v6532 = vpow.pop %v6531
  %v6533 = vmul.f32 %v6256, 1.442695
  %v6534 = vpow.pop %v6533
  %v6535 = vmul.f32 %v6257, 1.442695
  %v6536 = vpow.pop %v6535
  %v6537 = vmul.f32 %v6258, 1.442695
  %v6538 = vpow.pop %v6537
  %v6539 = vmul.f32 %v6259, 1.442695
  %v6540 = vpow.pop %v6539
  %v6541 = vmul.f32 %v6260, 1.442695
  %v6542 = vpow.pop %v6541
  %v6543 = vmul.f32 %v6261, 1.442695
  %v6544 = vpow.pop %v6543
  %v6545 = vmul.f32 %v6262, 1.442695
  %v6546 = vpow.pop %v6545
  %v6547 = vmul.f32 %v6263, 1.442695
  %v6548 = vpow.pop %v6547
  %v6549 = vmul.f32 %v6264, 1.442695
  %v6550 = vpow.pop %v6549
  %v6551 = vmul.f32 %v6265, 1.442695
  %v6552 = vpow.pop %v6551
  %v6553 = vmul.f32 %v6266, 1.442695
  %v6554 = vpow.pop %v6553
  %v6555 = vmul.f32 %v6267, 1.442695
  %v6556 = vpow.pop %v6555
  %v6557 = vmul.f32 %v6268, 1.442695
  %v6558 = vpow.pop %v6557
  %v6559 = vmul.f32 %v6269, 1.442695
  %v6560 = vpow.pop %v6559
  %v6561 = vmul.f32 %v6270, 1.442695
  %v6562 = vpow.pop %v6561
  %v6563 = vmul.f32 %v6271, 1.442695
  %v6564 = vpow.pop %v6563
  %v6565 = vmul.f32 %v6272, 1.442695
  %v6566 = vpow.pop %v6565
  %v6567 = vmul.f32 %v6273, 1.442695
  %v6568 = vpow.pop %v6567
  %v6569 = vmul.f32 %v6274, 1.442695
  %v6570 = vpow.pop %v6569
  %v6571 = vmul.f32 %v6275, 1.442695
  %v6572 = vpow.pop %v6571
  %v6573 = vmul.f32 %v6276, 1.442695
  %v6574 = vpow.pop %v6573
  %v6575 = vmul.f32 %v6277, 1.442695
  %v6576 = vpow.pop %v6575
  %v6577 = vmul.f32 %v6278, 1.442695
  %v6578 = vpow.pop %v6577
  %v6579 = vmul.f32 %v6279, 1.442695
  %v6580 = vpow.pop %v6579
  %v6581 = vmul.f32 %v6280, 1.442695
  %v6582 = vpow.pop %v6581
  %v6583 = vmul.f32 %v6281, 1.442695
  %v6584 = vpow.pop %v6583
  %v6585 = vmul.f32 %v6282, 1.442695
  %v6586 = vpow.pop %v6585
  %v6587 = vmul.f32 %v6283, 1.442695
  %v6588 = vpow.pop %v6587
  %v6589 = vmul.f32 %v6284, 1.442695
  %v6590 = vpow.pop %v6589
  %v6591 = vmul.f32 %v6285, 1.442695
  %v6592 = vpow.pop %v6591
  %v6593 = vmul.f32 %v6286, 1.442695
  %v6594 = vpow.pop %v6593
  %v6595 = vmul.f32 %v6287, 1.442695
  %v6596 = vpow.pop %v6595
  %v6597 = vmul.f32 %v6288, 1.442695
  %v6598 = vpow.pop %v6597
  %v6599 = vmul.f32 %v6289, 1.442695
  %v6600 = vpow.pop %v6599
  %v6601 = vmul.f32 %v6290, 1.442695
  %v6602 = vpow.pop %v6601
  %v6603 = vmul.f32 %v6291, 1.442695
  %v6604 = vpow.pop %v6603
  %v6605 = vmul.f32 %v6292, 1.442695
  %v6606 = vpow.pop %v6605
  %v6607 = vmul.f32 %v6293, 1.442695
  %v6608 = vpow.pop %v6607
  %v6609 = vmul.f32 %v6294, 1.442695
  %v6610 = vpow.pop %v6609
  %v6611 = vmul.f32 %v6295, 1.442695
  %v6612 = vpow.pop %v6611
  %v6613 = vmul.f32 %v6296, 1.442695
  %v6614 = vpow.pop %v6613
  %v6615 = vmul.f32 %v6297, 1.442695
  %v6616 = vpow.pop %v6615
  %v6617 = vmul.f32 %v6298, 1.442695
  %v6618 = vpow.pop %v6617
  %v6619 = vmul.f32 %v6299, 1.442695
  %v6620 = vpow.pop %v6619
  %v6621 = vmul.f32 %v6300, 1.442695
  %v6622 = vpow.pop %v6621
  %v6623 = vmul.f32 %v6301, 1.442695
  %v6624 = vpow.pop %v6623
  %v6625 = vmul.f32 %v6302, 1.442695
  %v6626 = vpow.pop %v6625
  %v6627 = vmul.f32 %v6303, 1.442695
  %v6628 = vpow.pop %v6627
  %v6629 = vmul.f32 %v6304, 1.442695
  %v6630 = vpow.pop %v6629
  %v6631 = vmul.f32 %v6305, 1.442695
  %v6632 = vpow.pop %v6631
  %v6633 = vmul.f32 %v6306, 1.442695
  %v6634 = vpow.pop %v6633
  %v6635 = vmul.f32 %v6307, 1.442695
  %v6636 = vpow.pop %v6635
  %v6637 = vmul.f32 %v6308, 1.442695
  %v6638 = vpow.pop %v6637
  %v6639 = vmul.f32 %v6309, 1.442695
  %v6640 = vpow.pop %v6639
  %v6641 = vmul.f32 %v6310, 1.442695
  %v6642 = vpow.pop %v6641
  %v6643 = vmul.f32 %v6311, 1.442695
  %v6644 = vpow.pop %v6643
  %v6645 = vmul.f32 %v6312, 1.442695
  %v6646 = vpow.pop %v6645
  %v6647 = vmul.f32 %v6313, 1.442695
  %v6648 = vpow.pop %v6647
  %v6649 = vmul.f32 %v6314, 1.442695
  %v6650 = vpow.pop %v6649
  %v6651 = vmul.f32 %v6315, 1.442695
  %v6652 = vpow.pop %v6651
  %v6653 = vmul.f32 %v6316, 1.442695
  %v6654 = vpow.pop %v6653
  %v6655 = vmul.f32 %v6317, 1.442695
  %v6656 = vpow.pop %v6655
  %v6657 = vmul.f32 %v6318, 1.442695
  %v6658 = vpow.pop %v6657
  %v6659 = vmul.f32 %v6319, 1.442695
  %v6660 = vpow.pop %v6659
  %v6661 = vmul.f32 %v6320, 1.442695
  %v6662 = vpow.pop %v6661
  %v6663 = vmul.f32 %v6321, 1.442695
  %v6664 = vpow.pop %v6663
  %v6665 = vmul.f32 %v6322, 1.442695
  %v6666 = vpow.pop %v6665
  %v6667 = vmul.f32 %v6323, 1.442695
  %v6668 = vpow.pop %v6667
  %v6669 = vmul.f32 %v6324, 1.442695
  %v6670 = vpow.pop %v6669
  %v6671 = vmul.f32 %v6325, 1.442695
  %v6672 = vpow.pop %v6671
  %v6673 = vmul.f32 %v6326, 1.442695
  %v6674 = vpow.pop %v6673
  %v6675 = vmul.f32 %v6327, 1.442695
  %v6676 = vpow.pop %v6675
  %v6677 = vmul.f32 %v6328, 1.442695
  %v6678 = vpow.pop %v6677
  %v6679 = vmul.f32 %v6329, 1.442695
  %v6680 = vpow.pop %v6679
  %v6681 = vmul.f32 %v6330, 1.442695
  %v6682 = vpow.pop %v6681
  %v6683 = vmul.f32 %v6331, 1.442695
  %v6684 = vpow.pop %v6683
  %v6685 = vmul.f32 %v6332, 1.442695
  %v6686 = vpow.pop %v6685
  %v6687 = vmul.f32 %v6333, 1.442695
  %v6688 = vpow.pop %v6687
  %v6689 = vmul.f32 %v6334, 1.442695
  %v6690 = vpow.pop %v6689
  %v6691 = vmul.f32 %v6335, 1.442695
  %v6692 = vpow.pop %v6691
  %v6693 = vmul.f32 %v6336, 1.442695
  %v6694 = vpow.pop %v6693
  %v6695 = vmul.f32 %v6337, 1.442695
  %v6696 = vpow.pop %v6695
  %v6697 = vmul.f32 %v6338, 1.442695
  %v6698 = vpow.pop %v6697
  %v6699 = vmul.f32 %v6339, 1.442695
  %v6700 = vpow.pop %v6699
  %v6701 = vmul.f32 %v6340, 1.442695
  %v6702 = vpow.pop %v6701
  %v6703 = vmul.f32 %v6341, 1.442695
  %v6704 = vpow.pop %v6703
  %v6705 = vmul.f32 %v6342, 1.442695
  %v6706 = vpow.pop %v6705
  %v6707 = vmul.f32 %v6343, 1.442695
  %v6708 = vpow.pop %v6707
  %v6709 = vmul.f32 %v6344, 1.442695
  %v6710 = vpow.pop %v6709
  %v6711 = vmul.f32 %v6345, 1.442695
  %v6712 = vpow.pop %v6711
  %v6713 = vmul.f32 %v6346, 1.442695
  %v6714 = vpow.pop %v6713
  %v6715 = vmul.f32 %v6347, 1.442695
  %v6716 = vpow.pop %v6715
  %v6717 = vmul.f32 %v6348, 1.442695
  %v6718 = vpow.pop %v6717
  %v6719 = vmul.f32 %v6349, 1.442695
  %v6720 = vpow.pop %v6719
  %v6721 = vmul.f32 %v6350, 1.442695
  %v6722 = vpow.pop %v6721
  %v6723 = vmul.f32 %v6351, 1.442695
  %v6724 = vpow.pop %v6723
  %v6725 = vmul.f32 %v6352, 1.442695
  %v6726 = vpow.pop %v6725
  %v6727 = vmul.f32 %v6353, 1.442695
  %v6728 = vpow.pop %v6727
  %v6729 = vmul.f32 %v6354, 1.442695
  %v6730 = vpow.pop %v6729
  %v6731 = vmul.f32 %v6355, 1.442695
  %v6732 = vpow.pop %v6731
  %v6733 = vmul.f32 %v6356, 1.442695
  %v6734 = vpow.pop %v6733
  %v6735 = vmul.f32 %v6357, 1.442695
  %v6736 = vpow.pop %v6735
  %v6737 = vmul.f32 %v6358, 1.442695
  %v6738 = vpow.pop %v6737
  %v6739 = vmul.f32 %v6359, 1.442695
  %v6740 = vpow.pop %v6739
  %v6741 = vmul.f32 %v6360, 1.442695
  %v6742 = vpow.pop %v6741
  %v6743 = vmul.f32 %v6361, 1.442695
  %v6744 = vpow.pop %v6743
  %v6745 = vmul.f32 %v6362, 1.442695
  %v6746 = vpow.pop %v6745
  %v6747 = vmul.f32 %v6363, 1.442695
  %v6748 = vpow.pop %v6747
  %v6749 = vmul.f32 %v6364, 1.442695
  %v6750 = vpow.pop %v6749
  %v6751 = vmul.f32 %v6365, 1.442695
  %v6752 = vpow.pop %v6751
  %v6753 = vmul.f32 %v6366, 1.442695
  %v6754 = vpow.pop %v6753
  %v6755 = vmul.f32 %v6367, 1.442695
  %v6756 = vpow.pop %v6755
  %v6757 = vmul.f32 %v6368, 1.442695
  %v6758 = vpow.pop %v6757
  %v6759 = vmul.f32 %v6369, 1.442695
  %v6760 = vpow.pop %v6759
  %v6761 = vmul.f32 %v6370, 1.442695
  %v6762 = vpow.pop %v6761
  %v6763 = vmul.f32 %v6371, 1.442695
  %v6764 = vpow.pop %v6763
  %v6765 = vmul.f32 %v6372, 1.442695
  %v6766 = vpow.pop %v6765
  %v6767 = vmul.f32 %v6373, 1.442695
  %v6768 = vpow.pop %v6767
  %v6769 = vmul.f32 %v6374, 1.442695
  %v6770 = vpow.pop %v6769
  %v6771 = vmul.f32 %v6375, 1.442695
  %v6772 = vpow.pop %v6771
  %v6773 = vmul.f32 %v6376, 1.442695
  %v6774 = vpow.pop %v6773
  %v6775 = vmul.f32 %v6377, 1.442695
  %v6776 = vpow.pop %v6775
  %v6777 = vmul.f32 %v6378, 1.442695
  %v6778 = vpow.pop %v6777
  %v6779 = vmul.f32 %v6379, 1.442695
  %v6780 = vpow.pop %v6779
  %v6781 = vmul.f32 %v6380, 1.442695
  %v6782 = vpow.pop %v6781
  %v6783 = vmul.f32 %v6381, 1.442695
  %v6784 = vpow.pop %v6783
  %v6785 = vmul.f32 %v6382, 1.442695
  %v6786 = vpow.pop %v6785
  %v6787 = vmul.f32 %v6383, 1.442695
  %v6788 = vpow.pop %v6787
  %v6789 = vmul.f32 %v6384, 1.442695
  %v6790 = vpow.pop %v6789
  %v6791 = vmul.f32 %v6385, 1.442695
  %v6792 = vpow.pop %v6791
  %v6793 = vmul.f32 %v6386, 1.442695
  %v6794 = vpow.pop %v6793
  %v6795 = vmul.f32 %v6387, 1.442695
  %v6796 = vpow.pop %v6795
  %v6797 = vmul.f32 %v6388, 1.442695
  %v6798 = vpow.pop %v6797
  %v6799 = vmul.f32 %v6389, 1.442695
  %v6800 = vpow.pop %v6799
  %v6801 = vmul.f32 %v6390, 1.442695
  %v6802 = vpow.pop %v6801
  %v6803 = vmul.f32 %v6391, 1.442695
  %v6804 = vpow.pop %v6803
  %v6805 = vmul.f32 %v6392, 1.442695
  %v6806 = vpow.pop %v6805
  %v6807 = vmul.f32 %v6393, 1.442695
  %v6808 = vpow.pop %v6807
  %v6809 = vmul.f32 %v6394, 1.442695
  %v6810 = vpow.pop %v6809
  %v6811 = vmul.f32 %v6395, 1.442695
  %v6812 = vpow.pop %v6811
  %v6813 = vmul.f32 %v6396, 1.442695
  %v6814 = vpow.pop %v6813
  %v6815 = vmul.f32 %v6397, 1.442695
  %v6816 = vpow.pop %v6815
  %v6817 = vmul.f32 %v6398, 1.442695
  %v6818 = vpow.pop %v6817
  %v6819 = vmul.f32 %v6399, 1.442695
  %v6820 = vpow.pop %v6819
  %v6821 = vmul.f32 %v6400, 1.442695
  %v6822 = vpow.pop %v6821
  %v6823 = vmul.f32 %v6401, 1.442695
  %v6824 = vpow.pop %v6823
  %v6825 = vmul.f32 %v6402, 1.442695
  %v6826 = vpow.pop %v6825
  %v6827 = vmul.f32 %v6403, 1.442695
  %v6828 = vpow.pop %v6827
  %v6829 = vmul.f32 %v6404, 1.442695
  %v6830 = vpow.pop %v6829
  %v6831 = vmul.f32 %v6405, 1.442695
  %v6832 = vpow.pop %v6831
  %v6833 = vmul.f32 %v6406, 1.442695
  %v6834 = vpow.pop %v6833
  %v6835 = vmul.f32 %v6407, 1.442695
  %v6836 = vpow.pop %v6835
  %v6837 = vmul.f32 %v6408, 1.442695
  %v6838 = vpow.pop %v6837
  %v6839 = vmul.f32 %v6409, 1.442695
  %v6840 = vpow.pop %v6839
  %v6841 = vmul.f32 %v6410, 1.442695
  %v6842 = vpow.pop %v6841
  %v6843 = vmul.f32 %v6411, 1.442695
  %v6844 = vpow.pop %v6843
  %v6845 = vmul.f32 %v6412, 1.442695
  %v6846 = vpow.pop %v6845
  %v6847 = vmul.f32 %v6413, 1.442695
  %v6848 = vpow.pop %v6847
  %v6849 = vmul.f32 %v6414, 1.442695
  %v6850 = vpow.pop %v6849
  %v6851 = vmul.f32 %v6415, 1.442695
  %v6852 = vpow.pop %v6851
  %v6853 = vmul.f32 %v6416, 1.442695
  %v6854 = vpow.pop %v6853
  %v6855 = vmul.f32 %v6417, 1.442695
  %v6856 = vpow.pop %v6855
  %v6857 = vmul.f32 %v6418, 1.442695
  %v6858 = vpow.pop %v6857
  %v6859 = vmul.f32 %v6419, 1.442695
  %v6860 = vpow.pop %v6859
  %v6861 = vmul.f32 %v6420, 1.442695
  %v6862 = vpow.pop %v6861
  %v6863 = vmul.f32 %v6421, 1.442695
  %v6864 = vpow.pop %v6863
  %v6865 = vmul.f32 %v6422, 1.442695
  %v6866 = vpow.pop %v6865
  %v6867 = vmul.f32 %v6423, 1.442695
  %v6868 = vpow.pop %v6867
  %v6869 = vmul.f32 %v6424, 1.442695
  %v6870 = vpow.pop %v6869
  %v6871 = vmul.f32 %v6425, 1.442695
  %v6872 = vpow.pop %v6871
  %v6873 = vmul.f32 %v6426, 1.442695
  %v6874 = vpow.pop %v6873
  %v6875 = vmul.f32 %v6427, 1.442695
  %v6876 = vpow.pop %v6875
  %v6877 = vmul.f32 %v6428, 1.442695
  %v6878 = vpow.pop %v6877
  %v6879 = vmul.f32 %v6429, 1.442695
  %v6880 = vpow.pop %v6879
  %v6881 = vmul.f32 %v6430, 1.442695
  %v6882 = vpow.pop %v6881
  %v6883 = vmul.f32 %v6431, 1.442695
  %v6884 = vpow.pop %v6883
  %v6885 = vmul.f32 %v6432, 1.442695
  %v6886 = vpow.pop %v6885
  %v6887 = vmul.f32 %v6433, 1.442695
  %v6888 = vpow.pop %v6887
  %v6889 = vmul.f32 %v6434, 1.442695
  %v6890 = vpow.pop %v6889
  %v6891 = vmul.f32 %v6435, 1.442695
  %v6892 = vpow.pop %v6891
  %v6893 = vmul.f32 %v6436, 1.442695
  %v6894 = vpow.pop %v6893
  %v6895 = vmul.f32 %v6437, 1.442695
  %v6896 = vpow.pop %v6895
  %v6897 = vmul.f32 %v6438, 1.442695
  %v6898 = vpow.pop %v6897
  %v6899 = vmul.f32 %v6439, 1.442695
  %v6900 = vpow.pop %v6899
  %v6901 = vmul.f32 %v6440, 1.442695
  %v6902 = vpow.pop %v6901
  %v6903 = vmul.f32 %v6441, 1.442695
  %v6904 = vpow.pop %v6903
  %v6905 = vmul.f32 %v6442, 1.442695
  %v6906 = vpow.pop %v6905
  %v6907 = vmul.f32 %v6443, 1.442695
  %v6908 = vpow.pop %v6907
  %v6909 = vmul.f32 %v6444, 1.442695
  %v6910 = vpow.pop %v6909
  %v6911 = vmul.f32 %v6445, 1.442695
  %v6912 = vpow.pop %v6911
  %v6913 = vmul.f32 %v6446, 1.442695
  %v6914 = vpow.pop %v6913
  %v6915 = vmul.f32 %v6447, 1.442695
  %v6916 = vpow.pop %v6915
  %v6917 = vmul.f32 %v6448, 1.442695
  %v6918 = vpow.pop %v6917
  %v6919 = vmul.f32 %v6449, 1.442695
  %v6920 = vpow.pop %v6919
  %v6921 = vmul.f32 %v6450, 1.442695
  %v6922 = vpow.pop %v6921
  %v6923 = vmul.f32 %v6451, 1.442695
  %v6924 = vpow.pop %v6923
  %v6925 = vmul.f32 %v6452, 1.442695
  %v6926 = vpow.pop %v6925
  %v6927 = vmul.f32 %v6453, 1.442695
  %v6928 = vpow.pop %v6927
  %v6929 = vmul.f32 %v6454, 1.442695
  %v6930 = vpow.pop %v6929
  %v6931 = vmul.f32 %v6455, 1.442695
  %v6932 = vpow.pop %v6931
  %v6933 = vmul.f32 %v6456, 1.442695
  %v6934 = vpow.pop %v6933
  %v6935 = vmul.f32 %v6457, 1.442695
  %v6936 = vpow.pop %v6935
  %v6937 = vmul.f32 %v6458, 1.442695
  %v6938 = vpow.pop %v6937
  %v6939 = vmul.f32 %v6459, 1.442695
  %v6940 = vpow.pop %v6939
  %v6941 = vmul.f32 %v6460, 1.442695
  %v6942 = vpow.pop %v6941
  %v6943 = vmul.f32 %v6461, 1.442695
  %v6944 = vpow.pop %v6943
  %v6945 = vmul.f32 %v6462, 1.442695
  %v6946 = vpow.pop %v6945
  %v6947 = vmul.f32 %v6463, 1.442695
  %v6948 = vpow.pop %v6947
  %v6949 = vmul.f32 %v6464, 1.442695
  %v6950 = vpow.pop %v6949
  %v6951 = vmul.f32 %v6465, 1.442695
  %v6952 = vpow.pop %v6951
  %v6953 = vmul.f32 %v6466, 1.442695
  %v6954 = vpow.pop %v6953
  %v6955 = vmul.f32 %v6467, 1.442695
  %v6956 = vpow.pop %v6955
  %v6957 = vmul.f32 %v6468, 1.442695
  %v6958 = vpow.pop %v6957
  %v6959 = vmul.f32 %v6469, 1.442695
  %v6960 = vpow.pop %v6959
  %v6961 = vmul.f32 %v6470, 1.442695
  %v6962 = vpow.pop %v6961
  %v6963 = vmul.f32 %v6471, 1.442695
  %v6964 = vpow.pop %v6963
  %v6965 = vmul.f32 %v6472, 1.442695
  %v6966 = vpow.pop %v6965
  %v6967 = vmul.f32 %v6473, 1.442695
  %v6968 = vpow.pop %v6967
  %v6969 = vmul.f32 %v6474, 1.442695
  %v6970 = vpow.pop %v6969
  %v6971 = vmul.f32 %v6475, 1.442695
  %v6972 = vpow.pop %v6971
  %v6973 = vmul.f32 %v6476, 1.442695
  %v6974 = vpow.pop %v6973
  %v6975 = vmul.f32 %v6477, 1.442695
  %v6976 = vpow.pop %v6975
  %v6977 = vmul.f32 %v6478, 1.442695
  %v6978 = vpow.pop %v6977
  %v6979 = vmul.f32 %v6479, 1.442695
  %v6980 = vpow.pop %v6979
  %v6981 = vmul.f32 %v6480, 1.442695
  %v6982 = vpow.pop %v6981
  %v6983 = vmul.f32 %v6481, 1.442695
  %v6984 = vpow.pop %v6983
  %v6985 = vmul.f32 %v6482, 1.442695
  %v6986 = vpow.pop %v6985
  %v6987 = vmul.f32 %v6483, 1.442695
  %v6988 = vpow.pop %v6987
  %v6989 = vmul.f32 %v6484, 1.442695
  %v6990 = vpow.pop %v6989
  %v6991 = vmul.f32 %v6485, 1.442695
  %v6992 = vpow.pop %v6991
  %v6993 = vmul.f32 %v6486, 1.442695
  %v6994 = vpow.pop %v6993
  %v6995 = vmul.f32 %v6487, 1.442695
  %v6996 = vpow.pop %v6995
  %v6997 = vmul.f32 %v6488, 1.442695
  %v6998 = vpow.pop %v6997
  %v6999 = vmul.f32 %v6489, 1.442695
  %v7000 = vpow.pop %v6999
  %v7001 = vmul.f32 %v6490, 1.442695
  %v7002 = vpow.pop %v7001
  %v7003 = vsel %vm5466, %v6492, 0.0
  %7004 = vadd.xlane.f32.xlu0 %v7003
  %v7005 = vpop.xlane.xlu0 %7004
  %v7006 = vsel %vm5466, %v6494, 0.0
  %7007 = vadd.xlane.f32.xlu0 %v7006
  %v7008 = vpop.xlane.xlu0 %7007
  %v7009 = vsel %vm5466, %v6496, 0.0
  %7010 = vadd.xlane.f32.xlu0 %v7009
  %v7011 = vpop.xlane.xlu0 %7010
  %v7012 = vsel %vm5466, %v6498, 0.0
  %7013 = vadd.xlane.f32.xlu0 %v7012
  %v7014 = vpop.xlane.xlu0 %7013
  %v7015 = vsel %vm5466, %v6500, 0.0
  %7016 = vadd.xlane.f32.xlu0 %v7015
  %v7017 = vpop.xlane.xlu0 %7016
  %v7018 = vsel %vm5466, %v6502, 0.0
  %7019 = vadd.xlane.f32.xlu0 %v7018
  %v7020 = vpop.xlane.xlu0 %7019
  %v7021 = vsel %vm5466, %v6504, 0.0
  %7022 = vadd.xlane.f32.xlu0 %v7021
  %v7023 = vpop.xlane.xlu0 %7022
  %v7024 = vsel %vm5466, %v6506, 0.0
  %7025 = vadd.xlane.f32.xlu0 %v7024
  %v7026 = vpop.xlane.xlu0 %7025
  %v7027 = vsel %vm5466, %v6508, 0.0
  %7028 = vadd.xlane.f32.xlu0 %v7027
  %v7029 = vpop.xlane.xlu0 %7028
  %v7030 = vsel %vm5466, %v6510, 0.0
  %7031 = vadd.xlane.f32.xlu0 %v7030
  %v7032 = vpop.xlane.xlu0 %7031
  %v7033 = vsel %vm5466, %v6512, 0.0
  %7034 = vadd.xlane.f32.xlu0 %v7033
  %v7035 = vpop.xlane.xlu0 %7034
  %v7036 = vsel %vm5466, %v6514, 0.0
  %7037 = vadd.xlane.f32.xlu0 %v7036
  %v7038 = vpop.xlane.xlu0 %7037
  %v7039 = vsel %vm5466, %v6516, 0.0
  %7040 = vadd.xlane.f32.xlu0 %v7039
  %v7041 = vpop.xlane.xlu0 %7040
  %v7042 = vsel %vm5466, %v6518, 0.0
  %7043 = vadd.xlane.f32.xlu0 %v7042
  %v7044 = vpop.xlane.xlu0 %7043
  %v7045 = vsel %vm5466, %v6520, 0.0
  %7046 = vadd.xlane.f32.xlu0 %v7045
  %v7047 = vpop.xlane.xlu0 %7046
  %v7048 = vsel %vm5466, %v6522, 0.0
  %7049 = vadd.xlane.f32.xlu0 %v7048
  %v7050 = vpop.xlane.xlu0 %7049
  %v7051 = vsel %vm5466, %v6524, 0.0
  %7052 = vadd.xlane.f32.xlu0 %v7051
  %v7053 = vpop.xlane.xlu0 %7052
  %v7054 = vsel %vm5466, %v6526, 0.0
  %7055 = vadd.xlane.f32.xlu0 %v7054
  %v7056 = vpop.xlane.xlu0 %7055
  %v7057 = vsel %vm5466, %v6528, 0.0
  %7058 = vadd.xlane.f32.xlu0 %v7057
  %v7059 = vpop.xlane.xlu0 %7058
  %v7060 = vsel %vm5466, %v6530, 0.0
  %7061 = vadd.xlane.f32.xlu0 %v7060
  %v7062 = vpop.xlane.xlu0 %7061
  %v7063 = vsel %vm5466, %v6532, 0.0
  %7064 = vadd.xlane.f32.xlu0 %v7063
  %v7065 = vpop.xlane.xlu0 %7064
  %v7066 = vsel %vm5466, %v6534, 0.0
  %7067 = vadd.xlane.f32.xlu0 %v7066
  %v7068 = vpop.xlane.xlu0 %7067
  %v7069 = vsel %vm5466, %v6536, 0.0
  %7070 = vadd.xlane.f32.xlu0 %v7069
  %v7071 = vpop.xlane.xlu0 %7070
  %v7072 = vsel %vm5466, %v6538, 0.0
  %7073 = vadd.xlane.f32.xlu0 %v7072
  %v7074 = vpop.xlane.xlu0 %7073
  %v7075 = vsel %vm5466, %v6540, 0.0
  %7076 = vadd.xlane.f32.xlu0 %v7075
  %v7077 = vpop.xlane.xlu0 %7076
  %v7078 = vsel %vm5466, %v6542, 0.0
  %7079 = vadd.xlane.f32.xlu0 %v7078
  %v7080 = vpop.xlane.xlu0 %7079
  %v7081 = vsel %vm5466, %v6544, 0.0
  %7082 = vadd.xlane.f32.xlu0 %v7081
  %v7083 = vpop.xlane.xlu0 %7082
  %v7084 = vsel %vm5466, %v6546, 0.0
  %7085 = vadd.xlane.f32.xlu0 %v7084
  %v7086 = vpop.xlane.xlu0 %7085
  %v7087 = vsel %vm5466, %v6548, 0.0
  %7088 = vadd.xlane.f32.xlu0 %v7087
  %v7089 = vpop.xlane.xlu0 %7088
  %v7090 = vsel %vm5466, %v6550, 0.0
  %7091 = vadd.xlane.f32.xlu0 %v7090
  %v7092 = vpop.xlane.xlu0 %7091
  %v7093 = vsel %vm5466, %v6552, 0.0
  %7094 = vadd.xlane.f32.xlu0 %v7093
  %v7095 = vpop.xlane.xlu0 %7094
  %v7096 = vsel %vm5466, %v6554, 0.0
  %7097 = vadd.xlane.f32.xlu0 %v7096
  %v7098 = vpop.xlane.xlu0 %7097
  %v7099 = vsel %vm5466, %v6556, 0.0
  %7100 = vadd.xlane.f32.xlu0 %v7099
  %v7101 = vpop.xlane.xlu0 %7100
  %v7102 = vsel %vm5466, %v6558, 0.0
  %7103 = vadd.xlane.f32.xlu0 %v7102
  %v7104 = vpop.xlane.xlu0 %7103
  %v7105 = vsel %vm5466, %v6560, 0.0
  %7106 = vadd.xlane.f32.xlu0 %v7105
  %v7107 = vpop.xlane.xlu0 %7106
  %v7108 = vsel %vm5466, %v6562, 0.0
  %7109 = vadd.xlane.f32.xlu0 %v7108
  %v7110 = vpop.xlane.xlu0 %7109
  %v7111 = vsel %vm5466, %v6564, 0.0
  %7112 = vadd.xlane.f32.xlu0 %v7111
  %v7113 = vpop.xlane.xlu0 %7112
  %v7114 = vsel %vm5466, %v6566, 0.0
  %7115 = vadd.xlane.f32.xlu0 %v7114
  %v7116 = vpop.xlane.xlu0 %7115
  %v7117 = vsel %vm5466, %v6568, 0.0
  %7118 = vadd.xlane.f32.xlu0 %v7117
  %v7119 = vpop.xlane.xlu0 %7118
  %v7120 = vsel %vm5466, %v6570, 0.0
  %7121 = vadd.xlane.f32.xlu0 %v7120
  %v7122 = vpop.xlane.xlu0 %7121
  %v7123 = vsel %vm5466, %v6572, 0.0
  %7124 = vadd.xlane.f32.xlu0 %v7123
  %v7125 = vpop.xlane.xlu0 %7124
  %v7126 = vsel %vm5466, %v6574, 0.0
  %7127 = vadd.xlane.f32.xlu0 %v7126
  %v7128 = vpop.xlane.xlu0 %7127
  %v7129 = vsel %vm5466, %v6576, 0.0
  %7130 = vadd.xlane.f32.xlu0 %v7129
  %v7131 = vpop.xlane.xlu0 %7130
  %v7132 = vsel %vm5466, %v6578, 0.0
  %7133 = vadd.xlane.f32.xlu0 %v7132
  %v7134 = vpop.xlane.xlu0 %7133
  %v7135 = vsel %vm5466, %v6580, 0.0
  %7136 = vadd.xlane.f32.xlu0 %v7135
  %v7137 = vpop.xlane.xlu0 %7136
  %v7138 = vsel %vm5466, %v6582, 0.0
  %7139 = vadd.xlane.f32.xlu0 %v7138
  %v7140 = vpop.xlane.xlu0 %7139
  %v7141 = vsel %vm5466, %v6584, 0.0
  %7142 = vadd.xlane.f32.xlu0 %v7141
  %v7143 = vpop.xlane.xlu0 %7142
  %v7144 = vsel %vm5466, %v6586, 0.0
  %7145 = vadd.xlane.f32.xlu0 %v7144
  %v7146 = vpop.xlane.xlu0 %7145
  %v7147 = vsel %vm5466, %v6588, 0.0
  %7148 = vadd.xlane.f32.xlu0 %v7147
  %v7149 = vpop.xlane.xlu0 %7148
  %v7150 = vsel %vm5466, %v6590, 0.0
  %7151 = vadd.xlane.f32.xlu0 %v7150
  %v7152 = vpop.xlane.xlu0 %7151
  %v7153 = vsel %vm5466, %v6592, 0.0
  %7154 = vadd.xlane.f32.xlu0 %v7153
  %v7155 = vpop.xlane.xlu0 %7154
  %v7156 = vsel %vm5466, %v6594, 0.0
  %7157 = vadd.xlane.f32.xlu0 %v7156
  %v7158 = vpop.xlane.xlu0 %7157
  %v7159 = vsel %vm5466, %v6596, 0.0
  %7160 = vadd.xlane.f32.xlu0 %v7159
  %v7161 = vpop.xlane.xlu0 %7160
  %v7162 = vsel %vm5466, %v6598, 0.0
  %7163 = vadd.xlane.f32.xlu0 %v7162
  %v7164 = vpop.xlane.xlu0 %7163
  %v7165 = vsel %vm5466, %v6600, 0.0
  %7166 = vadd.xlane.f32.xlu0 %v7165
  %v7167 = vpop.xlane.xlu0 %7166
  %v7168 = vsel %vm5466, %v6602, 0.0
  %7169 = vadd.xlane.f32.xlu0 %v7168
  %v7170 = vpop.xlane.xlu0 %7169
  %v7171 = vsel %vm5466, %v6604, 0.0
  %7172 = vadd.xlane.f32.xlu0 %v7171
  %v7173 = vpop.xlane.xlu0 %7172
  %v7174 = vsel %vm5466, %v6606, 0.0
  %7175 = vadd.xlane.f32.xlu0 %v7174
  %v7176 = vpop.xlane.xlu0 %7175
  %v7177 = vsel %vm5466, %v6608, 0.0
  %7178 = vadd.xlane.f32.xlu0 %v7177
  %v7179 = vpop.xlane.xlu0 %7178
  %v7180 = vsel %vm5466, %v6610, 0.0
  %7181 = vadd.xlane.f32.xlu0 %v7180
  %v7182 = vpop.xlane.xlu0 %7181
  %v7183 = vsel %vm5466, %v6612, 0.0
  %7184 = vadd.xlane.f32.xlu0 %v7183
  %v7185 = vpop.xlane.xlu0 %7184
  %v7186 = vsel %vm5466, %v6614, 0.0
  %7187 = vadd.xlane.f32.xlu0 %v7186
  %v7188 = vpop.xlane.xlu0 %7187
  %v7189 = vsel %vm5466, %v6616, 0.0
  %7190 = vadd.xlane.f32.xlu0 %v7189
  %v7191 = vpop.xlane.xlu0 %7190
  %v7192 = vsel %vm5466, %v6618, 0.0
  %7193 = vadd.xlane.f32.xlu0 %v7192
  %v7194 = vpop.xlane.xlu0 %7193
  %v7195 = vsel %vm5466, %v6620, 0.0
  %7196 = vadd.xlane.f32.xlu0 %v7195
  %v7197 = vpop.xlane.xlu0 %7196
  %v7198 = vsel %vm5466, %v6622, 0.0
  %7199 = vadd.xlane.f32.xlu0 %v7198
  %v7200 = vpop.xlane.xlu0 %7199
  %v7201 = vsel %vm5466, %v6624, 0.0
  %7202 = vadd.xlane.f32.xlu0 %v7201
  %v7203 = vpop.xlane.xlu0 %7202
  %v7204 = vsel %vm5466, %v6626, 0.0
  %7205 = vadd.xlane.f32.xlu0 %v7204
  %v7206 = vpop.xlane.xlu0 %7205
  %v7207 = vsel %vm5466, %v6628, 0.0
  %7208 = vadd.xlane.f32.xlu0 %v7207
  %v7209 = vpop.xlane.xlu0 %7208
  %v7210 = vsel %vm5466, %v6630, 0.0
  %7211 = vadd.xlane.f32.xlu0 %v7210
  %v7212 = vpop.xlane.xlu0 %7211
  %v7213 = vsel %vm5466, %v6632, 0.0
  %7214 = vadd.xlane.f32.xlu0 %v7213
  %v7215 = vpop.xlane.xlu0 %7214
  %v7216 = vsel %vm5466, %v6634, 0.0
  %7217 = vadd.xlane.f32.xlu0 %v7216
  %v7218 = vpop.xlane.xlu0 %7217
  %v7219 = vsel %vm5466, %v6636, 0.0
  %7220 = vadd.xlane.f32.xlu0 %v7219
  %v7221 = vpop.xlane.xlu0 %7220
  %v7222 = vsel %vm5466, %v6638, 0.0
  %7223 = vadd.xlane.f32.xlu0 %v7222
  %v7224 = vpop.xlane.xlu0 %7223
  %v7225 = vsel %vm5466, %v6640, 0.0
  %7226 = vadd.xlane.f32.xlu0 %v7225
  %v7227 = vpop.xlane.xlu0 %7226
  %v7228 = vsel %vm5466, %v6642, 0.0
  %7229 = vadd.xlane.f32.xlu0 %v7228
  %v7230 = vpop.xlane.xlu0 %7229
  %v7231 = vsel %vm5466, %v6644, 0.0
  %7232 = vadd.xlane.f32.xlu0 %v7231
  %v7233 = vpop.xlane.xlu0 %7232
  %v7234 = vsel %vm5466, %v6646, 0.0
  %7235 = vadd.xlane.f32.xlu0 %v7234
  %v7236 = vpop.xlane.xlu0 %7235
  %v7237 = vsel %vm5466, %v6648, 0.0
  %7238 = vadd.xlane.f32.xlu0 %v7237
  %v7239 = vpop.xlane.xlu0 %7238
  %v7240 = vsel %vm5466, %v6650, 0.0
  %7241 = vadd.xlane.f32.xlu0 %v7240
  %v7242 = vpop.xlane.xlu0 %7241
  %v7243 = vsel %vm5466, %v6652, 0.0
  %7244 = vadd.xlane.f32.xlu0 %v7243
  %v7245 = vpop.xlane.xlu0 %7244
  %v7246 = vsel %vm5466, %v6654, 0.0
  %7247 = vadd.xlane.f32.xlu0 %v7246
  %v7248 = vpop.xlane.xlu0 %7247
  %v7249 = vsel %vm5466, %v6656, 0.0
  %7250 = vadd.xlane.f32.xlu0 %v7249
  %v7251 = vpop.xlane.xlu0 %7250
  %v7252 = vsel %vm5466, %v6658, 0.0
  %7253 = vadd.xlane.f32.xlu0 %v7252
  %v7254 = vpop.xlane.xlu0 %7253
  %v7255 = vsel %vm5466, %v6660, 0.0
  %7256 = vadd.xlane.f32.xlu0 %v7255
  %v7257 = vpop.xlane.xlu0 %7256
  %v7258 = vsel %vm5466, %v6662, 0.0
  %7259 = vadd.xlane.f32.xlu0 %v7258
  %v7260 = vpop.xlane.xlu0 %7259
  %v7261 = vsel %vm5466, %v6664, 0.0
  %7262 = vadd.xlane.f32.xlu0 %v7261
  %v7263 = vpop.xlane.xlu0 %7262
  %v7264 = vsel %vm5466, %v6666, 0.0
  %7265 = vadd.xlane.f32.xlu0 %v7264
  %v7266 = vpop.xlane.xlu0 %7265
  %v7267 = vsel %vm5466, %v6668, 0.0
  %7268 = vadd.xlane.f32.xlu0 %v7267
  %v7269 = vpop.xlane.xlu0 %7268
  %v7270 = vsel %vm5466, %v6670, 0.0
  %7271 = vadd.xlane.f32.xlu0 %v7270
  %v7272 = vpop.xlane.xlu0 %7271
  %v7273 = vsel %vm5466, %v6672, 0.0
  %7274 = vadd.xlane.f32.xlu0 %v7273
  %v7275 = vpop.xlane.xlu0 %7274
  %v7276 = vsel %vm5466, %v6674, 0.0
  %7277 = vadd.xlane.f32.xlu0 %v7276
  %v7278 = vpop.xlane.xlu0 %7277
  %v7279 = vsel %vm5466, %v6676, 0.0
  %7280 = vadd.xlane.f32.xlu0 %v7279
  %v7281 = vpop.xlane.xlu0 %7280
  %v7282 = vsel %vm5466, %v6678, 0.0
  %7283 = vadd.xlane.f32.xlu0 %v7282
  %v7284 = vpop.xlane.xlu0 %7283
  %v7285 = vsel %vm5466, %v6680, 0.0
  %7286 = vadd.xlane.f32.xlu0 %v7285
  %v7287 = vpop.xlane.xlu0 %7286
  %v7288 = vsel %vm5466, %v6682, 0.0
  %7289 = vadd.xlane.f32.xlu0 %v7288
  %v7290 = vpop.xlane.xlu0 %7289
  %v7291 = vsel %vm5466, %v6684, 0.0
  %7292 = vadd.xlane.f32.xlu0 %v7291
  %v7293 = vpop.xlane.xlu0 %7292
  %v7294 = vsel %vm5466, %v6686, 0.0
  %7295 = vadd.xlane.f32.xlu0 %v7294
  %v7296 = vpop.xlane.xlu0 %7295
  %v7297 = vsel %vm5466, %v6688, 0.0
  %7298 = vadd.xlane.f32.xlu0 %v7297
  %v7299 = vpop.xlane.xlu0 %7298
  %v7300 = vsel %vm5466, %v6690, 0.0
  %7301 = vadd.xlane.f32.xlu0 %v7300
  %v7302 = vpop.xlane.xlu0 %7301
  %v7303 = vsel %vm5466, %v6692, 0.0
  %7304 = vadd.xlane.f32.xlu0 %v7303
  %v7305 = vpop.xlane.xlu0 %7304
  %v7306 = vsel %vm5466, %v6694, 0.0
  %7307 = vadd.xlane.f32.xlu0 %v7306
  %v7308 = vpop.xlane.xlu0 %7307
  %v7309 = vsel %vm5466, %v6696, 0.0
  %7310 = vadd.xlane.f32.xlu0 %v7309
  %v7311 = vpop.xlane.xlu0 %7310
  %v7312 = vsel %vm5466, %v6698, 0.0
  %7313 = vadd.xlane.f32.xlu0 %v7312
  %v7314 = vpop.xlane.xlu0 %7313
  %v7315 = vsel %vm5466, %v6700, 0.0
  %7316 = vadd.xlane.f32.xlu0 %v7315
  %v7317 = vpop.xlane.xlu0 %7316
  %v7318 = vsel %vm5466, %v6702, 0.0
  %7319 = vadd.xlane.f32.xlu0 %v7318
  %v7320 = vpop.xlane.xlu0 %7319
  %v7321 = vsel %vm5466, %v6704, 0.0
  %7322 = vadd.xlane.f32.xlu0 %v7321
  %v7323 = vpop.xlane.xlu0 %7322
  %v7324 = vsel %vm5466, %v6706, 0.0
  %7325 = vadd.xlane.f32.xlu0 %v7324
  %v7326 = vpop.xlane.xlu0 %7325
  %v7327 = vsel %vm5466, %v6708, 0.0
  %7328 = vadd.xlane.f32.xlu0 %v7327
  %v7329 = vpop.xlane.xlu0 %7328
  %v7330 = vsel %vm5466, %v6710, 0.0
  %7331 = vadd.xlane.f32.xlu0 %v7330
  %v7332 = vpop.xlane.xlu0 %7331
  %v7333 = vsel %vm5466, %v6712, 0.0
  %7334 = vadd.xlane.f32.xlu0 %v7333
  %v7335 = vpop.xlane.xlu0 %7334
  %v7336 = vsel %vm5466, %v6714, 0.0
  %7337 = vadd.xlane.f32.xlu0 %v7336
  %v7338 = vpop.xlane.xlu0 %7337
  %v7339 = vsel %vm5466, %v6716, 0.0
  %7340 = vadd.xlane.f32.xlu0 %v7339
  %v7341 = vpop.xlane.xlu0 %7340
  %v7342 = vsel %vm5466, %v6718, 0.0
  %7343 = vadd.xlane.f32.xlu0 %v7342
  %v7344 = vpop.xlane.xlu0 %7343
  %v7345 = vsel %vm5466, %v6720, 0.0
  %7346 = vadd.xlane.f32.xlu0 %v7345
  %v7347 = vpop.xlane.xlu0 %7346
  %v7348 = vsel %vm5466, %v6722, 0.0
  %7349 = vadd.xlane.f32.xlu0 %v7348
  %v7350 = vpop.xlane.xlu0 %7349
  %v7351 = vsel %vm5466, %v6724, 0.0
  %7352 = vadd.xlane.f32.xlu0 %v7351
  %v7353 = vpop.xlane.xlu0 %7352
  %v7354 = vsel %vm5466, %v6726, 0.0
  %7355 = vadd.xlane.f32.xlu0 %v7354
  %v7356 = vpop.xlane.xlu0 %7355
  %v7357 = vsel %vm5466, %v6728, 0.0
  %7358 = vadd.xlane.f32.xlu0 %v7357
  %v7359 = vpop.xlane.xlu0 %7358
  %v7360 = vsel %vm5466, %v6730, 0.0
  %7361 = vadd.xlane.f32.xlu0 %v7360
  %v7362 = vpop.xlane.xlu0 %7361
  %v7363 = vsel %vm5466, %v6732, 0.0
  %7364 = vadd.xlane.f32.xlu0 %v7363
  %v7365 = vpop.xlane.xlu0 %7364
  %v7366 = vsel %vm5466, %v6734, 0.0
  %7367 = vadd.xlane.f32.xlu0 %v7366
  %v7368 = vpop.xlane.xlu0 %7367
  %v7369 = vsel %vm5466, %v6736, 0.0
  %7370 = vadd.xlane.f32.xlu0 %v7369
  %v7371 = vpop.xlane.xlu0 %7370
  %v7372 = vsel %vm5466, %v6738, 0.0
  %7373 = vadd.xlane.f32.xlu0 %v7372
  %v7374 = vpop.xlane.xlu0 %7373
  %v7375 = vsel %vm5466, %v6740, 0.0
  %7376 = vadd.xlane.f32.xlu0 %v7375
  %v7377 = vpop.xlane.xlu0 %7376
  %v7378 = vsel %vm5466, %v6742, 0.0
  %7379 = vadd.xlane.f32.xlu0 %v7378
  %v7380 = vpop.xlane.xlu0 %7379
  %v7381 = vsel %vm5466, %v6744, 0.0
  %7382 = vadd.xlane.f32.xlu0 %v7381
  %v7383 = vpop.xlane.xlu0 %7382
  %v7384 = vsel %vm5466, %v6746, 0.0
  %7385 = vadd.xlane.f32.xlu0 %v7384
  %v7386 = vpop.xlane.xlu0 %7385
  %v7387 = vsel %vm5466, %v6748, 0.0
  %7388 = vadd.xlane.f32.xlu0 %v7387
  %v7389 = vpop.xlane.xlu0 %7388
  %v7390 = vsel %vm5466, %v6750, 0.0
  %7391 = vadd.xlane.f32.xlu0 %v7390
  %v7392 = vpop.xlane.xlu0 %7391
  %v7393 = vsel %vm5466, %v6752, 0.0
  %7394 = vadd.xlane.f32.xlu0 %v7393
  %v7395 = vpop.xlane.xlu0 %7394
  %v7396 = vsel %vm5466, %v6754, 0.0
  %7397 = vadd.xlane.f32.xlu0 %v7396
  %v7398 = vpop.xlane.xlu0 %7397
  %v7399 = vsel %vm5466, %v6756, 0.0
  %7400 = vadd.xlane.f32.xlu0 %v7399
  %v7401 = vpop.xlane.xlu0 %7400
  %v7402 = vsel %vm5466, %v6758, 0.0
  %7403 = vadd.xlane.f32.xlu0 %v7402
  %v7404 = vpop.xlane.xlu0 %7403
  %v7405 = vsel %vm5466, %v6760, 0.0
  %7406 = vadd.xlane.f32.xlu0 %v7405
  %v7407 = vpop.xlane.xlu0 %7406
  %v7408 = vsel %vm5466, %v6762, 0.0
  %7409 = vadd.xlane.f32.xlu0 %v7408
  %v7410 = vpop.xlane.xlu0 %7409
  %v7411 = vsel %vm5466, %v6764, 0.0
  %7412 = vadd.xlane.f32.xlu0 %v7411
  %v7413 = vpop.xlane.xlu0 %7412
  %v7414 = vsel %vm5466, %v6766, 0.0
  %7415 = vadd.xlane.f32.xlu0 %v7414
  %v7416 = vpop.xlane.xlu0 %7415
  %v7417 = vsel %vm5466, %v6768, 0.0
  %7418 = vadd.xlane.f32.xlu0 %v7417
  %v7419 = vpop.xlane.xlu0 %7418
  %v7420 = vsel %vm5466, %v6770, 0.0
  %7421 = vadd.xlane.f32.xlu0 %v7420
  %v7422 = vpop.xlane.xlu0 %7421
  %v7423 = vsel %vm5466, %v6772, 0.0
  %7424 = vadd.xlane.f32.xlu0 %v7423
  %v7425 = vpop.xlane.xlu0 %7424
  %v7426 = vsel %vm5466, %v6774, 0.0
  %7427 = vadd.xlane.f32.xlu0 %v7426
  %v7428 = vpop.xlane.xlu0 %7427
  %v7429 = vsel %vm5466, %v6776, 0.0
  %7430 = vadd.xlane.f32.xlu0 %v7429
  %v7431 = vpop.xlane.xlu0 %7430
  %v7432 = vsel %vm5466, %v6778, 0.0
  %7433 = vadd.xlane.f32.xlu0 %v7432
  %v7434 = vpop.xlane.xlu0 %7433
  %v7435 = vsel %vm5466, %v6780, 0.0
  %7436 = vadd.xlane.f32.xlu0 %v7435
  %v7437 = vpop.xlane.xlu0 %7436
  %v7438 = vsel %vm5466, %v6782, 0.0
  %7439 = vadd.xlane.f32.xlu0 %v7438
  %v7440 = vpop.xlane.xlu0 %7439
  %v7441 = vsel %vm5466, %v6784, 0.0
  %7442 = vadd.xlane.f32.xlu0 %v7441
  %v7443 = vpop.xlane.xlu0 %7442
  %v7444 = vsel %vm5466, %v6786, 0.0
  %7445 = vadd.xlane.f32.xlu0 %v7444
  %v7446 = vpop.xlane.xlu0 %7445
  %v7447 = vsel %vm5466, %v6788, 0.0
  %7448 = vadd.xlane.f32.xlu0 %v7447
  %v7449 = vpop.xlane.xlu0 %7448
  %v7450 = vsel %vm5466, %v6790, 0.0
  %7451 = vadd.xlane.f32.xlu0 %v7450
  %v7452 = vpop.xlane.xlu0 %7451
  %v7453 = vsel %vm5466, %v6792, 0.0
  %7454 = vadd.xlane.f32.xlu0 %v7453
  %v7455 = vpop.xlane.xlu0 %7454
  %v7456 = vsel %vm5466, %v6794, 0.0
  %7457 = vadd.xlane.f32.xlu0 %v7456
  %v7458 = vpop.xlane.xlu0 %7457
  %v7459 = vsel %vm5466, %v6796, 0.0
  %7460 = vadd.xlane.f32.xlu0 %v7459
  %v7461 = vpop.xlane.xlu0 %7460
  %v7462 = vsel %vm5466, %v6798, 0.0
  %7463 = vadd.xlane.f32.xlu0 %v7462
  %v7464 = vpop.xlane.xlu0 %7463
  %v7465 = vsel %vm5466, %v6800, 0.0
  %7466 = vadd.xlane.f32.xlu0 %v7465
  %v7467 = vpop.xlane.xlu0 %7466
  %v7468 = vsel %vm5466, %v6802, 0.0
  %7469 = vadd.xlane.f32.xlu0 %v7468
  %v7470 = vpop.xlane.xlu0 %7469
  %v7471 = vsel %vm5466, %v6804, 0.0
  %7472 = vadd.xlane.f32.xlu0 %v7471
  %v7473 = vpop.xlane.xlu0 %7472
  %v7474 = vsel %vm5466, %v6806, 0.0
  %7475 = vadd.xlane.f32.xlu0 %v7474
  %v7476 = vpop.xlane.xlu0 %7475
  %v7477 = vsel %vm5466, %v6808, 0.0
  %7478 = vadd.xlane.f32.xlu0 %v7477
  %v7479 = vpop.xlane.xlu0 %7478
  %v7480 = vsel %vm5466, %v6810, 0.0
  %7481 = vadd.xlane.f32.xlu0 %v7480
  %v7482 = vpop.xlane.xlu0 %7481
  %v7483 = vsel %vm5466, %v6812, 0.0
  %7484 = vadd.xlane.f32.xlu0 %v7483
  %v7485 = vpop.xlane.xlu0 %7484
  %v7486 = vsel %vm5466, %v6814, 0.0
  %7487 = vadd.xlane.f32.xlu0 %v7486
  %v7488 = vpop.xlane.xlu0 %7487
  %v7489 = vsel %vm5466, %v6816, 0.0
  %7490 = vadd.xlane.f32.xlu0 %v7489
  %v7491 = vpop.xlane.xlu0 %7490
  %v7492 = vsel %vm5466, %v6818, 0.0
  %7493 = vadd.xlane.f32.xlu0 %v7492
  %v7494 = vpop.xlane.xlu0 %7493
  %v7495 = vsel %vm5466, %v6820, 0.0
  %7496 = vadd.xlane.f32.xlu0 %v7495
  %v7497 = vpop.xlane.xlu0 %7496
  %v7498 = vsel %vm5466, %v6822, 0.0
  %7499 = vadd.xlane.f32.xlu0 %v7498
  %v7500 = vpop.xlane.xlu0 %7499
  %v7501 = vsel %vm5466, %v6824, 0.0
  %7502 = vadd.xlane.f32.xlu0 %v7501
  %v7503 = vpop.xlane.xlu0 %7502
  %v7504 = vsel %vm5466, %v6826, 0.0
  %7505 = vadd.xlane.f32.xlu0 %v7504
  %v7506 = vpop.xlane.xlu0 %7505
  %v7507 = vsel %vm5466, %v6828, 0.0
  %7508 = vadd.xlane.f32.xlu0 %v7507
  %v7509 = vpop.xlane.xlu0 %7508
  %v7510 = vsel %vm5466, %v6830, 0.0
  %7511 = vadd.xlane.f32.xlu0 %v7510
  %v7512 = vpop.xlane.xlu0 %7511
  %v7513 = vsel %vm5466, %v6832, 0.0
  %7514 = vadd.xlane.f32.xlu0 %v7513
  %v7515 = vpop.xlane.xlu0 %7514
  %v7516 = vsel %vm5466, %v6834, 0.0
  %7517 = vadd.xlane.f32.xlu0 %v7516
  %v7518 = vpop.xlane.xlu0 %7517
  %v7519 = vsel %vm5466, %v6836, 0.0
  %7520 = vadd.xlane.f32.xlu0 %v7519
  %v7521 = vpop.xlane.xlu0 %7520
  %v7522 = vsel %vm5466, %v6838, 0.0
  %7523 = vadd.xlane.f32.xlu0 %v7522
  %v7524 = vpop.xlane.xlu0 %7523
  %v7525 = vsel %vm5466, %v6840, 0.0
  %7526 = vadd.xlane.f32.xlu0 %v7525
  %v7527 = vpop.xlane.xlu0 %7526
  %v7528 = vsel %vm5466, %v6842, 0.0
  %7529 = vadd.xlane.f32.xlu0 %v7528
  %v7530 = vpop.xlane.xlu0 %7529
  %v7531 = vsel %vm5466, %v6844, 0.0
  %7532 = vadd.xlane.f32.xlu0 %v7531
  %v7533 = vpop.xlane.xlu0 %7532
  %v7534 = vsel %vm5466, %v6846, 0.0
  %7535 = vadd.xlane.f32.xlu0 %v7534
  %v7536 = vpop.xlane.xlu0 %7535
  %v7537 = vsel %vm5466, %v6848, 0.0
  %7538 = vadd.xlane.f32.xlu0 %v7537
  %v7539 = vpop.xlane.xlu0 %7538
  %v7540 = vsel %vm5466, %v6850, 0.0
  %7541 = vadd.xlane.f32.xlu0 %v7540
  %v7542 = vpop.xlane.xlu0 %7541
  %v7543 = vsel %vm5466, %v6852, 0.0
  %7544 = vadd.xlane.f32.xlu0 %v7543
  %v7545 = vpop.xlane.xlu0 %7544
  %v7546 = vsel %vm5466, %v6854, 0.0
  %7547 = vadd.xlane.f32.xlu0 %v7546
  %v7548 = vpop.xlane.xlu0 %7547
  %v7549 = vsel %vm5466, %v6856, 0.0
  %7550 = vadd.xlane.f32.xlu0 %v7549
  %v7551 = vpop.xlane.xlu0 %7550
  %v7552 = vsel %vm5466, %v6858, 0.0
  %7553 = vadd.xlane.f32.xlu0 %v7552
  %v7554 = vpop.xlane.xlu0 %7553
  %v7555 = vsel %vm5466, %v6860, 0.0
  %7556 = vadd.xlane.f32.xlu0 %v7555
  %v7557 = vpop.xlane.xlu0 %7556
  %v7558 = vsel %vm5466, %v6862, 0.0
  %7559 = vadd.xlane.f32.xlu0 %v7558
  %v7560 = vpop.xlane.xlu0 %7559
  %v7561 = vsel %vm5466, %v6864, 0.0
  %7562 = vadd.xlane.f32.xlu0 %v7561
  %v7563 = vpop.xlane.xlu0 %7562
  %v7564 = vsel %vm5466, %v6866, 0.0
  %7565 = vadd.xlane.f32.xlu0 %v7564
  %v7566 = vpop.xlane.xlu0 %7565
  %v7567 = vsel %vm5466, %v6868, 0.0
  %7568 = vadd.xlane.f32.xlu0 %v7567
  %v7569 = vpop.xlane.xlu0 %7568
  %v7570 = vsel %vm5466, %v6870, 0.0
  %7571 = vadd.xlane.f32.xlu0 %v7570
  %v7572 = vpop.xlane.xlu0 %7571
  %v7573 = vsel %vm5466, %v6872, 0.0
  %7574 = vadd.xlane.f32.xlu0 %v7573
  %v7575 = vpop.xlane.xlu0 %7574
  %v7576 = vsel %vm5466, %v6874, 0.0
  %7577 = vadd.xlane.f32.xlu0 %v7576
  %v7578 = vpop.xlane.xlu0 %7577
  %v7579 = vsel %vm5466, %v6876, 0.0
  %7580 = vadd.xlane.f32.xlu0 %v7579
  %v7581 = vpop.xlane.xlu0 %7580
  %v7582 = vsel %vm5466, %v6878, 0.0
  %7583 = vadd.xlane.f32.xlu0 %v7582
  %v7584 = vpop.xlane.xlu0 %7583
  %v7585 = vsel %vm5466, %v6880, 0.0
  %7586 = vadd.xlane.f32.xlu0 %v7585
  %v7587 = vpop.xlane.xlu0 %7586
  %v7588 = vsel %vm5466, %v6882, 0.0
  %7589 = vadd.xlane.f32.xlu0 %v7588
  %v7590 = vpop.xlane.xlu0 %7589
  %v7591 = vsel %vm5466, %v6884, 0.0
  %7592 = vadd.xlane.f32.xlu0 %v7591
  %v7593 = vpop.xlane.xlu0 %7592
  %v7594 = vsel %vm5466, %v6886, 0.0
  %7595 = vadd.xlane.f32.xlu0 %v7594
  %v7596 = vpop.xlane.xlu0 %7595
  %v7597 = vsel %vm5466, %v6888, 0.0
  %7598 = vadd.xlane.f32.xlu0 %v7597
  %v7599 = vpop.xlane.xlu0 %7598
  %v7600 = vsel %vm5466, %v6890, 0.0
  %7601 = vadd.xlane.f32.xlu0 %v7600
  %v7602 = vpop.xlane.xlu0 %7601
  %v7603 = vsel %vm5466, %v6892, 0.0
  %7604 = vadd.xlane.f32.xlu0 %v7603
  %v7605 = vpop.xlane.xlu0 %7604
  %v7606 = vsel %vm5466, %v6894, 0.0
  %7607 = vadd.xlane.f32.xlu0 %v7606
  %v7608 = vpop.xlane.xlu0 %7607
  %v7609 = vsel %vm5466, %v6896, 0.0
  %7610 = vadd.xlane.f32.xlu0 %v7609
  %v7611 = vpop.xlane.xlu0 %7610
  %v7612 = vsel %vm5466, %v6898, 0.0
  %7613 = vadd.xlane.f32.xlu0 %v7612
  %v7614 = vpop.xlane.xlu0 %7613
  %v7615 = vsel %vm5466, %v6900, 0.0
  %7616 = vadd.xlane.f32.xlu0 %v7615
  %v7617 = vpop.xlane.xlu0 %7616
  %v7618 = vsel %vm5466, %v6902, 0.0
  %7619 = vadd.xlane.f32.xlu0 %v7618
  %v7620 = vpop.xlane.xlu0 %7619
  %v7621 = vsel %vm5466, %v6904, 0.0
  %7622 = vadd.xlane.f32.xlu0 %v7621
  %v7623 = vpop.xlane.xlu0 %7622
  %v7624 = vsel %vm5466, %v6906, 0.0
  %7625 = vadd.xlane.f32.xlu0 %v7624
  %v7626 = vpop.xlane.xlu0 %7625
  %v7627 = vsel %vm5466, %v6908, 0.0
  %7628 = vadd.xlane.f32.xlu0 %v7627
  %v7629 = vpop.xlane.xlu0 %7628
  %v7630 = vsel %vm5466, %v6910, 0.0
  %7631 = vadd.xlane.f32.xlu0 %v7630
  %v7632 = vpop.xlane.xlu0 %7631
  %v7633 = vsel %vm5466, %v6912, 0.0
  %7634 = vadd.xlane.f32.xlu0 %v7633
  %v7635 = vpop.xlane.xlu0 %7634
  %v7636 = vsel %vm5466, %v6914, 0.0
  %7637 = vadd.xlane.f32.xlu0 %v7636
  %v7638 = vpop.xlane.xlu0 %7637
  %v7639 = vsel %vm5466, %v6916, 0.0
  %7640 = vadd.xlane.f32.xlu0 %v7639
  %v7641 = vpop.xlane.xlu0 %7640
  %v7642 = vsel %vm5466, %v6918, 0.0
  %7643 = vadd.xlane.f32.xlu0 %v7642
  %v7644 = vpop.xlane.xlu0 %7643
  %v7645 = vsel %vm5466, %v6920, 0.0
  %7646 = vadd.xlane.f32.xlu0 %v7645
  %v7647 = vpop.xlane.xlu0 %7646
  %v7648 = vsel %vm5466, %v6922, 0.0
  %7649 = vadd.xlane.f32.xlu0 %v7648
  %v7650 = vpop.xlane.xlu0 %7649
  %v7651 = vsel %vm5466, %v6924, 0.0
  %7652 = vadd.xlane.f32.xlu0 %v7651
  %v7653 = vpop.xlane.xlu0 %7652
  %v7654 = vsel %vm5466, %v6926, 0.0
  %7655 = vadd.xlane.f32.xlu0 %v7654
  %v7656 = vpop.xlane.xlu0 %7655
  %v7657 = vsel %vm5466, %v6928, 0.0
  %7658 = vadd.xlane.f32.xlu0 %v7657
  %v7659 = vpop.xlane.xlu0 %7658
  %v7660 = vsel %vm5466, %v6930, 0.0
  %7661 = vadd.xlane.f32.xlu0 %v7660
  %v7662 = vpop.xlane.xlu0 %7661
  %v7663 = vsel %vm5466, %v6932, 0.0
  %7664 = vadd.xlane.f32.xlu0 %v7663
  %v7665 = vpop.xlane.xlu0 %7664
  %v7666 = vsel %vm5466, %v6934, 0.0
  %7667 = vadd.xlane.f32.xlu0 %v7666
  %v7668 = vpop.xlane.xlu0 %7667
  %v7669 = vsel %vm5466, %v6936, 0.0
  %7670 = vadd.xlane.f32.xlu0 %v7669
  %v7671 = vpop.xlane.xlu0 %7670
  %v7672 = vsel %vm5466, %v6938, 0.0
  %7673 = vadd.xlane.f32.xlu0 %v7672
  %v7674 = vpop.xlane.xlu0 %7673
  %v7675 = vsel %vm5466, %v6940, 0.0
  %7676 = vadd.xlane.f32.xlu0 %v7675
  %v7677 = vpop.xlane.xlu0 %7676
  %v7678 = vsel %vm5466, %v6942, 0.0
  %7679 = vadd.xlane.f32.xlu0 %v7678
  %v7680 = vpop.xlane.xlu0 %7679
  %v7681 = vsel %vm5466, %v6944, 0.0
  %7682 = vadd.xlane.f32.xlu0 %v7681
  %v7683 = vpop.xlane.xlu0 %7682
  %v7684 = vsel %vm5466, %v6946, 0.0
  %7685 = vadd.xlane.f32.xlu0 %v7684
  %v7686 = vpop.xlane.xlu0 %7685
  %v7687 = vsel %vm5466, %v6948, 0.0
  %7688 = vadd.xlane.f32.xlu0 %v7687
  %v7689 = vpop.xlane.xlu0 %7688
  %v7690 = vsel %vm5466, %v6950, 0.0
  %7691 = vadd.xlane.f32.xlu0 %v7690
  %v7692 = vpop.xlane.xlu0 %7691
  %v7693 = vsel %vm5466, %v6952, 0.0
  %7694 = vadd.xlane.f32.xlu0 %v7693
  %v7695 = vpop.xlane.xlu0 %7694
  %v7696 = vsel %vm5466, %v6954, 0.0
  %7697 = vadd.xlane.f32.xlu0 %v7696
  %v7698 = vpop.xlane.xlu0 %7697
  %v7699 = vsel %vm5466, %v6956, 0.0
  %7700 = vadd.xlane.f32.xlu0 %v7699
  %v7701 = vpop.xlane.xlu0 %7700
  %v7702 = vsel %vm5466, %v6958, 0.0
  %7703 = vadd.xlane.f32.xlu0 %v7702
  %v7704 = vpop.xlane.xlu0 %7703
  %v7705 = vsel %vm5466, %v6960, 0.0
  %7706 = vadd.xlane.f32.xlu0 %v7705
  %v7707 = vpop.xlane.xlu0 %7706
  %v7708 = vsel %vm5466, %v6962, 0.0
  %7709 = vadd.xlane.f32.xlu0 %v7708
  %v7710 = vpop.xlane.xlu0 %7709
  %v7711 = vsel %vm5466, %v6964, 0.0
  %7712 = vadd.xlane.f32.xlu0 %v7711
  %v7713 = vpop.xlane.xlu0 %7712
  %v7714 = vsel %vm5466, %v6966, 0.0
  %7715 = vadd.xlane.f32.xlu0 %v7714
  %v7716 = vpop.xlane.xlu0 %7715
  %v7717 = vsel %vm5466, %v6968, 0.0
  %7718 = vadd.xlane.f32.xlu0 %v7717
  %v7719 = vpop.xlane.xlu0 %7718
  %v7720 = vsel %vm5466, %v6970, 0.0
  %7721 = vadd.xlane.f32.xlu0 %v7720
  %v7722 = vpop.xlane.xlu0 %7721
  %v7723 = vsel %vm5466, %v6972, 0.0
  %7724 = vadd.xlane.f32.xlu0 %v7723
  %v7725 = vpop.xlane.xlu0 %7724
  %v7726 = vsel %vm5466, %v6974, 0.0
  %7727 = vadd.xlane.f32.xlu0 %v7726
  %v7728 = vpop.xlane.xlu0 %7727
  %v7729 = vsel %vm5466, %v6976, 0.0
  %7730 = vadd.xlane.f32.xlu0 %v7729
  %v7731 = vpop.xlane.xlu0 %7730
  %v7732 = vsel %vm5466, %v6978, 0.0
  %7733 = vadd.xlane.f32.xlu0 %v7732
  %v7734 = vpop.xlane.xlu0 %7733
  %v7735 = vsel %vm5466, %v6980, 0.0
  %7736 = vadd.xlane.f32.xlu0 %v7735
  %v7737 = vpop.xlane.xlu0 %7736
  %v7738 = vsel %vm5466, %v6982, 0.0
  %7739 = vadd.xlane.f32.xlu0 %v7738
  %v7740 = vpop.xlane.xlu0 %7739
  %v7741 = vsel %vm5466, %v6984, 0.0
  %7742 = vadd.xlane.f32.xlu0 %v7741
  %v7743 = vpop.xlane.xlu0 %7742
  %v7744 = vsel %vm5466, %v6986, 0.0
  %7745 = vadd.xlane.f32.xlu0 %v7744
  %v7746 = vpop.xlane.xlu0 %7745
  %v7747 = vsel %vm5466, %v6988, 0.0
  %7748 = vadd.xlane.f32.xlu0 %v7747
  %v7749 = vpop.xlane.xlu0 %7748
  %v7750 = vsel %vm5466, %v6990, 0.0
  %7751 = vadd.xlane.f32.xlu0 %v7750
  %v7752 = vpop.xlane.xlu0 %7751
  %v7753 = vsel %vm5466, %v6992, 0.0
  %7754 = vadd.xlane.f32.xlu0 %v7753
  %v7755 = vpop.xlane.xlu0 %7754
  %v7756 = vsel %vm5466, %v6994, 0.0
  %7757 = vadd.xlane.f32.xlu0 %v7756
  %v7758 = vpop.xlane.xlu0 %7757
  %v7759 = vsel %vm5466, %v6996, 0.0
  %7760 = vadd.xlane.f32.xlu0 %v7759
  %v7761 = vpop.xlane.xlu0 %7760
  %v7762 = vsel %vm5466, %v6998, 0.0
  %7763 = vadd.xlane.f32.xlu0 %v7762
  %v7764 = vpop.xlane.xlu0 %7763
  %v7765 = vsel %vm5466, %v7000, 0.0
  %7766 = vadd.xlane.f32.xlu0 %v7765
  %v7767 = vpop.xlane.xlu0 %7766
  %v7768 = vsel %vm5466, %v7002, 0.0
  %7769 = vadd.xlane.f32.xlu0 %v7768
  %v7770 = vpop.xlane.xlu0 %7769
  %v7771 = vrcp.pop %v7005
  %v7772 = vmul.f32 %v7005, %v7771
  %v7773 = vsub.f32 1.0, %v7772
  %v7774 = vmul.f32 %v7771, %v7773
  %v7775 = vadd.f32 %v7771, %v7774
  %vm7776 = vweird.f32 %v7005
  %vm7777 = vweird.f32 %v7771
  %vm7778 = vmor %vm7776, %vm7777
  %v7779 = vsel %vm7778, %v7771, %v7775
  %v7780 = vand.u32 2147483647, %v7005
  %vm7781 = vcmp.eq.f32.partialorder %v7780, 8.507059e+37
  %v7782 = vand.u32 %v7005, 2147483648
  %v7783 = vor.u32 1.1754944e-38, %v7782
  %v7784 = vsel %vm7781, %v7783, %v7779
  %v7785 = vmul.f32 %v6492, %v7784
  %v7786 = vrcp.pop %v7008
  %v7787 = vmul.f32 %v7008, %v7786
  %v7788 = vsub.f32 1.0, %v7787
  %v7789 = vmul.f32 %v7786, %v7788
  %v7790 = vadd.f32 %v7786, %v7789
  %vm7791 = vweird.f32 %v7008
  %vm7792 = vweird.f32 %v7786
  %vm7793 = vmor %vm7791, %vm7792
  %v7794 = vsel %vm7793, %v7786, %v7790
  %v7795 = vand.u32 2147483647, %v7008
  %vm7796 = vcmp.eq.f32.partialorder %v7795, 8.507059e+37
  %v7797 = vand.u32 %v7008, 2147483648
  %v7798 = vor.u32 1.1754944e-38, %v7797
  %v7799 = vsel %vm7796, %v7798, %v7794
  %v7800 = vmul.f32 %v6494, %v7799
  %v7801 = vrcp.pop %v7011
  %v7802 = vmul.f32 %v7011, %v7801
  %v7803 = vsub.f32 1.0, %v7802
  %v7804 = vmul.f32 %v7801, %v7803
  %v7805 = vadd.f32 %v7801, %v7804
  %vm7806 = vweird.f32 %v7011
  %vm7807 = vweird.f32 %v7801
  %vm7808 = vmor %vm7806, %vm7807
  %v7809 = vsel %vm7808, %v7801, %v7805
  %v7810 = vand.u32 2147483647, %v7011
  %vm7811 = vcmp.eq.f32.partialorder %v7810, 8.507059e+37
  %v7812 = vand.u32 %v7011, 2147483648
  %v7813 = vor.u32 1.1754944e-38, %v7812
  %v7814 = vsel %vm7811, %v7813, %v7809
  %v7815 = vmul.f32 %v6496, %v7814
  %v7816 = vrcp.pop %v7014
  %v7817 = vmul.f32 %v7014, %v7816
  %v7818 = vsub.f32 1.0, %v7817
  %v7819 = vmul.f32 %v7816, %v7818
  %v7820 = vadd.f32 %v7816, %v7819
  %vm7821 = vweird.f32 %v7014
  %vm7822 = vweird.f32 %v7816
  %vm7823 = vmor %vm7821, %vm7822
  %v7824 = vsel %vm7823, %v7816, %v7820
  %v7825 = vand.u32 2147483647, %v7014
  %vm7826 = vcmp.eq.f32.partialorder %v7825, 8.507059e+37
  %v7827 = vand.u32 %v7014, 2147483648
  %v7828 = vor.u32 1.1754944e-38, %v7827
  %v7829 = vsel %vm7826, %v7828, %v7824
  %v7830 = vmul.f32 %v6498, %v7829
  %v7831 = vrcp.pop %v7017
  %v7832 = vmul.f32 %v7017, %v7831
  %v7833 = vsub.f32 1.0, %v7832
  %v7834 = vmul.f32 %v7831, %v7833
  %v7835 = vadd.f32 %v7831, %v7834
  %vm7836 = vweird.f32 %v7017
  %vm7837 = vweird.f32 %v7831
  %vm7838 = vmor %vm7836, %vm7837
  %v7839 = vsel %vm7838, %v7831, %v7835
  %v7840 = vand.u32 2147483647, %v7017
  %vm7841 = vcmp.eq.f32.partialorder %v7840, 8.507059e+37
  %v7842 = vand.u32 %v7017, 2147483648
  %v7843 = vor.u32 1.1754944e-38, %v7842
  %v7844 = vsel %vm7841, %v7843, %v7839
  %v7845 = vmul.f32 %v6500, %v7844
  %v7846 = vrcp.pop %v7020
  %v7847 = vmul.f32 %v7020, %v7846
  %v7848 = vsub.f32 1.0, %v7847
  %v7849 = vmul.f32 %v7846, %v7848
  %v7850 = vadd.f32 %v7846, %v7849
  %vm7851 = vweird.f32 %v7020
  %vm7852 = vweird.f32 %v7846
  %vm7853 = vmor %vm7851, %vm7852
  %v7854 = vsel %vm7853, %v7846, %v7850
  %v7855 = vand.u32 2147483647, %v7020
  %vm7856 = vcmp.eq.f32.partialorder %v7855, 8.507059e+37
  %v7857 = vand.u32 %v7020, 2147483648
  %v7858 = vor.u32 1.1754944e-38, %v7857
  %v7859 = vsel %vm7856, %v7858, %v7854
  %v7860 = vmul.f32 %v6502, %v7859
  %v7861 = vrcp.pop %v7023
  %v7862 = vmul.f32 %v7023, %v7861
  %v7863 = vsub.f32 1.0, %v7862
  %v7864 = vmul.f32 %v7861, %v7863
  %v7865 = vadd.f32 %v7861, %v7864
  %vm7866 = vweird.f32 %v7023
  %vm7867 = vweird.f32 %v7861
  %vm7868 = vmor %vm7866, %vm7867
  %v7869 = vsel %vm7868, %v7861, %v7865
  %v7870 = vand.u32 2147483647, %v7023
  %vm7871 = vcmp.eq.f32.partialorder %v7870, 8.507059e+37
  %v7872 = vand.u32 %v7023, 2147483648
  %v7873 = vor.u32 1.1754944e-38, %v7872
  %v7874 = vsel %vm7871, %v7873, %v7869
  %v7875 = vmul.f32 %v6504, %v7874
  %v7876 = vrcp.pop %v7026
  %v7877 = vmul.f32 %v7026, %v7876
  %v7878 = vsub.f32 1.0, %v7877
  %v7879 = vmul.f32 %v7876, %v7878
  %v7880 = vadd.f32 %v7876, %v7879
  %vm7881 = vweird.f32 %v7026
  %vm7882 = vweird.f32 %v7876
  %vm7883 = vmor %vm7881, %vm7882
  %v7884 = vsel %vm7883, %v7876, %v7880
  %v7885 = vand.u32 2147483647, %v7026
  %vm7886 = vcmp.eq.f32.partialorder %v7885, 8.507059e+37
  %v7887 = vand.u32 %v7026, 2147483648
  %v7888 = vor.u32 1.1754944e-38, %v7887
  %v7889 = vsel %vm7886, %v7888, %v7884
  %v7890 = vmul.f32 %v6506, %v7889
  %v7891 = vrcp.pop %v7029
  %v7892 = vmul.f32 %v7029, %v7891
  %v7893 = vsub.f32 1.0, %v7892
  %v7894 = vmul.f32 %v7891, %v7893
  %v7895 = vadd.f32 %v7891, %v7894
  %vm7896 = vweird.f32 %v7029
  %vm7897 = vweird.f32 %v7891
  %vm7898 = vmor %vm7896, %vm7897
  %v7899 = vsel %vm7898, %v7891, %v7895
  %v7900 = vand.u32 2147483647, %v7029
  %vm7901 = vcmp.eq.f32.partialorder %v7900, 8.507059e+37
  %v7902 = vand.u32 %v7029, 2147483648
  %v7903 = vor.u32 1.1754944e-38, %v7902
  %v7904 = vsel %vm7901, %v7903, %v7899
  %v7905 = vmul.f32 %v6508, %v7904
  %v7906 = vrcp.pop %v7032
  %v7907 = vmul.f32 %v7032, %v7906
  %v7908 = vsub.f32 1.0, %v7907
  %v7909 = vmul.f32 %v7906, %v7908
  %v7910 = vadd.f32 %v7906, %v7909
  %vm7911 = vweird.f32 %v7032
  %vm7912 = vweird.f32 %v7906
  %vm7913 = vmor %vm7911, %vm7912
  %v7914 = vsel %vm7913, %v7906, %v7910
  %v7915 = vand.u32 2147483647, %v7032
  %vm7916 = vcmp.eq.f32.partialorder %v7915, 8.507059e+37
  %v7917 = vand.u32 %v7032, 2147483648
  %v7918 = vor.u32 1.1754944e-38, %v7917
  %v7919 = vsel %vm7916, %v7918, %v7914
  %v7920 = vmul.f32 %v6510, %v7919
  %v7921 = vrcp.pop %v7035
  %v7922 = vmul.f32 %v7035, %v7921
  %v7923 = vsub.f32 1.0, %v7922
  %v7924 = vmul.f32 %v7921, %v7923
  %v7925 = vadd.f32 %v7921, %v7924
  %vm7926 = vweird.f32 %v7035
  %vm7927 = vweird.f32 %v7921
  %vm7928 = vmor %vm7926, %vm7927
  %v7929 = vsel %vm7928, %v7921, %v7925
  %v7930 = vand.u32 2147483647, %v7035
  %vm7931 = vcmp.eq.f32.partialorder %v7930, 8.507059e+37
  %v7932 = vand.u32 %v7035, 2147483648
  %v7933 = vor.u32 1.1754944e-38, %v7932
  %v7934 = vsel %vm7931, %v7933, %v7929
  %v7935 = vmul.f32 %v6512, %v7934
  %v7936 = vrcp.pop %v7038
  %v7937 = vmul.f32 %v7038, %v7936
  %v7938 = vsub.f32 1.0, %v7937
  %v7939 = vmul.f32 %v7936, %v7938
  %v7940 = vadd.f32 %v7936, %v7939
  %vm7941 = vweird.f32 %v7038
  %vm7942 = vweird.f32 %v7936
  %vm7943 = vmor %vm7941, %vm7942
  %v7944 = vsel %vm7943, %v7936, %v7940
  %v7945 = vand.u32 2147483647, %v7038
  %vm7946 = vcmp.eq.f32.partialorder %v7945, 8.507059e+37
  %v7947 = vand.u32 %v7038, 2147483648
  %v7948 = vor.u32 1.1754944e-38, %v7947
  %v7949 = vsel %vm7946, %v7948, %v7944
  %v7950 = vmul.f32 %v6514, %v7949
  %v7951 = vrcp.pop %v7041
  %v7952 = vmul.f32 %v7041, %v7951
  %v7953 = vsub.f32 1.0, %v7952
  %v7954 = vmul.f32 %v7951, %v7953
  %v7955 = vadd.f32 %v7951, %v7954
  %vm7956 = vweird.f32 %v7041
  %vm7957 = vweird.f32 %v7951
  %vm7958 = vmor %vm7956, %vm7957
  %v7959 = vsel %vm7958, %v7951, %v7955
  %v7960 = vand.u32 2147483647, %v7041
  %vm7961 = vcmp.eq.f32.partialorder %v7960, 8.507059e+37
  %v7962 = vand.u32 %v7041, 2147483648
  %v7963 = vor.u32 1.1754944e-38, %v7962
  %v7964 = vsel %vm7961, %v7963, %v7959
  %v7965 = vmul.f32 %v6516, %v7964
  %v7966 = vrcp.pop %v7044
  %v7967 = vmul.f32 %v7044, %v7966
  %v7968 = vsub.f32 1.0, %v7967
  %v7969 = vmul.f32 %v7966, %v7968
  %v7970 = vadd.f32 %v7966, %v7969
  %vm7971 = vweird.f32 %v7044
  %vm7972 = vweird.f32 %v7966
  %vm7973 = vmor %vm7971, %vm7972
  %v7974 = vsel %vm7973, %v7966, %v7970
  %v7975 = vand.u32 2147483647, %v7044
  %vm7976 = vcmp.eq.f32.partialorder %v7975, 8.507059e+37
  %v7977 = vand.u32 %v7044, 2147483648
  %v7978 = vor.u32 1.1754944e-38, %v7977
  %v7979 = vsel %vm7976, %v7978, %v7974
  %v7980 = vmul.f32 %v6518, %v7979
  %v7981 = vrcp.pop %v7047
  %v7982 = vmul.f32 %v7047, %v7981
  %v7983 = vsub.f32 1.0, %v7982
  %v7984 = vmul.f32 %v7981, %v7983
  %v7985 = vadd.f32 %v7981, %v7984
  %vm7986 = vweird.f32 %v7047
  %vm7987 = vweird.f32 %v7981
  %vm7988 = vmor %vm7986, %vm7987
  %v7989 = vsel %vm7988, %v7981, %v7985
  %v7990 = vand.u32 2147483647, %v7047
  %vm7991 = vcmp.eq.f32.partialorder %v7990, 8.507059e+37
  %v7992 = vand.u32 %v7047, 2147483648
  %v7993 = vor.u32 1.1754944e-38, %v7992
  %v7994 = vsel %vm7991, %v7993, %v7989
  %v7995 = vmul.f32 %v6520, %v7994
  %v7996 = vrcp.pop %v7050
  %v7997 = vmul.f32 %v7050, %v7996
  %v7998 = vsub.f32 1.0, %v7997
  %v7999 = vmul.f32 %v7996, %v7998
  %v8000 = vadd.f32 %v7996, %v7999
  %vm8001 = vweird.f32 %v7050
  %vm8002 = vweird.f32 %v7996
  %vm8003 = vmor %vm8001, %vm8002
  %v8004 = vsel %vm8003, %v7996, %v8000
  %v8005 = vand.u32 2147483647, %v7050
  %vm8006 = vcmp.eq.f32.partialorder %v8005, 8.507059e+37
  %v8007 = vand.u32 %v7050, 2147483648
  %v8008 = vor.u32 1.1754944e-38, %v8007
  %v8009 = vsel %vm8006, %v8008, %v8004
  %v8010 = vmul.f32 %v6522, %v8009
  %v8011 = vrcp.pop %v7053
  %v8012 = vmul.f32 %v7053, %v8011
  %v8013 = vsub.f32 1.0, %v8012
  %v8014 = vmul.f32 %v8011, %v8013
  %v8015 = vadd.f32 %v8011, %v8014
  %vm8016 = vweird.f32 %v7053
  %vm8017 = vweird.f32 %v8011
  %vm8018 = vmor %vm8016, %vm8017
  %v8019 = vsel %vm8018, %v8011, %v8015
  %v8020 = vand.u32 2147483647, %v7053
  %vm8021 = vcmp.eq.f32.partialorder %v8020, 8.507059e+37
  %v8022 = vand.u32 %v7053, 2147483648
  %v8023 = vor.u32 1.1754944e-38, %v8022
  %v8024 = vsel %vm8021, %v8023, %v8019
  %v8025 = vmul.f32 %v6524, %v8024
  %v8026 = vrcp.pop %v7056
  %v8027 = vmul.f32 %v7056, %v8026
  %v8028 = vsub.f32 1.0, %v8027
  %v8029 = vmul.f32 %v8026, %v8028
  %v8030 = vadd.f32 %v8026, %v8029
  %vm8031 = vweird.f32 %v7056
  %vm8032 = vweird.f32 %v8026
  %vm8033 = vmor %vm8031, %vm8032
  %v8034 = vsel %vm8033, %v8026, %v8030
  %v8035 = vand.u32 2147483647, %v7056
  %vm8036 = vcmp.eq.f32.partialorder %v8035, 8.507059e+37
  %v8037 = vand.u32 %v7056, 2147483648
  %v8038 = vor.u32 1.1754944e-38, %v8037
  %v8039 = vsel %vm8036, %v8038, %v8034
  %v8040 = vmul.f32 %v6526, %v8039
  %v8041 = vrcp.pop %v7059
  %v8042 = vmul.f32 %v7059, %v8041
  %v8043 = vsub.f32 1.0, %v8042
  %v8044 = vmul.f32 %v8041, %v8043
  %v8045 = vadd.f32 %v8041, %v8044
  %vm8046 = vweird.f32 %v7059
  %vm8047 = vweird.f32 %v8041
  %vm8048 = vmor %vm8046, %vm8047
  %v8049 = vsel %vm8048, %v8041, %v8045
  %v8050 = vand.u32 2147483647, %v7059
  %vm8051 = vcmp.eq.f32.partialorder %v8050, 8.507059e+37
  %v8052 = vand.u32 %v7059, 2147483648
  %v8053 = vor.u32 1.1754944e-38, %v8052
  %v8054 = vsel %vm8051, %v8053, %v8049
  %v8055 = vmul.f32 %v6528, %v8054
  %v8056 = vrcp.pop %v7062
  %v8057 = vmul.f32 %v7062, %v8056
  %v8058 = vsub.f32 1.0, %v8057
  %v8059 = vmul.f32 %v8056, %v8058
  %v8060 = vadd.f32 %v8056, %v8059
  %vm8061 = vweird.f32 %v7062
  %vm8062 = vweird.f32 %v8056
  %vm8063 = vmor %vm8061, %vm8062
  %v8064 = vsel %vm8063, %v8056, %v8060
  %v8065 = vand.u32 2147483647, %v7062
  %vm8066 = vcmp.eq.f32.partialorder %v8065, 8.507059e+37
  %v8067 = vand.u32 %v7062, 2147483648
  %v8068 = vor.u32 1.1754944e-38, %v8067
  %v8069 = vsel %vm8066, %v8068, %v8064
  %v8070 = vmul.f32 %v6530, %v8069
  %v8071 = vrcp.pop %v7065
  %v8072 = vmul.f32 %v7065, %v8071
  %v8073 = vsub.f32 1.0, %v8072
  %v8074 = vmul.f32 %v8071, %v8073
  %v8075 = vadd.f32 %v8071, %v8074
  %vm8076 = vweird.f32 %v7065
  %vm8077 = vweird.f32 %v8071
  %vm8078 = vmor %vm8076, %vm8077
  %v8079 = vsel %vm8078, %v8071, %v8075
  %v8080 = vand.u32 2147483647, %v7065
  %vm8081 = vcmp.eq.f32.partialorder %v8080, 8.507059e+37
  %v8082 = vand.u32 %v7065, 2147483648
  %v8083 = vor.u32 1.1754944e-38, %v8082
  %v8084 = vsel %vm8081, %v8083, %v8079
  %v8085 = vmul.f32 %v6532, %v8084
  %v8086 = vrcp.pop %v7068
  %v8087 = vmul.f32 %v7068, %v8086
  %v8088 = vsub.f32 1.0, %v8087
  %v8089 = vmul.f32 %v8086, %v8088
  %v8090 = vadd.f32 %v8086, %v8089
  %vm8091 = vweird.f32 %v7068
  %vm8092 = vweird.f32 %v8086
  %vm8093 = vmor %vm8091, %vm8092
  %v8094 = vsel %vm8093, %v8086, %v8090
  %v8095 = vand.u32 2147483647, %v7068
  %vm8096 = vcmp.eq.f32.partialorder %v8095, 8.507059e+37
  %v8097 = vand.u32 %v7068, 2147483648
  %v8098 = vor.u32 1.1754944e-38, %v8097
  %v8099 = vsel %vm8096, %v8098, %v8094
  %v8100 = vmul.f32 %v6534, %v8099
  %v8101 = vrcp.pop %v7071
  %v8102 = vmul.f32 %v7071, %v8101
  %v8103 = vsub.f32 1.0, %v8102
  %v8104 = vmul.f32 %v8101, %v8103
  %v8105 = vadd.f32 %v8101, %v8104
  %vm8106 = vweird.f32 %v7071
  %vm8107 = vweird.f32 %v8101
  %vm8108 = vmor %vm8106, %vm8107
  %v8109 = vsel %vm8108, %v8101, %v8105
  %v8110 = vand.u32 2147483647, %v7071
  %vm8111 = vcmp.eq.f32.partialorder %v8110, 8.507059e+37
  %v8112 = vand.u32 %v7071, 2147483648
  %v8113 = vor.u32 1.1754944e-38, %v8112
  %v8114 = vsel %vm8111, %v8113, %v8109
  %v8115 = vmul.f32 %v6536, %v8114
  %v8116 = vrcp.pop %v7074
  %v8117 = vmul.f32 %v7074, %v8116
  %v8118 = vsub.f32 1.0, %v8117
  %v8119 = vmul.f32 %v8116, %v8118
  %v8120 = vadd.f32 %v8116, %v8119
  %vm8121 = vweird.f32 %v7074
  %vm8122 = vweird.f32 %v8116
  %vm8123 = vmor %vm8121, %vm8122
  %v8124 = vsel %vm8123, %v8116, %v8120
  %v8125 = vand.u32 2147483647, %v7074
  %vm8126 = vcmp.eq.f32.partialorder %v8125, 8.507059e+37
  %v8127 = vand.u32 %v7074, 2147483648
  %v8128 = vor.u32 1.1754944e-38, %v8127
  %v8129 = vsel %vm8126, %v8128, %v8124
  %v8130 = vmul.f32 %v6538, %v8129
  %v8131 = vrcp.pop %v7077
  %v8132 = vmul.f32 %v7077, %v8131
  %v8133 = vsub.f32 1.0, %v8132
  %v8134 = vmul.f32 %v8131, %v8133
  %v8135 = vadd.f32 %v8131, %v8134
  %vm8136 = vweird.f32 %v7077
  %vm8137 = vweird.f32 %v8131
  %vm8138 = vmor %vm8136, %vm8137
  %v8139 = vsel %vm8138, %v8131, %v8135
  %v8140 = vand.u32 2147483647, %v7077
  %vm8141 = vcmp.eq.f32.partialorder %v8140, 8.507059e+37
  %v8142 = vand.u32 %v7077, 2147483648
  %v8143 = vor.u32 1.1754944e-38, %v8142
  %v8144 = vsel %vm8141, %v8143, %v8139
  %v8145 = vmul.f32 %v6540, %v8144
  %v8146 = vrcp.pop %v7080
  %v8147 = vmul.f32 %v7080, %v8146
  %v8148 = vsub.f32 1.0, %v8147
  %v8149 = vmul.f32 %v8146, %v8148
  %v8150 = vadd.f32 %v8146, %v8149
  %vm8151 = vweird.f32 %v7080
  %vm8152 = vweird.f32 %v8146
  %vm8153 = vmor %vm8151, %vm8152
  %v8154 = vsel %vm8153, %v8146, %v8150
  %v8155 = vand.u32 2147483647, %v7080
  %vm8156 = vcmp.eq.f32.partialorder %v8155, 8.507059e+37
  %v8157 = vand.u32 %v7080, 2147483648
  %v8158 = vor.u32 1.1754944e-38, %v8157
  %v8159 = vsel %vm8156, %v8158, %v8154
  %v8160 = vmul.f32 %v6542, %v8159
  %v8161 = vrcp.pop %v7083
  %v8162 = vmul.f32 %v7083, %v8161
  %v8163 = vsub.f32 1.0, %v8162
  %v8164 = vmul.f32 %v8161, %v8163
  %v8165 = vadd.f32 %v8161, %v8164
  %vm8166 = vweird.f32 %v7083
  %vm8167 = vweird.f32 %v8161
  %vm8168 = vmor %vm8166, %vm8167
  %v8169 = vsel %vm8168, %v8161, %v8165
  %v8170 = vand.u32 2147483647, %v7083
  %vm8171 = vcmp.eq.f32.partialorder %v8170, 8.507059e+37
  %v8172 = vand.u32 %v7083, 2147483648
  %v8173 = vor.u32 1.1754944e-38, %v8172
  %v8174 = vsel %vm8171, %v8173, %v8169
  %v8175 = vmul.f32 %v6544, %v8174
  %v8176 = vrcp.pop %v7086
  %v8177 = vmul.f32 %v7086, %v8176
  %v8178 = vsub.f32 1.0, %v8177
  %v8179 = vmul.f32 %v8176, %v8178
  %v8180 = vadd.f32 %v8176, %v8179
  %vm8181 = vweird.f32 %v7086
  %vm8182 = vweird.f32 %v8176
  %vm8183 = vmor %vm8181, %vm8182
  %v8184 = vsel %vm8183, %v8176, %v8180
  %v8185 = vand.u32 2147483647, %v7086
  %vm8186 = vcmp.eq.f32.partialorder %v8185, 8.507059e+37
  %v8187 = vand.u32 %v7086, 2147483648
  %v8188 = vor.u32 1.1754944e-38, %v8187
  %v8189 = vsel %vm8186, %v8188, %v8184
  %v8190 = vmul.f32 %v6546, %v8189
  %v8191 = vrcp.pop %v7089
  %v8192 = vmul.f32 %v7089, %v8191
  %v8193 = vsub.f32 1.0, %v8192
  %v8194 = vmul.f32 %v8191, %v8193
  %v8195 = vadd.f32 %v8191, %v8194
  %vm8196 = vweird.f32 %v7089
  %vm8197 = vweird.f32 %v8191
  %vm8198 = vmor %vm8196, %vm8197
  %v8199 = vsel %vm8198, %v8191, %v8195
  %v8200 = vand.u32 2147483647, %v7089
  %vm8201 = vcmp.eq.f32.partialorder %v8200, 8.507059e+37
  %v8202 = vand.u32 %v7089, 2147483648
  %v8203 = vor.u32 1.1754944e-38, %v8202
  %v8204 = vsel %vm8201, %v8203, %v8199
  %v8205 = vmul.f32 %v6548, %v8204
  %v8206 = vrcp.pop %v7092
  %v8207 = vmul.f32 %v7092, %v8206
  %v8208 = vsub.f32 1.0, %v8207
  %v8209 = vmul.f32 %v8206, %v8208
  %v8210 = vadd.f32 %v8206, %v8209
  %vm8211 = vweird.f32 %v7092
  %vm8212 = vweird.f32 %v8206
  %vm8213 = vmor %vm8211, %vm8212
  %v8214 = vsel %vm8213, %v8206, %v8210
  %v8215 = vand.u32 2147483647, %v7092
  %vm8216 = vcmp.eq.f32.partialorder %v8215, 8.507059e+37
  %v8217 = vand.u32 %v7092, 2147483648
  %v8218 = vor.u32 1.1754944e-38, %v8217
  %v8219 = vsel %vm8216, %v8218, %v8214
  %v8220 = vmul.f32 %v6550, %v8219
  %v8221 = vrcp.pop %v7095
  %v8222 = vmul.f32 %v7095, %v8221
  %v8223 = vsub.f32 1.0, %v8222
  %v8224 = vmul.f32 %v8221, %v8223
  %v8225 = vadd.f32 %v8221, %v8224
  %vm8226 = vweird.f32 %v7095
  %vm8227 = vweird.f32 %v8221
  %vm8228 = vmor %vm8226, %vm8227
  %v8229 = vsel %vm8228, %v8221, %v8225
  %v8230 = vand.u32 2147483647, %v7095
  %vm8231 = vcmp.eq.f32.partialorder %v8230, 8.507059e+37
  %v8232 = vand.u32 %v7095, 2147483648
  %v8233 = vor.u32 1.1754944e-38, %v8232
  %v8234 = vsel %vm8231, %v8233, %v8229
  %v8235 = vmul.f32 %v6552, %v8234
  %v8236 = vrcp.pop %v7098
  %v8237 = vmul.f32 %v7098, %v8236
  %v8238 = vsub.f32 1.0, %v8237
  %v8239 = vmul.f32 %v8236, %v8238
  %v8240 = vadd.f32 %v8236, %v8239
  %vm8241 = vweird.f32 %v7098
  %vm8242 = vweird.f32 %v8236
  %vm8243 = vmor %vm8241, %vm8242
  %v8244 = vsel %vm8243, %v8236, %v8240
  %v8245 = vand.u32 2147483647, %v7098
  %vm8246 = vcmp.eq.f32.partialorder %v8245, 8.507059e+37
  %v8247 = vand.u32 %v7098, 2147483648
  %v8248 = vor.u32 1.1754944e-38, %v8247
  %v8249 = vsel %vm8246, %v8248, %v8244
  %v8250 = vmul.f32 %v6554, %v8249
  %v8251 = vrcp.pop %v7101
  %v8252 = vmul.f32 %v7101, %v8251
  %v8253 = vsub.f32 1.0, %v8252
  %v8254 = vmul.f32 %v8251, %v8253
  %v8255 = vadd.f32 %v8251, %v8254
  %vm8256 = vweird.f32 %v7101
  %vm8257 = vweird.f32 %v8251
  %vm8258 = vmor %vm8256, %vm8257
  %v8259 = vsel %vm8258, %v8251, %v8255
  %v8260 = vand.u32 2147483647, %v7101
  %vm8261 = vcmp.eq.f32.partialorder %v8260, 8.507059e+37
  %v8262 = vand.u32 %v7101, 2147483648
  %v8263 = vor.u32 1.1754944e-38, %v8262
  %v8264 = vsel %vm8261, %v8263, %v8259
  %v8265 = vmul.f32 %v6556, %v8264
  %v8266 = vrcp.pop %v7104
  %v8267 = vmul.f32 %v7104, %v8266
  %v8268 = vsub.f32 1.0, %v8267
  %v8269 = vmul.f32 %v8266, %v8268
  %v8270 = vadd.f32 %v8266, %v8269
  %vm8271 = vweird.f32 %v7104
  %vm8272 = vweird.f32 %v8266
  %vm8273 = vmor %vm8271, %vm8272
  %v8274 = vsel %vm8273, %v8266, %v8270
  %v8275 = vand.u32 2147483647, %v7104
  %vm8276 = vcmp.eq.f32.partialorder %v8275, 8.507059e+37
  %v8277 = vand.u32 %v7104, 2147483648
  %v8278 = vor.u32 1.1754944e-38, %v8277
  %v8279 = vsel %vm8276, %v8278, %v8274
  %v8280 = vmul.f32 %v6558, %v8279
  %v8281 = vrcp.pop %v7107
  %v8282 = vmul.f32 %v7107, %v8281
  %v8283 = vsub.f32 1.0, %v8282
  %v8284 = vmul.f32 %v8281, %v8283
  %v8285 = vadd.f32 %v8281, %v8284
  %vm8286 = vweird.f32 %v7107
  %vm8287 = vweird.f32 %v8281
  %vm8288 = vmor %vm8286, %vm8287
  %v8289 = vsel %vm8288, %v8281, %v8285
  %v8290 = vand.u32 2147483647, %v7107
  %vm8291 = vcmp.eq.f32.partialorder %v8290, 8.507059e+37
  %v8292 = vand.u32 %v7107, 2147483648
  %v8293 = vor.u32 1.1754944e-38, %v8292
  %v8294 = vsel %vm8291, %v8293, %v8289
  %v8295 = vmul.f32 %v6560, %v8294
  %v8296 = vrcp.pop %v7110
  %v8297 = vmul.f32 %v7110, %v8296
  %v8298 = vsub.f32 1.0, %v8297
  %v8299 = vmul.f32 %v8296, %v8298
  %v8300 = vadd.f32 %v8296, %v8299
  %vm8301 = vweird.f32 %v7110
  %vm8302 = vweird.f32 %v8296
  %vm8303 = vmor %vm8301, %vm8302
  %v8304 = vsel %vm8303, %v8296, %v8300
  %v8305 = vand.u32 2147483647, %v7110
  %vm8306 = vcmp.eq.f32.partialorder %v8305, 8.507059e+37
  %v8307 = vand.u32 %v7110, 2147483648
  %v8308 = vor.u32 1.1754944e-38, %v8307
  %v8309 = vsel %vm8306, %v8308, %v8304
  %v8310 = vmul.f32 %v6562, %v8309
  %v8311 = vrcp.pop %v7113
  %v8312 = vmul.f32 %v7113, %v8311
  %v8313 = vsub.f32 1.0, %v8312
  %v8314 = vmul.f32 %v8311, %v8313
  %v8315 = vadd.f32 %v8311, %v8314
  %vm8316 = vweird.f32 %v7113
  %vm8317 = vweird.f32 %v8311
  %vm8318 = vmor %vm8316, %vm8317
  %v8319 = vsel %vm8318, %v8311, %v8315
  %v8320 = vand.u32 2147483647, %v7113
  %vm8321 = vcmp.eq.f32.partialorder %v8320, 8.507059e+37
  %v8322 = vand.u32 %v7113, 2147483648
  %v8323 = vor.u32 1.1754944e-38, %v8322
  %v8324 = vsel %vm8321, %v8323, %v8319
  %v8325 = vmul.f32 %v6564, %v8324
  %v8326 = vrcp.pop %v7116
  %v8327 = vmul.f32 %v7116, %v8326
  %v8328 = vsub.f32 1.0, %v8327
  %v8329 = vmul.f32 %v8326, %v8328
  %v8330 = vadd.f32 %v8326, %v8329
  %vm8331 = vweird.f32 %v7116
  %vm8332 = vweird.f32 %v8326
  %vm8333 = vmor %vm8331, %vm8332
  %v8334 = vsel %vm8333, %v8326, %v8330
  %v8335 = vand.u32 2147483647, %v7116
  %vm8336 = vcmp.eq.f32.partialorder %v8335, 8.507059e+37
  %v8337 = vand.u32 %v7116, 2147483648
  %v8338 = vor.u32 1.1754944e-38, %v8337
  %v8339 = vsel %vm8336, %v8338, %v8334
  %v8340 = vmul.f32 %v6566, %v8339
  %v8341 = vrcp.pop %v7119
  %v8342 = vmul.f32 %v7119, %v8341
  %v8343 = vsub.f32 1.0, %v8342
  %v8344 = vmul.f32 %v8341, %v8343
  %v8345 = vadd.f32 %v8341, %v8344
  %vm8346 = vweird.f32 %v7119
  %vm8347 = vweird.f32 %v8341
  %vm8348 = vmor %vm8346, %vm8347
  %v8349 = vsel %vm8348, %v8341, %v8345
  %v8350 = vand.u32 2147483647, %v7119
  %vm8351 = vcmp.eq.f32.partialorder %v8350, 8.507059e+37
  %v8352 = vand.u32 %v7119, 2147483648
  %v8353 = vor.u32 1.1754944e-38, %v8352
  %v8354 = vsel %vm8351, %v8353, %v8349
  %v8355 = vmul.f32 %v6568, %v8354
  %v8356 = vrcp.pop %v7122
  %v8357 = vmul.f32 %v7122, %v8356
  %v8358 = vsub.f32 1.0, %v8357
  %v8359 = vmul.f32 %v8356, %v8358
  %v8360 = vadd.f32 %v8356, %v8359
  %vm8361 = vweird.f32 %v7122
  %vm8362 = vweird.f32 %v8356
  %vm8363 = vmor %vm8361, %vm8362
  %v8364 = vsel %vm8363, %v8356, %v8360
  %v8365 = vand.u32 2147483647, %v7122
  %vm8366 = vcmp.eq.f32.partialorder %v8365, 8.507059e+37
  %v8367 = vand.u32 %v7122, 2147483648
  %v8368 = vor.u32 1.1754944e-38, %v8367
  %v8369 = vsel %vm8366, %v8368, %v8364
  %v8370 = vmul.f32 %v6570, %v8369
  %v8371 = vrcp.pop %v7125
  %v8372 = vmul.f32 %v7125, %v8371
  %v8373 = vsub.f32 1.0, %v8372
  %v8374 = vmul.f32 %v8371, %v8373
  %v8375 = vadd.f32 %v8371, %v8374
  %vm8376 = vweird.f32 %v7125
  %vm8377 = vweird.f32 %v8371
  %vm8378 = vmor %vm8376, %vm8377
  %v8379 = vsel %vm8378, %v8371, %v8375
  %v8380 = vand.u32 2147483647, %v7125
  %vm8381 = vcmp.eq.f32.partialorder %v8380, 8.507059e+37
  %v8382 = vand.u32 %v7125, 2147483648
  %v8383 = vor.u32 1.1754944e-38, %v8382
  %v8384 = vsel %vm8381, %v8383, %v8379
  %v8385 = vmul.f32 %v6572, %v8384
  %v8386 = vrcp.pop %v7128
  %v8387 = vmul.f32 %v7128, %v8386
  %v8388 = vsub.f32 1.0, %v8387
  %v8389 = vmul.f32 %v8386, %v8388
  %v8390 = vadd.f32 %v8386, %v8389
  %vm8391 = vweird.f32 %v7128
  %vm8392 = vweird.f32 %v8386
  %vm8393 = vmor %vm8391, %vm8392
  %v8394 = vsel %vm8393, %v8386, %v8390
  %v8395 = vand.u32 2147483647, %v7128
  %vm8396 = vcmp.eq.f32.partialorder %v8395, 8.507059e+37
  %v8397 = vand.u32 %v7128, 2147483648
  %v8398 = vor.u32 1.1754944e-38, %v8397
  %v8399 = vsel %vm8396, %v8398, %v8394
  %v8400 = vmul.f32 %v6574, %v8399
  %v8401 = vrcp.pop %v7131
  %v8402 = vmul.f32 %v7131, %v8401
  %v8403 = vsub.f32 1.0, %v8402
  %v8404 = vmul.f32 %v8401, %v8403
  %v8405 = vadd.f32 %v8401, %v8404
  %vm8406 = vweird.f32 %v7131
  %vm8407 = vweird.f32 %v8401
  %vm8408 = vmor %vm8406, %vm8407
  %v8409 = vsel %vm8408, %v8401, %v8405
  %v8410 = vand.u32 2147483647, %v7131
  %vm8411 = vcmp.eq.f32.partialorder %v8410, 8.507059e+37
  %v8412 = vand.u32 %v7131, 2147483648
  %v8413 = vor.u32 1.1754944e-38, %v8412
  %v8414 = vsel %vm8411, %v8413, %v8409
  %v8415 = vmul.f32 %v6576, %v8414
  %v8416 = vrcp.pop %v7134
  %v8417 = vmul.f32 %v7134, %v8416
  %v8418 = vsub.f32 1.0, %v8417
  %v8419 = vmul.f32 %v8416, %v8418
  %v8420 = vadd.f32 %v8416, %v8419
  %vm8421 = vweird.f32 %v7134
  %vm8422 = vweird.f32 %v8416
  %vm8423 = vmor %vm8421, %vm8422
  %v8424 = vsel %vm8423, %v8416, %v8420
  %v8425 = vand.u32 2147483647, %v7134
  %vm8426 = vcmp.eq.f32.partialorder %v8425, 8.507059e+37
  %v8427 = vand.u32 %v7134, 2147483648
  %v8428 = vor.u32 1.1754944e-38, %v8427
  %v8429 = vsel %vm8426, %v8428, %v8424
  %v8430 = vmul.f32 %v6578, %v8429
  %v8431 = vrcp.pop %v7137
  %v8432 = vmul.f32 %v7137, %v8431
  %v8433 = vsub.f32 1.0, %v8432
  %v8434 = vmul.f32 %v8431, %v8433
  %v8435 = vadd.f32 %v8431, %v8434
  %vm8436 = vweird.f32 %v7137
  %vm8437 = vweird.f32 %v8431
  %vm8438 = vmor %vm8436, %vm8437
  %v8439 = vsel %vm8438, %v8431, %v8435
  %v8440 = vand.u32 2147483647, %v7137
  %vm8441 = vcmp.eq.f32.partialorder %v8440, 8.507059e+37
  %v8442 = vand.u32 %v7137, 2147483648
  %v8443 = vor.u32 1.1754944e-38, %v8442
  %v8444 = vsel %vm8441, %v8443, %v8439
  %v8445 = vmul.f32 %v6580, %v8444
  %v8446 = vrcp.pop %v7140
  %v8447 = vmul.f32 %v7140, %v8446
  %v8448 = vsub.f32 1.0, %v8447
  %v8449 = vmul.f32 %v8446, %v8448
  %v8450 = vadd.f32 %v8446, %v8449
  %vm8451 = vweird.f32 %v7140
  %vm8452 = vweird.f32 %v8446
  %vm8453 = vmor %vm8451, %vm8452
  %v8454 = vsel %vm8453, %v8446, %v8450
  %v8455 = vand.u32 2147483647, %v7140
  %vm8456 = vcmp.eq.f32.partialorder %v8455, 8.507059e+37
  %v8457 = vand.u32 %v7140, 2147483648
  %v8458 = vor.u32 1.1754944e-38, %v8457
  %v8459 = vsel %vm8456, %v8458, %v8454
  %v8460 = vmul.f32 %v6582, %v8459
  %v8461 = vrcp.pop %v7143
  %v8462 = vmul.f32 %v7143, %v8461
  %v8463 = vsub.f32 1.0, %v8462
  %v8464 = vmul.f32 %v8461, %v8463
  %v8465 = vadd.f32 %v8461, %v8464
  %vm8466 = vweird.f32 %v7143
  %vm8467 = vweird.f32 %v8461
  %vm8468 = vmor %vm8466, %vm8467
  %v8469 = vsel %vm8468, %v8461, %v8465
  %v8470 = vand.u32 2147483647, %v7143
  %vm8471 = vcmp.eq.f32.partialorder %v8470, 8.507059e+37
  %v8472 = vand.u32 %v7143, 2147483648
  %v8473 = vor.u32 1.1754944e-38, %v8472
  %v8474 = vsel %vm8471, %v8473, %v8469
  %v8475 = vmul.f32 %v6584, %v8474
  %v8476 = vrcp.pop %v7146
  %v8477 = vmul.f32 %v7146, %v8476
  %v8478 = vsub.f32 1.0, %v8477
  %v8479 = vmul.f32 %v8476, %v8478
  %v8480 = vadd.f32 %v8476, %v8479
  %vm8481 = vweird.f32 %v7146
  %vm8482 = vweird.f32 %v8476
  %vm8483 = vmor %vm8481, %vm8482
  %v8484 = vsel %vm8483, %v8476, %v8480
  %v8485 = vand.u32 2147483647, %v7146
  %vm8486 = vcmp.eq.f32.partialorder %v8485, 8.507059e+37
  %v8487 = vand.u32 %v7146, 2147483648
  %v8488 = vor.u32 1.1754944e-38, %v8487
  %v8489 = vsel %vm8486, %v8488, %v8484
  %v8490 = vmul.f32 %v6586, %v8489
  %v8491 = vrcp.pop %v7149
  %v8492 = vmul.f32 %v7149, %v8491
  %v8493 = vsub.f32 1.0, %v8492
  %v8494 = vmul.f32 %v8491, %v8493
  %v8495 = vadd.f32 %v8491, %v8494
  %vm8496 = vweird.f32 %v7149
  %vm8497 = vweird.f32 %v8491
  %vm8498 = vmor %vm8496, %vm8497
  %v8499 = vsel %vm8498, %v8491, %v8495
  %v8500 = vand.u32 2147483647, %v7149
  %vm8501 = vcmp.eq.f32.partialorder %v8500, 8.507059e+37
  %v8502 = vand.u32 %v7149, 2147483648
  %v8503 = vor.u32 1.1754944e-38, %v8502
  %v8504 = vsel %vm8501, %v8503, %v8499
  %v8505 = vmul.f32 %v6588, %v8504
  %v8506 = vrcp.pop %v7152
  %v8507 = vmul.f32 %v7152, %v8506
  %v8508 = vsub.f32 1.0, %v8507
  %v8509 = vmul.f32 %v8506, %v8508
  %v8510 = vadd.f32 %v8506, %v8509
  %vm8511 = vweird.f32 %v7152
  %vm8512 = vweird.f32 %v8506
  %vm8513 = vmor %vm8511, %vm8512
  %v8514 = vsel %vm8513, %v8506, %v8510
  %v8515 = vand.u32 2147483647, %v7152
  %vm8516 = vcmp.eq.f32.partialorder %v8515, 8.507059e+37
  %v8517 = vand.u32 %v7152, 2147483648
  %v8518 = vor.u32 1.1754944e-38, %v8517
  %v8519 = vsel %vm8516, %v8518, %v8514
  %v8520 = vmul.f32 %v6590, %v8519
  %v8521 = vrcp.pop %v7155
  %v8522 = vmul.f32 %v7155, %v8521
  %v8523 = vsub.f32 1.0, %v8522
  %v8524 = vmul.f32 %v8521, %v8523
  %v8525 = vadd.f32 %v8521, %v8524
  %vm8526 = vweird.f32 %v7155
  %vm8527 = vweird.f32 %v8521
  %vm8528 = vmor %vm8526, %vm8527
  %v8529 = vsel %vm8528, %v8521, %v8525
  %v8530 = vand.u32 2147483647, %v7155
  %vm8531 = vcmp.eq.f32.partialorder %v8530, 8.507059e+37
  %v8532 = vand.u32 %v7155, 2147483648
  %v8533 = vor.u32 1.1754944e-38, %v8532
  %v8534 = vsel %vm8531, %v8533, %v8529
  %v8535 = vmul.f32 %v6592, %v8534
  %v8536 = vrcp.pop %v7158
  %v8537 = vmul.f32 %v7158, %v8536
  %v8538 = vsub.f32 1.0, %v8537
  %v8539 = vmul.f32 %v8536, %v8538
  %v8540 = vadd.f32 %v8536, %v8539
  %vm8541 = vweird.f32 %v7158
  %vm8542 = vweird.f32 %v8536
  %vm8543 = vmor %vm8541, %vm8542
  %v8544 = vsel %vm8543, %v8536, %v8540
  %v8545 = vand.u32 2147483647, %v7158
  %vm8546 = vcmp.eq.f32.partialorder %v8545, 8.507059e+37
  %v8547 = vand.u32 %v7158, 2147483648
  %v8548 = vor.u32 1.1754944e-38, %v8547
  %v8549 = vsel %vm8546, %v8548, %v8544
  %v8550 = vmul.f32 %v6594, %v8549
  %v8551 = vrcp.pop %v7161
  %v8552 = vmul.f32 %v7161, %v8551
  %v8553 = vsub.f32 1.0, %v8552
  %v8554 = vmul.f32 %v8551, %v8553
  %v8555 = vadd.f32 %v8551, %v8554
  %vm8556 = vweird.f32 %v7161
  %vm8557 = vweird.f32 %v8551
  %vm8558 = vmor %vm8556, %vm8557
  %v8559 = vsel %vm8558, %v8551, %v8555
  %v8560 = vand.u32 2147483647, %v7161
  %vm8561 = vcmp.eq.f32.partialorder %v8560, 8.507059e+37
  %v8562 = vand.u32 %v7161, 2147483648
  %v8563 = vor.u32 1.1754944e-38, %v8562
  %v8564 = vsel %vm8561, %v8563, %v8559
  %v8565 = vmul.f32 %v6596, %v8564
  %v8566 = vrcp.pop %v7164
  %v8567 = vmul.f32 %v7164, %v8566
  %v8568 = vsub.f32 1.0, %v8567
  %v8569 = vmul.f32 %v8566, %v8568
  %v8570 = vadd.f32 %v8566, %v8569
  %vm8571 = vweird.f32 %v7164
  %vm8572 = vweird.f32 %v8566
  %vm8573 = vmor %vm8571, %vm8572
  %v8574 = vsel %vm8573, %v8566, %v8570
  %v8575 = vand.u32 2147483647, %v7164
  %vm8576 = vcmp.eq.f32.partialorder %v8575, 8.507059e+37
  %v8577 = vand.u32 %v7164, 2147483648
  %v8578 = vor.u32 1.1754944e-38, %v8577
  %v8579 = vsel %vm8576, %v8578, %v8574
  %v8580 = vmul.f32 %v6598, %v8579
  %v8581 = vrcp.pop %v7167
  %v8582 = vmul.f32 %v7167, %v8581
  %v8583 = vsub.f32 1.0, %v8582
  %v8584 = vmul.f32 %v8581, %v8583
  %v8585 = vadd.f32 %v8581, %v8584
  %vm8586 = vweird.f32 %v7167
  %vm8587 = vweird.f32 %v8581
  %vm8588 = vmor %vm8586, %vm8587
  %v8589 = vsel %vm8588, %v8581, %v8585
  %v8590 = vand.u32 2147483647, %v7167
  %vm8591 = vcmp.eq.f32.partialorder %v8590, 8.507059e+37
  %v8592 = vand.u32 %v7167, 2147483648
  %v8593 = vor.u32 1.1754944e-38, %v8592
  %v8594 = vsel %vm8591, %v8593, %v8589
  %v8595 = vmul.f32 %v6600, %v8594
  %v8596 = vrcp.pop %v7170
  %v8597 = vmul.f32 %v7170, %v8596
  %v8598 = vsub.f32 1.0, %v8597
  %v8599 = vmul.f32 %v8596, %v8598
  %v8600 = vadd.f32 %v8596, %v8599
  %vm8601 = vweird.f32 %v7170
  %vm8602 = vweird.f32 %v8596
  %vm8603 = vmor %vm8601, %vm8602
  %v8604 = vsel %vm8603, %v8596, %v8600
  %v8605 = vand.u32 2147483647, %v7170
  %vm8606 = vcmp.eq.f32.partialorder %v8605, 8.507059e+37
  %v8607 = vand.u32 %v7170, 2147483648
  %v8608 = vor.u32 1.1754944e-38, %v8607
  %v8609 = vsel %vm8606, %v8608, %v8604
  %v8610 = vmul.f32 %v6602, %v8609
  %v8611 = vrcp.pop %v7173
  %v8612 = vmul.f32 %v7173, %v8611
  %v8613 = vsub.f32 1.0, %v8612
  %v8614 = vmul.f32 %v8611, %v8613
  %v8615 = vadd.f32 %v8611, %v8614
  %vm8616 = vweird.f32 %v7173
  %vm8617 = vweird.f32 %v8611
  %vm8618 = vmor %vm8616, %vm8617
  %v8619 = vsel %vm8618, %v8611, %v8615
  %v8620 = vand.u32 2147483647, %v7173
  %vm8621 = vcmp.eq.f32.partialorder %v8620, 8.507059e+37
  %v8622 = vand.u32 %v7173, 2147483648
  %v8623 = vor.u32 1.1754944e-38, %v8622
  %v8624 = vsel %vm8621, %v8623, %v8619
  %v8625 = vmul.f32 %v6604, %v8624
  %v8626 = vrcp.pop %v7176
  %v8627 = vmul.f32 %v7176, %v8626
  %v8628 = vsub.f32 1.0, %v8627
  %v8629 = vmul.f32 %v8626, %v8628
  %v8630 = vadd.f32 %v8626, %v8629
  %vm8631 = vweird.f32 %v7176
  %vm8632 = vweird.f32 %v8626
  %vm8633 = vmor %vm8631, %vm8632
  %v8634 = vsel %vm8633, %v8626, %v8630
  %v8635 = vand.u32 2147483647, %v7176
  %vm8636 = vcmp.eq.f32.partialorder %v8635, 8.507059e+37
  %v8637 = vand.u32 %v7176, 2147483648
  %v8638 = vor.u32 1.1754944e-38, %v8637
  %v8639 = vsel %vm8636, %v8638, %v8634
  %v8640 = vmul.f32 %v6606, %v8639
  %v8641 = vrcp.pop %v7179
  %v8642 = vmul.f32 %v7179, %v8641
  %v8643 = vsub.f32 1.0, %v8642
  %v8644 = vmul.f32 %v8641, %v8643
  %v8645 = vadd.f32 %v8641, %v8644
  %vm8646 = vweird.f32 %v7179
  %vm8647 = vweird.f32 %v8641
  %vm8648 = vmor %vm8646, %vm8647
  %v8649 = vsel %vm8648, %v8641, %v8645
  %v8650 = vand.u32 2147483647, %v7179
  %vm8651 = vcmp.eq.f32.partialorder %v8650, 8.507059e+37
  %v8652 = vand.u32 %v7179, 2147483648
  %v8653 = vor.u32 1.1754944e-38, %v8652
  %v8654 = vsel %vm8651, %v8653, %v8649
  %v8655 = vmul.f32 %v6608, %v8654
  %v8656 = vrcp.pop %v7182
  %v8657 = vmul.f32 %v7182, %v8656
  %v8658 = vsub.f32 1.0, %v8657
  %v8659 = vmul.f32 %v8656, %v8658
  %v8660 = vadd.f32 %v8656, %v8659
  %vm8661 = vweird.f32 %v7182
  %vm8662 = vweird.f32 %v8656
  %vm8663 = vmor %vm8661, %vm8662
  %v8664 = vsel %vm8663, %v8656, %v8660
  %v8665 = vand.u32 2147483647, %v7182
  %vm8666 = vcmp.eq.f32.partialorder %v8665, 8.507059e+37
  %v8667 = vand.u32 %v7182, 2147483648
  %v8668 = vor.u32 1.1754944e-38, %v8667
  %v8669 = vsel %vm8666, %v8668, %v8664
  %v8670 = vmul.f32 %v6610, %v8669
  %v8671 = vrcp.pop %v7185
  %v8672 = vmul.f32 %v7185, %v8671
  %v8673 = vsub.f32 1.0, %v8672
  %v8674 = vmul.f32 %v8671, %v8673
  %v8675 = vadd.f32 %v8671, %v8674
  %vm8676 = vweird.f32 %v7185
  %vm8677 = vweird.f32 %v8671
  %vm8678 = vmor %vm8676, %vm8677
  %v8679 = vsel %vm8678, %v8671, %v8675
  %v8680 = vand.u32 2147483647, %v7185
  %vm8681 = vcmp.eq.f32.partialorder %v8680, 8.507059e+37
  %v8682 = vand.u32 %v7185, 2147483648
  %v8683 = vor.u32 1.1754944e-38, %v8682
  %v8684 = vsel %vm8681, %v8683, %v8679
  %v8685 = vmul.f32 %v6612, %v8684
  %v8686 = vrcp.pop %v7188
  %v8687 = vmul.f32 %v7188, %v8686
  %v8688 = vsub.f32 1.0, %v8687
  %v8689 = vmul.f32 %v8686, %v8688
  %v8690 = vadd.f32 %v8686, %v8689
  %vm8691 = vweird.f32 %v7188
  %vm8692 = vweird.f32 %v8686
  %vm8693 = vmor %vm8691, %vm8692
  %v8694 = vsel %vm8693, %v8686, %v8690
  %v8695 = vand.u32 2147483647, %v7188
  %vm8696 = vcmp.eq.f32.partialorder %v8695, 8.507059e+37
  %v8697 = vand.u32 %v7188, 2147483648
  %v8698 = vor.u32 1.1754944e-38, %v8697
  %v8699 = vsel %vm8696, %v8698, %v8694
  %v8700 = vmul.f32 %v6614, %v8699
  %v8701 = vrcp.pop %v7191
  %v8702 = vmul.f32 %v7191, %v8701
  %v8703 = vsub.f32 1.0, %v8702
  %v8704 = vmul.f32 %v8701, %v8703
  %v8705 = vadd.f32 %v8701, %v8704
  %vm8706 = vweird.f32 %v7191
  %vm8707 = vweird.f32 %v8701
  %vm8708 = vmor %vm8706, %vm8707
  %v8709 = vsel %vm8708, %v8701, %v8705
  %v8710 = vand.u32 2147483647, %v7191
  %vm8711 = vcmp.eq.f32.partialorder %v8710, 8.507059e+37
  %v8712 = vand.u32 %v7191, 2147483648
  %v8713 = vor.u32 1.1754944e-38, %v8712
  %v8714 = vsel %vm8711, %v8713, %v8709
  %v8715 = vmul.f32 %v6616, %v8714
  %v8716 = vrcp.pop %v7194
  %v8717 = vmul.f32 %v7194, %v8716
  %v8718 = vsub.f32 1.0, %v8717
  %v8719 = vmul.f32 %v8716, %v8718
  %v8720 = vadd.f32 %v8716, %v8719
  %vm8721 = vweird.f32 %v7194
  %vm8722 = vweird.f32 %v8716
  %vm8723 = vmor %vm8721, %vm8722
  %v8724 = vsel %vm8723, %v8716, %v8720
  %v8725 = vand.u32 2147483647, %v7194
  %vm8726 = vcmp.eq.f32.partialorder %v8725, 8.507059e+37
  %v8727 = vand.u32 %v7194, 2147483648
  %v8728 = vor.u32 1.1754944e-38, %v8727
  %v8729 = vsel %vm8726, %v8728, %v8724
  %v8730 = vmul.f32 %v6618, %v8729
  %v8731 = vrcp.pop %v7197
  %v8732 = vmul.f32 %v7197, %v8731
  %v8733 = vsub.f32 1.0, %v8732
  %v8734 = vmul.f32 %v8731, %v8733
  %v8735 = vadd.f32 %v8731, %v8734
  %vm8736 = vweird.f32 %v7197
  %vm8737 = vweird.f32 %v8731
  %vm8738 = vmor %vm8736, %vm8737
  %v8739 = vsel %vm8738, %v8731, %v8735
  %v8740 = vand.u32 2147483647, %v7197
  %vm8741 = vcmp.eq.f32.partialorder %v8740, 8.507059e+37
  %v8742 = vand.u32 %v7197, 2147483648
  %v8743 = vor.u32 1.1754944e-38, %v8742
  %v8744 = vsel %vm8741, %v8743, %v8739
  %v8745 = vmul.f32 %v6620, %v8744
  %v8746 = vrcp.pop %v7200
  %v8747 = vmul.f32 %v7200, %v8746
  %v8748 = vsub.f32 1.0, %v8747
  %v8749 = vmul.f32 %v8746, %v8748
  %v8750 = vadd.f32 %v8746, %v8749
  %vm8751 = vweird.f32 %v7200
  %vm8752 = vweird.f32 %v8746
  %vm8753 = vmor %vm8751, %vm8752
  %v8754 = vsel %vm8753, %v8746, %v8750
  %v8755 = vand.u32 2147483647, %v7200
  %vm8756 = vcmp.eq.f32.partialorder %v8755, 8.507059e+37
  %v8757 = vand.u32 %v7200, 2147483648
  %v8758 = vor.u32 1.1754944e-38, %v8757
  %v8759 = vsel %vm8756, %v8758, %v8754
  %v8760 = vmul.f32 %v6622, %v8759
  %v8761 = vrcp.pop %v7203
  %v8762 = vmul.f32 %v7203, %v8761
  %v8763 = vsub.f32 1.0, %v8762
  %v8764 = vmul.f32 %v8761, %v8763
  %v8765 = vadd.f32 %v8761, %v8764
  %vm8766 = vweird.f32 %v7203
  %vm8767 = vweird.f32 %v8761
  %vm8768 = vmor %vm8766, %vm8767
  %v8769 = vsel %vm8768, %v8761, %v8765
  %v8770 = vand.u32 2147483647, %v7203
  %vm8771 = vcmp.eq.f32.partialorder %v8770, 8.507059e+37
  %v8772 = vand.u32 %v7203, 2147483648
  %v8773 = vor.u32 1.1754944e-38, %v8772
  %v8774 = vsel %vm8771, %v8773, %v8769
  %v8775 = vmul.f32 %v6624, %v8774
  %v8776 = vrcp.pop %v7206
  %v8777 = vmul.f32 %v7206, %v8776
  %v8778 = vsub.f32 1.0, %v8777
  %v8779 = vmul.f32 %v8776, %v8778
  %v8780 = vadd.f32 %v8776, %v8779
  %vm8781 = vweird.f32 %v7206
  %vm8782 = vweird.f32 %v8776
  %vm8783 = vmor %vm8781, %vm8782
  %v8784 = vsel %vm8783, %v8776, %v8780
  %v8785 = vand.u32 2147483647, %v7206
  %vm8786 = vcmp.eq.f32.partialorder %v8785, 8.507059e+37
  %v8787 = vand.u32 %v7206, 2147483648
  %v8788 = vor.u32 1.1754944e-38, %v8787
  %v8789 = vsel %vm8786, %v8788, %v8784
  %v8790 = vmul.f32 %v6626, %v8789
  %v8791 = vrcp.pop %v7209
  %v8792 = vmul.f32 %v7209, %v8791
  %v8793 = vsub.f32 1.0, %v8792
  %v8794 = vmul.f32 %v8791, %v8793
  %v8795 = vadd.f32 %v8791, %v8794
  %vm8796 = vweird.f32 %v7209
  %vm8797 = vweird.f32 %v8791
  %vm8798 = vmor %vm8796, %vm8797
  %v8799 = vsel %vm8798, %v8791, %v8795
  %v8800 = vand.u32 2147483647, %v7209
  %vm8801 = vcmp.eq.f32.partialorder %v8800, 8.507059e+37
  %v8802 = vand.u32 %v7209, 2147483648
  %v8803 = vor.u32 1.1754944e-38, %v8802
  %v8804 = vsel %vm8801, %v8803, %v8799
  %v8805 = vmul.f32 %v6628, %v8804
  %v8806 = vrcp.pop %v7212
  %v8807 = vmul.f32 %v7212, %v8806
  %v8808 = vsub.f32 1.0, %v8807
  %v8809 = vmul.f32 %v8806, %v8808
  %v8810 = vadd.f32 %v8806, %v8809
  %vm8811 = vweird.f32 %v7212
  %vm8812 = vweird.f32 %v8806
  %vm8813 = vmor %vm8811, %vm8812
  %v8814 = vsel %vm8813, %v8806, %v8810
  %v8815 = vand.u32 2147483647, %v7212
  %vm8816 = vcmp.eq.f32.partialorder %v8815, 8.507059e+37
  %v8817 = vand.u32 %v7212, 2147483648
  %v8818 = vor.u32 1.1754944e-38, %v8817
  %v8819 = vsel %vm8816, %v8818, %v8814
  %v8820 = vmul.f32 %v6630, %v8819
  %v8821 = vrcp.pop %v7215
  %v8822 = vmul.f32 %v7215, %v8821
  %v8823 = vsub.f32 1.0, %v8822
  %v8824 = vmul.f32 %v8821, %v8823
  %v8825 = vadd.f32 %v8821, %v8824
  %vm8826 = vweird.f32 %v7215
  %vm8827 = vweird.f32 %v8821
  %vm8828 = vmor %vm8826, %vm8827
  %v8829 = vsel %vm8828, %v8821, %v8825
  %v8830 = vand.u32 2147483647, %v7215
  %vm8831 = vcmp.eq.f32.partialorder %v8830, 8.507059e+37
  %v8832 = vand.u32 %v7215, 2147483648
  %v8833 = vor.u32 1.1754944e-38, %v8832
  %v8834 = vsel %vm8831, %v8833, %v8829
  %v8835 = vmul.f32 %v6632, %v8834
  %v8836 = vrcp.pop %v7218
  %v8837 = vmul.f32 %v7218, %v8836
  %v8838 = vsub.f32 1.0, %v8837
  %v8839 = vmul.f32 %v8836, %v8838
  %v8840 = vadd.f32 %v8836, %v8839
  %vm8841 = vweird.f32 %v7218
  %vm8842 = vweird.f32 %v8836
  %vm8843 = vmor %vm8841, %vm8842
  %v8844 = vsel %vm8843, %v8836, %v8840
  %v8845 = vand.u32 2147483647, %v7218
  %vm8846 = vcmp.eq.f32.partialorder %v8845, 8.507059e+37
  %v8847 = vand.u32 %v7218, 2147483648
  %v8848 = vor.u32 1.1754944e-38, %v8847
  %v8849 = vsel %vm8846, %v8848, %v8844
  %v8850 = vmul.f32 %v6634, %v8849
  %v8851 = vrcp.pop %v7221
  %v8852 = vmul.f32 %v7221, %v8851
  %v8853 = vsub.f32 1.0, %v8852
  %v8854 = vmul.f32 %v8851, %v8853
  %v8855 = vadd.f32 %v8851, %v8854
  %vm8856 = vweird.f32 %v7221
  %vm8857 = vweird.f32 %v8851
  %vm8858 = vmor %vm8856, %vm8857
  %v8859 = vsel %vm8858, %v8851, %v8855
  %v8860 = vand.u32 2147483647, %v7221
  %vm8861 = vcmp.eq.f32.partialorder %v8860, 8.507059e+37
  %v8862 = vand.u32 %v7221, 2147483648
  %v8863 = vor.u32 1.1754944e-38, %v8862
  %v8864 = vsel %vm8861, %v8863, %v8859
  %v8865 = vmul.f32 %v6636, %v8864
  %v8866 = vrcp.pop %v7224
  %v8867 = vmul.f32 %v7224, %v8866
  %v8868 = vsub.f32 1.0, %v8867
  %v8869 = vmul.f32 %v8866, %v8868
  %v8870 = vadd.f32 %v8866, %v8869
  %vm8871 = vweird.f32 %v7224
  %vm8872 = vweird.f32 %v8866
  %vm8873 = vmor %vm8871, %vm8872
  %v8874 = vsel %vm8873, %v8866, %v8870
  %v8875 = vand.u32 2147483647, %v7224
  %vm8876 = vcmp.eq.f32.partialorder %v8875, 8.507059e+37
  %v8877 = vand.u32 %v7224, 2147483648
  %v8878 = vor.u32 1.1754944e-38, %v8877
  %v8879 = vsel %vm8876, %v8878, %v8874
  %v8880 = vmul.f32 %v6638, %v8879
  %v8881 = vrcp.pop %v7227
  %v8882 = vmul.f32 %v7227, %v8881
  %v8883 = vsub.f32 1.0, %v8882
  %v8884 = vmul.f32 %v8881, %v8883
  %v8885 = vadd.f32 %v8881, %v8884
  %vm8886 = vweird.f32 %v7227
  %vm8887 = vweird.f32 %v8881
  %vm8888 = vmor %vm8886, %vm8887
  %v8889 = vsel %vm8888, %v8881, %v8885
  %v8890 = vand.u32 2147483647, %v7227
  %vm8891 = vcmp.eq.f32.partialorder %v8890, 8.507059e+37
  %v8892 = vand.u32 %v7227, 2147483648
  %v8893 = vor.u32 1.1754944e-38, %v8892
  %v8894 = vsel %vm8891, %v8893, %v8889
  %v8895 = vmul.f32 %v6640, %v8894
  %v8896 = vrcp.pop %v7230
  %v8897 = vmul.f32 %v7230, %v8896
  %v8898 = vsub.f32 1.0, %v8897
  %v8899 = vmul.f32 %v8896, %v8898
  %v8900 = vadd.f32 %v8896, %v8899
  %vm8901 = vweird.f32 %v7230
  %vm8902 = vweird.f32 %v8896
  %vm8903 = vmor %vm8901, %vm8902
  %v8904 = vsel %vm8903, %v8896, %v8900
  %v8905 = vand.u32 2147483647, %v7230
  %vm8906 = vcmp.eq.f32.partialorder %v8905, 8.507059e+37
  %v8907 = vand.u32 %v7230, 2147483648
  %v8908 = vor.u32 1.1754944e-38, %v8907
  %v8909 = vsel %vm8906, %v8908, %v8904
  %v8910 = vmul.f32 %v6642, %v8909
  %v8911 = vrcp.pop %v7233
  %v8912 = vmul.f32 %v7233, %v8911
  %v8913 = vsub.f32 1.0, %v8912
  %v8914 = vmul.f32 %v8911, %v8913
  %v8915 = vadd.f32 %v8911, %v8914
  %vm8916 = vweird.f32 %v7233
  %vm8917 = vweird.f32 %v8911
  %vm8918 = vmor %vm8916, %vm8917
  %v8919 = vsel %vm8918, %v8911, %v8915
  %v8920 = vand.u32 2147483647, %v7233
  %vm8921 = vcmp.eq.f32.partialorder %v8920, 8.507059e+37
  %v8922 = vand.u32 %v7233, 2147483648
  %v8923 = vor.u32 1.1754944e-38, %v8922
  %v8924 = vsel %vm8921, %v8923, %v8919
  %v8925 = vmul.f32 %v6644, %v8924
  %v8926 = vrcp.pop %v7236
  %v8927 = vmul.f32 %v7236, %v8926
  %v8928 = vsub.f32 1.0, %v8927
  %v8929 = vmul.f32 %v8926, %v8928
  %v8930 = vadd.f32 %v8926, %v8929
  %vm8931 = vweird.f32 %v7236
  %vm8932 = vweird.f32 %v8926
  %vm8933 = vmor %vm8931, %vm8932
  %v8934 = vsel %vm8933, %v8926, %v8930
  %v8935 = vand.u32 2147483647, %v7236
  %vm8936 = vcmp.eq.f32.partialorder %v8935, 8.507059e+37
  %v8937 = vand.u32 %v7236, 2147483648
  %v8938 = vor.u32 1.1754944e-38, %v8937
  %v8939 = vsel %vm8936, %v8938, %v8934
  %v8940 = vmul.f32 %v6646, %v8939
  %v8941 = vrcp.pop %v7239
  %v8942 = vmul.f32 %v7239, %v8941
  %v8943 = vsub.f32 1.0, %v8942
  %v8944 = vmul.f32 %v8941, %v8943
  %v8945 = vadd.f32 %v8941, %v8944
  %vm8946 = vweird.f32 %v7239
  %vm8947 = vweird.f32 %v8941
  %vm8948 = vmor %vm8946, %vm8947
  %v8949 = vsel %vm8948, %v8941, %v8945
  %v8950 = vand.u32 2147483647, %v7239
  %vm8951 = vcmp.eq.f32.partialorder %v8950, 8.507059e+37
  %v8952 = vand.u32 %v7239, 2147483648
  %v8953 = vor.u32 1.1754944e-38, %v8952
  %v8954 = vsel %vm8951, %v8953, %v8949
  %v8955 = vmul.f32 %v6648, %v8954
  %v8956 = vrcp.pop %v7242
  %v8957 = vmul.f32 %v7242, %v8956
  %v8958 = vsub.f32 1.0, %v8957
  %v8959 = vmul.f32 %v8956, %v8958
  %v8960 = vadd.f32 %v8956, %v8959
  %vm8961 = vweird.f32 %v7242
  %vm8962 = vweird.f32 %v8956
  %vm8963 = vmor %vm8961, %vm8962
  %v8964 = vsel %vm8963, %v8956, %v8960
  %v8965 = vand.u32 2147483647, %v7242
  %vm8966 = vcmp.eq.f32.partialorder %v8965, 8.507059e+37
  %v8967 = vand.u32 %v7242, 2147483648
  %v8968 = vor.u32 1.1754944e-38, %v8967
  %v8969 = vsel %vm8966, %v8968, %v8964
  %v8970 = vmul.f32 %v6650, %v8969
  %v8971 = vrcp.pop %v7245
  %v8972 = vmul.f32 %v7245, %v8971
  %v8973 = vsub.f32 1.0, %v8972
  %v8974 = vmul.f32 %v8971, %v8973
  %v8975 = vadd.f32 %v8971, %v8974
  %vm8976 = vweird.f32 %v7245
  %vm8977 = vweird.f32 %v8971
  %vm8978 = vmor %vm8976, %vm8977
  %v8979 = vsel %vm8978, %v8971, %v8975
  %v8980 = vand.u32 2147483647, %v7245
  %vm8981 = vcmp.eq.f32.partialorder %v8980, 8.507059e+37
  %v8982 = vand.u32 %v7245, 2147483648
  %v8983 = vor.u32 1.1754944e-38, %v8982
  %v8984 = vsel %vm8981, %v8983, %v8979
  %v8985 = vmul.f32 %v6652, %v8984
  %v8986 = vrcp.pop %v7248
  %v8987 = vmul.f32 %v7248, %v8986
  %v8988 = vsub.f32 1.0, %v8987
  %v8989 = vmul.f32 %v8986, %v8988
  %v8990 = vadd.f32 %v8986, %v8989
  %vm8991 = vweird.f32 %v7248
  %vm8992 = vweird.f32 %v8986
  %vm8993 = vmor %vm8991, %vm8992
  %v8994 = vsel %vm8993, %v8986, %v8990
  %v8995 = vand.u32 2147483647, %v7248
  %vm8996 = vcmp.eq.f32.partialorder %v8995, 8.507059e+37
  %v8997 = vand.u32 %v7248, 2147483648
  %v8998 = vor.u32 1.1754944e-38, %v8997
  %v8999 = vsel %vm8996, %v8998, %v8994
  %v9000 = vmul.f32 %v6654, %v8999
  %v9001 = vrcp.pop %v7251
  %v9002 = vmul.f32 %v7251, %v9001
  %v9003 = vsub.f32 1.0, %v9002
  %v9004 = vmul.f32 %v9001, %v9003
  %v9005 = vadd.f32 %v9001, %v9004
  %vm9006 = vweird.f32 %v7251
  %vm9007 = vweird.f32 %v9001
  %vm9008 = vmor %vm9006, %vm9007
  %v9009 = vsel %vm9008, %v9001, %v9005
  %v9010 = vand.u32 2147483647, %v7251
  %vm9011 = vcmp.eq.f32.partialorder %v9010, 8.507059e+37
  %v9012 = vand.u32 %v7251, 2147483648
  %v9013 = vor.u32 1.1754944e-38, %v9012
  %v9014 = vsel %vm9011, %v9013, %v9009
  %v9015 = vmul.f32 %v6656, %v9014
  %v9016 = vrcp.pop %v7254
  %v9017 = vmul.f32 %v7254, %v9016
  %v9018 = vsub.f32 1.0, %v9017
  %v9019 = vmul.f32 %v9016, %v9018
  %v9020 = vadd.f32 %v9016, %v9019
  %vm9021 = vweird.f32 %v7254
  %vm9022 = vweird.f32 %v9016
  %vm9023 = vmor %vm9021, %vm9022
  %v9024 = vsel %vm9023, %v9016, %v9020
  %v9025 = vand.u32 2147483647, %v7254
  %vm9026 = vcmp.eq.f32.partialorder %v9025, 8.507059e+37
  %v9027 = vand.u32 %v7254, 2147483648
  %v9028 = vor.u32 1.1754944e-38, %v9027
  %v9029 = vsel %vm9026, %v9028, %v9024
  %v9030 = vmul.f32 %v6658, %v9029
  %v9031 = vrcp.pop %v7257
  %v9032 = vmul.f32 %v7257, %v9031
  %v9033 = vsub.f32 1.0, %v9032
  %v9034 = vmul.f32 %v9031, %v9033
  %v9035 = vadd.f32 %v9031, %v9034
  %vm9036 = vweird.f32 %v7257
  %vm9037 = vweird.f32 %v9031
  %vm9038 = vmor %vm9036, %vm9037
  %v9039 = vsel %vm9038, %v9031, %v9035
  %v9040 = vand.u32 2147483647, %v7257
  %vm9041 = vcmp.eq.f32.partialorder %v9040, 8.507059e+37
  %v9042 = vand.u32 %v7257, 2147483648
  %v9043 = vor.u32 1.1754944e-38, %v9042
  %v9044 = vsel %vm9041, %v9043, %v9039
  %v9045 = vmul.f32 %v6660, %v9044
  %v9046 = vrcp.pop %v7260
  %v9047 = vmul.f32 %v7260, %v9046
  %v9048 = vsub.f32 1.0, %v9047
  %v9049 = vmul.f32 %v9046, %v9048
  %v9050 = vadd.f32 %v9046, %v9049
  %vm9051 = vweird.f32 %v7260
  %vm9052 = vweird.f32 %v9046
  %vm9053 = vmor %vm9051, %vm9052
  %v9054 = vsel %vm9053, %v9046, %v9050
  %v9055 = vand.u32 2147483647, %v7260
  %vm9056 = vcmp.eq.f32.partialorder %v9055, 8.507059e+37
  %v9057 = vand.u32 %v7260, 2147483648
  %v9058 = vor.u32 1.1754944e-38, %v9057
  %v9059 = vsel %vm9056, %v9058, %v9054
  %v9060 = vmul.f32 %v6662, %v9059
  %v9061 = vrcp.pop %v7263
  %v9062 = vmul.f32 %v7263, %v9061
  %v9063 = vsub.f32 1.0, %v9062
  %v9064 = vmul.f32 %v9061, %v9063
  %v9065 = vadd.f32 %v9061, %v9064
  %vm9066 = vweird.f32 %v7263
  %vm9067 = vweird.f32 %v9061
  %vm9068 = vmor %vm9066, %vm9067
  %v9069 = vsel %vm9068, %v9061, %v9065
  %v9070 = vand.u32 2147483647, %v7263
  %vm9071 = vcmp.eq.f32.partialorder %v9070, 8.507059e+37
  %v9072 = vand.u32 %v7263, 2147483648
  %v9073 = vor.u32 1.1754944e-38, %v9072
  %v9074 = vsel %vm9071, %v9073, %v9069
  %v9075 = vmul.f32 %v6664, %v9074
  %v9076 = vrcp.pop %v7266
  %v9077 = vmul.f32 %v7266, %v9076
  %v9078 = vsub.f32 1.0, %v9077
  %v9079 = vmul.f32 %v9076, %v9078
  %v9080 = vadd.f32 %v9076, %v9079
  %vm9081 = vweird.f32 %v7266
  %vm9082 = vweird.f32 %v9076
  %vm9083 = vmor %vm9081, %vm9082
  %v9084 = vsel %vm9083, %v9076, %v9080
  %v9085 = vand.u32 2147483647, %v7266
  %vm9086 = vcmp.eq.f32.partialorder %v9085, 8.507059e+37
  %v9087 = vand.u32 %v7266, 2147483648
  %v9088 = vor.u32 1.1754944e-38, %v9087
  %v9089 = vsel %vm9086, %v9088, %v9084
  %v9090 = vmul.f32 %v6666, %v9089
  %v9091 = vrcp.pop %v7269
  %v9092 = vmul.f32 %v7269, %v9091
  %v9093 = vsub.f32 1.0, %v9092
  %v9094 = vmul.f32 %v9091, %v9093
  %v9095 = vadd.f32 %v9091, %v9094
  %vm9096 = vweird.f32 %v7269
  %vm9097 = vweird.f32 %v9091
  %vm9098 = vmor %vm9096, %vm9097
  %v9099 = vsel %vm9098, %v9091, %v9095
  %v9100 = vand.u32 2147483647, %v7269
  %vm9101 = vcmp.eq.f32.partialorder %v9100, 8.507059e+37
  %v9102 = vand.u32 %v7269, 2147483648
  %v9103 = vor.u32 1.1754944e-38, %v9102
  %v9104 = vsel %vm9101, %v9103, %v9099
  %v9105 = vmul.f32 %v6668, %v9104
  %v9106 = vrcp.pop %v7272
  %v9107 = vmul.f32 %v7272, %v9106
  %v9108 = vsub.f32 1.0, %v9107
  %v9109 = vmul.f32 %v9106, %v9108
  %v9110 = vadd.f32 %v9106, %v9109
  %vm9111 = vweird.f32 %v7272
  %vm9112 = vweird.f32 %v9106
  %vm9113 = vmor %vm9111, %vm9112
  %v9114 = vsel %vm9113, %v9106, %v9110
  %v9115 = vand.u32 2147483647, %v7272
  %vm9116 = vcmp.eq.f32.partialorder %v9115, 8.507059e+37
  %v9117 = vand.u32 %v7272, 2147483648
  %v9118 = vor.u32 1.1754944e-38, %v9117
  %v9119 = vsel %vm9116, %v9118, %v9114
  %v9120 = vmul.f32 %v6670, %v9119
  %v9121 = vrcp.pop %v7275
  %v9122 = vmul.f32 %v7275, %v9121
  %v9123 = vsub.f32 1.0, %v9122
  %v9124 = vmul.f32 %v9121, %v9123
  %v9125 = vadd.f32 %v9121, %v9124
  %vm9126 = vweird.f32 %v7275
  %vm9127 = vweird.f32 %v9121
  %vm9128 = vmor %vm9126, %vm9127
  %v9129 = vsel %vm9128, %v9121, %v9125
  %v9130 = vand.u32 2147483647, %v7275
  %vm9131 = vcmp.eq.f32.partialorder %v9130, 8.507059e+37
  %v9132 = vand.u32 %v7275, 2147483648
  %v9133 = vor.u32 1.1754944e-38, %v9132
  %v9134 = vsel %vm9131, %v9133, %v9129
  %v9135 = vmul.f32 %v6672, %v9134
  %v9136 = vrcp.pop %v7278
  %v9137 = vmul.f32 %v7278, %v9136
  %v9138 = vsub.f32 1.0, %v9137
  %v9139 = vmul.f32 %v9136, %v9138
  %v9140 = vadd.f32 %v9136, %v9139
  %vm9141 = vweird.f32 %v7278
  %vm9142 = vweird.f32 %v9136
  %vm9143 = vmor %vm9141, %vm9142
  %v9144 = vsel %vm9143, %v9136, %v9140
  %v9145 = vand.u32 2147483647, %v7278
  %vm9146 = vcmp.eq.f32.partialorder %v9145, 8.507059e+37
  %v9147 = vand.u32 %v7278, 2147483648
  %v9148 = vor.u32 1.1754944e-38, %v9147
  %v9149 = vsel %vm9146, %v9148, %v9144
  %v9150 = vmul.f32 %v6674, %v9149
  %v9151 = vrcp.pop %v7281
  %v9152 = vmul.f32 %v7281, %v9151
  %v9153 = vsub.f32 1.0, %v9152
  %v9154 = vmul.f32 %v9151, %v9153
  %v9155 = vadd.f32 %v9151, %v9154
  %vm9156 = vweird.f32 %v7281
  %vm9157 = vweird.f32 %v9151
  %vm9158 = vmor %vm9156, %vm9157
  %v9159 = vsel %vm9158, %v9151, %v9155
  %v9160 = vand.u32 2147483647, %v7281
  %vm9161 = vcmp.eq.f32.partialorder %v9160, 8.507059e+37
  %v9162 = vand.u32 %v7281, 2147483648
  %v9163 = vor.u32 1.1754944e-38, %v9162
  %v9164 = vsel %vm9161, %v9163, %v9159
  %v9165 = vmul.f32 %v6676, %v9164
  %v9166 = vrcp.pop %v7284
  %v9167 = vmul.f32 %v7284, %v9166
  %v9168 = vsub.f32 1.0, %v9167
  %v9169 = vmul.f32 %v9166, %v9168
  %v9170 = vadd.f32 %v9166, %v9169
  %vm9171 = vweird.f32 %v7284
  %vm9172 = vweird.f32 %v9166
  %vm9173 = vmor %vm9171, %vm9172
  %v9174 = vsel %vm9173, %v9166, %v9170
  %v9175 = vand.u32 2147483647, %v7284
  %vm9176 = vcmp.eq.f32.partialorder %v9175, 8.507059e+37
  %v9177 = vand.u32 %v7284, 2147483648
  %v9178 = vor.u32 1.1754944e-38, %v9177
  %v9179 = vsel %vm9176, %v9178, %v9174
  %v9180 = vmul.f32 %v6678, %v9179
  %v9181 = vrcp.pop %v7287
  %v9182 = vmul.f32 %v7287, %v9181
  %v9183 = vsub.f32 1.0, %v9182
  %v9184 = vmul.f32 %v9181, %v9183
  %v9185 = vadd.f32 %v9181, %v9184
  %vm9186 = vweird.f32 %v7287
  %vm9187 = vweird.f32 %v9181
  %vm9188 = vmor %vm9186, %vm9187
  %v9189 = vsel %vm9188, %v9181, %v9185
  %v9190 = vand.u32 2147483647, %v7287
  %vm9191 = vcmp.eq.f32.partialorder %v9190, 8.507059e+37
  %v9192 = vand.u32 %v7287, 2147483648
  %v9193 = vor.u32 1.1754944e-38, %v9192
  %v9194 = vsel %vm9191, %v9193, %v9189
  %v9195 = vmul.f32 %v6680, %v9194
  %v9196 = vrcp.pop %v7290
  %v9197 = vmul.f32 %v7290, %v9196
  %v9198 = vsub.f32 1.0, %v9197
  %v9199 = vmul.f32 %v9196, %v9198
  %v9200 = vadd.f32 %v9196, %v9199
  %vm9201 = vweird.f32 %v7290
  %vm9202 = vweird.f32 %v9196
  %vm9203 = vmor %vm9201, %vm9202
  %v9204 = vsel %vm9203, %v9196, %v9200
  %v9205 = vand.u32 2147483647, %v7290
  %vm9206 = vcmp.eq.f32.partialorder %v9205, 8.507059e+37
  %v9207 = vand.u32 %v7290, 2147483648
  %v9208 = vor.u32 1.1754944e-38, %v9207
  %v9209 = vsel %vm9206, %v9208, %v9204
  %v9210 = vmul.f32 %v6682, %v9209
  %v9211 = vrcp.pop %v7293
  %v9212 = vmul.f32 %v7293, %v9211
  %v9213 = vsub.f32 1.0, %v9212
  %v9214 = vmul.f32 %v9211, %v9213
  %v9215 = vadd.f32 %v9211, %v9214
  %vm9216 = vweird.f32 %v7293
  %vm9217 = vweird.f32 %v9211
  %vm9218 = vmor %vm9216, %vm9217
  %v9219 = vsel %vm9218, %v9211, %v9215
  %v9220 = vand.u32 2147483647, %v7293
  %vm9221 = vcmp.eq.f32.partialorder %v9220, 8.507059e+37
  %v9222 = vand.u32 %v7293, 2147483648
  %v9223 = vor.u32 1.1754944e-38, %v9222
  %v9224 = vsel %vm9221, %v9223, %v9219
  %v9225 = vmul.f32 %v6684, %v9224
  %v9226 = vrcp.pop %v7296
  %v9227 = vmul.f32 %v7296, %v9226
  %v9228 = vsub.f32 1.0, %v9227
  %v9229 = vmul.f32 %v9226, %v9228
  %v9230 = vadd.f32 %v9226, %v9229
  %vm9231 = vweird.f32 %v7296
  %vm9232 = vweird.f32 %v9226
  %vm9233 = vmor %vm9231, %vm9232
  %v9234 = vsel %vm9233, %v9226, %v9230
  %v9235 = vand.u32 2147483647, %v7296
  %vm9236 = vcmp.eq.f32.partialorder %v9235, 8.507059e+37
  %v9237 = vand.u32 %v7296, 2147483648
  %v9238 = vor.u32 1.1754944e-38, %v9237
  %v9239 = vsel %vm9236, %v9238, %v9234
  %v9240 = vmul.f32 %v6686, %v9239
  %v9241 = vrcp.pop %v7299
  %v9242 = vmul.f32 %v7299, %v9241
  %v9243 = vsub.f32 1.0, %v9242
  %v9244 = vmul.f32 %v9241, %v9243
  %v9245 = vadd.f32 %v9241, %v9244
  %vm9246 = vweird.f32 %v7299
  %vm9247 = vweird.f32 %v9241
  %vm9248 = vmor %vm9246, %vm9247
  %v9249 = vsel %vm9248, %v9241, %v9245
  %v9250 = vand.u32 2147483647, %v7299
  %vm9251 = vcmp.eq.f32.partialorder %v9250, 8.507059e+37
  %v9252 = vand.u32 %v7299, 2147483648
  %v9253 = vor.u32 1.1754944e-38, %v9252
  %v9254 = vsel %vm9251, %v9253, %v9249
  %v9255 = vmul.f32 %v6688, %v9254
  %v9256 = vrcp.pop %v7302
  %v9257 = vmul.f32 %v7302, %v9256
  %v9258 = vsub.f32 1.0, %v9257
  %v9259 = vmul.f32 %v9256, %v9258
  %v9260 = vadd.f32 %v9256, %v9259
  %vm9261 = vweird.f32 %v7302
  %vm9262 = vweird.f32 %v9256
  %vm9263 = vmor %vm9261, %vm9262
  %v9264 = vsel %vm9263, %v9256, %v9260
  %v9265 = vand.u32 2147483647, %v7302
  %vm9266 = vcmp.eq.f32.partialorder %v9265, 8.507059e+37
  %v9267 = vand.u32 %v7302, 2147483648
  %v9268 = vor.u32 1.1754944e-38, %v9267
  %v9269 = vsel %vm9266, %v9268, %v9264
  %v9270 = vmul.f32 %v6690, %v9269
  %v9271 = vrcp.pop %v7305
  %v9272 = vmul.f32 %v7305, %v9271
  %v9273 = vsub.f32 1.0, %v9272
  %v9274 = vmul.f32 %v9271, %v9273
  %v9275 = vadd.f32 %v9271, %v9274
  %vm9276 = vweird.f32 %v7305
  %vm9277 = vweird.f32 %v9271
  %vm9278 = vmor %vm9276, %vm9277
  %v9279 = vsel %vm9278, %v9271, %v9275
  %v9280 = vand.u32 2147483647, %v7305
  %vm9281 = vcmp.eq.f32.partialorder %v9280, 8.507059e+37
  %v9282 = vand.u32 %v7305, 2147483648
  %v9283 = vor.u32 1.1754944e-38, %v9282
  %v9284 = vsel %vm9281, %v9283, %v9279
  %v9285 = vmul.f32 %v6692, %v9284
  %v9286 = vrcp.pop %v7308
  %v9287 = vmul.f32 %v7308, %v9286
  %v9288 = vsub.f32 1.0, %v9287
  %v9289 = vmul.f32 %v9286, %v9288
  %v9290 = vadd.f32 %v9286, %v9289
  %vm9291 = vweird.f32 %v7308
  %vm9292 = vweird.f32 %v9286
  %vm9293 = vmor %vm9291, %vm9292
  %v9294 = vsel %vm9293, %v9286, %v9290
  %v9295 = vand.u32 2147483647, %v7308
  %vm9296 = vcmp.eq.f32.partialorder %v9295, 8.507059e+37
  %v9297 = vand.u32 %v7308, 2147483648
  %v9298 = vor.u32 1.1754944e-38, %v9297
  %v9299 = vsel %vm9296, %v9298, %v9294
  %v9300 = vmul.f32 %v6694, %v9299
  %v9301 = vrcp.pop %v7311
  %v9302 = vmul.f32 %v7311, %v9301
  %v9303 = vsub.f32 1.0, %v9302
  %v9304 = vmul.f32 %v9301, %v9303
  %v9305 = vadd.f32 %v9301, %v9304
  %vm9306 = vweird.f32 %v7311
  %vm9307 = vweird.f32 %v9301
  %vm9308 = vmor %vm9306, %vm9307
  %v9309 = vsel %vm9308, %v9301, %v9305
  %v9310 = vand.u32 2147483647, %v7311
  %vm9311 = vcmp.eq.f32.partialorder %v9310, 8.507059e+37
  %v9312 = vand.u32 %v7311, 2147483648
  %v9313 = vor.u32 1.1754944e-38, %v9312
  %v9314 = vsel %vm9311, %v9313, %v9309
  %v9315 = vmul.f32 %v6696, %v9314
  %v9316 = vrcp.pop %v7314
  %v9317 = vmul.f32 %v7314, %v9316
  %v9318 = vsub.f32 1.0, %v9317
  %v9319 = vmul.f32 %v9316, %v9318
  %v9320 = vadd.f32 %v9316, %v9319
  %vm9321 = vweird.f32 %v7314
  %vm9322 = vweird.f32 %v9316
  %vm9323 = vmor %vm9321, %vm9322
  %v9324 = vsel %vm9323, %v9316, %v9320
  %v9325 = vand.u32 2147483647, %v7314
  %vm9326 = vcmp.eq.f32.partialorder %v9325, 8.507059e+37
  %v9327 = vand.u32 %v7314, 2147483648
  %v9328 = vor.u32 1.1754944e-38, %v9327
  %v9329 = vsel %vm9326, %v9328, %v9324
  %v9330 = vmul.f32 %v6698, %v9329
  %v9331 = vrcp.pop %v7317
  %v9332 = vmul.f32 %v7317, %v9331
  %v9333 = vsub.f32 1.0, %v9332
  %v9334 = vmul.f32 %v9331, %v9333
  %v9335 = vadd.f32 %v9331, %v9334
  %vm9336 = vweird.f32 %v7317
  %vm9337 = vweird.f32 %v9331
  %vm9338 = vmor %vm9336, %vm9337
  %v9339 = vsel %vm9338, %v9331, %v9335
  %v9340 = vand.u32 2147483647, %v7317
  %vm9341 = vcmp.eq.f32.partialorder %v9340, 8.507059e+37
  %v9342 = vand.u32 %v7317, 2147483648
  %v9343 = vor.u32 1.1754944e-38, %v9342
  %v9344 = vsel %vm9341, %v9343, %v9339
  %v9345 = vmul.f32 %v6700, %v9344
  %v9346 = vrcp.pop %v7320
  %v9347 = vmul.f32 %v7320, %v9346
  %v9348 = vsub.f32 1.0, %v9347
  %v9349 = vmul.f32 %v9346, %v9348
  %v9350 = vadd.f32 %v9346, %v9349
  %vm9351 = vweird.f32 %v7320
  %vm9352 = vweird.f32 %v9346
  %vm9353 = vmor %vm9351, %vm9352
  %v9354 = vsel %vm9353, %v9346, %v9350
  %v9355 = vand.u32 2147483647, %v7320
  %vm9356 = vcmp.eq.f32.partialorder %v9355, 8.507059e+37
  %v9357 = vand.u32 %v7320, 2147483648
  %v9358 = vor.u32 1.1754944e-38, %v9357
  %v9359 = vsel %vm9356, %v9358, %v9354
  %v9360 = vmul.f32 %v6702, %v9359
  %v9361 = vrcp.pop %v7323
  %v9362 = vmul.f32 %v7323, %v9361
  %v9363 = vsub.f32 1.0, %v9362
  %v9364 = vmul.f32 %v9361, %v9363
  %v9365 = vadd.f32 %v9361, %v9364
  %vm9366 = vweird.f32 %v7323
  %vm9367 = vweird.f32 %v9361
  %vm9368 = vmor %vm9366, %vm9367
  %v9369 = vsel %vm9368, %v9361, %v9365
  %v9370 = vand.u32 2147483647, %v7323
  %vm9371 = vcmp.eq.f32.partialorder %v9370, 8.507059e+37
  %v9372 = vand.u32 %v7323, 2147483648
  %v9373 = vor.u32 1.1754944e-38, %v9372
  %v9374 = vsel %vm9371, %v9373, %v9369
  %v9375 = vmul.f32 %v6704, %v9374
  %v9376 = vrcp.pop %v7326
  %v9377 = vmul.f32 %v7326, %v9376
  %v9378 = vsub.f32 1.0, %v9377
  %v9379 = vmul.f32 %v9376, %v9378
  %v9380 = vadd.f32 %v9376, %v9379
  %vm9381 = vweird.f32 %v7326
  %vm9382 = vweird.f32 %v9376
  %vm9383 = vmor %vm9381, %vm9382
  %v9384 = vsel %vm9383, %v9376, %v9380
  %v9385 = vand.u32 2147483647, %v7326
  %vm9386 = vcmp.eq.f32.partialorder %v9385, 8.507059e+37
  %v9387 = vand.u32 %v7326, 2147483648
  %v9388 = vor.u32 1.1754944e-38, %v9387
  %v9389 = vsel %vm9386, %v9388, %v9384
  %v9390 = vmul.f32 %v6706, %v9389
  %v9391 = vrcp.pop %v7329
  %v9392 = vmul.f32 %v7329, %v9391
  %v9393 = vsub.f32 1.0, %v9392
  %v9394 = vmul.f32 %v9391, %v9393
  %v9395 = vadd.f32 %v9391, %v9394
  %vm9396 = vweird.f32 %v7329
  %vm9397 = vweird.f32 %v9391
  %vm9398 = vmor %vm9396, %vm9397
  %v9399 = vsel %vm9398, %v9391, %v9395
  %v9400 = vand.u32 2147483647, %v7329
  %vm9401 = vcmp.eq.f32.partialorder %v9400, 8.507059e+37
  %v9402 = vand.u32 %v7329, 2147483648
  %v9403 = vor.u32 1.1754944e-38, %v9402
  %v9404 = vsel %vm9401, %v9403, %v9399
  %v9405 = vmul.f32 %v6708, %v9404
  %v9406 = vrcp.pop %v7332
  %v9407 = vmul.f32 %v7332, %v9406
  %v9408 = vsub.f32 1.0, %v9407
  %v9409 = vmul.f32 %v9406, %v9408
  %v9410 = vadd.f32 %v9406, %v9409
  %vm9411 = vweird.f32 %v7332
  %vm9412 = vweird.f32 %v9406
  %vm9413 = vmor %vm9411, %vm9412
  %v9414 = vsel %vm9413, %v9406, %v9410
  %v9415 = vand.u32 2147483647, %v7332
  %vm9416 = vcmp.eq.f32.partialorder %v9415, 8.507059e+37
  %v9417 = vand.u32 %v7332, 2147483648
  %v9418 = vor.u32 1.1754944e-38, %v9417
  %v9419 = vsel %vm9416, %v9418, %v9414
  %v9420 = vmul.f32 %v6710, %v9419
  %v9421 = vrcp.pop %v7335
  %v9422 = vmul.f32 %v7335, %v9421
  %v9423 = vsub.f32 1.0, %v9422
  %v9424 = vmul.f32 %v9421, %v9423
  %v9425 = vadd.f32 %v9421, %v9424
  %vm9426 = vweird.f32 %v7335
  %vm9427 = vweird.f32 %v9421
  %vm9428 = vmor %vm9426, %vm9427
  %v9429 = vsel %vm9428, %v9421, %v9425
  %v9430 = vand.u32 2147483647, %v7335
  %vm9431 = vcmp.eq.f32.partialorder %v9430, 8.507059e+37
  %v9432 = vand.u32 %v7335, 2147483648
  %v9433 = vor.u32 1.1754944e-38, %v9432
  %v9434 = vsel %vm9431, %v9433, %v9429
  %v9435 = vmul.f32 %v6712, %v9434
  %v9436 = vrcp.pop %v7338
  %v9437 = vmul.f32 %v7338, %v9436
  %v9438 = vsub.f32 1.0, %v9437
  %v9439 = vmul.f32 %v9436, %v9438
  %v9440 = vadd.f32 %v9436, %v9439
  %vm9441 = vweird.f32 %v7338
  %vm9442 = vweird.f32 %v9436
  %vm9443 = vmor %vm9441, %vm9442
  %v9444 = vsel %vm9443, %v9436, %v9440
  %v9445 = vand.u32 2147483647, %v7338
  %vm9446 = vcmp.eq.f32.partialorder %v9445, 8.507059e+37
  %v9447 = vand.u32 %v7338, 2147483648
  %v9448 = vor.u32 1.1754944e-38, %v9447
  %v9449 = vsel %vm9446, %v9448, %v9444
  %v9450 = vmul.f32 %v6714, %v9449
  %v9451 = vrcp.pop %v7341
  %v9452 = vmul.f32 %v7341, %v9451
  %v9453 = vsub.f32 1.0, %v9452
  %v9454 = vmul.f32 %v9451, %v9453
  %v9455 = vadd.f32 %v9451, %v9454
  %vm9456 = vweird.f32 %v7341
  %vm9457 = vweird.f32 %v9451
  %vm9458 = vmor %vm9456, %vm9457
  %v9459 = vsel %vm9458, %v9451, %v9455
  %v9460 = vand.u32 2147483647, %v7341
  %vm9461 = vcmp.eq.f32.partialorder %v9460, 8.507059e+37
  %v9462 = vand.u32 %v7341, 2147483648
  %v9463 = vor.u32 1.1754944e-38, %v9462
  %v9464 = vsel %vm9461, %v9463, %v9459
  %v9465 = vmul.f32 %v6716, %v9464
  %v9466 = vrcp.pop %v7344
  %v9467 = vmul.f32 %v7344, %v9466
  %v9468 = vsub.f32 1.0, %v9467
  %v9469 = vmul.f32 %v9466, %v9468
  %v9470 = vadd.f32 %v9466, %v9469
  %vm9471 = vweird.f32 %v7344
  %vm9472 = vweird.f32 %v9466
  %vm9473 = vmor %vm9471, %vm9472
  %v9474 = vsel %vm9473, %v9466, %v9470
  %v9475 = vand.u32 2147483647, %v7344
  %vm9476 = vcmp.eq.f32.partialorder %v9475, 8.507059e+37
  %v9477 = vand.u32 %v7344, 2147483648
  %v9478 = vor.u32 1.1754944e-38, %v9477
  %v9479 = vsel %vm9476, %v9478, %v9474
  %v9480 = vmul.f32 %v6718, %v9479
  %v9481 = vrcp.pop %v7347
  %v9482 = vmul.f32 %v7347, %v9481
  %v9483 = vsub.f32 1.0, %v9482
  %v9484 = vmul.f32 %v9481, %v9483
  %v9485 = vadd.f32 %v9481, %v9484
  %vm9486 = vweird.f32 %v7347
  %vm9487 = vweird.f32 %v9481
  %vm9488 = vmor %vm9486, %vm9487
  %v9489 = vsel %vm9488, %v9481, %v9485
  %v9490 = vand.u32 2147483647, %v7347
  %vm9491 = vcmp.eq.f32.partialorder %v9490, 8.507059e+37
  %v9492 = vand.u32 %v7347, 2147483648
  %v9493 = vor.u32 1.1754944e-38, %v9492
  %v9494 = vsel %vm9491, %v9493, %v9489
  %v9495 = vmul.f32 %v6720, %v9494
  %v9496 = vrcp.pop %v7350
  %v9497 = vmul.f32 %v7350, %v9496
  %v9498 = vsub.f32 1.0, %v9497
  %v9499 = vmul.f32 %v9496, %v9498
  %v9500 = vadd.f32 %v9496, %v9499
  %vm9501 = vweird.f32 %v7350
  %vm9502 = vweird.f32 %v9496
  %vm9503 = vmor %vm9501, %vm9502
  %v9504 = vsel %vm9503, %v9496, %v9500
  %v9505 = vand.u32 2147483647, %v7350
  %vm9506 = vcmp.eq.f32.partialorder %v9505, 8.507059e+37
  %v9507 = vand.u32 %v7350, 2147483648
  %v9508 = vor.u32 1.1754944e-38, %v9507
  %v9509 = vsel %vm9506, %v9508, %v9504
  %v9510 = vmul.f32 %v6722, %v9509
  %v9511 = vrcp.pop %v7353
  %v9512 = vmul.f32 %v7353, %v9511
  %v9513 = vsub.f32 1.0, %v9512
  %v9514 = vmul.f32 %v9511, %v9513
  %v9515 = vadd.f32 %v9511, %v9514
  %vm9516 = vweird.f32 %v7353
  %vm9517 = vweird.f32 %v9511
  %vm9518 = vmor %vm9516, %vm9517
  %v9519 = vsel %vm9518, %v9511, %v9515
  %v9520 = vand.u32 2147483647, %v7353
  %vm9521 = vcmp.eq.f32.partialorder %v9520, 8.507059e+37
  %v9522 = vand.u32 %v7353, 2147483648
  %v9523 = vor.u32 1.1754944e-38, %v9522
  %v9524 = vsel %vm9521, %v9523, %v9519
  %v9525 = vmul.f32 %v6724, %v9524
  %v9526 = vrcp.pop %v7356
  %v9527 = vmul.f32 %v7356, %v9526
  %v9528 = vsub.f32 1.0, %v9527
  %v9529 = vmul.f32 %v9526, %v9528
  %v9530 = vadd.f32 %v9526, %v9529
  %vm9531 = vweird.f32 %v7356
  %vm9532 = vweird.f32 %v9526
  %vm9533 = vmor %vm9531, %vm9532
  %v9534 = vsel %vm9533, %v9526, %v9530
  %v9535 = vand.u32 2147483647, %v7356
  %vm9536 = vcmp.eq.f32.partialorder %v9535, 8.507059e+37
  %v9537 = vand.u32 %v7356, 2147483648
  %v9538 = vor.u32 1.1754944e-38, %v9537
  %v9539 = vsel %vm9536, %v9538, %v9534
  %v9540 = vmul.f32 %v6726, %v9539
  %v9541 = vrcp.pop %v7359
  %v9542 = vmul.f32 %v7359, %v9541
  %v9543 = vsub.f32 1.0, %v9542
  %v9544 = vmul.f32 %v9541, %v9543
  %v9545 = vadd.f32 %v9541, %v9544
  %vm9546 = vweird.f32 %v7359
  %vm9547 = vweird.f32 %v9541
  %vm9548 = vmor %vm9546, %vm9547
  %v9549 = vsel %vm9548, %v9541, %v9545
  %v9550 = vand.u32 2147483647, %v7359
  %vm9551 = vcmp.eq.f32.partialorder %v9550, 8.507059e+37
  %v9552 = vand.u32 %v7359, 2147483648
  %v9553 = vor.u32 1.1754944e-38, %v9552
  %v9554 = vsel %vm9551, %v9553, %v9549
  %v9555 = vmul.f32 %v6728, %v9554
  %v9556 = vrcp.pop %v7362
  %v9557 = vmul.f32 %v7362, %v9556
  %v9558 = vsub.f32 1.0, %v9557
  %v9559 = vmul.f32 %v9556, %v9558
  %v9560 = vadd.f32 %v9556, %v9559
  %vm9561 = vweird.f32 %v7362
  %vm9562 = vweird.f32 %v9556
  %vm9563 = vmor %vm9561, %vm9562
  %v9564 = vsel %vm9563, %v9556, %v9560
  %v9565 = vand.u32 2147483647, %v7362
  %vm9566 = vcmp.eq.f32.partialorder %v9565, 8.507059e+37
  %v9567 = vand.u32 %v7362, 2147483648
  %v9568 = vor.u32 1.1754944e-38, %v9567
  %v9569 = vsel %vm9566, %v9568, %v9564
  %v9570 = vmul.f32 %v6730, %v9569
  %v9571 = vrcp.pop %v7365
  %v9572 = vmul.f32 %v7365, %v9571
  %v9573 = vsub.f32 1.0, %v9572
  %v9574 = vmul.f32 %v9571, %v9573
  %v9575 = vadd.f32 %v9571, %v9574
  %vm9576 = vweird.f32 %v7365
  %vm9577 = vweird.f32 %v9571
  %vm9578 = vmor %vm9576, %vm9577
  %v9579 = vsel %vm9578, %v9571, %v9575
  %v9580 = vand.u32 2147483647, %v7365
  %vm9581 = vcmp.eq.f32.partialorder %v9580, 8.507059e+37
  %v9582 = vand.u32 %v7365, 2147483648
  %v9583 = vor.u32 1.1754944e-38, %v9582
  %v9584 = vsel %vm9581, %v9583, %v9579
  %v9585 = vmul.f32 %v6732, %v9584
  %v9586 = vrcp.pop %v7368
  %v9587 = vmul.f32 %v7368, %v9586
  %v9588 = vsub.f32 1.0, %v9587
  %v9589 = vmul.f32 %v9586, %v9588
  %v9590 = vadd.f32 %v9586, %v9589
  %vm9591 = vweird.f32 %v7368
  %vm9592 = vweird.f32 %v9586
  %vm9593 = vmor %vm9591, %vm9592
  %v9594 = vsel %vm9593, %v9586, %v9590
  %v9595 = vand.u32 2147483647, %v7368
  %vm9596 = vcmp.eq.f32.partialorder %v9595, 8.507059e+37
  %v9597 = vand.u32 %v7368, 2147483648
  %v9598 = vor.u32 1.1754944e-38, %v9597
  %v9599 = vsel %vm9596, %v9598, %v9594
  %v9600 = vmul.f32 %v6734, %v9599
  %v9601 = vrcp.pop %v7371
  %v9602 = vmul.f32 %v7371, %v9601
  %v9603 = vsub.f32 1.0, %v9602
  %v9604 = vmul.f32 %v9601, %v9603
  %v9605 = vadd.f32 %v9601, %v9604
  %vm9606 = vweird.f32 %v7371
  %vm9607 = vweird.f32 %v9601
  %vm9608 = vmor %vm9606, %vm9607
  %v9609 = vsel %vm9608, %v9601, %v9605
  %v9610 = vand.u32 2147483647, %v7371
  %vm9611 = vcmp.eq.f32.partialorder %v9610, 8.507059e+37
  %v9612 = vand.u32 %v7371, 2147483648
  %v9613 = vor.u32 1.1754944e-38, %v9612
  %v9614 = vsel %vm9611, %v9613, %v9609
  %v9615 = vmul.f32 %v6736, %v9614
  %v9616 = vrcp.pop %v7374
  %v9617 = vmul.f32 %v7374, %v9616
  %v9618 = vsub.f32 1.0, %v9617
  %v9619 = vmul.f32 %v9616, %v9618
  %v9620 = vadd.f32 %v9616, %v9619
  %vm9621 = vweird.f32 %v7374
  %vm9622 = vweird.f32 %v9616
  %vm9623 = vmor %vm9621, %vm9622
  %v9624 = vsel %vm9623, %v9616, %v9620
  %v9625 = vand.u32 2147483647, %v7374
  %vm9626 = vcmp.eq.f32.partialorder %v9625, 8.507059e+37
  %v9627 = vand.u32 %v7374, 2147483648
  %v9628 = vor.u32 1.1754944e-38, %v9627
  %v9629 = vsel %vm9626, %v9628, %v9624
  %v9630 = vmul.f32 %v6738, %v9629
  %v9631 = vrcp.pop %v7377
  %v9632 = vmul.f32 %v7377, %v9631
  %v9633 = vsub.f32 1.0, %v9632
  %v9634 = vmul.f32 %v9631, %v9633
  %v9635 = vadd.f32 %v9631, %v9634
  %vm9636 = vweird.f32 %v7377
  %vm9637 = vweird.f32 %v9631
  %vm9638 = vmor %vm9636, %vm9637
  %v9639 = vsel %vm9638, %v9631, %v9635
  %v9640 = vand.u32 2147483647, %v7377
  %vm9641 = vcmp.eq.f32.partialorder %v9640, 8.507059e+37
  %v9642 = vand.u32 %v7377, 2147483648
  %v9643 = vor.u32 1.1754944e-38, %v9642
  %v9644 = vsel %vm9641, %v9643, %v9639
  %v9645 = vmul.f32 %v6740, %v9644
  %v9646 = vrcp.pop %v7380
  %v9647 = vmul.f32 %v7380, %v9646
  %v9648 = vsub.f32 1.0, %v9647
  %v9649 = vmul.f32 %v9646, %v9648
  %v9650 = vadd.f32 %v9646, %v9649
  %vm9651 = vweird.f32 %v7380
  %vm9652 = vweird.f32 %v9646
  %vm9653 = vmor %vm9651, %vm9652
  %v9654 = vsel %vm9653, %v9646, %v9650
  %v9655 = vand.u32 2147483647, %v7380
  %vm9656 = vcmp.eq.f32.partialorder %v9655, 8.507059e+37
  %v9657 = vand.u32 %v7380, 2147483648
  %v9658 = vor.u32 1.1754944e-38, %v9657
  %v9659 = vsel %vm9656, %v9658, %v9654
  %v9660 = vmul.f32 %v6742, %v9659
  %v9661 = vrcp.pop %v7383
  %v9662 = vmul.f32 %v7383, %v9661
  %v9663 = vsub.f32 1.0, %v9662
  %v9664 = vmul.f32 %v9661, %v9663
  %v9665 = vadd.f32 %v9661, %v9664
  %vm9666 = vweird.f32 %v7383
  %vm9667 = vweird.f32 %v9661
  %vm9668 = vmor %vm9666, %vm9667
  %v9669 = vsel %vm9668, %v9661, %v9665
  %v9670 = vand.u32 2147483647, %v7383
  %vm9671 = vcmp.eq.f32.partialorder %v9670, 8.507059e+37
  %v9672 = vand.u32 %v7383, 2147483648
  %v9673 = vor.u32 1.1754944e-38, %v9672
  %v9674 = vsel %vm9671, %v9673, %v9669
  %v9675 = vmul.f32 %v6744, %v9674
  %v9676 = vrcp.pop %v7386
  %v9677 = vmul.f32 %v7386, %v9676
  %v9678 = vsub.f32 1.0, %v9677
  %v9679 = vmul.f32 %v9676, %v9678
  %v9680 = vadd.f32 %v9676, %v9679
  %vm9681 = vweird.f32 %v7386
  %vm9682 = vweird.f32 %v9676
  %vm9683 = vmor %vm9681, %vm9682
  %v9684 = vsel %vm9683, %v9676, %v9680
  %v9685 = vand.u32 2147483647, %v7386
  %vm9686 = vcmp.eq.f32.partialorder %v9685, 8.507059e+37
  %v9687 = vand.u32 %v7386, 2147483648
  %v9688 = vor.u32 1.1754944e-38, %v9687
  %v9689 = vsel %vm9686, %v9688, %v9684
  %v9690 = vmul.f32 %v6746, %v9689
  %v9691 = vrcp.pop %v7389
  %v9692 = vmul.f32 %v7389, %v9691
  %v9693 = vsub.f32 1.0, %v9692
  %v9694 = vmul.f32 %v9691, %v9693
  %v9695 = vadd.f32 %v9691, %v9694
  %vm9696 = vweird.f32 %v7389
  %vm9697 = vweird.f32 %v9691
  %vm9698 = vmor %vm9696, %vm9697
  %v9699 = vsel %vm9698, %v9691, %v9695
  %v9700 = vand.u32 2147483647, %v7389
  %vm9701 = vcmp.eq.f32.partialorder %v9700, 8.507059e+37
  %v9702 = vand.u32 %v7389, 2147483648
  %v9703 = vor.u32 1.1754944e-38, %v9702
  %v9704 = vsel %vm9701, %v9703, %v9699
  %v9705 = vmul.f32 %v6748, %v9704
  %v9706 = vrcp.pop %v7392
  %v9707 = vmul.f32 %v7392, %v9706
  %v9708 = vsub.f32 1.0, %v9707
  %v9709 = vmul.f32 %v9706, %v9708
  %v9710 = vadd.f32 %v9706, %v9709
  %vm9711 = vweird.f32 %v7392
  %vm9712 = vweird.f32 %v9706
  %vm9713 = vmor %vm9711, %vm9712
  %v9714 = vsel %vm9713, %v9706, %v9710
  %v9715 = vand.u32 2147483647, %v7392
  %vm9716 = vcmp.eq.f32.partialorder %v9715, 8.507059e+37
  %v9717 = vand.u32 %v7392, 2147483648
  %v9718 = vor.u32 1.1754944e-38, %v9717
  %v9719 = vsel %vm9716, %v9718, %v9714
  %v9720 = vmul.f32 %v6750, %v9719
  %v9721 = vrcp.pop %v7395
  %v9722 = vmul.f32 %v7395, %v9721
  %v9723 = vsub.f32 1.0, %v9722
  %v9724 = vmul.f32 %v9721, %v9723
  %v9725 = vadd.f32 %v9721, %v9724
  %vm9726 = vweird.f32 %v7395
  %vm9727 = vweird.f32 %v9721
  %vm9728 = vmor %vm9726, %vm9727
  %v9729 = vsel %vm9728, %v9721, %v9725
  %v9730 = vand.u32 2147483647, %v7395
  %vm9731 = vcmp.eq.f32.partialorder %v9730, 8.507059e+37
  %v9732 = vand.u32 %v7395, 2147483648
  %v9733 = vor.u32 1.1754944e-38, %v9732
  %v9734 = vsel %vm9731, %v9733, %v9729
  %v9735 = vmul.f32 %v6752, %v9734
  %v9736 = vrcp.pop %v7398
  %v9737 = vmul.f32 %v7398, %v9736
  %v9738 = vsub.f32 1.0, %v9737
  %v9739 = vmul.f32 %v9736, %v9738
  %v9740 = vadd.f32 %v9736, %v9739
  %vm9741 = vweird.f32 %v7398
  %vm9742 = vweird.f32 %v9736
  %vm9743 = vmor %vm9741, %vm9742
  %v9744 = vsel %vm9743, %v9736, %v9740
  %v9745 = vand.u32 2147483647, %v7398
  %vm9746 = vcmp.eq.f32.partialorder %v9745, 8.507059e+37
  %v9747 = vand.u32 %v7398, 2147483648
  %v9748 = vor.u32 1.1754944e-38, %v9747
  %v9749 = vsel %vm9746, %v9748, %v9744
  %v9750 = vmul.f32 %v6754, %v9749
  %v9751 = vrcp.pop %v7401
  %v9752 = vmul.f32 %v7401, %v9751
  %v9753 = vsub.f32 1.0, %v9752
  %v9754 = vmul.f32 %v9751, %v9753
  %v9755 = vadd.f32 %v9751, %v9754
  %vm9756 = vweird.f32 %v7401
  %vm9757 = vweird.f32 %v9751
  %vm9758 = vmor %vm9756, %vm9757
  %v9759 = vsel %vm9758, %v9751, %v9755
  %v9760 = vand.u32 2147483647, %v7401
  %vm9761 = vcmp.eq.f32.partialorder %v9760, 8.507059e+37
  %v9762 = vand.u32 %v7401, 2147483648
  %v9763 = vor.u32 1.1754944e-38, %v9762
  %v9764 = vsel %vm9761, %v9763, %v9759
  %v9765 = vmul.f32 %v6756, %v9764
  %v9766 = vrcp.pop %v7404
  %v9767 = vmul.f32 %v7404, %v9766
  %v9768 = vsub.f32 1.0, %v9767
  %v9769 = vmul.f32 %v9766, %v9768
  %v9770 = vadd.f32 %v9766, %v9769
  %vm9771 = vweird.f32 %v7404
  %vm9772 = vweird.f32 %v9766
  %vm9773 = vmor %vm9771, %vm9772
  %v9774 = vsel %vm9773, %v9766, %v9770
  %v9775 = vand.u32 2147483647, %v7404
  %vm9776 = vcmp.eq.f32.partialorder %v9775, 8.507059e+37
  %v9777 = vand.u32 %v7404, 2147483648
  %v9778 = vor.u32 1.1754944e-38, %v9777
  %v9779 = vsel %vm9776, %v9778, %v9774
  %v9780 = vmul.f32 %v6758, %v9779
  %v9781 = vrcp.pop %v7407
  %v9782 = vmul.f32 %v7407, %v9781
  %v9783 = vsub.f32 1.0, %v9782
  %v9784 = vmul.f32 %v9781, %v9783
  %v9785 = vadd.f32 %v9781, %v9784
  %vm9786 = vweird.f32 %v7407
  %vm9787 = vweird.f32 %v9781
  %vm9788 = vmor %vm9786, %vm9787
  %v9789 = vsel %vm9788, %v9781, %v9785
  %v9790 = vand.u32 2147483647, %v7407
  %vm9791 = vcmp.eq.f32.partialorder %v9790, 8.507059e+37
  %v9792 = vand.u32 %v7407, 2147483648
  %v9793 = vor.u32 1.1754944e-38, %v9792
  %v9794 = vsel %vm9791, %v9793, %v9789
  %v9795 = vmul.f32 %v6760, %v9794
  %v9796 = vrcp.pop %v7410
  %v9797 = vmul.f32 %v7410, %v9796
  %v9798 = vsub.f32 1.0, %v9797
  %v9799 = vmul.f32 %v9796, %v9798
  %v9800 = vadd.f32 %v9796, %v9799
  %vm9801 = vweird.f32 %v7410
  %vm9802 = vweird.f32 %v9796
  %vm9803 = vmor %vm9801, %vm9802
  %v9804 = vsel %vm9803, %v9796, %v9800
  %v9805 = vand.u32 2147483647, %v7410
  %vm9806 = vcmp.eq.f32.partialorder %v9805, 8.507059e+37
  %v9807 = vand.u32 %v7410, 2147483648
  %v9808 = vor.u32 1.1754944e-38, %v9807
  %v9809 = vsel %vm9806, %v9808, %v9804
  %v9810 = vmul.f32 %v6762, %v9809
  %v9811 = vrcp.pop %v7413
  %v9812 = vmul.f32 %v7413, %v9811
  %v9813 = vsub.f32 1.0, %v9812
  %v9814 = vmul.f32 %v9811, %v9813
  %v9815 = vadd.f32 %v9811, %v9814
  %vm9816 = vweird.f32 %v7413
  %vm9817 = vweird.f32 %v9811
  %vm9818 = vmor %vm9816, %vm9817
  %v9819 = vsel %vm9818, %v9811, %v9815
  %v9820 = vand.u32 2147483647, %v7413
  %vm9821 = vcmp.eq.f32.partialorder %v9820, 8.507059e+37
  %v9822 = vand.u32 %v7413, 2147483648
  %v9823 = vor.u32 1.1754944e-38, %v9822
  %v9824 = vsel %vm9821, %v9823, %v9819
  %v9825 = vmul.f32 %v6764, %v9824
  %v9826 = vrcp.pop %v7416
  %v9827 = vmul.f32 %v7416, %v9826
  %v9828 = vsub.f32 1.0, %v9827
  %v9829 = vmul.f32 %v9826, %v9828
  %v9830 = vadd.f32 %v9826, %v9829
  %vm9831 = vweird.f32 %v7416
  %vm9832 = vweird.f32 %v9826
  %vm9833 = vmor %vm9831, %vm9832
  %v9834 = vsel %vm9833, %v9826, %v9830
  %v9835 = vand.u32 2147483647, %v7416
  %vm9836 = vcmp.eq.f32.partialorder %v9835, 8.507059e+37
  %v9837 = vand.u32 %v7416, 2147483648
  %v9838 = vor.u32 1.1754944e-38, %v9837
  %v9839 = vsel %vm9836, %v9838, %v9834
  %v9840 = vmul.f32 %v6766, %v9839
  %v9841 = vrcp.pop %v7419
  %v9842 = vmul.f32 %v7419, %v9841
  %v9843 = vsub.f32 1.0, %v9842
  %v9844 = vmul.f32 %v9841, %v9843
  %v9845 = vadd.f32 %v9841, %v9844
  %vm9846 = vweird.f32 %v7419
  %vm9847 = vweird.f32 %v9841
  %vm9848 = vmor %vm9846, %vm9847
  %v9849 = vsel %vm9848, %v9841, %v9845
  %v9850 = vand.u32 2147483647, %v7419
  %vm9851 = vcmp.eq.f32.partialorder %v9850, 8.507059e+37
  %v9852 = vand.u32 %v7419, 2147483648
  %v9853 = vor.u32 1.1754944e-38, %v9852
  %v9854 = vsel %vm9851, %v9853, %v9849
  %v9855 = vmul.f32 %v6768, %v9854
  %v9856 = vrcp.pop %v7422
  %v9857 = vmul.f32 %v7422, %v9856
  %v9858 = vsub.f32 1.0, %v9857
  %v9859 = vmul.f32 %v9856, %v9858
  %v9860 = vadd.f32 %v9856, %v9859
  %vm9861 = vweird.f32 %v7422
  %vm9862 = vweird.f32 %v9856
  %vm9863 = vmor %vm9861, %vm9862
  %v9864 = vsel %vm9863, %v9856, %v9860
  %v9865 = vand.u32 2147483647, %v7422
  %vm9866 = vcmp.eq.f32.partialorder %v9865, 8.507059e+37
  %v9867 = vand.u32 %v7422, 2147483648
  %v9868 = vor.u32 1.1754944e-38, %v9867
  %v9869 = vsel %vm9866, %v9868, %v9864
  %v9870 = vmul.f32 %v6770, %v9869
  %v9871 = vrcp.pop %v7425
  %v9872 = vmul.f32 %v7425, %v9871
  %v9873 = vsub.f32 1.0, %v9872
  %v9874 = vmul.f32 %v9871, %v9873
  %v9875 = vadd.f32 %v9871, %v9874
  %vm9876 = vweird.f32 %v7425
  %vm9877 = vweird.f32 %v9871
  %vm9878 = vmor %vm9876, %vm9877
  %v9879 = vsel %vm9878, %v9871, %v9875
  %v9880 = vand.u32 2147483647, %v7425
  %vm9881 = vcmp.eq.f32.partialorder %v9880, 8.507059e+37
  %v9882 = vand.u32 %v7425, 2147483648
  %v9883 = vor.u32 1.1754944e-38, %v9882
  %v9884 = vsel %vm9881, %v9883, %v9879
  %v9885 = vmul.f32 %v6772, %v9884
  %v9886 = vrcp.pop %v7428
  %v9887 = vmul.f32 %v7428, %v9886
  %v9888 = vsub.f32 1.0, %v9887
  %v9889 = vmul.f32 %v9886, %v9888
  %v9890 = vadd.f32 %v9886, %v9889
  %vm9891 = vweird.f32 %v7428
  %vm9892 = vweird.f32 %v9886
  %vm9893 = vmor %vm9891, %vm9892
  %v9894 = vsel %vm9893, %v9886, %v9890
  %v9895 = vand.u32 2147483647, %v7428
  %vm9896 = vcmp.eq.f32.partialorder %v9895, 8.507059e+37
  %v9897 = vand.u32 %v7428, 2147483648
  %v9898 = vor.u32 1.1754944e-38, %v9897
  %v9899 = vsel %vm9896, %v9898, %v9894
  %v9900 = vmul.f32 %v6774, %v9899
  %v9901 = vrcp.pop %v7431
  %v9902 = vmul.f32 %v7431, %v9901
  %v9903 = vsub.f32 1.0, %v9902
  %v9904 = vmul.f32 %v9901, %v9903
  %v9905 = vadd.f32 %v9901, %v9904
  %vm9906 = vweird.f32 %v7431
  %vm9907 = vweird.f32 %v9901
  %vm9908 = vmor %vm9906, %vm9907
  %v9909 = vsel %vm9908, %v9901, %v9905
  %v9910 = vand.u32 2147483647, %v7431
  %vm9911 = vcmp.eq.f32.partialorder %v9910, 8.507059e+37
  %v9912 = vand.u32 %v7431, 2147483648
  %v9913 = vor.u32 1.1754944e-38, %v9912
  %v9914 = vsel %vm9911, %v9913, %v9909
  %v9915 = vmul.f32 %v6776, %v9914
  %v9916 = vrcp.pop %v7434
  %v9917 = vmul.f32 %v7434, %v9916
  %v9918 = vsub.f32 1.0, %v9917
  %v9919 = vmul.f32 %v9916, %v9918
  %v9920 = vadd.f32 %v9916, %v9919
  %vm9921 = vweird.f32 %v7434
  %vm9922 = vweird.f32 %v9916
  %vm9923 = vmor %vm9921, %vm9922
  %v9924 = vsel %vm9923, %v9916, %v9920
  %v9925 = vand.u32 2147483647, %v7434
  %vm9926 = vcmp.eq.f32.partialorder %v9925, 8.507059e+37
  %v9927 = vand.u32 %v7434, 2147483648
  %v9928 = vor.u32 1.1754944e-38, %v9927
  %v9929 = vsel %vm9926, %v9928, %v9924
  %v9930 = vmul.f32 %v6778, %v9929
  %v9931 = vrcp.pop %v7437
  %v9932 = vmul.f32 %v7437, %v9931
  %v9933 = vsub.f32 1.0, %v9932
  %v9934 = vmul.f32 %v9931, %v9933
  %v9935 = vadd.f32 %v9931, %v9934
  %vm9936 = vweird.f32 %v7437
  %vm9937 = vweird.f32 %v9931
  %vm9938 = vmor %vm9936, %vm9937
  %v9939 = vsel %vm9938, %v9931, %v9935
  %v9940 = vand.u32 2147483647, %v7437
  %vm9941 = vcmp.eq.f32.partialorder %v9940, 8.507059e+37
  %v9942 = vand.u32 %v7437, 2147483648
  %v9943 = vor.u32 1.1754944e-38, %v9942
  %v9944 = vsel %vm9941, %v9943, %v9939
  %v9945 = vmul.f32 %v6780, %v9944
  %v9946 = vrcp.pop %v7440
  %v9947 = vmul.f32 %v7440, %v9946
  %v9948 = vsub.f32 1.0, %v9947
  %v9949 = vmul.f32 %v9946, %v9948
  %v9950 = vadd.f32 %v9946, %v9949
  %vm9951 = vweird.f32 %v7440
  %vm9952 = vweird.f32 %v9946
  %vm9953 = vmor %vm9951, %vm9952
  %v9954 = vsel %vm9953, %v9946, %v9950
  %v9955 = vand.u32 2147483647, %v7440
  %vm9956 = vcmp.eq.f32.partialorder %v9955, 8.507059e+37
  %v9957 = vand.u32 %v7440, 2147483648
  %v9958 = vor.u32 1.1754944e-38, %v9957
  %v9959 = vsel %vm9956, %v9958, %v9954
  %v9960 = vmul.f32 %v6782, %v9959
  %v9961 = vrcp.pop %v7443
  %v9962 = vmul.f32 %v7443, %v9961
  %v9963 = vsub.f32 1.0, %v9962
  %v9964 = vmul.f32 %v9961, %v9963
  %v9965 = vadd.f32 %v9961, %v9964
  %vm9966 = vweird.f32 %v7443
  %vm9967 = vweird.f32 %v9961
  %vm9968 = vmor %vm9966, %vm9967
  %v9969 = vsel %vm9968, %v9961, %v9965
  %v9970 = vand.u32 2147483647, %v7443
  %vm9971 = vcmp.eq.f32.partialorder %v9970, 8.507059e+37
  %v9972 = vand.u32 %v7443, 2147483648
  %v9973 = vor.u32 1.1754944e-38, %v9972
  %v9974 = vsel %vm9971, %v9973, %v9969
  %v9975 = vmul.f32 %v6784, %v9974
  %v9976 = vrcp.pop %v7446
  %v9977 = vmul.f32 %v7446, %v9976
  %v9978 = vsub.f32 1.0, %v9977
  %v9979 = vmul.f32 %v9976, %v9978
  %v9980 = vadd.f32 %v9976, %v9979
  %vm9981 = vweird.f32 %v7446
  %vm9982 = vweird.f32 %v9976
  %vm9983 = vmor %vm9981, %vm9982
  %v9984 = vsel %vm9983, %v9976, %v9980
  %v9985 = vand.u32 2147483647, %v7446
  %vm9986 = vcmp.eq.f32.partialorder %v9985, 8.507059e+37
  %v9987 = vand.u32 %v7446, 2147483648
  %v9988 = vor.u32 1.1754944e-38, %v9987
  %v9989 = vsel %vm9986, %v9988, %v9984
  %v9990 = vmul.f32 %v6786, %v9989
  %v9991 = vrcp.pop %v7449
  %v9992 = vmul.f32 %v7449, %v9991
  %v9993 = vsub.f32 1.0, %v9992
  %v9994 = vmul.f32 %v9991, %v9993
  %v9995 = vadd.f32 %v9991, %v9994
  %vm9996 = vweird.f32 %v7449
  %vm9997 = vweird.f32 %v9991
  %vm9998 = vmor %vm9996, %vm9997
  %v9999 = vsel %vm9998, %v9991, %v9995
  %v10000 = vand.u32 2147483647, %v7449
  %vm10001 = vcmp.eq.f32.partialorder %v10000, 8.507059e+37
  %v10002 = vand.u32 %v7449, 2147483648
  %v10003 = vor.u32 1.1754944e-38, %v10002
  %v10004 = vsel %vm10001, %v10003, %v9999
  %v10005 = vmul.f32 %v6788, %v10004
  %v10006 = vrcp.pop %v7452
  %v10007 = vmul.f32 %v7452, %v10006
  %v10008 = vsub.f32 1.0, %v10007
  %v10009 = vmul.f32 %v10006, %v10008
  %v10010 = vadd.f32 %v10006, %v10009
  %vm10011 = vweird.f32 %v7452
  %vm10012 = vweird.f32 %v10006
  %vm10013 = vmor %vm10011, %vm10012
  %v10014 = vsel %vm10013, %v10006, %v10010
  %v10015 = vand.u32 2147483647, %v7452
  %vm10016 = vcmp.eq.f32.partialorder %v10015, 8.507059e+37
  %v10017 = vand.u32 %v7452, 2147483648
  %v10018 = vor.u32 1.1754944e-38, %v10017
  %v10019 = vsel %vm10016, %v10018, %v10014
  %v10020 = vmul.f32 %v6790, %v10019
  %v10021 = vrcp.pop %v7455
  %v10022 = vmul.f32 %v7455, %v10021
  %v10023 = vsub.f32 1.0, %v10022
  %v10024 = vmul.f32 %v10021, %v10023
  %v10025 = vadd.f32 %v10021, %v10024
  %vm10026 = vweird.f32 %v7455
  %vm10027 = vweird.f32 %v10021
  %vm10028 = vmor %vm10026, %vm10027
  %v10029 = vsel %vm10028, %v10021, %v10025
  %v10030 = vand.u32 2147483647, %v7455
  %vm10031 = vcmp.eq.f32.partialorder %v10030, 8.507059e+37
  %v10032 = vand.u32 %v7455, 2147483648
  %v10033 = vor.u32 1.1754944e-38, %v10032
  %v10034 = vsel %vm10031, %v10033, %v10029
  %v10035 = vmul.f32 %v6792, %v10034
  %v10036 = vrcp.pop %v7458
  %v10037 = vmul.f32 %v7458, %v10036
  %v10038 = vsub.f32 1.0, %v10037
  %v10039 = vmul.f32 %v10036, %v10038
  %v10040 = vadd.f32 %v10036, %v10039
  %vm10041 = vweird.f32 %v7458
  %vm10042 = vweird.f32 %v10036
  %vm10043 = vmor %vm10041, %vm10042
  %v10044 = vsel %vm10043, %v10036, %v10040
  %v10045 = vand.u32 2147483647, %v7458
  %vm10046 = vcmp.eq.f32.partialorder %v10045, 8.507059e+37
  %v10047 = vand.u32 %v7458, 2147483648
  %v10048 = vor.u32 1.1754944e-38, %v10047
  %v10049 = vsel %vm10046, %v10048, %v10044
  %v10050 = vmul.f32 %v6794, %v10049
  %v10051 = vrcp.pop %v7461
  %v10052 = vmul.f32 %v7461, %v10051
  %v10053 = vsub.f32 1.0, %v10052
  %v10054 = vmul.f32 %v10051, %v10053
  %v10055 = vadd.f32 %v10051, %v10054
  %vm10056 = vweird.f32 %v7461
  %vm10057 = vweird.f32 %v10051
  %vm10058 = vmor %vm10056, %vm10057
  %v10059 = vsel %vm10058, %v10051, %v10055
  %v10060 = vand.u32 2147483647, %v7461
  %vm10061 = vcmp.eq.f32.partialorder %v10060, 8.507059e+37
  %v10062 = vand.u32 %v7461, 2147483648
  %v10063 = vor.u32 1.1754944e-38, %v10062
  %v10064 = vsel %vm10061, %v10063, %v10059
  %v10065 = vmul.f32 %v6796, %v10064
  %v10066 = vrcp.pop %v7464
  %v10067 = vmul.f32 %v7464, %v10066
  %v10068 = vsub.f32 1.0, %v10067
  %v10069 = vmul.f32 %v10066, %v10068
  %v10070 = vadd.f32 %v10066, %v10069
  %vm10071 = vweird.f32 %v7464
  %vm10072 = vweird.f32 %v10066
  %vm10073 = vmor %vm10071, %vm10072
  %v10074 = vsel %vm10073, %v10066, %v10070
  %v10075 = vand.u32 2147483647, %v7464
  %vm10076 = vcmp.eq.f32.partialorder %v10075, 8.507059e+37
  %v10077 = vand.u32 %v7464, 2147483648
  %v10078 = vor.u32 1.1754944e-38, %v10077
  %v10079 = vsel %vm10076, %v10078, %v10074
  %v10080 = vmul.f32 %v6798, %v10079
  %v10081 = vrcp.pop %v7467
  %v10082 = vmul.f32 %v7467, %v10081
  %v10083 = vsub.f32 1.0, %v10082
  %v10084 = vmul.f32 %v10081, %v10083
  %v10085 = vadd.f32 %v10081, %v10084
  %vm10086 = vweird.f32 %v7467
  %vm10087 = vweird.f32 %v10081
  %vm10088 = vmor %vm10086, %vm10087
  %v10089 = vsel %vm10088, %v10081, %v10085
  %v10090 = vand.u32 2147483647, %v7467
  %vm10091 = vcmp.eq.f32.partialorder %v10090, 8.507059e+37
  %v10092 = vand.u32 %v7467, 2147483648
  %v10093 = vor.u32 1.1754944e-38, %v10092
  %v10094 = vsel %vm10091, %v10093, %v10089
  %v10095 = vmul.f32 %v6800, %v10094
  %v10096 = vrcp.pop %v7470
  %v10097 = vmul.f32 %v7470, %v10096
  %v10098 = vsub.f32 1.0, %v10097
  %v10099 = vmul.f32 %v10096, %v10098
  %v10100 = vadd.f32 %v10096, %v10099
  %vm10101 = vweird.f32 %v7470
  %vm10102 = vweird.f32 %v10096
  %vm10103 = vmor %vm10101, %vm10102
  %v10104 = vsel %vm10103, %v10096, %v10100
  %v10105 = vand.u32 2147483647, %v7470
  %vm10106 = vcmp.eq.f32.partialorder %v10105, 8.507059e+37
  %v10107 = vand.u32 %v7470, 2147483648
  %v10108 = vor.u32 1.1754944e-38, %v10107
  %v10109 = vsel %vm10106, %v10108, %v10104
  %v10110 = vmul.f32 %v6802, %v10109
  %v10111 = vrcp.pop %v7473
  %v10112 = vmul.f32 %v7473, %v10111
  %v10113 = vsub.f32 1.0, %v10112
  %v10114 = vmul.f32 %v10111, %v10113
  %v10115 = vadd.f32 %v10111, %v10114
  %vm10116 = vweird.f32 %v7473
  %vm10117 = vweird.f32 %v10111
  %vm10118 = vmor %vm10116, %vm10117
  %v10119 = vsel %vm10118, %v10111, %v10115
  %v10120 = vand.u32 2147483647, %v7473
  %vm10121 = vcmp.eq.f32.partialorder %v10120, 8.507059e+37
  %v10122 = vand.u32 %v7473, 2147483648
  %v10123 = vor.u32 1.1754944e-38, %v10122
  %v10124 = vsel %vm10121, %v10123, %v10119
  %v10125 = vmul.f32 %v6804, %v10124
  %v10126 = vrcp.pop %v7476
  %v10127 = vmul.f32 %v7476, %v10126
  %v10128 = vsub.f32 1.0, %v10127
  %v10129 = vmul.f32 %v10126, %v10128
  %v10130 = vadd.f32 %v10126, %v10129
  %vm10131 = vweird.f32 %v7476
  %vm10132 = vweird.f32 %v10126
  %vm10133 = vmor %vm10131, %vm10132
  %v10134 = vsel %vm10133, %v10126, %v10130
  %v10135 = vand.u32 2147483647, %v7476
  %vm10136 = vcmp.eq.f32.partialorder %v10135, 8.507059e+37
  %v10137 = vand.u32 %v7476, 2147483648
  %v10138 = vor.u32 1.1754944e-38, %v10137
  %v10139 = vsel %vm10136, %v10138, %v10134
  %v10140 = vmul.f32 %v6806, %v10139
  %v10141 = vrcp.pop %v7479
  %v10142 = vmul.f32 %v7479, %v10141
  %v10143 = vsub.f32 1.0, %v10142
  %v10144 = vmul.f32 %v10141, %v10143
  %v10145 = vadd.f32 %v10141, %v10144
  %vm10146 = vweird.f32 %v7479
  %vm10147 = vweird.f32 %v10141
  %vm10148 = vmor %vm10146, %vm10147
  %v10149 = vsel %vm10148, %v10141, %v10145
  %v10150 = vand.u32 2147483647, %v7479
  %vm10151 = vcmp.eq.f32.partialorder %v10150, 8.507059e+37
  %v10152 = vand.u32 %v7479, 2147483648
  %v10153 = vor.u32 1.1754944e-38, %v10152
  %v10154 = vsel %vm10151, %v10153, %v10149
  %v10155 = vmul.f32 %v6808, %v10154
  %v10156 = vrcp.pop %v7482
  %v10157 = vmul.f32 %v7482, %v10156
  %v10158 = vsub.f32 1.0, %v10157
  %v10159 = vmul.f32 %v10156, %v10158
  %v10160 = vadd.f32 %v10156, %v10159
  %vm10161 = vweird.f32 %v7482
  %vm10162 = vweird.f32 %v10156
  %vm10163 = vmor %vm10161, %vm10162
  %v10164 = vsel %vm10163, %v10156, %v10160
  %v10165 = vand.u32 2147483647, %v7482
  %vm10166 = vcmp.eq.f32.partialorder %v10165, 8.507059e+37
  %v10167 = vand.u32 %v7482, 2147483648
  %v10168 = vor.u32 1.1754944e-38, %v10167
  %v10169 = vsel %vm10166, %v10168, %v10164
  %v10170 = vmul.f32 %v6810, %v10169
  %v10171 = vrcp.pop %v7485
  %v10172 = vmul.f32 %v7485, %v10171
  %v10173 = vsub.f32 1.0, %v10172
  %v10174 = vmul.f32 %v10171, %v10173
  %v10175 = vadd.f32 %v10171, %v10174
  %vm10176 = vweird.f32 %v7485
  %vm10177 = vweird.f32 %v10171
  %vm10178 = vmor %vm10176, %vm10177
  %v10179 = vsel %vm10178, %v10171, %v10175
  %v10180 = vand.u32 2147483647, %v7485
  %vm10181 = vcmp.eq.f32.partialorder %v10180, 8.507059e+37
  %v10182 = vand.u32 %v7485, 2147483648
  %v10183 = vor.u32 1.1754944e-38, %v10182
  %v10184 = vsel %vm10181, %v10183, %v10179
  %v10185 = vmul.f32 %v6812, %v10184
  %v10186 = vrcp.pop %v7488
  %v10187 = vmul.f32 %v7488, %v10186
  %v10188 = vsub.f32 1.0, %v10187
  %v10189 = vmul.f32 %v10186, %v10188
  %v10190 = vadd.f32 %v10186, %v10189
  %vm10191 = vweird.f32 %v7488
  %vm10192 = vweird.f32 %v10186
  %vm10193 = vmor %vm10191, %vm10192
  %v10194 = vsel %vm10193, %v10186, %v10190
  %v10195 = vand.u32 2147483647, %v7488
  %vm10196 = vcmp.eq.f32.partialorder %v10195, 8.507059e+37
  %v10197 = vand.u32 %v7488, 2147483648
  %v10198 = vor.u32 1.1754944e-38, %v10197
  %v10199 = vsel %vm10196, %v10198, %v10194
  %v10200 = vmul.f32 %v6814, %v10199
  %v10201 = vrcp.pop %v7491
  %v10202 = vmul.f32 %v7491, %v10201
  %v10203 = vsub.f32 1.0, %v10202
  %v10204 = vmul.f32 %v10201, %v10203
  %v10205 = vadd.f32 %v10201, %v10204
  %vm10206 = vweird.f32 %v7491
  %vm10207 = vweird.f32 %v10201
  %vm10208 = vmor %vm10206, %vm10207
  %v10209 = vsel %vm10208, %v10201, %v10205
  %v10210 = vand.u32 2147483647, %v7491
  %vm10211 = vcmp.eq.f32.partialorder %v10210, 8.507059e+37
  %v10212 = vand.u32 %v7491, 2147483648
  %v10213 = vor.u32 1.1754944e-38, %v10212
  %v10214 = vsel %vm10211, %v10213, %v10209
  %v10215 = vmul.f32 %v6816, %v10214
  %v10216 = vrcp.pop %v7494
  %v10217 = vmul.f32 %v7494, %v10216
  %v10218 = vsub.f32 1.0, %v10217
  %v10219 = vmul.f32 %v10216, %v10218
  %v10220 = vadd.f32 %v10216, %v10219
  %vm10221 = vweird.f32 %v7494
  %vm10222 = vweird.f32 %v10216
  %vm10223 = vmor %vm10221, %vm10222
  %v10224 = vsel %vm10223, %v10216, %v10220
  %v10225 = vand.u32 2147483647, %v7494
  %vm10226 = vcmp.eq.f32.partialorder %v10225, 8.507059e+37
  %v10227 = vand.u32 %v7494, 2147483648
  %v10228 = vor.u32 1.1754944e-38, %v10227
  %v10229 = vsel %vm10226, %v10228, %v10224
  %v10230 = vmul.f32 %v6818, %v10229
  %v10231 = vrcp.pop %v7497
  %v10232 = vmul.f32 %v7497, %v10231
  %v10233 = vsub.f32 1.0, %v10232
  %v10234 = vmul.f32 %v10231, %v10233
  %v10235 = vadd.f32 %v10231, %v10234
  %vm10236 = vweird.f32 %v7497
  %vm10237 = vweird.f32 %v10231
  %vm10238 = vmor %vm10236, %vm10237
  %v10239 = vsel %vm10238, %v10231, %v10235
  %v10240 = vand.u32 2147483647, %v7497
  %vm10241 = vcmp.eq.f32.partialorder %v10240, 8.507059e+37
  %v10242 = vand.u32 %v7497, 2147483648
  %v10243 = vor.u32 1.1754944e-38, %v10242
  %v10244 = vsel %vm10241, %v10243, %v10239
  %v10245 = vmul.f32 %v6820, %v10244
  %v10246 = vrcp.pop %v7500
  %v10247 = vmul.f32 %v7500, %v10246
  %v10248 = vsub.f32 1.0, %v10247
  %v10249 = vmul.f32 %v10246, %v10248
  %v10250 = vadd.f32 %v10246, %v10249
  %vm10251 = vweird.f32 %v7500
  %vm10252 = vweird.f32 %v10246
  %vm10253 = vmor %vm10251, %vm10252
  %v10254 = vsel %vm10253, %v10246, %v10250
  %v10255 = vand.u32 2147483647, %v7500
  %vm10256 = vcmp.eq.f32.partialorder %v10255, 8.507059e+37
  %v10257 = vand.u32 %v7500, 2147483648
  %v10258 = vor.u32 1.1754944e-38, %v10257
  %v10259 = vsel %vm10256, %v10258, %v10254
  %v10260 = vmul.f32 %v6822, %v10259
  %v10261 = vrcp.pop %v7503
  %v10262 = vmul.f32 %v7503, %v10261
  %v10263 = vsub.f32 1.0, %v10262
  %v10264 = vmul.f32 %v10261, %v10263
  %v10265 = vadd.f32 %v10261, %v10264
  %vm10266 = vweird.f32 %v7503
  %vm10267 = vweird.f32 %v10261
  %vm10268 = vmor %vm10266, %vm10267
  %v10269 = vsel %vm10268, %v10261, %v10265
  %v10270 = vand.u32 2147483647, %v7503
  %vm10271 = vcmp.eq.f32.partialorder %v10270, 8.507059e+37
  %v10272 = vand.u32 %v7503, 2147483648
  %v10273 = vor.u32 1.1754944e-38, %v10272
  %v10274 = vsel %vm10271, %v10273, %v10269
  %v10275 = vmul.f32 %v6824, %v10274
  %v10276 = vrcp.pop %v7506
  %v10277 = vmul.f32 %v7506, %v10276
  %v10278 = vsub.f32 1.0, %v10277
  %v10279 = vmul.f32 %v10276, %v10278
  %v10280 = vadd.f32 %v10276, %v10279
  %vm10281 = vweird.f32 %v7506
  %vm10282 = vweird.f32 %v10276
  %vm10283 = vmor %vm10281, %vm10282
  %v10284 = vsel %vm10283, %v10276, %v10280
  %v10285 = vand.u32 2147483647, %v7506
  %vm10286 = vcmp.eq.f32.partialorder %v10285, 8.507059e+37
  %v10287 = vand.u32 %v7506, 2147483648
  %v10288 = vor.u32 1.1754944e-38, %v10287
  %v10289 = vsel %vm10286, %v10288, %v10284
  %v10290 = vmul.f32 %v6826, %v10289
  %v10291 = vrcp.pop %v7509
  %v10292 = vmul.f32 %v7509, %v10291
  %v10293 = vsub.f32 1.0, %v10292
  %v10294 = vmul.f32 %v10291, %v10293
  %v10295 = vadd.f32 %v10291, %v10294
  %vm10296 = vweird.f32 %v7509
  %vm10297 = vweird.f32 %v10291
  %vm10298 = vmor %vm10296, %vm10297
  %v10299 = vsel %vm10298, %v10291, %v10295
  %v10300 = vand.u32 2147483647, %v7509
  %vm10301 = vcmp.eq.f32.partialorder %v10300, 8.507059e+37
  %v10302 = vand.u32 %v7509, 2147483648
  %v10303 = vor.u32 1.1754944e-38, %v10302
  %v10304 = vsel %vm10301, %v10303, %v10299
  %v10305 = vmul.f32 %v6828, %v10304
  %v10306 = vrcp.pop %v7512
  %v10307 = vmul.f32 %v7512, %v10306
  %v10308 = vsub.f32 1.0, %v10307
  %v10309 = vmul.f32 %v10306, %v10308
  %v10310 = vadd.f32 %v10306, %v10309
  %vm10311 = vweird.f32 %v7512
  %vm10312 = vweird.f32 %v10306
  %vm10313 = vmor %vm10311, %vm10312
  %v10314 = vsel %vm10313, %v10306, %v10310
  %v10315 = vand.u32 2147483647, %v7512
  %vm10316 = vcmp.eq.f32.partialorder %v10315, 8.507059e+37
  %v10317 = vand.u32 %v7512, 2147483648
  %v10318 = vor.u32 1.1754944e-38, %v10317
  %v10319 = vsel %vm10316, %v10318, %v10314
  %v10320 = vmul.f32 %v6830, %v10319
  %v10321 = vrcp.pop %v7515
  %v10322 = vmul.f32 %v7515, %v10321
  %v10323 = vsub.f32 1.0, %v10322
  %v10324 = vmul.f32 %v10321, %v10323
  %v10325 = vadd.f32 %v10321, %v10324
  %vm10326 = vweird.f32 %v7515
  %vm10327 = vweird.f32 %v10321
  %vm10328 = vmor %vm10326, %vm10327
  %v10329 = vsel %vm10328, %v10321, %v10325
  %v10330 = vand.u32 2147483647, %v7515
  %vm10331 = vcmp.eq.f32.partialorder %v10330, 8.507059e+37
  %v10332 = vand.u32 %v7515, 2147483648
  %v10333 = vor.u32 1.1754944e-38, %v10332
  %v10334 = vsel %vm10331, %v10333, %v10329
  %v10335 = vmul.f32 %v6832, %v10334
  %v10336 = vrcp.pop %v7518
  %v10337 = vmul.f32 %v7518, %v10336
  %v10338 = vsub.f32 1.0, %v10337
  %v10339 = vmul.f32 %v10336, %v10338
  %v10340 = vadd.f32 %v10336, %v10339
  %vm10341 = vweird.f32 %v7518
  %vm10342 = vweird.f32 %v10336
  %vm10343 = vmor %vm10341, %vm10342
  %v10344 = vsel %vm10343, %v10336, %v10340
  %v10345 = vand.u32 2147483647, %v7518
  %vm10346 = vcmp.eq.f32.partialorder %v10345, 8.507059e+37
  %v10347 = vand.u32 %v7518, 2147483648
  %v10348 = vor.u32 1.1754944e-38, %v10347
  %v10349 = vsel %vm10346, %v10348, %v10344
  %v10350 = vmul.f32 %v6834, %v10349
  %v10351 = vrcp.pop %v7521
  %v10352 = vmul.f32 %v7521, %v10351
  %v10353 = vsub.f32 1.0, %v10352
  %v10354 = vmul.f32 %v10351, %v10353
  %v10355 = vadd.f32 %v10351, %v10354
  %vm10356 = vweird.f32 %v7521
  %vm10357 = vweird.f32 %v10351
  %vm10358 = vmor %vm10356, %vm10357
  %v10359 = vsel %vm10358, %v10351, %v10355
  %v10360 = vand.u32 2147483647, %v7521
  %vm10361 = vcmp.eq.f32.partialorder %v10360, 8.507059e+37
  %v10362 = vand.u32 %v7521, 2147483648
  %v10363 = vor.u32 1.1754944e-38, %v10362
  %v10364 = vsel %vm10361, %v10363, %v10359
  %v10365 = vmul.f32 %v6836, %v10364
  %v10366 = vrcp.pop %v7524
  %v10367 = vmul.f32 %v7524, %v10366
  %v10368 = vsub.f32 1.0, %v10367
  %v10369 = vmul.f32 %v10366, %v10368
  %v10370 = vadd.f32 %v10366, %v10369
  %vm10371 = vweird.f32 %v7524
  %vm10372 = vweird.f32 %v10366
  %vm10373 = vmor %vm10371, %vm10372
  %v10374 = vsel %vm10373, %v10366, %v10370
  %v10375 = vand.u32 2147483647, %v7524
  %vm10376 = vcmp.eq.f32.partialorder %v10375, 8.507059e+37
  %v10377 = vand.u32 %v7524, 2147483648
  %v10378 = vor.u32 1.1754944e-38, %v10377
  %v10379 = vsel %vm10376, %v10378, %v10374
  %v10380 = vmul.f32 %v6838, %v10379
  %v10381 = vrcp.pop %v7527
  %v10382 = vmul.f32 %v7527, %v10381
  %v10383 = vsub.f32 1.0, %v10382
  %v10384 = vmul.f32 %v10381, %v10383
  %v10385 = vadd.f32 %v10381, %v10384
  %vm10386 = vweird.f32 %v7527
  %vm10387 = vweird.f32 %v10381
  %vm10388 = vmor %vm10386, %vm10387
  %v10389 = vsel %vm10388, %v10381, %v10385
  %v10390 = vand.u32 2147483647, %v7527
  %vm10391 = vcmp.eq.f32.partialorder %v10390, 8.507059e+37
  %v10392 = vand.u32 %v7527, 2147483648
  %v10393 = vor.u32 1.1754944e-38, %v10392
  %v10394 = vsel %vm10391, %v10393, %v10389
  %v10395 = vmul.f32 %v6840, %v10394
  %v10396 = vrcp.pop %v7530
  %v10397 = vmul.f32 %v7530, %v10396
  %v10398 = vsub.f32 1.0, %v10397
  %v10399 = vmul.f32 %v10396, %v10398
  %v10400 = vadd.f32 %v10396, %v10399
  %vm10401 = vweird.f32 %v7530
  %vm10402 = vweird.f32 %v10396
  %vm10403 = vmor %vm10401, %vm10402
  %v10404 = vsel %vm10403, %v10396, %v10400
  %v10405 = vand.u32 2147483647, %v7530
  %vm10406 = vcmp.eq.f32.partialorder %v10405, 8.507059e+37
  %v10407 = vand.u32 %v7530, 2147483648
  %v10408 = vor.u32 1.1754944e-38, %v10407
  %v10409 = vsel %vm10406, %v10408, %v10404
  %v10410 = vmul.f32 %v6842, %v10409
  %v10411 = vrcp.pop %v7533
  %v10412 = vmul.f32 %v7533, %v10411
  %v10413 = vsub.f32 1.0, %v10412
  %v10414 = vmul.f32 %v10411, %v10413
  %v10415 = vadd.f32 %v10411, %v10414
  %vm10416 = vweird.f32 %v7533
  %vm10417 = vweird.f32 %v10411
  %vm10418 = vmor %vm10416, %vm10417
  %v10419 = vsel %vm10418, %v10411, %v10415
  %v10420 = vand.u32 2147483647, %v7533
  %vm10421 = vcmp.eq.f32.partialorder %v10420, 8.507059e+37
  %v10422 = vand.u32 %v7533, 2147483648
  %v10423 = vor.u32 1.1754944e-38, %v10422
  %v10424 = vsel %vm10421, %v10423, %v10419
  %v10425 = vmul.f32 %v6844, %v10424
  %v10426 = vrcp.pop %v7536
  %v10427 = vmul.f32 %v7536, %v10426
  %v10428 = vsub.f32 1.0, %v10427
  %v10429 = vmul.f32 %v10426, %v10428
  %v10430 = vadd.f32 %v10426, %v10429
  %vm10431 = vweird.f32 %v7536
  %vm10432 = vweird.f32 %v10426
  %vm10433 = vmor %vm10431, %vm10432
  %v10434 = vsel %vm10433, %v10426, %v10430
  %v10435 = vand.u32 2147483647, %v7536
  %vm10436 = vcmp.eq.f32.partialorder %v10435, 8.507059e+37
  %v10437 = vand.u32 %v7536, 2147483648
  %v10438 = vor.u32 1.1754944e-38, %v10437
  %v10439 = vsel %vm10436, %v10438, %v10434
  %v10440 = vmul.f32 %v6846, %v10439
  %v10441 = vrcp.pop %v7539
  %v10442 = vmul.f32 %v7539, %v10441
  %v10443 = vsub.f32 1.0, %v10442
  %v10444 = vmul.f32 %v10441, %v10443
  %v10445 = vadd.f32 %v10441, %v10444
  %vm10446 = vweird.f32 %v7539
  %vm10447 = vweird.f32 %v10441
  %vm10448 = vmor %vm10446, %vm10447
  %v10449 = vsel %vm10448, %v10441, %v10445
  %v10450 = vand.u32 2147483647, %v7539
  %vm10451 = vcmp.eq.f32.partialorder %v10450, 8.507059e+37
  %v10452 = vand.u32 %v7539, 2147483648
  %v10453 = vor.u32 1.1754944e-38, %v10452
  %v10454 = vsel %vm10451, %v10453, %v10449
  %v10455 = vmul.f32 %v6848, %v10454
  %v10456 = vrcp.pop %v7542
  %v10457 = vmul.f32 %v7542, %v10456
  %v10458 = vsub.f32 1.0, %v10457
  %v10459 = vmul.f32 %v10456, %v10458
  %v10460 = vadd.f32 %v10456, %v10459
  %vm10461 = vweird.f32 %v7542
  %vm10462 = vweird.f32 %v10456
  %vm10463 = vmor %vm10461, %vm10462
  %v10464 = vsel %vm10463, %v10456, %v10460
  %v10465 = vand.u32 2147483647, %v7542
  %vm10466 = vcmp.eq.f32.partialorder %v10465, 8.507059e+37
  %v10467 = vand.u32 %v7542, 2147483648
  %v10468 = vor.u32 1.1754944e-38, %v10467
  %v10469 = vsel %vm10466, %v10468, %v10464
  %v10470 = vmul.f32 %v6850, %v10469
  %v10471 = vrcp.pop %v7545
  %v10472 = vmul.f32 %v7545, %v10471
  %v10473 = vsub.f32 1.0, %v10472
  %v10474 = vmul.f32 %v10471, %v10473
  %v10475 = vadd.f32 %v10471, %v10474
  %vm10476 = vweird.f32 %v7545
  %vm10477 = vweird.f32 %v10471
  %vm10478 = vmor %vm10476, %vm10477
  %v10479 = vsel %vm10478, %v10471, %v10475
  %v10480 = vand.u32 2147483647, %v7545
  %vm10481 = vcmp.eq.f32.partialorder %v10480, 8.507059e+37
  %v10482 = vand.u32 %v7545, 2147483648
  %v10483 = vor.u32 1.1754944e-38, %v10482
  %v10484 = vsel %vm10481, %v10483, %v10479
  %v10485 = vmul.f32 %v6852, %v10484
  %v10486 = vrcp.pop %v7548
  %v10487 = vmul.f32 %v7548, %v10486
  %v10488 = vsub.f32 1.0, %v10487
  %v10489 = vmul.f32 %v10486, %v10488
  %v10490 = vadd.f32 %v10486, %v10489
  %vm10491 = vweird.f32 %v7548
  %vm10492 = vweird.f32 %v10486
  %vm10493 = vmor %vm10491, %vm10492
  %v10494 = vsel %vm10493, %v10486, %v10490
  %v10495 = vand.u32 2147483647, %v7548
  %vm10496 = vcmp.eq.f32.partialorder %v10495, 8.507059e+37
  %v10497 = vand.u32 %v7548, 2147483648
  %v10498 = vor.u32 1.1754944e-38, %v10497
  %v10499 = vsel %vm10496, %v10498, %v10494
  %v10500 = vmul.f32 %v6854, %v10499
  %v10501 = vrcp.pop %v7551
  %v10502 = vmul.f32 %v7551, %v10501
  %v10503 = vsub.f32 1.0, %v10502
  %v10504 = vmul.f32 %v10501, %v10503
  %v10505 = vadd.f32 %v10501, %v10504
  %vm10506 = vweird.f32 %v7551
  %vm10507 = vweird.f32 %v10501
  %vm10508 = vmor %vm10506, %vm10507
  %v10509 = vsel %vm10508, %v10501, %v10505
  %v10510 = vand.u32 2147483647, %v7551
  %vm10511 = vcmp.eq.f32.partialorder %v10510, 8.507059e+37
  %v10512 = vand.u32 %v7551, 2147483648
  %v10513 = vor.u32 1.1754944e-38, %v10512
  %v10514 = vsel %vm10511, %v10513, %v10509
  %v10515 = vmul.f32 %v6856, %v10514
  %v10516 = vrcp.pop %v7554
  %v10517 = vmul.f32 %v7554, %v10516
  %v10518 = vsub.f32 1.0, %v10517
  %v10519 = vmul.f32 %v10516, %v10518
  %v10520 = vadd.f32 %v10516, %v10519
  %vm10521 = vweird.f32 %v7554
  %vm10522 = vweird.f32 %v10516
  %vm10523 = vmor %vm10521, %vm10522
  %v10524 = vsel %vm10523, %v10516, %v10520
  %v10525 = vand.u32 2147483647, %v7554
  %vm10526 = vcmp.eq.f32.partialorder %v10525, 8.507059e+37
  %v10527 = vand.u32 %v7554, 2147483648
  %v10528 = vor.u32 1.1754944e-38, %v10527
  %v10529 = vsel %vm10526, %v10528, %v10524
  %v10530 = vmul.f32 %v6858, %v10529
  %v10531 = vrcp.pop %v7557
  %v10532 = vmul.f32 %v7557, %v10531
  %v10533 = vsub.f32 1.0, %v10532
  %v10534 = vmul.f32 %v10531, %v10533
  %v10535 = vadd.f32 %v10531, %v10534
  %vm10536 = vweird.f32 %v7557
  %vm10537 = vweird.f32 %v10531
  %vm10538 = vmor %vm10536, %vm10537
  %v10539 = vsel %vm10538, %v10531, %v10535
  %v10540 = vand.u32 2147483647, %v7557
  %vm10541 = vcmp.eq.f32.partialorder %v10540, 8.507059e+37
  %v10542 = vand.u32 %v7557, 2147483648
  %v10543 = vor.u32 1.1754944e-38, %v10542
  %v10544 = vsel %vm10541, %v10543, %v10539
  %v10545 = vmul.f32 %v6860, %v10544
  %v10546 = vrcp.pop %v7560
  %v10547 = vmul.f32 %v7560, %v10546
  %v10548 = vsub.f32 1.0, %v10547
  %v10549 = vmul.f32 %v10546, %v10548
  %v10550 = vadd.f32 %v10546, %v10549
  %vm10551 = vweird.f32 %v7560
  %vm10552 = vweird.f32 %v10546
  %vm10553 = vmor %vm10551, %vm10552
  %v10554 = vsel %vm10553, %v10546, %v10550
  %v10555 = vand.u32 2147483647, %v7560
  %vm10556 = vcmp.eq.f32.partialorder %v10555, 8.507059e+37
  %v10557 = vand.u32 %v7560, 2147483648
  %v10558 = vor.u32 1.1754944e-38, %v10557
  %v10559 = vsel %vm10556, %v10558, %v10554
  %v10560 = vmul.f32 %v6862, %v10559
  %v10561 = vrcp.pop %v7563
  %v10562 = vmul.f32 %v7563, %v10561
  %v10563 = vsub.f32 1.0, %v10562
  %v10564 = vmul.f32 %v10561, %v10563
  %v10565 = vadd.f32 %v10561, %v10564
  %vm10566 = vweird.f32 %v7563
  %vm10567 = vweird.f32 %v10561
  %vm10568 = vmor %vm10566, %vm10567
  %v10569 = vsel %vm10568, %v10561, %v10565
  %v10570 = vand.u32 2147483647, %v7563
  %vm10571 = vcmp.eq.f32.partialorder %v10570, 8.507059e+37
  %v10572 = vand.u32 %v7563, 2147483648
  %v10573 = vor.u32 1.1754944e-38, %v10572
  %v10574 = vsel %vm10571, %v10573, %v10569
  %v10575 = vmul.f32 %v6864, %v10574
  %v10576 = vrcp.pop %v7566
  %v10577 = vmul.f32 %v7566, %v10576
  %v10578 = vsub.f32 1.0, %v10577
  %v10579 = vmul.f32 %v10576, %v10578
  %v10580 = vadd.f32 %v10576, %v10579
  %vm10581 = vweird.f32 %v7566
  %vm10582 = vweird.f32 %v10576
  %vm10583 = vmor %vm10581, %vm10582
  %v10584 = vsel %vm10583, %v10576, %v10580
  %v10585 = vand.u32 2147483647, %v7566
  %vm10586 = vcmp.eq.f32.partialorder %v10585, 8.507059e+37
  %v10587 = vand.u32 %v7566, 2147483648
  %v10588 = vor.u32 1.1754944e-38, %v10587
  %v10589 = vsel %vm10586, %v10588, %v10584
  %v10590 = vmul.f32 %v6866, %v10589
  %v10591 = vrcp.pop %v7569
  %v10592 = vmul.f32 %v7569, %v10591
  %v10593 = vsub.f32 1.0, %v10592
  %v10594 = vmul.f32 %v10591, %v10593
  %v10595 = vadd.f32 %v10591, %v10594
  %vm10596 = vweird.f32 %v7569
  %vm10597 = vweird.f32 %v10591
  %vm10598 = vmor %vm10596, %vm10597
  %v10599 = vsel %vm10598, %v10591, %v10595
  %v10600 = vand.u32 2147483647, %v7569
  %vm10601 = vcmp.eq.f32.partialorder %v10600, 8.507059e+37
  %v10602 = vand.u32 %v7569, 2147483648
  %v10603 = vor.u32 1.1754944e-38, %v10602
  %v10604 = vsel %vm10601, %v10603, %v10599
  %v10605 = vmul.f32 %v6868, %v10604
  %v10606 = vrcp.pop %v7572
  %v10607 = vmul.f32 %v7572, %v10606
  %v10608 = vsub.f32 1.0, %v10607
  %v10609 = vmul.f32 %v10606, %v10608
  %v10610 = vadd.f32 %v10606, %v10609
  %vm10611 = vweird.f32 %v7572
  %vm10612 = vweird.f32 %v10606
  %vm10613 = vmor %vm10611, %vm10612
  %v10614 = vsel %vm10613, %v10606, %v10610
  %v10615 = vand.u32 2147483647, %v7572
  %vm10616 = vcmp.eq.f32.partialorder %v10615, 8.507059e+37
  %v10617 = vand.u32 %v7572, 2147483648
  %v10618 = vor.u32 1.1754944e-38, %v10617
  %v10619 = vsel %vm10616, %v10618, %v10614
  %v10620 = vmul.f32 %v6870, %v10619
  %v10621 = vrcp.pop %v7575
  %v10622 = vmul.f32 %v7575, %v10621
  %v10623 = vsub.f32 1.0, %v10622
  %v10624 = vmul.f32 %v10621, %v10623
  %v10625 = vadd.f32 %v10621, %v10624
  %vm10626 = vweird.f32 %v7575
  %vm10627 = vweird.f32 %v10621
  %vm10628 = vmor %vm10626, %vm10627
  %v10629 = vsel %vm10628, %v10621, %v10625
  %v10630 = vand.u32 2147483647, %v7575
  %vm10631 = vcmp.eq.f32.partialorder %v10630, 8.507059e+37
  %v10632 = vand.u32 %v7575, 2147483648
  %v10633 = vor.u32 1.1754944e-38, %v10632
  %v10634 = vsel %vm10631, %v10633, %v10629
  %v10635 = vmul.f32 %v6872, %v10634
  %v10636 = vrcp.pop %v7578
  %v10637 = vmul.f32 %v7578, %v10636
  %v10638 = vsub.f32 1.0, %v10637
  %v10639 = vmul.f32 %v10636, %v10638
  %v10640 = vadd.f32 %v10636, %v10639
  %vm10641 = vweird.f32 %v7578
  %vm10642 = vweird.f32 %v10636
  %vm10643 = vmor %vm10641, %vm10642
  %v10644 = vsel %vm10643, %v10636, %v10640
  %v10645 = vand.u32 2147483647, %v7578
  %vm10646 = vcmp.eq.f32.partialorder %v10645, 8.507059e+37
  %v10647 = vand.u32 %v7578, 2147483648
  %v10648 = vor.u32 1.1754944e-38, %v10647
  %v10649 = vsel %vm10646, %v10648, %v10644
  %v10650 = vmul.f32 %v6874, %v10649
  %v10651 = vrcp.pop %v7581
  %v10652 = vmul.f32 %v7581, %v10651
  %v10653 = vsub.f32 1.0, %v10652
  %v10654 = vmul.f32 %v10651, %v10653
  %v10655 = vadd.f32 %v10651, %v10654
  %vm10656 = vweird.f32 %v7581
  %vm10657 = vweird.f32 %v10651
  %vm10658 = vmor %vm10656, %vm10657
  %v10659 = vsel %vm10658, %v10651, %v10655
  %v10660 = vand.u32 2147483647, %v7581
  %vm10661 = vcmp.eq.f32.partialorder %v10660, 8.507059e+37
  %v10662 = vand.u32 %v7581, 2147483648
  %v10663 = vor.u32 1.1754944e-38, %v10662
  %v10664 = vsel %vm10661, %v10663, %v10659
  %v10665 = vmul.f32 %v6876, %v10664
  %v10666 = vrcp.pop %v7584
  %v10667 = vmul.f32 %v7584, %v10666
  %v10668 = vsub.f32 1.0, %v10667
  %v10669 = vmul.f32 %v10666, %v10668
  %v10670 = vadd.f32 %v10666, %v10669
  %vm10671 = vweird.f32 %v7584
  %vm10672 = vweird.f32 %v10666
  %vm10673 = vmor %vm10671, %vm10672
  %v10674 = vsel %vm10673, %v10666, %v10670
  %v10675 = vand.u32 2147483647, %v7584
  %vm10676 = vcmp.eq.f32.partialorder %v10675, 8.507059e+37
  %v10677 = vand.u32 %v7584, 2147483648
  %v10678 = vor.u32 1.1754944e-38, %v10677
  %v10679 = vsel %vm10676, %v10678, %v10674
  %v10680 = vmul.f32 %v6878, %v10679
  %v10681 = vrcp.pop %v7587
  %v10682 = vmul.f32 %v7587, %v10681
  %v10683 = vsub.f32 1.0, %v10682
  %v10684 = vmul.f32 %v10681, %v10683
  %v10685 = vadd.f32 %v10681, %v10684
  %vm10686 = vweird.f32 %v7587
  %vm10687 = vweird.f32 %v10681
  %vm10688 = vmor %vm10686, %vm10687
  %v10689 = vsel %vm10688, %v10681, %v10685
  %v10690 = vand.u32 2147483647, %v7587
  %vm10691 = vcmp.eq.f32.partialorder %v10690, 8.507059e+37
  %v10692 = vand.u32 %v7587, 2147483648
  %v10693 = vor.u32 1.1754944e-38, %v10692
  %v10694 = vsel %vm10691, %v10693, %v10689
  %v10695 = vmul.f32 %v6880, %v10694
  %v10696 = vrcp.pop %v7590
  %v10697 = vmul.f32 %v7590, %v10696
  %v10698 = vsub.f32 1.0, %v10697
  %v10699 = vmul.f32 %v10696, %v10698
  %v10700 = vadd.f32 %v10696, %v10699
  %vm10701 = vweird.f32 %v7590
  %vm10702 = vweird.f32 %v10696
  %vm10703 = vmor %vm10701, %vm10702
  %v10704 = vsel %vm10703, %v10696, %v10700
  %v10705 = vand.u32 2147483647, %v7590
  %vm10706 = vcmp.eq.f32.partialorder %v10705, 8.507059e+37
  %v10707 = vand.u32 %v7590, 2147483648
  %v10708 = vor.u32 1.1754944e-38, %v10707
  %v10709 = vsel %vm10706, %v10708, %v10704
  %v10710 = vmul.f32 %v6882, %v10709
  %v10711 = vrcp.pop %v7593
  %v10712 = vmul.f32 %v7593, %v10711
  %v10713 = vsub.f32 1.0, %v10712
  %v10714 = vmul.f32 %v10711, %v10713
  %v10715 = vadd.f32 %v10711, %v10714
  %vm10716 = vweird.f32 %v7593
  %vm10717 = vweird.f32 %v10711
  %vm10718 = vmor %vm10716, %vm10717
  %v10719 = vsel %vm10718, %v10711, %v10715
  %v10720 = vand.u32 2147483647, %v7593
  %vm10721 = vcmp.eq.f32.partialorder %v10720, 8.507059e+37
  %v10722 = vand.u32 %v7593, 2147483648
  %v10723 = vor.u32 1.1754944e-38, %v10722
  %v10724 = vsel %vm10721, %v10723, %v10719
  %v10725 = vmul.f32 %v6884, %v10724
  %v10726 = vrcp.pop %v7596
  %v10727 = vmul.f32 %v7596, %v10726
  %v10728 = vsub.f32 1.0, %v10727
  %v10729 = vmul.f32 %v10726, %v10728
  %v10730 = vadd.f32 %v10726, %v10729
  %vm10731 = vweird.f32 %v7596
  %vm10732 = vweird.f32 %v10726
  %vm10733 = vmor %vm10731, %vm10732
  %v10734 = vsel %vm10733, %v10726, %v10730
  %v10735 = vand.u32 2147483647, %v7596
  %vm10736 = vcmp.eq.f32.partialorder %v10735, 8.507059e+37
  %v10737 = vand.u32 %v7596, 2147483648
  %v10738 = vor.u32 1.1754944e-38, %v10737
  %v10739 = vsel %vm10736, %v10738, %v10734
  %v10740 = vmul.f32 %v6886, %v10739
  %v10741 = vrcp.pop %v7599
  %v10742 = vmul.f32 %v7599, %v10741
  %v10743 = vsub.f32 1.0, %v10742
  %v10744 = vmul.f32 %v10741, %v10743
  %v10745 = vadd.f32 %v10741, %v10744
  %vm10746 = vweird.f32 %v7599
  %vm10747 = vweird.f32 %v10741
  %vm10748 = vmor %vm10746, %vm10747
  %v10749 = vsel %vm10748, %v10741, %v10745
  %v10750 = vand.u32 2147483647, %v7599
  %vm10751 = vcmp.eq.f32.partialorder %v10750, 8.507059e+37
  %v10752 = vand.u32 %v7599, 2147483648
  %v10753 = vor.u32 1.1754944e-38, %v10752
  %v10754 = vsel %vm10751, %v10753, %v10749
  %v10755 = vmul.f32 %v6888, %v10754
  %v10756 = vrcp.pop %v7602
  %v10757 = vmul.f32 %v7602, %v10756
  %v10758 = vsub.f32 1.0, %v10757
  %v10759 = vmul.f32 %v10756, %v10758
  %v10760 = vadd.f32 %v10756, %v10759
  %vm10761 = vweird.f32 %v7602
  %vm10762 = vweird.f32 %v10756
  %vm10763 = vmor %vm10761, %vm10762
  %v10764 = vsel %vm10763, %v10756, %v10760
  %v10765 = vand.u32 2147483647, %v7602
  %vm10766 = vcmp.eq.f32.partialorder %v10765, 8.507059e+37
  %v10767 = vand.u32 %v7602, 2147483648
  %v10768 = vor.u32 1.1754944e-38, %v10767
  %v10769 = vsel %vm10766, %v10768, %v10764
  %v10770 = vmul.f32 %v6890, %v10769
  %v10771 = vrcp.pop %v7605
  %v10772 = vmul.f32 %v7605, %v10771
  %v10773 = vsub.f32 1.0, %v10772
  %v10774 = vmul.f32 %v10771, %v10773
  %v10775 = vadd.f32 %v10771, %v10774
  %vm10776 = vweird.f32 %v7605
  %vm10777 = vweird.f32 %v10771
  %vm10778 = vmor %vm10776, %vm10777
  %v10779 = vsel %vm10778, %v10771, %v10775
  %v10780 = vand.u32 2147483647, %v7605
  %vm10781 = vcmp.eq.f32.partialorder %v10780, 8.507059e+37
  %v10782 = vand.u32 %v7605, 2147483648
  %v10783 = vor.u32 1.1754944e-38, %v10782
  %v10784 = vsel %vm10781, %v10783, %v10779
  %v10785 = vmul.f32 %v6892, %v10784
  %v10786 = vrcp.pop %v7608
  %v10787 = vmul.f32 %v7608, %v10786
  %v10788 = vsub.f32 1.0, %v10787
  %v10789 = vmul.f32 %v10786, %v10788
  %v10790 = vadd.f32 %v10786, %v10789
  %vm10791 = vweird.f32 %v7608
  %vm10792 = vweird.f32 %v10786
  %vm10793 = vmor %vm10791, %vm10792
  %v10794 = vsel %vm10793, %v10786, %v10790
  %v10795 = vand.u32 2147483647, %v7608
  %vm10796 = vcmp.eq.f32.partialorder %v10795, 8.507059e+37
  %v10797 = vand.u32 %v7608, 2147483648
  %v10798 = vor.u32 1.1754944e-38, %v10797
  %v10799 = vsel %vm10796, %v10798, %v10794
  %v10800 = vmul.f32 %v6894, %v10799
  %v10801 = vrcp.pop %v7611
  %v10802 = vmul.f32 %v7611, %v10801
  %v10803 = vsub.f32 1.0, %v10802
  %v10804 = vmul.f32 %v10801, %v10803
  %v10805 = vadd.f32 %v10801, %v10804
  %vm10806 = vweird.f32 %v7611
  %vm10807 = vweird.f32 %v10801
  %vm10808 = vmor %vm10806, %vm10807
  %v10809 = vsel %vm10808, %v10801, %v10805
  %v10810 = vand.u32 2147483647, %v7611
  %vm10811 = vcmp.eq.f32.partialorder %v10810, 8.507059e+37
  %v10812 = vand.u32 %v7611, 2147483648
  %v10813 = vor.u32 1.1754944e-38, %v10812
  %v10814 = vsel %vm10811, %v10813, %v10809
  %v10815 = vmul.f32 %v6896, %v10814
  %v10816 = vrcp.pop %v7614
  %v10817 = vmul.f32 %v7614, %v10816
  %v10818 = vsub.f32 1.0, %v10817
  %v10819 = vmul.f32 %v10816, %v10818
  %v10820 = vadd.f32 %v10816, %v10819
  %vm10821 = vweird.f32 %v7614
  %vm10822 = vweird.f32 %v10816
  %vm10823 = vmor %vm10821, %vm10822
  %v10824 = vsel %vm10823, %v10816, %v10820
  %v10825 = vand.u32 2147483647, %v7614
  %vm10826 = vcmp.eq.f32.partialorder %v10825, 8.507059e+37
  %v10827 = vand.u32 %v7614, 2147483648
  %v10828 = vor.u32 1.1754944e-38, %v10827
  %v10829 = vsel %vm10826, %v10828, %v10824
  %v10830 = vmul.f32 %v6898, %v10829
  %v10831 = vrcp.pop %v7617
  %v10832 = vmul.f32 %v7617, %v10831
  %v10833 = vsub.f32 1.0, %v10832
  %v10834 = vmul.f32 %v10831, %v10833
  %v10835 = vadd.f32 %v10831, %v10834
  %vm10836 = vweird.f32 %v7617
  %vm10837 = vweird.f32 %v10831
  %vm10838 = vmor %vm10836, %vm10837
  %v10839 = vsel %vm10838, %v10831, %v10835
  %v10840 = vand.u32 2147483647, %v7617
  %vm10841 = vcmp.eq.f32.partialorder %v10840, 8.507059e+37
  %v10842 = vand.u32 %v7617, 2147483648
  %v10843 = vor.u32 1.1754944e-38, %v10842
  %v10844 = vsel %vm10841, %v10843, %v10839
  %v10845 = vmul.f32 %v6900, %v10844
  %v10846 = vrcp.pop %v7620
  %v10847 = vmul.f32 %v7620, %v10846
  %v10848 = vsub.f32 1.0, %v10847
  %v10849 = vmul.f32 %v10846, %v10848
  %v10850 = vadd.f32 %v10846, %v10849
  %vm10851 = vweird.f32 %v7620
  %vm10852 = vweird.f32 %v10846
  %vm10853 = vmor %vm10851, %vm10852
  %v10854 = vsel %vm10853, %v10846, %v10850
  %v10855 = vand.u32 2147483647, %v7620
  %vm10856 = vcmp.eq.f32.partialorder %v10855, 8.507059e+37
  %v10857 = vand.u32 %v7620, 2147483648
  %v10858 = vor.u32 1.1754944e-38, %v10857
  %v10859 = vsel %vm10856, %v10858, %v10854
  %v10860 = vmul.f32 %v6902, %v10859
  %v10861 = vrcp.pop %v7623
  %v10862 = vmul.f32 %v7623, %v10861
  %v10863 = vsub.f32 1.0, %v10862
  %v10864 = vmul.f32 %v10861, %v10863
  %v10865 = vadd.f32 %v10861, %v10864
  %vm10866 = vweird.f32 %v7623
  %vm10867 = vweird.f32 %v10861
  %vm10868 = vmor %vm10866, %vm10867
  %v10869 = vsel %vm10868, %v10861, %v10865
  %v10870 = vand.u32 2147483647, %v7623
  %vm10871 = vcmp.eq.f32.partialorder %v10870, 8.507059e+37
  %v10872 = vand.u32 %v7623, 2147483648
  %v10873 = vor.u32 1.1754944e-38, %v10872
  %v10874 = vsel %vm10871, %v10873, %v10869
  %v10875 = vmul.f32 %v6904, %v10874
  %v10876 = vrcp.pop %v7626
  %v10877 = vmul.f32 %v7626, %v10876
  %v10878 = vsub.f32 1.0, %v10877
  %v10879 = vmul.f32 %v10876, %v10878
  %v10880 = vadd.f32 %v10876, %v10879
  %vm10881 = vweird.f32 %v7626
  %vm10882 = vweird.f32 %v10876
  %vm10883 = vmor %vm10881, %vm10882
  %v10884 = vsel %vm10883, %v10876, %v10880
  %v10885 = vand.u32 2147483647, %v7626
  %vm10886 = vcmp.eq.f32.partialorder %v10885, 8.507059e+37
  %v10887 = vand.u32 %v7626, 2147483648
  %v10888 = vor.u32 1.1754944e-38, %v10887
  %v10889 = vsel %vm10886, %v10888, %v10884
  %v10890 = vmul.f32 %v6906, %v10889
  %v10891 = vrcp.pop %v7629
  %v10892 = vmul.f32 %v7629, %v10891
  %v10893 = vsub.f32 1.0, %v10892
  %v10894 = vmul.f32 %v10891, %v10893
  %v10895 = vadd.f32 %v10891, %v10894
  %vm10896 = vweird.f32 %v7629
  %vm10897 = vweird.f32 %v10891
  %vm10898 = vmor %vm10896, %vm10897
  %v10899 = vsel %vm10898, %v10891, %v10895
  %v10900 = vand.u32 2147483647, %v7629
  %vm10901 = vcmp.eq.f32.partialorder %v10900, 8.507059e+37
  %v10902 = vand.u32 %v7629, 2147483648
  %v10903 = vor.u32 1.1754944e-38, %v10902
  %v10904 = vsel %vm10901, %v10903, %v10899
  %v10905 = vmul.f32 %v6908, %v10904
  %v10906 = vrcp.pop %v7632
  %v10907 = vmul.f32 %v7632, %v10906
  %v10908 = vsub.f32 1.0, %v10907
  %v10909 = vmul.f32 %v10906, %v10908
  %v10910 = vadd.f32 %v10906, %v10909
  %vm10911 = vweird.f32 %v7632
  %vm10912 = vweird.f32 %v10906
  %vm10913 = vmor %vm10911, %vm10912
  %v10914 = vsel %vm10913, %v10906, %v10910
  %v10915 = vand.u32 2147483647, %v7632
  %vm10916 = vcmp.eq.f32.partialorder %v10915, 8.507059e+37
  %v10917 = vand.u32 %v7632, 2147483648
  %v10918 = vor.u32 1.1754944e-38, %v10917
  %v10919 = vsel %vm10916, %v10918, %v10914
  %v10920 = vmul.f32 %v6910, %v10919
  %v10921 = vrcp.pop %v7635
  %v10922 = vmul.f32 %v7635, %v10921
  %v10923 = vsub.f32 1.0, %v10922
  %v10924 = vmul.f32 %v10921, %v10923
  %v10925 = vadd.f32 %v10921, %v10924
  %vm10926 = vweird.f32 %v7635
  %vm10927 = vweird.f32 %v10921
  %vm10928 = vmor %vm10926, %vm10927
  %v10929 = vsel %vm10928, %v10921, %v10925
  %v10930 = vand.u32 2147483647, %v7635
  %vm10931 = vcmp.eq.f32.partialorder %v10930, 8.507059e+37
  %v10932 = vand.u32 %v7635, 2147483648
  %v10933 = vor.u32 1.1754944e-38, %v10932
  %v10934 = vsel %vm10931, %v10933, %v10929
  %v10935 = vmul.f32 %v6912, %v10934
  %v10936 = vrcp.pop %v7638
  %v10937 = vmul.f32 %v7638, %v10936
  %v10938 = vsub.f32 1.0, %v10937
  %v10939 = vmul.f32 %v10936, %v10938
  %v10940 = vadd.f32 %v10936, %v10939
  %vm10941 = vweird.f32 %v7638
  %vm10942 = vweird.f32 %v10936
  %vm10943 = vmor %vm10941, %vm10942
  %v10944 = vsel %vm10943, %v10936, %v10940
  %v10945 = vand.u32 2147483647, %v7638
  %vm10946 = vcmp.eq.f32.partialorder %v10945, 8.507059e+37
  %v10947 = vand.u32 %v7638, 2147483648
  %v10948 = vor.u32 1.1754944e-38, %v10947
  %v10949 = vsel %vm10946, %v10948, %v10944
  %v10950 = vmul.f32 %v6914, %v10949
  %v10951 = vrcp.pop %v7641
  %v10952 = vmul.f32 %v7641, %v10951
  %v10953 = vsub.f32 1.0, %v10952
  %v10954 = vmul.f32 %v10951, %v10953
  %v10955 = vadd.f32 %v10951, %v10954
  %vm10956 = vweird.f32 %v7641
  %vm10957 = vweird.f32 %v10951
  %vm10958 = vmor %vm10956, %vm10957
  %v10959 = vsel %vm10958, %v10951, %v10955
  %v10960 = vand.u32 2147483647, %v7641
  %vm10961 = vcmp.eq.f32.partialorder %v10960, 8.507059e+37
  %v10962 = vand.u32 %v7641, 2147483648
  %v10963 = vor.u32 1.1754944e-38, %v10962
  %v10964 = vsel %vm10961, %v10963, %v10959
  %v10965 = vmul.f32 %v6916, %v10964
  %v10966 = vrcp.pop %v7644
  %v10967 = vmul.f32 %v7644, %v10966
  %v10968 = vsub.f32 1.0, %v10967
  %v10969 = vmul.f32 %v10966, %v10968
  %v10970 = vadd.f32 %v10966, %v10969
  %vm10971 = vweird.f32 %v7644
  %vm10972 = vweird.f32 %v10966
  %vm10973 = vmor %vm10971, %vm10972
  %v10974 = vsel %vm10973, %v10966, %v10970
  %v10975 = vand.u32 2147483647, %v7644
  %vm10976 = vcmp.eq.f32.partialorder %v10975, 8.507059e+37
  %v10977 = vand.u32 %v7644, 2147483648
  %v10978 = vor.u32 1.1754944e-38, %v10977
  %v10979 = vsel %vm10976, %v10978, %v10974
  %v10980 = vmul.f32 %v6918, %v10979
  %v10981 = vrcp.pop %v7647
  %v10982 = vmul.f32 %v7647, %v10981
  %v10983 = vsub.f32 1.0, %v10982
  %v10984 = vmul.f32 %v10981, %v10983
  %v10985 = vadd.f32 %v10981, %v10984
  %vm10986 = vweird.f32 %v7647
  %vm10987 = vweird.f32 %v10981
  %vm10988 = vmor %vm10986, %vm10987
  %v10989 = vsel %vm10988, %v10981, %v10985
  %v10990 = vand.u32 2147483647, %v7647
  %vm10991 = vcmp.eq.f32.partialorder %v10990, 8.507059e+37
  %v10992 = vand.u32 %v7647, 2147483648
  %v10993 = vor.u32 1.1754944e-38, %v10992
  %v10994 = vsel %vm10991, %v10993, %v10989
  %v10995 = vmul.f32 %v6920, %v10994
  %v10996 = vrcp.pop %v7650
  %v10997 = vmul.f32 %v7650, %v10996
  %v10998 = vsub.f32 1.0, %v10997
  %v10999 = vmul.f32 %v10996, %v10998
  %v11000 = vadd.f32 %v10996, %v10999
  %vm11001 = vweird.f32 %v7650
  %vm11002 = vweird.f32 %v10996
  %vm11003 = vmor %vm11001, %vm11002
  %v11004 = vsel %vm11003, %v10996, %v11000
  %v11005 = vand.u32 2147483647, %v7650
  %vm11006 = vcmp.eq.f32.partialorder %v11005, 8.507059e+37
  %v11007 = vand.u32 %v7650, 2147483648
  %v11008 = vor.u32 1.1754944e-38, %v11007
  %v11009 = vsel %vm11006, %v11008, %v11004
  %v11010 = vmul.f32 %v6922, %v11009
  %v11011 = vrcp.pop %v7653
  %v11012 = vmul.f32 %v7653, %v11011
  %v11013 = vsub.f32 1.0, %v11012
  %v11014 = vmul.f32 %v11011, %v11013
  %v11015 = vadd.f32 %v11011, %v11014
  %vm11016 = vweird.f32 %v7653
  %vm11017 = vweird.f32 %v11011
  %vm11018 = vmor %vm11016, %vm11017
  %v11019 = vsel %vm11018, %v11011, %v11015
  %v11020 = vand.u32 2147483647, %v7653
  %vm11021 = vcmp.eq.f32.partialorder %v11020, 8.507059e+37
  %v11022 = vand.u32 %v7653, 2147483648
  %v11023 = vor.u32 1.1754944e-38, %v11022
  %v11024 = vsel %vm11021, %v11023, %v11019
  %v11025 = vmul.f32 %v6924, %v11024
  %v11026 = vrcp.pop %v7656
  %v11027 = vmul.f32 %v7656, %v11026
  %v11028 = vsub.f32 1.0, %v11027
  %v11029 = vmul.f32 %v11026, %v11028
  %v11030 = vadd.f32 %v11026, %v11029
  %vm11031 = vweird.f32 %v7656
  %vm11032 = vweird.f32 %v11026
  %vm11033 = vmor %vm11031, %vm11032
  %v11034 = vsel %vm11033, %v11026, %v11030
  %v11035 = vand.u32 2147483647, %v7656
  %vm11036 = vcmp.eq.f32.partialorder %v11035, 8.507059e+37
  %v11037 = vand.u32 %v7656, 2147483648
  %v11038 = vor.u32 1.1754944e-38, %v11037
  %v11039 = vsel %vm11036, %v11038, %v11034
  %v11040 = vmul.f32 %v6926, %v11039
  %v11041 = vrcp.pop %v7659
  %v11042 = vmul.f32 %v7659, %v11041
  %v11043 = vsub.f32 1.0, %v11042
  %v11044 = vmul.f32 %v11041, %v11043
  %v11045 = vadd.f32 %v11041, %v11044
  %vm11046 = vweird.f32 %v7659
  %vm11047 = vweird.f32 %v11041
  %vm11048 = vmor %vm11046, %vm11047
  %v11049 = vsel %vm11048, %v11041, %v11045
  %v11050 = vand.u32 2147483647, %v7659
  %vm11051 = vcmp.eq.f32.partialorder %v11050, 8.507059e+37
  %v11052 = vand.u32 %v7659, 2147483648
  %v11053 = vor.u32 1.1754944e-38, %v11052
  %v11054 = vsel %vm11051, %v11053, %v11049
  %v11055 = vmul.f32 %v6928, %v11054
  %v11056 = vrcp.pop %v7662
  %v11057 = vmul.f32 %v7662, %v11056
  %v11058 = vsub.f32 1.0, %v11057
  %v11059 = vmul.f32 %v11056, %v11058
  %v11060 = vadd.f32 %v11056, %v11059
  %vm11061 = vweird.f32 %v7662
  %vm11062 = vweird.f32 %v11056
  %vm11063 = vmor %vm11061, %vm11062
  %v11064 = vsel %vm11063, %v11056, %v11060
  %v11065 = vand.u32 2147483647, %v7662
  %vm11066 = vcmp.eq.f32.partialorder %v11065, 8.507059e+37
  %v11067 = vand.u32 %v7662, 2147483648
  %v11068 = vor.u32 1.1754944e-38, %v11067
  %v11069 = vsel %vm11066, %v11068, %v11064
  %v11070 = vmul.f32 %v6930, %v11069
  %v11071 = vrcp.pop %v7665
  %v11072 = vmul.f32 %v7665, %v11071
  %v11073 = vsub.f32 1.0, %v11072
  %v11074 = vmul.f32 %v11071, %v11073
  %v11075 = vadd.f32 %v11071, %v11074
  %vm11076 = vweird.f32 %v7665
  %vm11077 = vweird.f32 %v11071
  %vm11078 = vmor %vm11076, %vm11077
  %v11079 = vsel %vm11078, %v11071, %v11075
  %v11080 = vand.u32 2147483647, %v7665
  %vm11081 = vcmp.eq.f32.partialorder %v11080, 8.507059e+37
  %v11082 = vand.u32 %v7665, 2147483648
  %v11083 = vor.u32 1.1754944e-38, %v11082
  %v11084 = vsel %vm11081, %v11083, %v11079
  %v11085 = vmul.f32 %v6932, %v11084
  %v11086 = vrcp.pop %v7668
  %v11087 = vmul.f32 %v7668, %v11086
  %v11088 = vsub.f32 1.0, %v11087
  %v11089 = vmul.f32 %v11086, %v11088
  %v11090 = vadd.f32 %v11086, %v11089
  %vm11091 = vweird.f32 %v7668
  %vm11092 = vweird.f32 %v11086
  %vm11093 = vmor %vm11091, %vm11092
  %v11094 = vsel %vm11093, %v11086, %v11090
  %v11095 = vand.u32 2147483647, %v7668
  %vm11096 = vcmp.eq.f32.partialorder %v11095, 8.507059e+37
  %v11097 = vand.u32 %v7668, 2147483648
  %v11098 = vor.u32 1.1754944e-38, %v11097
  %v11099 = vsel %vm11096, %v11098, %v11094
  %v11100 = vmul.f32 %v6934, %v11099
  %v11101 = vrcp.pop %v7671
  %v11102 = vmul.f32 %v7671, %v11101
  %v11103 = vsub.f32 1.0, %v11102
  %v11104 = vmul.f32 %v11101, %v11103
  %v11105 = vadd.f32 %v11101, %v11104
  %vm11106 = vweird.f32 %v7671
  %vm11107 = vweird.f32 %v11101
  %vm11108 = vmor %vm11106, %vm11107
  %v11109 = vsel %vm11108, %v11101, %v11105
  %v11110 = vand.u32 2147483647, %v7671
  %vm11111 = vcmp.eq.f32.partialorder %v11110, 8.507059e+37
  %v11112 = vand.u32 %v7671, 2147483648
  %v11113 = vor.u32 1.1754944e-38, %v11112
  %v11114 = vsel %vm11111, %v11113, %v11109
  %v11115 = vmul.f32 %v6936, %v11114
  %v11116 = vrcp.pop %v7674
  %v11117 = vmul.f32 %v7674, %v11116
  %v11118 = vsub.f32 1.0, %v11117
  %v11119 = vmul.f32 %v11116, %v11118
  %v11120 = vadd.f32 %v11116, %v11119
  %vm11121 = vweird.f32 %v7674
  %vm11122 = vweird.f32 %v11116
  %vm11123 = vmor %vm11121, %vm11122
  %v11124 = vsel %vm11123, %v11116, %v11120
  %v11125 = vand.u32 2147483647, %v7674
  %vm11126 = vcmp.eq.f32.partialorder %v11125, 8.507059e+37
  %v11127 = vand.u32 %v7674, 2147483648
  %v11128 = vor.u32 1.1754944e-38, %v11127
  %v11129 = vsel %vm11126, %v11128, %v11124
  %v11130 = vmul.f32 %v6938, %v11129
  %v11131 = vrcp.pop %v7677
  %v11132 = vmul.f32 %v7677, %v11131
  %v11133 = vsub.f32 1.0, %v11132
  %v11134 = vmul.f32 %v11131, %v11133
  %v11135 = vadd.f32 %v11131, %v11134
  %vm11136 = vweird.f32 %v7677
  %vm11137 = vweird.f32 %v11131
  %vm11138 = vmor %vm11136, %vm11137
  %v11139 = vsel %vm11138, %v11131, %v11135
  %v11140 = vand.u32 2147483647, %v7677
  %vm11141 = vcmp.eq.f32.partialorder %v11140, 8.507059e+37
  %v11142 = vand.u32 %v7677, 2147483648
  %v11143 = vor.u32 1.1754944e-38, %v11142
  %v11144 = vsel %vm11141, %v11143, %v11139
  %v11145 = vmul.f32 %v6940, %v11144
  %v11146 = vrcp.pop %v7680
  %v11147 = vmul.f32 %v7680, %v11146
  %v11148 = vsub.f32 1.0, %v11147
  %v11149 = vmul.f32 %v11146, %v11148
  %v11150 = vadd.f32 %v11146, %v11149
  %vm11151 = vweird.f32 %v7680
  %vm11152 = vweird.f32 %v11146
  %vm11153 = vmor %vm11151, %vm11152
  %v11154 = vsel %vm11153, %v11146, %v11150
  %v11155 = vand.u32 2147483647, %v7680
  %vm11156 = vcmp.eq.f32.partialorder %v11155, 8.507059e+37
  %v11157 = vand.u32 %v7680, 2147483648
  %v11158 = vor.u32 1.1754944e-38, %v11157
  %v11159 = vsel %vm11156, %v11158, %v11154
  %v11160 = vmul.f32 %v6942, %v11159
  %v11161 = vrcp.pop %v7683
  %v11162 = vmul.f32 %v7683, %v11161
  %v11163 = vsub.f32 1.0, %v11162
  %v11164 = vmul.f32 %v11161, %v11163
  %v11165 = vadd.f32 %v11161, %v11164
  %vm11166 = vweird.f32 %v7683
  %vm11167 = vweird.f32 %v11161
  %vm11168 = vmor %vm11166, %vm11167
  %v11169 = vsel %vm11168, %v11161, %v11165
  %v11170 = vand.u32 2147483647, %v7683
  %vm11171 = vcmp.eq.f32.partialorder %v11170, 8.507059e+37
  %v11172 = vand.u32 %v7683, 2147483648
  %v11173 = vor.u32 1.1754944e-38, %v11172
  %v11174 = vsel %vm11171, %v11173, %v11169
  %v11175 = vmul.f32 %v6944, %v11174
  %v11176 = vrcp.pop %v7686
  %v11177 = vmul.f32 %v7686, %v11176
  %v11178 = vsub.f32 1.0, %v11177
  %v11179 = vmul.f32 %v11176, %v11178
  %v11180 = vadd.f32 %v11176, %v11179
  %vm11181 = vweird.f32 %v7686
  %vm11182 = vweird.f32 %v11176
  %vm11183 = vmor %vm11181, %vm11182
  %v11184 = vsel %vm11183, %v11176, %v11180
  %v11185 = vand.u32 2147483647, %v7686
  %vm11186 = vcmp.eq.f32.partialorder %v11185, 8.507059e+37
  %v11187 = vand.u32 %v7686, 2147483648
  %v11188 = vor.u32 1.1754944e-38, %v11187
  %v11189 = vsel %vm11186, %v11188, %v11184
  %v11190 = vmul.f32 %v6946, %v11189
  %v11191 = vrcp.pop %v7689
  %v11192 = vmul.f32 %v7689, %v11191
  %v11193 = vsub.f32 1.0, %v11192
  %v11194 = vmul.f32 %v11191, %v11193
  %v11195 = vadd.f32 %v11191, %v11194
  %vm11196 = vweird.f32 %v7689
  %vm11197 = vweird.f32 %v11191
  %vm11198 = vmor %vm11196, %vm11197
  %v11199 = vsel %vm11198, %v11191, %v11195
  %v11200 = vand.u32 2147483647, %v7689
  %vm11201 = vcmp.eq.f32.partialorder %v11200, 8.507059e+37
  %v11202 = vand.u32 %v7689, 2147483648
  %v11203 = vor.u32 1.1754944e-38, %v11202
  %v11204 = vsel %vm11201, %v11203, %v11199
  %v11205 = vmul.f32 %v6948, %v11204
  %v11206 = vrcp.pop %v7692
  %v11207 = vmul.f32 %v7692, %v11206
  %v11208 = vsub.f32 1.0, %v11207
  %v11209 = vmul.f32 %v11206, %v11208
  %v11210 = vadd.f32 %v11206, %v11209
  %vm11211 = vweird.f32 %v7692
  %vm11212 = vweird.f32 %v11206
  %vm11213 = vmor %vm11211, %vm11212
  %v11214 = vsel %vm11213, %v11206, %v11210
  %v11215 = vand.u32 2147483647, %v7692
  %vm11216 = vcmp.eq.f32.partialorder %v11215, 8.507059e+37
  %v11217 = vand.u32 %v7692, 2147483648
  %v11218 = vor.u32 1.1754944e-38, %v11217
  %v11219 = vsel %vm11216, %v11218, %v11214
  %v11220 = vmul.f32 %v6950, %v11219
  %v11221 = vrcp.pop %v7695
  %v11222 = vmul.f32 %v7695, %v11221
  %v11223 = vsub.f32 1.0, %v11222
  %v11224 = vmul.f32 %v11221, %v11223
  %v11225 = vadd.f32 %v11221, %v11224
  %vm11226 = vweird.f32 %v7695
  %vm11227 = vweird.f32 %v11221
  %vm11228 = vmor %vm11226, %vm11227
  %v11229 = vsel %vm11228, %v11221, %v11225
  %v11230 = vand.u32 2147483647, %v7695
  %vm11231 = vcmp.eq.f32.partialorder %v11230, 8.507059e+37
  %v11232 = vand.u32 %v7695, 2147483648
  %v11233 = vor.u32 1.1754944e-38, %v11232
  %v11234 = vsel %vm11231, %v11233, %v11229
  %v11235 = vmul.f32 %v6952, %v11234
  %v11236 = vrcp.pop %v7698
  %v11237 = vmul.f32 %v7698, %v11236
  %v11238 = vsub.f32 1.0, %v11237
  %v11239 = vmul.f32 %v11236, %v11238
  %v11240 = vadd.f32 %v11236, %v11239
  %vm11241 = vweird.f32 %v7698
  %vm11242 = vweird.f32 %v11236
  %vm11243 = vmor %vm11241, %vm11242
  %v11244 = vsel %vm11243, %v11236, %v11240
  %v11245 = vand.u32 2147483647, %v7698
  %vm11246 = vcmp.eq.f32.partialorder %v11245, 8.507059e+37
  %v11247 = vand.u32 %v7698, 2147483648
  %v11248 = vor.u32 1.1754944e-38, %v11247
  %v11249 = vsel %vm11246, %v11248, %v11244
  %v11250 = vmul.f32 %v6954, %v11249
  %v11251 = vrcp.pop %v7701
  %v11252 = vmul.f32 %v7701, %v11251
  %v11253 = vsub.f32 1.0, %v11252
  %v11254 = vmul.f32 %v11251, %v11253
  %v11255 = vadd.f32 %v11251, %v11254
  %vm11256 = vweird.f32 %v7701
  %vm11257 = vweird.f32 %v11251
  %vm11258 = vmor %vm11256, %vm11257
  %v11259 = vsel %vm11258, %v11251, %v11255
  %v11260 = vand.u32 2147483647, %v7701
  %vm11261 = vcmp.eq.f32.partialorder %v11260, 8.507059e+37
  %v11262 = vand.u32 %v7701, 2147483648
  %v11263 = vor.u32 1.1754944e-38, %v11262
  %v11264 = vsel %vm11261, %v11263, %v11259
  %v11265 = vmul.f32 %v6956, %v11264
  %v11266 = vrcp.pop %v7704
  %v11267 = vmul.f32 %v7704, %v11266
  %v11268 = vsub.f32 1.0, %v11267
  %v11269 = vmul.f32 %v11266, %v11268
  %v11270 = vadd.f32 %v11266, %v11269
  %vm11271 = vweird.f32 %v7704
  %vm11272 = vweird.f32 %v11266
  %vm11273 = vmor %vm11271, %vm11272
  %v11274 = vsel %vm11273, %v11266, %v11270
  %v11275 = vand.u32 2147483647, %v7704
  %vm11276 = vcmp.eq.f32.partialorder %v11275, 8.507059e+37
  %v11277 = vand.u32 %v7704, 2147483648
  %v11278 = vor.u32 1.1754944e-38, %v11277
  %v11279 = vsel %vm11276, %v11278, %v11274
  %v11280 = vmul.f32 %v6958, %v11279
  %v11281 = vrcp.pop %v7707
  %v11282 = vmul.f32 %v7707, %v11281
  %v11283 = vsub.f32 1.0, %v11282
  %v11284 = vmul.f32 %v11281, %v11283
  %v11285 = vadd.f32 %v11281, %v11284
  %vm11286 = vweird.f32 %v7707
  %vm11287 = vweird.f32 %v11281
  %vm11288 = vmor %vm11286, %vm11287
  %v11289 = vsel %vm11288, %v11281, %v11285
  %v11290 = vand.u32 2147483647, %v7707
  %vm11291 = vcmp.eq.f32.partialorder %v11290, 8.507059e+37
  %v11292 = vand.u32 %v7707, 2147483648
  %v11293 = vor.u32 1.1754944e-38, %v11292
  %v11294 = vsel %vm11291, %v11293, %v11289
  %v11295 = vmul.f32 %v6960, %v11294
  %v11296 = vrcp.pop %v7710
  %v11297 = vmul.f32 %v7710, %v11296
  %v11298 = vsub.f32 1.0, %v11297
  %v11299 = vmul.f32 %v11296, %v11298
  %v11300 = vadd.f32 %v11296, %v11299
  %vm11301 = vweird.f32 %v7710
  %vm11302 = vweird.f32 %v11296
  %vm11303 = vmor %vm11301, %vm11302
  %v11304 = vsel %vm11303, %v11296, %v11300
  %v11305 = vand.u32 2147483647, %v7710
  %vm11306 = vcmp.eq.f32.partialorder %v11305, 8.507059e+37
  %v11307 = vand.u32 %v7710, 2147483648
  %v11308 = vor.u32 1.1754944e-38, %v11307
  %v11309 = vsel %vm11306, %v11308, %v11304
  %v11310 = vmul.f32 %v6962, %v11309
  %v11311 = vrcp.pop %v7713
  %v11312 = vmul.f32 %v7713, %v11311
  %v11313 = vsub.f32 1.0, %v11312
  %v11314 = vmul.f32 %v11311, %v11313
  %v11315 = vadd.f32 %v11311, %v11314
  %vm11316 = vweird.f32 %v7713
  %vm11317 = vweird.f32 %v11311
  %vm11318 = vmor %vm11316, %vm11317
  %v11319 = vsel %vm11318, %v11311, %v11315
  %v11320 = vand.u32 2147483647, %v7713
  %vm11321 = vcmp.eq.f32.partialorder %v11320, 8.507059e+37
  %v11322 = vand.u32 %v7713, 2147483648
  %v11323 = vor.u32 1.1754944e-38, %v11322
  %v11324 = vsel %vm11321, %v11323, %v11319
  %v11325 = vmul.f32 %v6964, %v11324
  %v11326 = vrcp.pop %v7716
  %v11327 = vmul.f32 %v7716, %v11326
  %v11328 = vsub.f32 1.0, %v11327
  %v11329 = vmul.f32 %v11326, %v11328
  %v11330 = vadd.f32 %v11326, %v11329
  %vm11331 = vweird.f32 %v7716
  %vm11332 = vweird.f32 %v11326
  %vm11333 = vmor %vm11331, %vm11332
  %v11334 = vsel %vm11333, %v11326, %v11330
  %v11335 = vand.u32 2147483647, %v7716
  %vm11336 = vcmp.eq.f32.partialorder %v11335, 8.507059e+37
  %v11337 = vand.u32 %v7716, 2147483648
  %v11338 = vor.u32 1.1754944e-38, %v11337
  %v11339 = vsel %vm11336, %v11338, %v11334
  %v11340 = vmul.f32 %v6966, %v11339
  %v11341 = vrcp.pop %v7719
  %v11342 = vmul.f32 %v7719, %v11341
  %v11343 = vsub.f32 1.0, %v11342
  %v11344 = vmul.f32 %v11341, %v11343
  %v11345 = vadd.f32 %v11341, %v11344
  %vm11346 = vweird.f32 %v7719
  %vm11347 = vweird.f32 %v11341
  %vm11348 = vmor %vm11346, %vm11347
  %v11349 = vsel %vm11348, %v11341, %v11345
  %v11350 = vand.u32 2147483647, %v7719
  %vm11351 = vcmp.eq.f32.partialorder %v11350, 8.507059e+37
  %v11352 = vand.u32 %v7719, 2147483648
  %v11353 = vor.u32 1.1754944e-38, %v11352
  %v11354 = vsel %vm11351, %v11353, %v11349
  %v11355 = vmul.f32 %v6968, %v11354
  %v11356 = vrcp.pop %v7722
  %v11357 = vmul.f32 %v7722, %v11356
  %v11358 = vsub.f32 1.0, %v11357
  %v11359 = vmul.f32 %v11356, %v11358
  %v11360 = vadd.f32 %v11356, %v11359
  %vm11361 = vweird.f32 %v7722
  %vm11362 = vweird.f32 %v11356
  %vm11363 = vmor %vm11361, %vm11362
  %v11364 = vsel %vm11363, %v11356, %v11360
  %v11365 = vand.u32 2147483647, %v7722
  %vm11366 = vcmp.eq.f32.partialorder %v11365, 8.507059e+37
  %v11367 = vand.u32 %v7722, 2147483648
  %v11368 = vor.u32 1.1754944e-38, %v11367
  %v11369 = vsel %vm11366, %v11368, %v11364
  %v11370 = vmul.f32 %v6970, %v11369
  %v11371 = vrcp.pop %v7725
  %v11372 = vmul.f32 %v7725, %v11371
  %v11373 = vsub.f32 1.0, %v11372
  %v11374 = vmul.f32 %v11371, %v11373
  %v11375 = vadd.f32 %v11371, %v11374
  %vm11376 = vweird.f32 %v7725
  %vm11377 = vweird.f32 %v11371
  %vm11378 = vmor %vm11376, %vm11377
  %v11379 = vsel %vm11378, %v11371, %v11375
  %v11380 = vand.u32 2147483647, %v7725
  %vm11381 = vcmp.eq.f32.partialorder %v11380, 8.507059e+37
  %v11382 = vand.u32 %v7725, 2147483648
  %v11383 = vor.u32 1.1754944e-38, %v11382
  %v11384 = vsel %vm11381, %v11383, %v11379
  %v11385 = vmul.f32 %v6972, %v11384
  %v11386 = vrcp.pop %v7728
  %v11387 = vmul.f32 %v7728, %v11386
  %v11388 = vsub.f32 1.0, %v11387
  %v11389 = vmul.f32 %v11386, %v11388
  %v11390 = vadd.f32 %v11386, %v11389
  %vm11391 = vweird.f32 %v7728
  %vm11392 = vweird.f32 %v11386
  %vm11393 = vmor %vm11391, %vm11392
  %v11394 = vsel %vm11393, %v11386, %v11390
  %v11395 = vand.u32 2147483647, %v7728
  %vm11396 = vcmp.eq.f32.partialorder %v11395, 8.507059e+37
  %v11397 = vand.u32 %v7728, 2147483648
  %v11398 = vor.u32 1.1754944e-38, %v11397
  %v11399 = vsel %vm11396, %v11398, %v11394
  %v11400 = vmul.f32 %v6974, %v11399
  %v11401 = vrcp.pop %v7731
  %v11402 = vmul.f32 %v7731, %v11401
  %v11403 = vsub.f32 1.0, %v11402
  %v11404 = vmul.f32 %v11401, %v11403
  %v11405 = vadd.f32 %v11401, %v11404
  %vm11406 = vweird.f32 %v7731
  %vm11407 = vweird.f32 %v11401
  %vm11408 = vmor %vm11406, %vm11407
  %v11409 = vsel %vm11408, %v11401, %v11405
  %v11410 = vand.u32 2147483647, %v7731
  %vm11411 = vcmp.eq.f32.partialorder %v11410, 8.507059e+37
  %v11412 = vand.u32 %v7731, 2147483648
  %v11413 = vor.u32 1.1754944e-38, %v11412
  %v11414 = vsel %vm11411, %v11413, %v11409
  %v11415 = vmul.f32 %v6976, %v11414
  %v11416 = vrcp.pop %v7734
  %v11417 = vmul.f32 %v7734, %v11416
  %v11418 = vsub.f32 1.0, %v11417
  %v11419 = vmul.f32 %v11416, %v11418
  %v11420 = vadd.f32 %v11416, %v11419
  %vm11421 = vweird.f32 %v7734
  %vm11422 = vweird.f32 %v11416
  %vm11423 = vmor %vm11421, %vm11422
  %v11424 = vsel %vm11423, %v11416, %v11420
  %v11425 = vand.u32 2147483647, %v7734
  %vm11426 = vcmp.eq.f32.partialorder %v11425, 8.507059e+37
  %v11427 = vand.u32 %v7734, 2147483648
  %v11428 = vor.u32 1.1754944e-38, %v11427
  %v11429 = vsel %vm11426, %v11428, %v11424
  %v11430 = vmul.f32 %v6978, %v11429
  %v11431 = vrcp.pop %v7737
  %v11432 = vmul.f32 %v7737, %v11431
  %v11433 = vsub.f32 1.0, %v11432
  %v11434 = vmul.f32 %v11431, %v11433
  %v11435 = vadd.f32 %v11431, %v11434
  %vm11436 = vweird.f32 %v7737
  %vm11437 = vweird.f32 %v11431
  %vm11438 = vmor %vm11436, %vm11437
  %v11439 = vsel %vm11438, %v11431, %v11435
  %v11440 = vand.u32 2147483647, %v7737
  %vm11441 = vcmp.eq.f32.partialorder %v11440, 8.507059e+37
  %v11442 = vand.u32 %v7737, 2147483648
  %v11443 = vor.u32 1.1754944e-38, %v11442
  %v11444 = vsel %vm11441, %v11443, %v11439
  %v11445 = vmul.f32 %v6980, %v11444
  %v11446 = vrcp.pop %v7740
  %v11447 = vmul.f32 %v7740, %v11446
  %v11448 = vsub.f32 1.0, %v11447
  %v11449 = vmul.f32 %v11446, %v11448
  %v11450 = vadd.f32 %v11446, %v11449
  %vm11451 = vweird.f32 %v7740
  %vm11452 = vweird.f32 %v11446
  %vm11453 = vmor %vm11451, %vm11452
  %v11454 = vsel %vm11453, %v11446, %v11450
  %v11455 = vand.u32 2147483647, %v7740
  %vm11456 = vcmp.eq.f32.partialorder %v11455, 8.507059e+37
  %v11457 = vand.u32 %v7740, 2147483648
  %v11458 = vor.u32 1.1754944e-38, %v11457
  %v11459 = vsel %vm11456, %v11458, %v11454
  %v11460 = vmul.f32 %v6982, %v11459
  %v11461 = vrcp.pop %v7743
  %v11462 = vmul.f32 %v7743, %v11461
  %v11463 = vsub.f32 1.0, %v11462
  %v11464 = vmul.f32 %v11461, %v11463
  %v11465 = vadd.f32 %v11461, %v11464
  %vm11466 = vweird.f32 %v7743
  %vm11467 = vweird.f32 %v11461
  %vm11468 = vmor %vm11466, %vm11467
  %v11469 = vsel %vm11468, %v11461, %v11465
  %v11470 = vand.u32 2147483647, %v7743
  %vm11471 = vcmp.eq.f32.partialorder %v11470, 8.507059e+37
  %v11472 = vand.u32 %v7743, 2147483648
  %v11473 = vor.u32 1.1754944e-38, %v11472
  %v11474 = vsel %vm11471, %v11473, %v11469
  %v11475 = vmul.f32 %v6984, %v11474
  %v11476 = vrcp.pop %v7746
  %v11477 = vmul.f32 %v7746, %v11476
  %v11478 = vsub.f32 1.0, %v11477
  %v11479 = vmul.f32 %v11476, %v11478
  %v11480 = vadd.f32 %v11476, %v11479
  %vm11481 = vweird.f32 %v7746
  %vm11482 = vweird.f32 %v11476
  %vm11483 = vmor %vm11481, %vm11482
  %v11484 = vsel %vm11483, %v11476, %v11480
  %v11485 = vand.u32 2147483647, %v7746
  %vm11486 = vcmp.eq.f32.partialorder %v11485, 8.507059e+37
  %v11487 = vand.u32 %v7746, 2147483648
  %v11488 = vor.u32 1.1754944e-38, %v11487
  %v11489 = vsel %vm11486, %v11488, %v11484
  %v11490 = vmul.f32 %v6986, %v11489
  %v11491 = vrcp.pop %v7749
  %v11492 = vmul.f32 %v7749, %v11491
  %v11493 = vsub.f32 1.0, %v11492
  %v11494 = vmul.f32 %v11491, %v11493
  %v11495 = vadd.f32 %v11491, %v11494
  %vm11496 = vweird.f32 %v7749
  %vm11497 = vweird.f32 %v11491
  %vm11498 = vmor %vm11496, %vm11497
  %v11499 = vsel %vm11498, %v11491, %v11495
  %v11500 = vand.u32 2147483647, %v7749
  %vm11501 = vcmp.eq.f32.partialorder %v11500, 8.507059e+37
  %v11502 = vand.u32 %v7749, 2147483648
  %v11503 = vor.u32 1.1754944e-38, %v11502
  %v11504 = vsel %vm11501, %v11503, %v11499
  %v11505 = vmul.f32 %v6988, %v11504
  %v11506 = vrcp.pop %v7752
  %v11507 = vmul.f32 %v7752, %v11506
  %v11508 = vsub.f32 1.0, %v11507
  %v11509 = vmul.f32 %v11506, %v11508
  %v11510 = vadd.f32 %v11506, %v11509
  %vm11511 = vweird.f32 %v7752
  %vm11512 = vweird.f32 %v11506
  %vm11513 = vmor %vm11511, %vm11512
  %v11514 = vsel %vm11513, %v11506, %v11510
  %v11515 = vand.u32 2147483647, %v7752
  %vm11516 = vcmp.eq.f32.partialorder %v11515, 8.507059e+37
  %v11517 = vand.u32 %v7752, 2147483648
  %v11518 = vor.u32 1.1754944e-38, %v11517
  %v11519 = vsel %vm11516, %v11518, %v11514
  %v11520 = vmul.f32 %v6990, %v11519
  %v11521 = vrcp.pop %v7755
  %v11522 = vmul.f32 %v7755, %v11521
  %v11523 = vsub.f32 1.0, %v11522
  %v11524 = vmul.f32 %v11521, %v11523
  %v11525 = vadd.f32 %v11521, %v11524
  %vm11526 = vweird.f32 %v7755
  %vm11527 = vweird.f32 %v11521
  %vm11528 = vmor %vm11526, %vm11527
  %v11529 = vsel %vm11528, %v11521, %v11525
  %v11530 = vand.u32 2147483647, %v7755
  %vm11531 = vcmp.eq.f32.partialorder %v11530, 8.507059e+37
  %v11532 = vand.u32 %v7755, 2147483648
  %v11533 = vor.u32 1.1754944e-38, %v11532
  %v11534 = vsel %vm11531, %v11533, %v11529
  %v11535 = vmul.f32 %v6992, %v11534
  %v11536 = vrcp.pop %v7758
  %v11537 = vmul.f32 %v7758, %v11536
  %v11538 = vsub.f32 1.0, %v11537
  %v11539 = vmul.f32 %v11536, %v11538
  %v11540 = vadd.f32 %v11536, %v11539
  %vm11541 = vweird.f32 %v7758
  %vm11542 = vweird.f32 %v11536
  %vm11543 = vmor %vm11541, %vm11542
  %v11544 = vsel %vm11543, %v11536, %v11540
  %v11545 = vand.u32 2147483647, %v7758
  %vm11546 = vcmp.eq.f32.partialorder %v11545, 8.507059e+37
  %v11547 = vand.u32 %v7758, 2147483648
  %v11548 = vor.u32 1.1754944e-38, %v11547
  %v11549 = vsel %vm11546, %v11548, %v11544
  %v11550 = vmul.f32 %v6994, %v11549
  %v11551 = vrcp.pop %v7761
  %v11552 = vmul.f32 %v7761, %v11551
  %v11553 = vsub.f32 1.0, %v11552
  %v11554 = vmul.f32 %v11551, %v11553
  %v11555 = vadd.f32 %v11551, %v11554
  %vm11556 = vweird.f32 %v7761
  %vm11557 = vweird.f32 %v11551
  %vm11558 = vmor %vm11556, %vm11557
  %v11559 = vsel %vm11558, %v11551, %v11555
  %v11560 = vand.u32 2147483647, %v7761
  %vm11561 = vcmp.eq.f32.partialorder %v11560, 8.507059e+37
  %v11562 = vand.u32 %v7761, 2147483648
  %v11563 = vor.u32 1.1754944e-38, %v11562
  %v11564 = vsel %vm11561, %v11563, %v11559
  %v11565 = vmul.f32 %v6996, %v11564
  %v11566 = vrcp.pop %v7764
  %v11567 = vmul.f32 %v7764, %v11566
  %v11568 = vsub.f32 1.0, %v11567
  %v11569 = vmul.f32 %v11566, %v11568
  %v11570 = vadd.f32 %v11566, %v11569
  %vm11571 = vweird.f32 %v7764
  %vm11572 = vweird.f32 %v11566
  %vm11573 = vmor %vm11571, %vm11572
  %v11574 = vsel %vm11573, %v11566, %v11570
  %v11575 = vand.u32 2147483647, %v7764
  %vm11576 = vcmp.eq.f32.partialorder %v11575, 8.507059e+37
  %v11577 = vand.u32 %v7764, 2147483648
  %v11578 = vor.u32 1.1754944e-38, %v11577
  %v11579 = vsel %vm11576, %v11578, %v11574
  %v11580 = vmul.f32 %v6998, %v11579
  %v11581 = vrcp.pop %v7767
  %v11582 = vmul.f32 %v7767, %v11581
  %v11583 = vsub.f32 1.0, %v11582
  %v11584 = vmul.f32 %v11581, %v11583
  %v11585 = vadd.f32 %v11581, %v11584
  %vm11586 = vweird.f32 %v7767
  %vm11587 = vweird.f32 %v11581
  %vm11588 = vmor %vm11586, %vm11587
  %v11589 = vsel %vm11588, %v11581, %v11585
  %v11590 = vand.u32 2147483647, %v7767
  %vm11591 = vcmp.eq.f32.partialorder %v11590, 8.507059e+37
  %v11592 = vand.u32 %v7767, 2147483648
  %v11593 = vor.u32 1.1754944e-38, %v11592
  %v11594 = vsel %vm11591, %v11593, %v11589
  %v11595 = vmul.f32 %v7000, %v11594
  %v11596 = vrcp.pop %v7770
  %v11597 = vmul.f32 %v7770, %v11596
  %v11598 = vsub.f32 1.0, %v11597
  %v11599 = vmul.f32 %v11596, %v11598
  %v11600 = vadd.f32 %v11596, %v11599
  %vm11601 = vweird.f32 %v7770
  %vm11602 = vweird.f32 %v11596
  %vm11603 = vmor %vm11601, %vm11602
  %v11604 = vsel %vm11603, %v11596, %v11600
  %v11605 = vand.u32 2147483647, %v7770
  %vm11606 = vcmp.eq.f32.partialorder %v11605, 8.507059e+37
  %v11607 = vand.u32 %v7770, 2147483648
  %v11608 = vor.u32 1.1754944e-38, %v11607
  %v11609 = vsel %vm11606, %v11608, %v11604
  %v11610 = vmul.f32 %v7002, %v11609
  %11611 = vst.msk [vmem:[%s5] sm:$0xff] %vm5466, %v7785
  %11612 = vst.msk [vmem:[%s5 + $0x8] sm:$0xff] %vm5466, %v7800
  %11613 = vst.msk [vmem:[%s5 + $0x10] sm:$0xff] %vm5466, %v7815
  %11614 = vst.msk [vmem:[%s5 + $0x18] sm:$0xff] %vm5466, %v7830
  %11615 = vst.msk [vmem:[%s5 + $0x20] sm:$0xff] %vm5466, %v7845
  %11616 = vst.msk [vmem:[%s5 + $0x28] sm:$0xff] %vm5466, %v7860
  %11617 = vst.msk [vmem:[%s5 + $0x30] sm:$0xff] %vm5466, %v7875
  %11618 = vst.msk [vmem:[%s5 + $0x38] sm:$0xff] %vm5466, %v7890
  %11619 = vst.msk [vmem:[%s5 + $0x40] sm:$0xff] %vm5466, %v7905
  %11620 = vst.msk [vmem:[%s5 + $0x48] sm:$0xff] %vm5466, %v7920
  %11621 = vst.msk [vmem:[%s5 + $0x50] sm:$0xff] %vm5466, %v7935
  %11622 = vst.msk [vmem:[%s5 + $0x58] sm:$0xff] %vm5466, %v7950
  %11623 = vst.msk [vmem:[%s5 + $0x60] sm:$0xff] %vm5466, %v7965
  %11624 = vst.msk [vmem:[%s5 + $0x68] sm:$0xff] %vm5466, %v7980
  %11625 = vst.msk [vmem:[%s5 + $0x70] sm:$0xff] %vm5466, %v7995
  %11626 = vst.msk [vmem:[%s5 + $0x78] sm:$0xff] %vm5466, %v8010
  %11627 = vst.msk [vmem:[%s5 + $0x80] sm:$0xff] %vm5466, %v8025
  %11628 = vst.msk [vmem:[%s5 + $0x88] sm:$0xff] %vm5466, %v8040
  %11629 = vst.msk [vmem:[%s5 + $0x90] sm:$0xff] %vm5466, %v8055
  %11630 = vst.msk [vmem:[%s5 + $0x98] sm:$0xff] %vm5466, %v8070
  %11631 = vst.msk [vmem:[%s5 + $0xa0] sm:$0xff] %vm5466, %v8085
  %11632 = vst.msk [vmem:[%s5 + $0xa8] sm:$0xff] %vm5466, %v8100
  %11633 = vst.msk [vmem:[%s5 + $0xb0] sm:$0xff] %vm5466, %v8115
  %11634 = vst.msk [vmem:[%s5 + $0xb8] sm:$0xff] %vm5466, %v8130
  %11635 = vst.msk [vmem:[%s5 + $0xc0] sm:$0xff] %vm5466, %v8145
  %11636 = vst.msk [vmem:[%s5 + $0xc8] sm:$0xff] %vm5466, %v8160
  %11637 = vst.msk [vmem:[%s5 + $0xd0] sm:$0xff] %vm5466, %v8175
  %11638 = vst.msk [vmem:[%s5 + $0xd8] sm:$0xff] %vm5466, %v8190
  %11639 = vst.msk [vmem:[%s5 + $0xe0] sm:$0xff] %vm5466, %v8205
  %11640 = vst.msk [vmem:[%s5 + $0xe8] sm:$0xff] %vm5466, %v8220
  %11641 = vst.msk [vmem:[%s5 + $0xf0] sm:$0xff] %vm5466, %v8235
  %11642 = vst.msk [vmem:[%s5 + $0xf8] sm:$0xff] %vm5466, %v8250
  %11643 = vst.msk [vmem:[%s5 + $0x100] sm:$0xff] %vm5466, %v8265
  %11644 = vst.msk [vmem:[%s5 + $0x108] sm:$0xff] %vm5466, %v8280
  %11645 = vst.msk [vmem:[%s5 + $0x110] sm:$0xff] %vm5466, %v8295
  %11646 = vst.msk [vmem:[%s5 + $0x118] sm:$0xff] %vm5466, %v8310
  %11647 = vst.msk [vmem:[%s5 + $0x120] sm:$0xff] %vm5466, %v8325
  %11648 = vst.msk [vmem:[%s5 + $0x128] sm:$0xff] %vm5466, %v8340
  %11649 = vst.msk [vmem:[%s5 + $0x130] sm:$0xff] %vm5466, %v8355
  %11650 = vst.msk [vmem:[%s5 + $0x138] sm:$0xff] %vm5466, %v8370
  %11651 = vst.msk [vmem:[%s5 + $0x140] sm:$0xff] %vm5466, %v8385
  %11652 = vst.msk [vmem:[%s5 + $0x148] sm:$0xff] %vm5466, %v8400
  %11653 = vst.msk [vmem:[%s5 + $0x150] sm:$0xff] %vm5466, %v8415
  %11654 = vst.msk [vmem:[%s5 + $0x158] sm:$0xff] %vm5466, %v8430
  %11655 = vst.msk [vmem:[%s5 + $0x160] sm:$0xff] %vm5466, %v8445
  %11656 = vst.msk [vmem:[%s5 + $0x168] sm:$0xff] %vm5466, %v8460
  %11657 = vst.msk [vmem:[%s5 + $0x170] sm:$0xff] %vm5466, %v8475
  %11658 = vst.msk [vmem:[%s5 + $0x178] sm:$0xff] %vm5466, %v8490
  %11659 = vst.msk [vmem:[%s5 + $0x180] sm:$0xff] %vm5466, %v8505
  %11660 = vst.msk [vmem:[%s5 + $0x188] sm:$0xff] %vm5466, %v8520
  %11661 = vst.msk [vmem:[%s5 + $0x190] sm:$0xff] %vm5466, %v8535
  %11662 = vst.msk [vmem:[%s5 + $0x198] sm:$0xff] %vm5466, %v8550
  %11663 = vst.msk [vmem:[%s5 + $0x1a0] sm:$0xff] %vm5466, %v8565
  %11664 = vst.msk [vmem:[%s5 + $0x1a8] sm:$0xff] %vm5466, %v8580
  %11665 = vst.msk [vmem:[%s5 + $0x1b0] sm:$0xff] %vm5466, %v8595
  %11666 = vst.msk [vmem:[%s5 + $0x1b8] sm:$0xff] %vm5466, %v8610
  %11667 = vst.msk [vmem:[%s5 + $0x1c0] sm:$0xff] %vm5466, %v8625
  %11668 = vst.msk [vmem:[%s5 + $0x1c8] sm:$0xff] %vm5466, %v8640
  %11669 = vst.msk [vmem:[%s5 + $0x1d0] sm:$0xff] %vm5466, %v8655
  %11670 = vst.msk [vmem:[%s5 + $0x1d8] sm:$0xff] %vm5466, %v8670
  %11671 = vst.msk [vmem:[%s5 + $0x1e0] sm:$0xff] %vm5466, %v8685
  %11672 = vst.msk [vmem:[%s5 + $0x1e8] sm:$0xff] %vm5466, %v8700
  %11673 = vst.msk [vmem:[%s5 + $0x1f0] sm:$0xff] %vm5466, %v8715
  %11674 = vst.msk [vmem:[%s5 + $0x1f8] sm:$0xff] %vm5466, %v8730
  %11675 = vst.msk [vmem:[%s5 + $0x200] sm:$0xff] %vm5466, %v8745
  %11676 = vst.msk [vmem:[%s5 + $0x208] sm:$0xff] %vm5466, %v8760
  %11677 = vst.msk [vmem:[%s5 + $0x210] sm:$0xff] %vm5466, %v8775
  %11678 = vst.msk [vmem:[%s5 + $0x218] sm:$0xff] %vm5466, %v8790
  %11679 = vst.msk [vmem:[%s5 + $0x220] sm:$0xff] %vm5466, %v8805
  %11680 = vst.msk [vmem:[%s5 + $0x228] sm:$0xff] %vm5466, %v8820
  %11681 = vst.msk [vmem:[%s5 + $0x230] sm:$0xff] %vm5466, %v8835
  %11682 = vst.msk [vmem:[%s5 + $0x238] sm:$0xff] %vm5466, %v8850
  %11683 = vst.msk [vmem:[%s5 + $0x240] sm:$0xff] %vm5466, %v8865
  %11684 = vst.msk [vmem:[%s5 + $0x248] sm:$0xff] %vm5466, %v8880
  %11685 = vst.msk [vmem:[%s5 + $0x250] sm:$0xff] %vm5466, %v8895
  %11686 = vst.msk [vmem:[%s5 + $0x258] sm:$0xff] %vm5466, %v8910
  %11687 = vst.msk [vmem:[%s5 + $0x260] sm:$0xff] %vm5466, %v8925
  %11688 = vst.msk [vmem:[%s5 + $0x268] sm:$0xff] %vm5466, %v8940
  %11689 = vst.msk [vmem:[%s5 + $0x270] sm:$0xff] %vm5466, %v8955
  %11690 = vst.msk [vmem:[%s5 + $0x278] sm:$0xff] %vm5466, %v8970
  %11691 = vst.msk [vmem:[%s5 + $0x280] sm:$0xff] %vm5466, %v8985
  %11692 = vst.msk [vmem:[%s5 + $0x288] sm:$0xff] %vm5466, %v9000
  %11693 = vst.msk [vmem:[%s5 + $0x290] sm:$0xff] %vm5466, %v9015
  %11694 = vst.msk [vmem:[%s5 + $0x298] sm:$0xff] %vm5466, %v9030
  %11695 = vst.msk [vmem:[%s5 + $0x2a0] sm:$0xff] %vm5466, %v9045
  %11696 = vst.msk [vmem:[%s5 + $0x2a8] sm:$0xff] %vm5466, %v9060
  %11697 = vst.msk [vmem:[%s5 + $0x2b0] sm:$0xff] %vm5466, %v9075
  %11698 = vst.msk [vmem:[%s5 + $0x2b8] sm:$0xff] %vm5466, %v9090
  %11699 = vst.msk [vmem:[%s5 + $0x2c0] sm:$0xff] %vm5466, %v9105
  %11700 = vst.msk [vmem:[%s5 + $0x2c8] sm:$0xff] %vm5466, %v9120
  %11701 = vst.msk [vmem:[%s5 + $0x2d0] sm:$0xff] %vm5466, %v9135
  %11702 = vst.msk [vmem:[%s5 + $0x2d8] sm:$0xff] %vm5466, %v9150
  %11703 = vst.msk [vmem:[%s5 + $0x2e0] sm:$0xff] %vm5466, %v9165
  %11704 = vst.msk [vmem:[%s5 + $0x2e8] sm:$0xff] %vm5466, %v9180
  %11705 = vst.msk [vmem:[%s5 + $0x2f0] sm:$0xff] %vm5466, %v9195
  %11706 = vst.msk [vmem:[%s5 + $0x2f8] sm:$0xff] %vm5466, %v9210
  %11707 = vst.msk [vmem:[%s5 + $0x300] sm:$0xff] %vm5466, %v9225
  %11708 = vst.msk [vmem:[%s5 + $0x308] sm:$0xff] %vm5466, %v9240
  %11709 = vst.msk [vmem:[%s5 + $0x310] sm:$0xff] %vm5466, %v9255
  %11710 = vst.msk [vmem:[%s5 + $0x318] sm:$0xff] %vm5466, %v9270
  %11711 = vst.msk [vmem:[%s5 + $0x320] sm:$0xff] %vm5466, %v9285
  %11712 = vst.msk [vmem:[%s5 + $0x328] sm:$0xff] %vm5466, %v9300
  %11713 = vst.msk [vmem:[%s5 + $0x330] sm:$0xff] %vm5466, %v9315
  %11714 = vst.msk [vmem:[%s5 + $0x338] sm:$0xff] %vm5466, %v9330
  %11715 = vst.msk [vmem:[%s5 + $0x340] sm:$0xff] %vm5466, %v9345
  %11716 = vst.msk [vmem:[%s5 + $0x348] sm:$0xff] %vm5466, %v9360
  %11717 = vst.msk [vmem:[%s5 + $0x350] sm:$0xff] %vm5466, %v9375
  %11718 = vst.msk [vmem:[%s5 + $0x358] sm:$0xff] %vm5466, %v9390
  %11719 = vst.msk [vmem:[%s5 + $0x360] sm:$0xff] %vm5466, %v9405
  %11720 = vst.msk [vmem:[%s5 + $0x368] sm:$0xff] %vm5466, %v9420
  %11721 = vst.msk [vmem:[%s5 + $0x370] sm:$0xff] %vm5466, %v9435
  %11722 = vst.msk [vmem:[%s5 + $0x378] sm:$0xff] %vm5466, %v9450
  %11723 = vst.msk [vmem:[%s5 + $0x380] sm:$0xff] %vm5466, %v9465
  %11724 = vst.msk [vmem:[%s5 + $0x388] sm:$0xff] %vm5466, %v9480
  %11725 = vst.msk [vmem:[%s5 + $0x390] sm:$0xff] %vm5466, %v9495
  %11726 = vst.msk [vmem:[%s5 + $0x398] sm:$0xff] %vm5466, %v9510
  %11727 = vst.msk [vmem:[%s5 + $0x3a0] sm:$0xff] %vm5466, %v9525
  %11728 = vst.msk [vmem:[%s5 + $0x3a8] sm:$0xff] %vm5466, %v9540
  %11729 = vst.msk [vmem:[%s5 + $0x3b0] sm:$0xff] %vm5466, %v9555
  %11730 = vst.msk [vmem:[%s5 + $0x3b8] sm:$0xff] %vm5466, %v9570
  %11731 = vst.msk [vmem:[%s5 + $0x3c0] sm:$0xff] %vm5466, %v9585
  %11732 = vst.msk [vmem:[%s5 + $0x3c8] sm:$0xff] %vm5466, %v9600
  %11733 = vst.msk [vmem:[%s5 + $0x3d0] sm:$0xff] %vm5466, %v9615
  %11734 = vst.msk [vmem:[%s5 + $0x3d8] sm:$0xff] %vm5466, %v9630
  %11735 = vst.msk [vmem:[%s5 + $0x3e0] sm:$0xff] %vm5466, %v9645
  %11736 = vst.msk [vmem:[%s5 + $0x3e8] sm:$0xff] %vm5466, %v9660
  %11737 = vst.msk [vmem:[%s5 + $0x3f0] sm:$0xff] %vm5466, %v9675
  %11738 = vst.msk [vmem:[%s5 + $0x3f8] sm:$0xff] %vm5466, %v9690
  %11739 = vst.msk [vmem:[%s5 + $0x400] sm:$0xff] %vm5466, %v9705
  %11740 = vst.msk [vmem:[%s5 + $0x408] sm:$0xff] %vm5466, %v9720
  %11741 = vst.msk [vmem:[%s5 + $0x410] sm:$0xff] %vm5466, %v9735
  %11742 = vst.msk [vmem:[%s5 + $0x418] sm:$0xff] %vm5466, %v9750
  %11743 = vst.msk [vmem:[%s5 + $0x420] sm:$0xff] %vm5466, %v9765
  %11744 = vst.msk [vmem:[%s5 + $0x428] sm:$0xff] %vm5466, %v9780
  %11745 = vst.msk [vmem:[%s5 + $0x430] sm:$0xff] %vm5466, %v9795
  %11746 = vst.msk [vmem:[%s5 + $0x438] sm:$0xff] %vm5466, %v9810
  %11747 = vst.msk [vmem:[%s5 + $0x440] sm:$0xff] %vm5466, %v9825
  %11748 = vst.msk [vmem:[%s5 + $0x448] sm:$0xff] %vm5466, %v9840
  %11749 = vst.msk [vmem:[%s5 + $0x450] sm:$0xff] %vm5466, %v9855
  %11750 = vst.msk [vmem:[%s5 + $0x458] sm:$0xff] %vm5466, %v9870
  %11751 = vst.msk [vmem:[%s5 + $0x460] sm:$0xff] %vm5466, %v9885
  %11752 = vst.msk [vmem:[%s5 + $0x468] sm:$0xff] %vm5466, %v9900
  %11753 = vst.msk [vmem:[%s5 + $0x470] sm:$0xff] %vm5466, %v9915
  %11754 = vst.msk [vmem:[%s5 + $0x478] sm:$0xff] %vm5466, %v9930
  %11755 = vst.msk [vmem:[%s5 + $0x480] sm:$0xff] %vm5466, %v9945
  %11756 = vst.msk [vmem:[%s5 + $0x488] sm:$0xff] %vm5466, %v9960
  %11757 = vst.msk [vmem:[%s5 + $0x490] sm:$0xff] %vm5466, %v9975
  %11758 = vst.msk [vmem:[%s5 + $0x498] sm:$0xff] %vm5466, %v9990
  %11759 = vst.msk [vmem:[%s5 + $0x4a0] sm:$0xff] %vm5466, %v10005
  %11760 = vst.msk [vmem:[%s5 + $0x4a8] sm:$0xff] %vm5466, %v10020
  %11761 = vst.msk [vmem:[%s5 + $0x4b0] sm:$0xff] %vm5466, %v10035
  %11762 = vst.msk [vmem:[%s5 + $0x4b8] sm:$0xff] %vm5466, %v10050
  %11763 = vst.msk [vmem:[%s5 + $0x4c0] sm:$0xff] %vm5466, %v10065
  %11764 = vst.msk [vmem:[%s5 + $0x4c8] sm:$0xff] %vm5466, %v10080
  %11765 = vst.msk [vmem:[%s5 + $0x4d0] sm:$0xff] %vm5466, %v10095
  %11766 = vst.msk [vmem:[%s5 + $0x4d8] sm:$0xff] %vm5466, %v10110
  %11767 = vst.msk [vmem:[%s5 + $0x4e0] sm:$0xff] %vm5466, %v10125
  %11768 = vst.msk [vmem:[%s5 + $0x4e8] sm:$0xff] %vm5466, %v10140
  %11769 = vst.msk [vmem:[%s5 + $0x4f0] sm:$0xff] %vm5466, %v10155
  %11770 = vst.msk [vmem:[%s5 + $0x4f8] sm:$0xff] %vm5466, %v10170
  %11771 = vst.msk [vmem:[%s5 + $0x500] sm:$0xff] %vm5466, %v10185
  %11772 = vst.msk [vmem:[%s5 + $0x508] sm:$0xff] %vm5466, %v10200
  %11773 = vst.msk [vmem:[%s5 + $0x510] sm:$0xff] %vm5466, %v10215
  %11774 = vst.msk [vmem:[%s5 + $0x518] sm:$0xff] %vm5466, %v10230
  %11775 = vst.msk [vmem:[%s5 + $0x520] sm:$0xff] %vm5466, %v10245
  %11776 = vst.msk [vmem:[%s5 + $0x528] sm:$0xff] %vm5466, %v10260
  %11777 = vst.msk [vmem:[%s5 + $0x530] sm:$0xff] %vm5466, %v10275
  %11778 = vst.msk [vmem:[%s5 + $0x538] sm:$0xff] %vm5466, %v10290
  %11779 = vst.msk [vmem:[%s5 + $0x540] sm:$0xff] %vm5466, %v10305
  %11780 = vst.msk [vmem:[%s5 + $0x548] sm:$0xff] %vm5466, %v10320
  %11781 = vst.msk [vmem:[%s5 + $0x550] sm:$0xff] %vm5466, %v10335
  %11782 = vst.msk [vmem:[%s5 + $0x558] sm:$0xff] %vm5466, %v10350
  %11783 = vst.msk [vmem:[%s5 + $0x560] sm:$0xff] %vm5466, %v10365
  %11784 = vst.msk [vmem:[%s5 + $0x568] sm:$0xff] %vm5466, %v10380
  %11785 = vst.msk [vmem:[%s5 + $0x570] sm:$0xff] %vm5466, %v10395
  %11786 = vst.msk [vmem:[%s5 + $0x578] sm:$0xff] %vm5466, %v10410
  %11787 = vst.msk [vmem:[%s5 + $0x580] sm:$0xff] %vm5466, %v10425
  %11788 = vst.msk [vmem:[%s5 + $0x588] sm:$0xff] %vm5466, %v10440
  %11789 = vst.msk [vmem:[%s5 + $0x590] sm:$0xff] %vm5466, %v10455
  %11790 = vst.msk [vmem:[%s5 + $0x598] sm:$0xff] %vm5466, %v10470
  %11791 = vst.msk [vmem:[%s5 + $0x5a0] sm:$0xff] %vm5466, %v10485
  %11792 = vst.msk [vmem:[%s5 + $0x5a8] sm:$0xff] %vm5466, %v10500
  %11793 = vst.msk [vmem:[%s5 + $0x5b0] sm:$0xff] %vm5466, %v10515
  %11794 = vst.msk [vmem:[%s5 + $0x5b8] sm:$0xff] %vm5466, %v10530
  %11795 = vst.msk [vmem:[%s5 + $0x5c0] sm:$0xff] %vm5466, %v10545
  %11796 = vst.msk [vmem:[%s5 + $0x5c8] sm:$0xff] %vm5466, %v10560
  %11797 = vst.msk [vmem:[%s5 + $0x5d0] sm:$0xff] %vm5466, %v10575
  %11798 = vst.msk [vmem:[%s5 + $0x5d8] sm:$0xff] %vm5466, %v10590
  %11799 = vst.msk [vmem:[%s5 + $0x5e0] sm:$0xff] %vm5466, %v10605
  %11800 = vst.msk [vmem:[%s5 + $0x5e8] sm:$0xff] %vm5466, %v10620
  %11801 = vst.msk [vmem:[%s5 + $0x5f0] sm:$0xff] %vm5466, %v10635
  %11802 = vst.msk [vmem:[%s5 + $0x5f8] sm:$0xff] %vm5466, %v10650
  %11803 = vst.msk [vmem:[%s5 + $0x600] sm:$0xff] %vm5466, %v10665
  %11804 = vst.msk [vmem:[%s5 + $0x608] sm:$0xff] %vm5466, %v10680
  %11805 = vst.msk [vmem:[%s5 + $0x610] sm:$0xff] %vm5466, %v10695
  %11806 = vst.msk [vmem:[%s5 + $0x618] sm:$0xff] %vm5466, %v10710
  %11807 = vst.msk [vmem:[%s5 + $0x620] sm:$0xff] %vm5466, %v10725
  %11808 = vst.msk [vmem:[%s5 + $0x628] sm:$0xff] %vm5466, %v10740
  %11809 = vst.msk [vmem:[%s5 + $0x630] sm:$0xff] %vm5466, %v10755
  %11810 = vst.msk [vmem:[%s5 + $0x638] sm:$0xff] %vm5466, %v10770
  %11811 = vst.msk [vmem:[%s5 + $0x640] sm:$0xff] %vm5466, %v10785
  %11812 = vst.msk [vmem:[%s5 + $0x648] sm:$0xff] %vm5466, %v10800
  %11813 = vst.msk [vmem:[%s5 + $0x650] sm:$0xff] %vm5466, %v10815
  %11814 = vst.msk [vmem:[%s5 + $0x658] sm:$0xff] %vm5466, %v10830
  %11815 = vst.msk [vmem:[%s5 + $0x660] sm:$0xff] %vm5466, %v10845
  %11816 = vst.msk [vmem:[%s5 + $0x668] sm:$0xff] %vm5466, %v10860
  %11817 = vst.msk [vmem:[%s5 + $0x670] sm:$0xff] %vm5466, %v10875
  %11818 = vst.msk [vmem:[%s5 + $0x678] sm:$0xff] %vm5466, %v10890
  %11819 = vst.msk [vmem:[%s5 + $0x680] sm:$0xff] %vm5466, %v10905
  %11820 = vst.msk [vmem:[%s5 + $0x688] sm:$0xff] %vm5466, %v10920
  %11821 = vst.msk [vmem:[%s5 + $0x690] sm:$0xff] %vm5466, %v10935
  %11822 = vst.msk [vmem:[%s5 + $0x698] sm:$0xff] %vm5466, %v10950
  %11823 = vst.msk [vmem:[%s5 + $0x6a0] sm:$0xff] %vm5466, %v10965
  %11824 = vst.msk [vmem:[%s5 + $0x6a8] sm:$0xff] %vm5466, %v10980
  %11825 = vst.msk [vmem:[%s5 + $0x6b0] sm:$0xff] %vm5466, %v10995
  %11826 = vst.msk [vmem:[%s5 + $0x6b8] sm:$0xff] %vm5466, %v11010
  %11827 = vst.msk [vmem:[%s5 + $0x6c0] sm:$0xff] %vm5466, %v11025
  %11828 = vst.msk [vmem:[%s5 + $0x6c8] sm:$0xff] %vm5466, %v11040
  %11829 = vst.msk [vmem:[%s5 + $0x6d0] sm:$0xff] %vm5466, %v11055
  %11830 = vst.msk [vmem:[%s5 + $0x6d8] sm:$0xff] %vm5466, %v11070
  %11831 = vst.msk [vmem:[%s5 + $0x6e0] sm:$0xff] %vm5466, %v11085
  %11832 = vst.msk [vmem:[%s5 + $0x6e8] sm:$0xff] %vm5466, %v11100
  %11833 = vst.msk [vmem:[%s5 + $0x6f0] sm:$0xff] %vm5466, %v11115
  %11834 = vst.msk [vmem:[%s5 + $0x6f8] sm:$0xff] %vm5466, %v11130
  %11835 = vst.msk [vmem:[%s5 + $0x700] sm:$0xff] %vm5466, %v11145
  %11836 = vst.msk [vmem:[%s5 + $0x708] sm:$0xff] %vm5466, %v11160
  %11837 = vst.msk [vmem:[%s5 + $0x710] sm:$0xff] %vm5466, %v11175
  %11838 = vst.msk [vmem:[%s5 + $0x718] sm:$0xff] %vm5466, %v11190
  %11839 = vst.msk [vmem:[%s5 + $0x720] sm:$0xff] %vm5466, %v11205
  %11840 = vst.msk [vmem:[%s5 + $0x728] sm:$0xff] %vm5466, %v11220
  %11841 = vst.msk [vmem:[%s5 + $0x730] sm:$0xff] %vm5466, %v11235
  %11842 = vst.msk [vmem:[%s5 + $0x738] sm:$0xff] %vm5466, %v11250
  %11843 = vst.msk [vmem:[%s5 + $0x740] sm:$0xff] %vm5466, %v11265
  %11844 = vst.msk [vmem:[%s5 + $0x748] sm:$0xff] %vm5466, %v11280
  %11845 = vst.msk [vmem:[%s5 + $0x750] sm:$0xff] %vm5466, %v11295
  %11846 = vst.msk [vmem:[%s5 + $0x758] sm:$0xff] %vm5466, %v11310
  %11847 = vst.msk [vmem:[%s5 + $0x760] sm:$0xff] %vm5466, %v11325
  %11848 = vst.msk [vmem:[%s5 + $0x768] sm:$0xff] %vm5466, %v11340
  %11849 = vst.msk [vmem:[%s5 + $0x770] sm:$0xff] %vm5466, %v11355
  %11850 = vst.msk [vmem:[%s5 + $0x778] sm:$0xff] %vm5466, %v11370
  %11851 = vst.msk [vmem:[%s5 + $0x780] sm:$0xff] %vm5466, %v11385
  %11852 = vst.msk [vmem:[%s5 + $0x788] sm:$0xff] %vm5466, %v11400
  %11853 = vst.msk [vmem:[%s5 + $0x790] sm:$0xff] %vm5466, %v11415
  %11854 = vst.msk [vmem:[%s5 + $0x798] sm:$0xff] %vm5466, %v11430
  %11855 = vst.msk [vmem:[%s5 + $0x7a0] sm:$0xff] %vm5466, %v11445
  %11856 = vst.msk [vmem:[%s5 + $0x7a8] sm:$0xff] %vm5466, %v11460
  %11857 = vst.msk [vmem:[%s5 + $0x7b0] sm:$0xff] %vm5466, %v11475
  %11858 = vst.msk [vmem:[%s5 + $0x7b8] sm:$0xff] %vm5466, %v11490
  %11859 = vst.msk [vmem:[%s5 + $0x7c0] sm:$0xff] %vm5466, %v11505
  %11860 = vst.msk [vmem:[%s5 + $0x7c8] sm:$0xff] %vm5466, %v11520
  %11861 = vst.msk [vmem:[%s5 + $0x7d0] sm:$0xff] %vm5466, %v11535
  %11862 = vst.msk [vmem:[%s5 + $0x7d8] sm:$0xff] %vm5466, %v11550
  %11863 = vst.msk [vmem:[%s5 + $0x7e0] sm:$0xff] %vm5466, %v11565
  %11864 = vst.msk [vmem:[%s5 + $0x7e8] sm:$0xff] %vm5466, %v11580
  %11865 = vst.msk [vmem:[%s5 + $0x7f0] sm:$0xff] %vm5466, %v11595
  %11866 = vst.msk [vmem:[%s5 + $0x7f8] sm:$0xff] %vm5466, %v11610
  // Predicated region
  $region22: #{tpu_custom_call.1} parent=0 // pred_check
    _
  $region23: #{tpu_custom_call.1} parent=0 // pred_check_branch
    %11868 = sbr.rel (0) target = $region25
  $region24: #{tpu_custom_call.1} parent=0 // pred_region
    _
  $region25: #{tpu_custom_call.1} parent=0 // pred_fallthru
    _
  // Predicated region
  $region26: #{tpu_custom_call.1} parent=0 // pred_check
    _
  $region27: #{tpu_custom_call.1} parent=0 // pred_check_branch
    %11870 = sbr.rel (0) target = $region29
  $region28: #{tpu_custom_call.1} parent=0 // pred_region
    _
  $region29: #{tpu_custom_call.1} parent=0 // pred_fallthru
    _

</llo_original>
